<compile_context>
chip_gen: v5e
topology: v5e:2x2
jax: 0.10.0
libtpu: 0.0.40
codegen_flags: <defaults>
</compile_context>

<pallas_src>
import functools

import jax
import jax.numpy as jnp
from jax.experimental import pallas as pl
from jax.experimental.pallas import tpu as pltpu

# Feature sizes hard-coded by the PyTorch module
IMG_FEAT = 2048          # EfficientNet-b5 extract_features channel count
BERT_HIDDEN = 768        # bert-base-uncased hidden size
JOINT_SPACE = 128        # joint_space
BN_EPS = 1e-5
L2_EPS = 1e-12
VOCAB = 1000
SUBLANE = 8


def _round_up(x, m):
    return ((x + m - 1) // m) * m


def _pick_tile(total, candidates):
    for c in candidates:
        if total % c == 0:
            return c
    return total                     # full extent (always a legal block)


def _full_spec(shape):
    nd = len(shape)
    return pl.BlockSpec(shape, lambda *args, _nd=nd: (0,) * _nd)


def _compiler_params():
    return pltpu.CompilerParams(
        dimension_semantics=("arbitrary",),          # reduction axis carries scratch
        vmem_limit_bytes=32 * 1024 * 1024,           # explicit limit (v5e default is 16 MiB)
    )


# ---------------------------------------------------------------------------
# Shared projector tail: fc2(BatchNorm1d(relu(fc1(x)))) -> L2 normalize
# ---------------------------------------------------------------------------
def _projector_compute(x, w1, b1, gamma, beta, w2, b2, batch_real):
    # fc1 on the MXU (bf16 operands, f32 accumulation) + ReLU
    h = jnp.dot(x.astype(jnp.bfloat16), w1,
                preferred_element_type=jnp.float32) + b1
    h = jnp.maximum(h, 0.0)
    # BatchNorm1d (training mode): batch statistics over the REAL batch rows only
    # (trailing rows are sublane padding and must not perturb mean/var).
    valid = (jax.lax.broadcasted_iota(jnp.int32, (h.shape[0], 1), 0)
             < batch_real).astype(jnp.float32)
    inv_n = 1.0 / float(batch_real)
    mean = jnp.sum(h * valid, axis=0, keepdims=True) * inv_n
    centered = h - mean
    var = jnp.sum(centered * centered * valid, axis=0, keepdims=True) * inv_n
    h = centered * jax.lax.rsqrt(var + BN_EPS) * gamma + beta
    # fc2
    y = jnp.dot(h, w2, preferred_element_type=jnp.float32) + b2
    # L2 normalize: rsqrt runs on the EUP; eps guards the all-zero-row case.
    return y * jax.lax.rsqrt(jnp.sum(y * y, axis=1, keepdims=True) + L2_EPS)


# ---------------------------------------------------------------------------
# Fused image encoder (+ AdaptiveAvgPool2d(1) + flatten) + image projector
# ---------------------------------------------------------------------------
def _image_fused_kernel(batch_real, hw_total,
                        x_ref, cw_ref, cb_ref, pool_ref,
                        w1_ref, b1_ref, g_ref, be_ref, w2_ref, b2_ref,
                        out_ref, acc_ref):
    t = pl.program_id(0)

    @pl.when(t == 0)
    def _init():
        acc_ref[...] = jnp.zeros_like(acc_ref)

    # TODO(synk): pretrained EfficientNet-b5 backbone has no Pallas equivalent;
    # replaced by a deterministic 1x1-conv + ReLU stand-in producing 2048 channels.
    # Rows of x are ordered pixel-major / batch-minor: row = p * B_pad + b.
    x2 = x_ref[...].astype(jnp.bfloat16)                       # (T*B_pad, C_pad)
    feat = jnp.dot(x2, cw_ref[...], preferred_element_type=jnp.float32)
    feat = jnp.maximum(feat + cb_ref[...], 0.0)                # (T*B_pad, 2048)
    # Per-batch spatial sum as a 0/1 pooling-matrix matmul (rank-2, on the MXU).
    acc_ref[...] += jnp.dot(pool_ref[...], feat, preferred_element_type=jnp.float32)

    @pl.when(t == pl.num_programs(0) - 1)
    def _finish():
        emb = acc_ref[...] * (1.0 / float(hw_total))           # AdaptiveAvgPool2d(1)+flatten
        out_ref[...] = _projector_compute(
            emb, w1_ref[...], b1_ref[...], g_ref[...], be_ref[...],
            w2_ref[...], b2_ref[...], batch_real)


def image_encode_project(images_nchw, conv_w, conv_b, proj):
    B, C, H, W = images_nchw.shape
    hw = H * W
    b_pad = _round_up(max(B, SUBLANE), SUBLANE)
    c_pad = conv_w.shape[0]                                    # already sublane-padded
    tile_hw = _pick_tile(hw, (64, 32, 16, 8))

    # Layout: pixel-major rows, padded channels -> (hw * b_pad, c_pad), zeros in pads.
    x = jnp.transpose(images_nchw, (2, 3, 0, 1)).reshape(hw, B, C)
    x = jnp.pad(x, ((0, 0), (0, b_pad - B), (0, c_pad - C)))
    x = x.reshape(hw * b_pad, c_pad)

    # pool[b, r] = 1 iff flattened row r belongs to batch element b.
    pool = (jnp.arange(b_pad)[:, None]
            == (jnp.arange(tile_hw * b_pad)[None, :] % b_pad)).astype(jnp.float32)

    w1, b1, gamma, beta, w2, b2 = proj
    kernel = functools.partial(_image_fused_kernel, B, hw)

    out = pl.pallas_call(
        kernel,
        out_shape=jax.ShapeDtypeStruct((b_pad, JOINT_SPACE), jnp.float32),
        grid_spec=pltpu.PrefetchScalarGridSpec(
            num_scalar_prefetch=0,
            grid=(hw // tile_hw,),
            in_specs=[
                pl.BlockSpec((tile_hw * b_pad, c_pad), lambda t: (t, 0)),
                _full_spec(conv_w.shape),
                _full_spec(conv_b.shape),
                _full_spec(pool.shape),
                _full_spec(w1.shape), _full_spec(b1.shape),
                _full_spec(gamma.shape), _full_spec(beta.shape),
                _full_spec(w2.shape), _full_spec(b2.shape),
            ],
            out_specs=pl.BlockSpec((b_pad, JOINT_SPACE), lambda t: (0, 0)),
            scratch_shapes=[pltpu.VMEM((b_pad, IMG_FEAT), jnp.float32)],
        ),
        compiler_params=_compiler_params(),
    )(x, conv_w, conv_b, pool, w1, b1, gamma, beta, w2, b2)
    return out[:B]


# ---------------------------------------------------------------------------
# Fused sentence pooling (token0 / max / mean) + sentence projector
# ---------------------------------------------------------------------------
def _sentence_fused_kernel(batch_real, seq_total,
                           h_ref, w1_ref, b1_ref, g_ref, be_ref, w2_ref, b2_ref,
                           out_ref, tok0_ref, max_ref, sum_ref):
    s = pl.program_id(0)

    @pl.when(s == 0)
    def _init():
        tok0_ref[...] = h_ref[:, 0, :]                          # hidden[:, 0, :]
        max_ref[...] = jnp.full(max_ref.shape, -jnp.inf, jnp.float32)
        sum_ref[...] = jnp.zeros_like(sum_ref)

    h = h_ref[...]                                              # (B_pad, T_s, 768)
    max_ref[...] = jnp.maximum(max_ref[...], jnp.max(h, axis=1))
    sum_ref[...] = sum_ref[...] + jnp.sum(h, axis=1)

    @pl.when(s == pl.num_programs(0) - 1)
    def _finish():
        pooled = jnp.concatenate(
            [tok0_ref[...], max_ref[...], sum_ref[...] * (1.0 / float(seq_total))],
            axis=1)                                             # (B_pad, 2304)
        out_ref[...] = _projector_compute(
            pooled, w1_ref[...], b1_ref[...], g_ref[...], be_ref[...],
            w2_ref[...], b2_ref[...], batch_real)


def sentence_encode_project(hidden, proj):
    B, S, Hd = hidden.shape
    b_pad = _round_up(max(B, SUBLANE), SUBLANE)
    tile_s = _pick_tile(S, (128, 64, 32, 16, 8))
    h = jnp.pad(hidden, ((0, b_pad - B), (0, 0), (0, 0)))

    w1, b1, gamma, beta, w2, b2 = proj
    kernel = functools.partial(_sentence_fused_kernel, B, S)

    out = pl.pallas_call(
        kernel,
        out_shape=jax.ShapeDtypeStruct((b_pad, JOINT_SPACE), jnp.float32),
        grid_spec=pltpu.PrefetchScalarGridSpec(
            num_scalar_prefetch=0,
            grid=(S // tile_s,),
            in_specs=[
                pl.BlockSpec((b_pad, tile_s, Hd), lambda t: (0, t, 0)),
                _full_spec(w1.shape), _full_spec(b1.shape),
                _full_spec(gamma.shape), _full_spec(beta.shape),
                _full_spec(w2.shape), _full_spec(b2.shape),
            ],
            out_specs=pl.BlockSpec((b_pad, JOINT_SPACE), lambda t: (0, 0)),
            scratch_shapes=[
                pltpu.VMEM((b_pad, Hd), jnp.float32),           # token-0 state
                pltpu.VMEM((b_pad, Hd), jnp.float32),           # running max
                pltpu.VMEM((b_pad, Hd), jnp.float32),           # running sum
            ],
        ),
        compiler_params=_compiler_params(),
    )(h, w1, b1, gamma, beta, w2, b2)
    return out[:B]


# ---------------------------------------------------------------------------
# Parameter init (deterministic, synthetic) and full forward
# ---------------------------------------------------------------------------
def init_projector_params(key, in_dim, joint):
    k1, k2, k3, k4 = jax.random.split(key, 4)
    w1 = (jax.random.normal(k1, (in_dim, joint), jnp.float32)
          / jnp.sqrt(float(in_dim))).astype(jnp.bfloat16)       # fc1 weight kept bf16 for MXU
    b1 = jax.random.normal(k2, (1, joint), jnp.float32) * 0.01
    gamma = jnp.ones((1, joint), jnp.float32)                   # BatchNorm1d default weight
    beta = jnp.zeros((1, joint), jnp.float32)                   # BatchNorm1d default bias
    w2 = jax.random.normal(k3, (joint, joint), jnp.float32) / jnp.sqrt(float(joint))
    b2 = jax.random.normal(k4, (1, joint), jnp.float32) * 0.01
    return (w1, b1, gamma, beta, w2, b2)


def init_params(key, img_in_channels):
    k1, k2, k3, k4, k5 = jax.random.split(key, 5)
    c_pad = _round_up(img_in_channels, SUBLANE)
    conv_w = jax.random.normal(k1, (img_in_channels, IMG_FEAT), jnp.float32) * 0.1
    conv_w = jnp.pad(conv_w, ((0, c_pad - img_in_channels), (0, 0))).astype(jnp.bfloat16)
    return {
        "img_w": conv_w,                                        # (C_pad, 2048) bf16, zero pad rows
        "img_b": jax.random.normal(k2, (1, IMG_FEAT), jnp.float32) * 0.01,
        # TODO(synk): pretrained BERT backbone has no Pallas equivalent; replaced by
        # a deterministic token-embedding-table stand-in.
        "bert_embed": jax.random.normal(k3, (VOCAB, BERT_HIDDEN), jnp.float32) * 0.1,
        "img_proj": init_projector_params(k4, IMG_FEAT, JOINT_SPACE),
        "sent_proj": init_projector_params(k5, 3 * BERT_HIDDEN, JOINT_SPACE),
    }


@jax.jit
def image_text_matching_forward(images, sentences, params):
    # BERT stand-in: embedding lookup (gather glue stays in plain JAX/XLA).
    hidden = jnp.take(params["bert_embed"], sentences, axis=0)          # (B, S, 768)
    proj_images = image_encode_project(images, params["img_w"],
                                       params["img_b"], params["img_proj"])
    proj_sentences = sentence_encode_project(hidden, params["sent_proj"])
    return proj_images, proj_sentences


if __name__ == "__main__":
    key = jax.random.PRNGKey(0)
    k_img, k_tok, k_par = jax.random.split(key, 3)

    B, C, H, W, S = 2, 3, 16, 16, 8
    images = jax.random.normal(k_img, (B, C, H, W), jnp.float32)        # NCHW like PyTorch
    sentences = jax.random.randint(k_tok, (B, S), 0, VOCAB, jnp.int32)  # token ids

    params = init_params(k_par, C)

    img_emb, sent_emb = image_text_matching_forward(images, sentences, params)
    jax.block_until_ready((img_emb, sent_emb))

    assert img_emb.shape == (B, JOINT_SPACE) and sent_emb.shape == (B, JOINT_SPACE)
    assert bool(jnp.all(jnp.isfinite(img_emb))) and bool(jnp.all(jnp.isfinite(sent_emb)))
    # Projector output is L2-normalized along dim 1
    assert bool(jnp.allclose(jnp.sum(img_emb * img_emb, axis=1), 1.0, atol=1e-4))
    assert bool(jnp.allclose(jnp.sum(sent_emb * sent_emb, axis=1), 1.0, atol=1e-4))

    print("KERNEL_OK")
</pallas_src>

<mosaic_0001>
module attributes {stable_mosaic.version = 11 : i64} {
  func.func @_sentence_fused_kernel(%arg0: i32, %arg1: memref<8x8x768xf32, #tpu.memory_space<vmem>>, %arg2: memref<2304x128xbf16, #tpu.memory_space<vmem>>, %arg3: memref<1x128xf32, #tpu.memory_space<vmem>>, %arg4: memref<1x128xf32, #tpu.memory_space<vmem>>, %arg5: memref<1x128xf32, #tpu.memory_space<vmem>>, %arg6: memref<128x128xf32, #tpu.memory_space<vmem>>, %arg7: memref<1x128xf32, #tpu.memory_space<vmem>>, %arg8: memref<8x128xf32, #tpu.memory_space<vmem>>, %arg9: memref<8x768xf32, #tpu.memory_space<vmem>>, %arg10: memref<8x768xf32, #tpu.memory_space<vmem>>, %arg11: memref<8x768xf32, #tpu.memory_space<vmem>>) attributes {dimension_semantics = [#tpu.dimension_semantics<arbitrary>], iteration_bounds = array<i64: 1>, scalar_prefetch = 0 : i64, scratch_operands = 3 : i64, tpu.core_type = #tpu.core_type<tc>, window_params = [{transform_indices = @transform_0, window_bounds = array<i64: 8, 8, 768>}, {pipeline_mode = #tpu.pipeline_mode<synchronous>, transform_indices = @transform_1, window_bounds = array<i64: 2304, 128>}, {pipeline_mode = #tpu.pipeline_mode<synchronous>, transform_indices = @transform_2, window_bounds = array<i64: 1, 128>}, {pipeline_mode = #tpu.pipeline_mode<synchronous>, transform_indices = @transform_3, window_bounds = array<i64: 1, 128>}, {pipeline_mode = #tpu.pipeline_mode<synchronous>, transform_indices = @transform_4, window_bounds = array<i64: 1, 128>}, {pipeline_mode = #tpu.pipeline_mode<synchronous>, transform_indices = @transform_5, window_bounds = array<i64: 128, 128>}, {pipeline_mode = #tpu.pipeline_mode<synchronous>, transform_indices = @transform_6, window_bounds = array<i64: 1, 128>}, {pipeline_mode = #tpu.pipeline_mode<synchronous>, transform_indices = @transform_7, window_bounds = array<i64: 8, 128>}]} {
    %c0_i32 = arith.constant 0 : i32
    %0 = arith.cmpi eq, %arg0, %c0_i32 : i32
    %1 = arith.extui %0 : i1 to i32
    %c0_i32_0 = arith.constant 0 : i32
    %2 = arith.cmpi ne, %1, %c0_i32_0 : i32
    scf.if %2 {
      %c0_14 = arith.constant 0 : index
      %c0_15 = arith.constant 0 : index
      %c0_16 = arith.constant 0 : index
      %15 = vector.load %arg1[%c0_14, %c0_15, %c0_16] : memref<8x8x768xf32, #tpu.memory_space<vmem>>, vector<8x1x768xf32>
      %16 = vector.shape_cast %15 : vector<8x1x768xf32> to vector<8x768xf32>
      %c0_17 = arith.constant 0 : index
      %c0_18 = arith.constant 0 : index
      %17 = vector.load %arg9[%c0_17, %c0_18] : memref<8x768xf32, #tpu.memory_space<vmem>>, vector<8x768xf32>
      tpu.vector_store %arg9[%c0_17, %c0_18], %16 {strides = array<i32>} : memref<8x768xf32, #tpu.memory_space<vmem>>, vector<8x768xf32>,
      %cst_19 = arith.constant 0xFF800000 : f32
      %18 = vector.broadcast %cst_19 : f32 to vector<8x768xf32>
      %c0_20 = arith.constant 0 : index
      %c0_21 = arith.constant 0 : index
      %19 = vector.load %arg10[%c0_20, %c0_21] : memref<8x768xf32, #tpu.memory_space<vmem>>, vector<8x768xf32>
      tpu.vector_store %arg10[%c0_20, %c0_21], %18 {strides = array<i32>} : memref<8x768xf32, #tpu.memory_space<vmem>>, vector<8x768xf32>,
      %cst_22 = arith.constant 0.000000e+00 : f32
      %20 = vector.broadcast %cst_22 : f32 to vector<8x768xf32>
      %c0_23 = arith.constant 0 : index
      %c0_24 = arith.constant 0 : index
      %21 = vector.load %arg11[%c0_23, %c0_24] : memref<8x768xf32, #tpu.memory_space<vmem>>, vector<8x768xf32>
      tpu.vector_store %arg11[%c0_23, %c0_24], %20 {strides = array<i32>} : memref<8x768xf32, #tpu.memory_space<vmem>>, vector<8x768xf32>,
    } else {
    }
    %c0 = arith.constant 0 : index
    %c0_1 = arith.constant 0 : index
    %c0_2 = arith.constant 0 : index
    %3 = vector.load %arg1[%c0, %c0_1, %c0_2] : memref<8x8x768xf32, #tpu.memory_space<vmem>>, vector<8x8x768xf32>
    %c0_3 = arith.constant 0 : index
    %c0_4 = arith.constant 0 : index
    %4 = vector.load %arg10[%c0_3, %c0_4] : memref<8x768xf32, #tpu.memory_space<vmem>>, vector<8x768xf32>
    %cst = arith.constant dense<0xFF800000> : vector<8x768xf32>
    %5 = vector.multi_reduction <maximumf>, %3, %cst [1] : vector<8x8x768xf32> to vector<8x768xf32>
    %6 = arith.maximumf %4, %5 : vector<8x768xf32>
    %c0_5 = arith.constant 0 : index
    %c0_6 = arith.constant 0 : index
    %7 = vector.load %arg10[%c0_5, %c0_6] : memref<8x768xf32, #tpu.memory_space<vmem>>, vector<8x768xf32>
    tpu.vector_store %arg10[%c0_5, %c0_6], %6 {strides = array<i32>} : memref<8x768xf32, #tpu.memory_space<vmem>>, vector<8x768xf32>,
    %c0_7 = arith.constant 0 : index
    %c0_8 = arith.constant 0 : index
    %8 = vector.load %arg11[%c0_7, %c0_8] : memref<8x768xf32, #tpu.memory_space<vmem>>, vector<8x768xf32>
    %cst_9 = arith.constant dense<0.000000e+00> : vector<8x768xf32>
    %9 = vector.multi_reduction <add>, %3, %cst_9 [1] : vector<8x8x768xf32> to vector<8x768xf32>
    %10 = arith.addf %8, %9 : vector<8x768xf32>
    %c0_10 = arith.constant 0 : index
    %c0_11 = arith.constant 0 : index
    %11 = vector.load %arg11[%c0_10, %c0_11] : memref<8x768xf32, #tpu.memory_space<vmem>>, vector<8x768xf32>
    tpu.vector_store %arg11[%c0_10, %c0_11], %10 {strides = array<i32>} : memref<8x768xf32, #tpu.memory_space<vmem>>, vector<8x768xf32>,
    %c0_i32_12 = arith.constant 0 : i32
    %12 = arith.cmpi eq, %arg0, %c0_i32_12 : i32
    %13 = arith.extui %12 : i1 to i32
    %c0_i32_13 = arith.constant 0 : i32
    %14 = arith.cmpi ne, %13, %c0_i32_13 : i32
    scf.if %14 {
      %c0_14 = arith.constant 0 : index
      %c0_15 = arith.constant 0 : index
      %15 = vector.load %arg9[%c0_14, %c0_15] : memref<8x768xf32, #tpu.memory_space<vmem>>, vector<8x768xf32>
      %c0_16 = arith.constant 0 : index
      %c0_17 = arith.constant 0 : index
      %16 = vector.load %arg10[%c0_16, %c0_17] : memref<8x768xf32, #tpu.memory_space<vmem>>, vector<8x768xf32>
      %c0_18 = arith.constant 0 : index
      %c0_19 = arith.constant 0 : index
      %17 = vector.load %arg11[%c0_18, %c0_19] : memref<8x768xf32, #tpu.memory_space<vmem>>, vector<8x768xf32>
      %cst_20 = arith.constant 1.250000e-01 : f32
      %18 = vector.broadcast %cst_20 : f32 to vector<8x768xf32>
      %19 = arith.mulf %17, %18 : vector<8x768xf32>
      %20 = tpu.concatenate %15, %16, %19 in 1 : vector<8x768xf32>, vector<8x768xf32>, vector<8x768xf32> -> vector<8x2304xf32>
      %c0_21 = arith.constant 0 : index
      %c0_22 = arith.constant 0 : index
      %21 = vector.load %arg2[%c0_21, %c0_22] : memref<2304x128xbf16, #tpu.memory_space<vmem>>, vector<2304x128xbf16>
      %c0_23 = arith.constant 0 : index
      %c0_24 = arith.constant 0 : index
      %22 = vector.load %arg3[%c0_23, %c0_24] : memref<1x128xf32, #tpu.memory_space<vmem>>, vector<1x128xf32>
      %c0_25 = arith.constant 0 : index
      %c0_26 = arith.constant 0 : index
      %23 = vector.load %arg4[%c0_25, %c0_26] : memref<1x128xf32, #tpu.memory_space<vmem>>, vector<1x128xf32>
      %c0_27 = arith.constant 0 : index
      %c0_28 = arith.constant 0 : index
      %24 = vector.load %arg5[%c0_27, %c0_28] : memref<1x128xf32, #tpu.memory_space<vmem>>, vector<1x128xf32>
      %c0_29 = arith.constant 0 : index
      %c0_30 = arith.constant 0 : index
      %25 = vector.load %arg6[%c0_29, %c0_30] : memref<128x128xf32, #tpu.memory_space<vmem>>, vector<128x128xf32>
      %c0_31 = arith.constant 0 : index
      %c0_32 = arith.constant 0 : index
      %26 = vector.load %arg7[%c0_31, %c0_32] : memref<1x128xf32, #tpu.memory_space<vmem>>, vector<1x128xf32>
      %27 = arith.truncf %20 : vector<8x2304xf32> to vector<8x2304xbf16>
      %cst_33 = arith.constant dense<0.000000e+00> : vector<8x128xf32>
      %28 = tpu.matmul %27, %21, %cst_33 {dimension_numbers = #tpu.dot_dimension_numbers<[1], [0], [0], [1], [0, 0, 1, 1], [], []>} : vector<8x2304xbf16>, vector<2304x128xbf16>, vector<8x128xf32> -> vector<8x128xf32>
      %29 = vector.broadcast %22 : vector<1x128xf32> to vector<8x128xf32>
      %30 = arith.addf %28, %29 : vector<8x128xf32>
      %cst_34 = arith.constant 0.000000e+00 : f32
      %31 = vector.broadcast %cst_34 : f32 to vector<8x128xf32>
      %32 = arith.maximumf %30, %31 : vector<8x128xf32>
      %33 = tpu.iota {dimensions = array<i32: 0>} : vector<8x1xi32>
      %c2_i32 = arith.constant 2 : i32
      %34 = vector.broadcast %c2_i32 : i32 to vector<8x1xi32>
      %35 = arith.cmpi slt, %33, %34 : vector<8x1xi32>
      %36 = arith.extui %35 : vector<8x1xi1> to vector<8x1xi32>
      %37 = arith.sitofp %36 : vector<8x1xi32> to vector<8x1xf32>
      %38 = vector.broadcast %37 : vector<8x1xf32> to vector<8x128xf32>
      %39 = arith.mulf %32, %38 : vector<8x128xf32>
      %cst_35 = arith.constant dense<0.000000e+00> : vector<128xf32>
      %40 = vector.multi_reduction <add>, %39, %cst_35 [0] : vector<8x128xf32> to vector<128xf32>
      %41 = vector.shape_cast %40 : vector<128xf32> to vector<1x128xf32>
      %cst_36 = arith.constant 5.000000e-01 : f32
      %42 = vector.broadcast %cst_36 : f32 to vector<1x128xf32>
      %43 = arith.mulf %41, %42 : vector<1x128xf32>
      %44 = vector.broadcast %43 : vector<1x128xf32> to vector<8x128xf32>
      %45 = arith.subf %32, %44 : vector<8x128xf32>
      %46 = arith.mulf %45, %45 : vector<8x128xf32>
      %47 = vector.broadcast %37 : vector<8x1xf32> to vector<8x128xf32>
      %48 = arith.mulf %46, %47 : vector<8x128xf32>
      %cst_37 = arith.constant dense<0.000000e+00> : vector<128xf32>
      %49 = vector.multi_reduction <add>, %48, %cst_37 [0] : vector<8x128xf32> to vector<128xf32>
      %50 = vector.shape_cast %49 : vector<128xf32> to vector<1x128xf32>
      %cst_38 = arith.constant 5.000000e-01 : f32
      %51 = vector.broadcast %cst_38 : f32 to vector<1x128xf32>
      %52 = arith.mulf %50, %51 : vector<1x128xf32>
      %cst_39 = arith.constant 9.99999974E-6 : f32
      %53 = vector.broadcast %cst_39 : f32 to vector<1x128xf32>
      %54 = arith.addf %52, %53 : vector<1x128xf32>
      %55 = math.rsqrt %54 : vector<1x128xf32>
      %56 = vector.broadcast %55 : vector<1x128xf32> to vector<8x128xf32>
      %57 = arith.mulf %45, %56 : vector<8x128xf32>
      %58 = vector.broadcast %23 : vector<1x128xf32> to vector<8x128xf32>
      %59 = arith.mulf %57, %58 : vector<8x128xf32>
      %60 = vector.broadcast %24 : vector<1x128xf32> to vector<8x128xf32>
      %61 = arith.addf %59, %60 : vector<8x128xf32>
      %cst_40 = arith.constant dense<0.000000e+00> : vector<8x128xf32>
      %62 = tpu.matmul %61, %25, %cst_40 {dimension_numbers = #tpu.dot_dimension_numbers<[1], [0], [0], [1], [0, 0, 1, 1], [], []>} : vector<8x128xf32>, vector<128x128xf32>, vector<8x128xf32> -> vector<8x128xf32>
      %63 = vector.broadcast %26 : vector<1x128xf32> to vector<8x128xf32>
      %64 = arith.addf %62, %63 : vector<8x128xf32>
      %65 = arith.mulf %64, %64 : vector<8x128xf32>
      %cst_41 = arith.constant dense<0.000000e+00> : vector<8xf32>
      %66 = vector.multi_reduction <add>, %65, %cst_41 [1] : vector<8x128xf32> to vector<8xf32>
      %67 = vector.shape_cast %66 : vector<8xf32> to vector<8x1xf32>
      %cst_42 = arith.constant 9.99999996E-13 : f32
      %68 = vector.broadcast %cst_42 : f32 to vector<8x1xf32>
      %69 = arith.addf %67, %68 : vector<8x1xf32>
      %70 = math.rsqrt %69 : vector<8x1xf32>
      %71 = vector.broadcast %70 : vector<8x1xf32> to vector<8x128xf32>
      %72 = arith.mulf %64, %71 : vector<8x128xf32>
      %c0_43 = arith.constant 0 : index
      %c0_44 = arith.constant 0 : index
      %73 = vector.load %arg8[%c0_43, %c0_44] : memref<8x128xf32, #tpu.memory_space<vmem>>, vector<8x128xf32>
      tpu.vector_store %arg8[%c0_43, %c0_44], %72 {strides = array<i32>} : memref<8x128xf32, #tpu.memory_space<vmem>>, vector<8x128xf32>,
    } else {
    }
    return
  }
  func.func @transform_0(%arg0: i32) -> (i32, i32, i32) {
    %c0_i32 = arith.constant 0 : i32
    %c0_i32_0 = arith.constant 0 : i32
    %c0_i32_1 = arith.constant 0 : i32
    return %c0_i32, %arg0, %c0_i32_0 : i32, i32, i32
  }
  func.func @transform_1(%arg0: i32) -> (i32, i32) {
    %c0_i32 = arith.constant 0 : i32
    %c0_i32_0 = arith.constant 0 : i32
    %c0_i32_1 = arith.constant 0 : i32
    return %c0_i32, %c0_i32_0 : i32, i32
  }
  func.func @transform_2(%arg0: i32) -> (i32, i32) {
    %c0_i32 = arith.constant 0 : i32
    %c0_i32_0 = arith.constant 0 : i32
    %c0_i32_1 = arith.constant 0 : i32
    return %c0_i32, %c0_i32_0 : i32, i32
  }
  func.func @transform_3(%arg0: i32) -> (i32, i32) {
    %c0_i32 = arith.constant 0 : i32
    %c0_i32_0 = arith.constant 0 : i32
    %c0_i32_1 = arith.constant 0 : i32
    return %c0_i32, %c0_i32_0 : i32, i32
  }
  func.func @transform_4(%arg0: i32) -> (i32, i32) {
    %c0_i32 = arith.constant 0 : i32
    %c0_i32_0 = arith.constant 0 : i32
    %c0_i32_1 = arith.constant 0 : i32
    return %c0_i32, %c0_i32_0 : i32, i32
  }
  func.func @transform_5(%arg0: i32) -> (i32, i32) {
    %c0_i32 = arith.constant 0 : i32
    %c0_i32_0 = arith.constant 0 : i32
    %c0_i32_1 = arith.constant 0 : i32
    return %c0_i32, %c0_i32_0 : i32, i32
  }
  func.func @transform_6(%arg0: i32) -> (i32, i32) {
    %c0_i32 = arith.constant 0 : i32
    %c0_i32_0 = arith.constant 0 : i32
    %c0_i32_1 = arith.constant 0 : i32
    return %c0_i32, %c0_i32_0 : i32, i32
  }
  func.func @transform_7(%arg0: i32) -> (i32, i32) {
    %c0_i32 = arith.constant 0 : i32
    %c0_i32_0 = arith.constant 0 : i32
    %c0_i32_1 = arith.constant 0 : i32
    return %c0_i32, %c0_i32_0 : i32, i32
  }
}

module attributes {stable_mosaic.version = 11 : i64} {
  func.func @_image_fused_kernel(%arg0: i32, %arg1: memref<512x8xf32, #tpu.memory_space<vmem>>, %arg2: memref<8x2048xbf16, #tpu.memory_space<vmem>>, %arg3: memref<1x2048xf32, #tpu.memory_space<vmem>>, %arg4: memref<8x512xf32, #tpu.memory_space<vmem>>, %arg5: memref<2048x128xbf16, #tpu.memory_space<vmem>>, %arg6: memref<1x128xf32, #tpu.memory_space<vmem>>, %arg7: memref<1x128xf32, #tpu.memory_space<vmem>>, %arg8: memref<1x128xf32, #tpu.memory_space<vmem>>, %arg9: memref<128x128xf32, #tpu.memory_space<vmem>>, %arg10: memref<1x128xf32, #tpu.memory_space<vmem>>, %arg11: memref<8x128xf32, #tpu.memory_space<vmem>>, %arg12: memref<8x2048xf32, #tpu.memory_space<vmem>>) attributes {dimension_semantics = [#tpu.dimension_semantics<arbitrary>], iteration_bounds = array<i64: 4>, scalar_prefetch = 0 : i64, scratch_operands = 1 : i64, tpu.core_type = #tpu.core_type<tc>, window_params = [{transform_indices = @transform_0, window_bounds = array<i64: 512, 8>}, {pipeline_mode = #tpu.pipeline_mode<synchronous>, transform_indices = @transform_1, window_bounds = array<i64: 8, 2048>}, {pipeline_mode = #tpu.pipeline_mode<synchronous>, transform_indices = @transform_2, window_bounds = array<i64: 1, 2048>}, {pipeline_mode = #tpu.pipeline_mode<synchronous>, transform_indices = @transform_3, window_bounds = array<i64: 8, 512>}, {pipeline_mode = #tpu.pipeline_mode<synchronous>, transform_indices = @transform_4, window_bounds = array<i64: 2048, 128>}, {pipeline_mode = #tpu.pipeline_mode<synchronous>, transform_indices = @transform_5, window_bounds = array<i64: 1, 128>}, {pipeline_mode = #tpu.pipeline_mode<synchronous>, transform_indices = @transform_6, window_bounds = array<i64: 1, 128>}, {pipeline_mode = #tpu.pipeline_mode<synchronous>, transform_indices = @transform_7, window_bounds = array<i64: 1, 128>}, {pipeline_mode = #tpu.pipeline_mode<synchronous>, transform_indices = @transform_8, window_bounds = array<i64: 128, 128>}, {pipeline_mode = #tpu.pipeline_mode<synchronous>, transform_indices = @transform_9, window_bounds = array<i64: 1, 128>}, {pipeline_mode = #tpu.pipeline_mode<synchronous>, transform_indices = @transform_10, window_bounds = array<i64: 8, 128>}]} {
    %c0_i32 = arith.constant 0 : i32
    %0 = arith.cmpi eq, %arg0, %c0_i32 : i32
    %1 = arith.extui %0 : i1 to i32
    %c0_i32_0 = arith.constant 0 : i32
    %2 = arith.cmpi ne, %1, %c0_i32_0 : i32
    scf.if %2 {
      %cst_15 = arith.constant 0.000000e+00 : f32
      %20 = vector.broadcast %cst_15 : f32 to vector<8x2048xf32>
      %c0_16 = arith.constant 0 : index
      %c0_17 = arith.constant 0 : index
      %21 = vector.load %arg12[%c0_16, %c0_17] : memref<8x2048xf32, #tpu.memory_space<vmem>>, vector<8x2048xf32>
      tpu.vector_store %arg12[%c0_16, %c0_17], %20 {strides = array<i32>} : memref<8x2048xf32, #tpu.memory_space<vmem>>, vector<8x2048xf32>,
    } else {
    }
    %c0 = arith.constant 0 : index
    %c0_1 = arith.constant 0 : index
    %3 = vector.load %arg1[%c0, %c0_1] : memref<512x8xf32, #tpu.memory_space<vmem>>, vector<512x8xf32>
    %4 = arith.truncf %3 : vector<512x8xf32> to vector<512x8xbf16>
    %c0_2 = arith.constant 0 : index
    %c0_3 = arith.constant 0 : index
    %5 = vector.load %arg2[%c0_2, %c0_3] : memref<8x2048xbf16, #tpu.memory_space<vmem>>, vector<8x2048xbf16>
    %cst = arith.constant dense<0.000000e+00> : vector<512x2048xf32>
    %6 = tpu.matmul %4, %5, %cst {dimension_numbers = #tpu.dot_dimension_numbers<[1], [0], [0], [1], [0, 0, 1, 1], [], []>} : vector<512x8xbf16>, vector<8x2048xbf16>, vector<512x2048xf32> -> vector<512x2048xf32>
    %c0_4 = arith.constant 0 : index
    %c0_5 = arith.constant 0 : index
    %7 = vector.load %arg3[%c0_4, %c0_5] : memref<1x2048xf32, #tpu.memory_space<vmem>>, vector<1x2048xf32>
    %8 = vector.broadcast %7 : vector<1x2048xf32> to vector<512x2048xf32>
    %9 = arith.addf %6, %8 : vector<512x2048xf32>
    %cst_6 = arith.constant 0.000000e+00 : f32
    %10 = vector.broadcast %cst_6 : f32 to vector<512x2048xf32>
    %11 = arith.maximumf %9, %10 : vector<512x2048xf32>
    %c0_7 = arith.constant 0 : index
    %c0_8 = arith.constant 0 : index
    %12 = vector.load %arg12[%c0_7, %c0_8] : memref<8x2048xf32, #tpu.memory_space<vmem>>, vector<8x2048xf32>
    %c0_9 = arith.constant 0 : index
    %c0_10 = arith.constant 0 : index
    %13 = vector.load %arg4[%c0_9, %c0_10] : memref<8x512xf32, #tpu.memory_space<vmem>>, vector<8x512xf32>
    %cst_11 = arith.constant dense<0.000000e+00> : vector<8x2048xf32>
    %14 = tpu.matmul %13, %11, %cst_11 {dimension_numbers = #tpu.dot_dimension_numbers<[1], [0], [0], [1], [0, 0, 1, 1], [], []>} : vector<8x512xf32>, vector<512x2048xf32>, vector<8x2048xf32> -> vector<8x2048xf32>
    %15 = arith.addf %12, %14 : vector<8x2048xf32>
    %c0_12 = arith.constant 0 : index
    %c0_13 = arith.constant 0 : index
    %16 = vector.load %arg12[%c0_12, %c0_13] : memref<8x2048xf32, #tpu.memory_space<vmem>>, vector<8x2048xf32>
    tpu.vector_store %arg12[%c0_12, %c0_13], %15 {strides = array<i32>} : memref<8x2048xf32, #tpu.memory_space<vmem>>, vector<8x2048xf32>,
    %c3_i32 = arith.constant 3 : i32
    %17 = arith.cmpi eq, %arg0, %c3_i32 : i32
    %18 = arith.extui %17 : i1 to i32
    %c0_i32_14 = arith.constant 0 : i32
    %19 = arith.cmpi ne, %18, %c0_i32_14 : i32
    scf.if %19 {
      %c0_15 = arith.constant 0 : index
      %c0_16 = arith.constant 0 : index
      %20 = vector.load %arg12[%c0_15, %c0_16] : memref<8x2048xf32, #tpu.memory_space<vmem>>, vector<8x2048xf32>
      %cst_17 = arith.constant 3.906250e-03 : f32
      %21 = vector.broadcast %cst_17 : f32 to vector<8x2048xf32>
      %22 = arith.mulf %20, %21 : vector<8x2048xf32>
      %c0_18 = arith.constant 0 : index
      %c0_19 = arith.constant 0 : index
      %23 = vector.load %arg5[%c0_18, %c0_19] : memref<2048x128xbf16, #tpu.memory_space<vmem>>, vector<2048x128xbf16>
      %c0_20 = arith.constant 0 : index
      %c0_21 = arith.constant 0 : index
      %24 = vector.load %arg6[%c0_20, %c0_21] : memref<1x128xf32, #tpu.memory_space<vmem>>, vector<1x128xf32>
      %c0_22 = arith.constant 0 : index
      %c0_23 = arith.constant 0 : index
      %25 = vector.load %arg7[%c0_22, %c0_23] : memref<1x128xf32, #tpu.memory_space<vmem>>, vector<1x128xf32>
      %c0_24 = arith.constant 0 : index
      %c0_25 = arith.constant 0 : index
      %26 = vector.load %arg8[%c0_24, %c0_25] : memref<1x128xf32, #tpu.memory_space<vmem>>, vector<1x128xf32>
      %c0_26 = arith.constant 0 : index
      %c0_27 = arith.constant 0 : index
      %27 = vector.load %arg9[%c0_26, %c0_27] : memref<128x128xf32, #tpu.memory_space<vmem>>, vector<128x128xf32>
      %c0_28 = arith.constant 0 : index
      %c0_29 = arith.constant 0 : index
      %28 = vector.load %arg10[%c0_28, %c0_29] : memref<1x128xf32, #tpu.memory_space<vmem>>, vector<1x128xf32>
      %29 = arith.truncf %22 : vector<8x2048xf32> to vector<8x2048xbf16>
      %cst_30 = arith.constant dense<0.000000e+00> : vector<8x128xf32>
      %30 = tpu.matmul %29, %23, %cst_30 {dimension_numbers = #tpu.dot_dimension_numbers<[1], [0], [0], [1], [0, 0, 1, 1], [], []>} : vector<8x2048xbf16>, vector<2048x128xbf16>, vector<8x128xf32> -> vector<8x128xf32>
      %31 = vector.broadcast %24 : vector<1x128xf32> to vector<8x128xf32>
      %32 = arith.addf %30, %31 : vector<8x128xf32>
      %cst_31 = arith.constant 0.000000e+00 : f32
      %33 = vector.broadcast %cst_31 : f32 to vector<8x128xf32>
      %34 = arith.maximumf %32, %33 : vector<8x128xf32>
      %35 = tpu.iota {dimensions = array<i32: 0>} : vector<8x1xi32>
      %c2_i32 = arith.constant 2 : i32
      %36 = vector.broadcast %c2_i32 : i32 to vector<8x1xi32>
      %37 = arith.cmpi slt, %35, %36 : vector<8x1xi32>
      %38 = arith.extui %37 : vector<8x1xi1> to vector<8x1xi32>
      %39 = arith.sitofp %38 : vector<8x1xi32> to vector<8x1xf32>
      %40 = vector.broadcast %39 : vector<8x1xf32> to vector<8x128xf32>
      %41 = arith.mulf %34, %40 : vector<8x128xf32>
      %cst_32 = arith.constant dense<0.000000e+00> : vector<128xf32>
      %42 = vector.multi_reduction <add>, %41, %cst_32 [0] : vector<8x128xf32> to vector<128xf32>
      %43 = vector.shape_cast %42 : vector<128xf32> to vector<1x128xf32>
      %cst_33 = arith.constant 5.000000e-01 : f32
      %44 = vector.broadcast %cst_33 : f32 to vector<1x128xf32>
      %45 = arith.mulf %43, %44 : vector<1x128xf32>
      %46 = vector.broadcast %45 : vector<1x128xf32> to vector<8x128xf32>
      %47 = arith.subf %34, %46 : vector<8x128xf32>
      %48 = arith.mulf %47, %47 : vector<8x128xf32>
      %49 = vector.broadcast %39 : vector<8x1xf32> to vector<8x128xf32>
      %50 = arith.mulf %48, %49 : vector<8x128xf32>
      %cst_34 = arith.constant dense<0.000000e+00> : vector<128xf32>
      %51 = vector.multi_reduction <add>, %50, %cst_34 [0] : vector<8x128xf32> to vector<128xf32>
      %52 = vector.shape_cast %51 : vector<128xf32> to vector<1x128xf32>
      %cst_35 = arith.constant 5.000000e-01 : f32
      %53 = vector.broadcast %cst_35 : f32 to vector<1x128xf32>
      %54 = arith.mulf %52, %53 : vector<1x128xf32>
      %cst_36 = arith.constant 9.99999974E-6 : f32
      %55 = vector.broadcast %cst_36 : f32 to vector<1x128xf32>
      %56 = arith.addf %54, %55 : vector<1x128xf32>
      %57 = math.rsqrt %56 : vector<1x128xf32>
      %58 = vector.broadcast %57 : vector<1x128xf32> to vector<8x128xf32>
      %59 = arith.mulf %47, %58 : vector<8x128xf32>
      %60 = vector.broadcast %25 : vector<1x128xf32> to vector<8x128xf32>
      %61 = arith.mulf %59, %60 : vector<8x128xf32>
      %62 = vector.broadcast %26 : vector<1x128xf32> to vector<8x128xf32>
      %63 = arith.addf %61, %62 : vector<8x128xf32>
      %cst_37 = arith.constant dense<0.000000e+00> : vector<8x128xf32>
      %64 = tpu.matmul %63, %27, %cst_37 {dimension_numbers = #tpu.dot_dimension_numbers<[1], [0], [0], [1], [0, 0, 1, 1], [], []>} : vector<8x128xf32>, vector<128x128xf32>, vector<8x128xf32> -> vector<8x128xf32>
      %65 = vector.broadcast %28 : vector<1x128xf32> to vector<8x128xf32>
      %66 = arith.addf %64, %65 : vector<8x128xf32>
      %67 = arith.mulf %66, %66 : vector<8x128xf32>
      %cst_38 = arith.constant dense<0.000000e+00> : vector<8xf32>
      %68 = vector.multi_reduction <add>, %67, %cst_38 [1] : vector<8x128xf32> to vector<8xf32>
      %69 = vector.shape_cast %68 : vector<8xf32> to vector<8x1xf32>
      %cst_39 = arith.constant 9.99999996E-13 : f32
      %70 = vector.broadcast %cst_39 : f32 to vector<8x1xf32>
      %71 = arith.addf %69, %70 : vector<8x1xf32>
      %72 = math.rsqrt %71 : vector<8x1xf32>
      %73 = vector.broadcast %72 : vector<8x1xf32> to vector<8x128xf32>
      %74 = arith.mulf %66, %73 : vector<8x128xf32>
      %c0_40 = arith.constant 0 : index
      %c0_41 = arith.constant 0 : index
      %75 = vector.load %arg11[%c0_40, %c0_41] : memref<8x128xf32, #tpu.memory_space<vmem>>, vector<8x128xf32>
      tpu.vector_store %arg11[%c0_40, %c0_41], %74 {strides = array<i32>} : memref<8x128xf32, #tpu.memory_space<vmem>>, vector<8x128xf32>,
    } else {
    }
    return
  }
  func.func @transform_0(%arg0: i32) -> (i32, i32) {
    %c0_i32 = arith.constant 0 : i32
    %c0_i32_0 = arith.constant 0 : i32
    return %arg0, %c0_i32 : i32, i32
  }
  func.func @transform_1(%arg0: i32) -> (i32, i32) {
    %c0_i32 = arith.constant 0 : i32
    %c0_i32_0 = arith.constant 0 : i32
    %c0_i32_1 = arith.constant 0 : i32
    return %c0_i32, %c0_i32_0 : i32, i32
  }
  func.func @transform_2(%arg0: i32) -> (i32, i32) {
    %c0_i32 = arith.constant 0 : i32
    %c0_i32_0 = arith.constant 0 : i32
    %c0_i32_1 = arith.constant 0 : i32
    return %c0_i32, %c0_i32_0 : i32, i32
  }
  func.func @transform_3(%arg0: i32) -> (i32, i32) {
    %c0_i32 = arith.constant 0 : i32
    %c0_i32_0 = arith.constant 0 : i32
    %c0_i32_1 = arith.constant 0 : i32
    return %c0_i32, %c0_i32_0 : i32, i32
  }
  func.func @transform_4(%arg0: i32) -> (i32, i32) {
    %c0_i32 = arith.constant 0 : i32
    %c0_i32_0 = arith.constant 0 : i32
    %c0_i32_1 = arith.constant 0 : i32
    return %c0_i32, %c0_i32_0 : i32, i32
  }
  func.func @transform_5(%arg0: i32) -> (i32, i32) {
    %c0_i32 = arith.constant 0 : i32
    %c0_i32_0 = arith.constant 0 : i32
    %c0_i32_1 = arith.constant 0 : i32
    return %c0_i32, %c0_i32_0 : i32, i32
  }
  func.func @transform_6(%arg0: i32) -> (i32, i32) {
    %c0_i32 = arith.constant 0 : i32
    %c0_i32_0 = arith.constant 0 : i32
    %c0_i32_1 = arith.constant 0 : i32
    return %c0_i32, %c0_i32_0 : i32, i32
  }
  func.func @transform_7(%arg0: i32) -> (i32, i32) {
    %c0_i32 = arith.constant 0 : i32
    %c0_i32_0 = arith.constant 0 : i32
    %c0_i32_1 = arith.constant 0 : i32
    return %c0_i32, %c0_i32_0 : i32, i32
  }
  func.func @transform_8(%arg0: i32) -> (i32, i32) {
    %c0_i32 = arith.constant 0 : i32
    %c0_i32_0 = arith.constant 0 : i32
    %c0_i32_1 = arith.constant 0 : i32
    return %c0_i32, %c0_i32_0 : i32, i32
  }
  func.func @transform_9(%arg0: i32) -> (i32, i32) {
    %c0_i32 = arith.constant 0 : i32
    %c0_i32_0 = arith.constant 0 : i32
    %c0_i32_1 = arith.constant 0 : i32
    return %c0_i32, %c0_i32_0 : i32, i32
  }
  func.func @transform_10(%arg0: i32) -> (i32, i32) {
    %c0_i32 = arith.constant 0 : i32
    %c0_i32_0 = arith.constant 0 : i32
    %c0_i32_1 = arith.constant 0 : i32
    return %c0_i32, %c0_i32_0 : i32, i32
  }
}

</mosaic_0001>

<llo_original>
// kernel: image_text_matching_forward.3
$region0: #{image_text_matching_forward.3}
  #allocation0 [shape = 'u32[]', space=smem, size = 0x4, offset = 0x4, fixed_abs, tag = 'smem constant byte address 0x4 - core index']
  #allocation1 [shape = 'u32[72,128]{1,0:T(1,128)}', space=vmem, size = 0x9000, scoped, tag = 'internal scratch']
  #allocation2 [shape = 'f32[8,768]{1,0:T(8,128)}', space=vmem, size = 0x6000, scoped, tag = 'scratch operand']
  #allocation3 [shape = 'f32[8,768]{1,0:T(8,128)}', space=vmem, size = 0x6000, scoped, tag = 'scratch operand']
  #allocation4 [shape = 'f32[8,768]{1,0:T(8,128)}', space=vmem, size = 0x6000, scoped, tag = 'scratch operand']
  %s0 = inlined_call_operand.vmem [shape: f32[8,8,768], index: 0, kind: input, shape index: {}]
  %s1 = inlined_call_operand.hbm [shape: bf16[2304,128], index: 1, kind: input, shape index: {}]
  %s2 = inlined_call_operand.hbm [shape: f32[1,128], index: 2, kind: input, shape index: {}]
  %s3 = inlined_call_operand.hbm [shape: f32[1,128], index: 3, kind: input, shape index: {}]
  %s4 = inlined_call_operand.hbm [shape: f32[1,128], index: 4, kind: input, shape index: {}]
  %s5 = inlined_call_operand.hbm [shape: f32[128,128], index: 5, kind: input, shape index: {}]
  %s6 = inlined_call_operand.hbm [shape: f32[1,128], index: 6, kind: input, shape index: {}]
  %s7 = inlined_call_operand.vmem [shape: f32[8,128], index: 7, kind: output, shape index: {}]
  %s8 = sld [smem:[#allocation0]]
  $region70: #{image_text_matching_forward.3} parent=0
    _
  %s10 = ssub.s32 1, %s8
  %s11 = scalar_select 0, %s10, %s8
  $region1: #{image_text_matching_forward.3} parent=0
    #allocation5 [shape = 'u8[589824]{0}', space=vmem, size = 0x90000, scoped, tag = 'input window, operand 1, single buffered']
    #allocation6 [shape = 's32[1]{0}', space=sflag, size = 0x4, scoped, tag = 'scoped memory for image_text_matching_forward.3']
    #allocation7 [shape = 'u8[512]{0}', space=vmem, size = 0x400, scoped, tag = 'input window, operand 2, single buffered']
    #allocation8 [shape = 's32[1]{0}', space=sflag, size = 0x4, scoped, tag = 'scoped memory for image_text_matching_forward.3']
    #allocation9 [shape = 'u8[512]{0}', space=vmem, size = 0x400, scoped, tag = 'input window, operand 3, single buffered']
    #allocation10 [shape = 'u8[512]{0}', space=vmem, size = 0x400, scoped, tag = 'input window, operand 4, single buffered']
    #allocation11 [shape = 's32[1]{0}', space=sflag, size = 0x4, scoped, tag = 'scoped memory for image_text_matching_forward.3']
    #allocation12 [shape = 'u8[65536]{0}', space=vmem, size = 0x10000, scoped, tag = 'input window, operand 5, single buffered']
    #allocation13 [shape = 'u8[512]{0}', space=vmem, size = 0x400, scoped, tag = 'input window, operand 6, single buffered']
    #allocation14 [shape = 's32[1]{0}', space=sflag, size = 0x4, scoped, tag = 'scoped memory for image_text_matching_forward.3']
    %12 = vsyncpa [#allocation6], 0
    %13 = vsyncpa [#allocation8], 0
    %14 = vsyncpa [#allocation11], 0
    %15 = vsyncpa [#allocation14], 0
    // Predicated region
    $region2: #{image_text_matching_forward.3} parent=1 // pred_check
      _
    $region3: #{image_text_matching_forward.3} parent=1 // pred_check_branch
      %17 = sbr.rel (0) target = $region5
    $region4: #{image_text_matching_forward.3} parent=1 // pred_region
      _
    $region5: #{image_text_matching_forward.3} parent=1 // pred_fallthru
      _
    // Predicated region
    $region6: #{image_text_matching_forward.3} parent=1 // pred_check
      _
    $region7: #{image_text_matching_forward.3} parent=1 // pred_check_branch
      %19 = sbr.rel (0) target = $region9
    $region8: #{image_text_matching_forward.3} parent=1 // pred_region
      %21 = vsyncadd [#allocation6], 0
      %s22 = sshll.u32 %s1, 4
      %s23 = int_to_ptr.hbm [resolvable:$true] %s22
      %s24 = sshll.u32 [#allocation5], 4
      %s25 = int_to_ptr.vmem [resolvable:$true] %s24
      %30 = dma.hbm_to_vmem [thread:$0]  %s23, 18432, %s25, [#allocation6], 64, 64, 4
    $region9: #{image_text_matching_forward.3} parent=1 // pred_fallthru
      _
    // Predicated region
    $region10: #{image_text_matching_forward.3} parent=1 // pred_check
      _
    $region11: #{image_text_matching_forward.3} parent=1 // pred_check_branch
      %32 = sbr.rel (0) target = $region13
    $region12: #{image_text_matching_forward.3} parent=1 // pred_region
      %34 = vsyncadd [#allocation8], 0
      %s36 = sshll.u32 %s2, 4
      %s37 = int_to_ptr.hbm [resolvable:$true] %s36
      %s38 = sshll.u32 [#allocation7], 4
      %s39 = int_to_ptr.vmem [resolvable:$true] %s38
      %41 = dma.hbm_to_vmem [thread:$0]  %s37, 16, %s39, [#allocation8]
    $region13: #{image_text_matching_forward.3} parent=1 // pred_fallthru
      _
    // Predicated region
    $region14: #{image_text_matching_forward.3} parent=1 // pred_check
      _
    $region15: #{image_text_matching_forward.3} parent=1 // pred_check_branch
      %43 = sbr.rel (0) target = $region17
    $region16: #{image_text_matching_forward.3} parent=1 // pred_region
      %45 = vsyncadd [#allocation8], 0
      %s47 = sshll.u32 %s3, 4
      %s48 = int_to_ptr.hbm [resolvable:$true] %s47
      %s49 = sshll.u32 [#allocation9], 4
      %s50 = int_to_ptr.vmem [resolvable:$true] %s49
      %52 = dma.hbm_to_vmem [thread:$0]  %s48, 16, %s50, [#allocation8]
    $region17: #{image_text_matching_forward.3} parent=1 // pred_fallthru
      _
    // Predicated region
    $region18: #{image_text_matching_forward.3} parent=1 // pred_check
      _
    $region19: #{image_text_matching_forward.3} parent=1 // pred_check_branch
      %54 = sbr.rel (0) target = $region21
    $region20: #{image_text_matching_forward.3} parent=1 // pred_region
      %56 = vsyncadd [#allocation11], 0
      %s58 = sshll.u32 %s4, 4
      %s59 = int_to_ptr.hbm [resolvable:$true] %s58
      %s60 = sshll.u32 [#allocation10], 4
      %s61 = int_to_ptr.vmem [resolvable:$true] %s60
      %63 = dma.hbm_to_vmem [thread:$0]  %s59, 16, %s61, [#allocation11]
    $region21: #{image_text_matching_forward.3} parent=1 // pred_fallthru
      _
    // Predicated region
    $region22: #{image_text_matching_forward.3} parent=1 // pred_check
      _
    $region23: #{image_text_matching_forward.3} parent=1 // pred_check_branch
      %65 = sbr.rel (0) target = $region25
    $region24: #{image_text_matching_forward.3} parent=1 // pred_region
      %67 = vsyncadd [#allocation11], 0
      %s68 = sshll.u32 %s5, 4
      %s69 = int_to_ptr.hbm [resolvable:$true] %s68
      %s70 = sshll.u32 [#allocation12], 4
      %s71 = int_to_ptr.vmem [resolvable:$true] %s70
      %76 = dma.hbm_to_vmem [thread:$0]  %s69, 2048, %s71, [#allocation11], 128, 128, 8
    $region25: #{image_text_matching_forward.3} parent=1 // pred_fallthru
      _
    // Predicated region
    $region26: #{image_text_matching_forward.3} parent=1 // pred_check
      _
    $region27: #{image_text_matching_forward.3} parent=1 // pred_check_branch
      %78 = sbr.rel (0) target = $region29
    $region28: #{image_text_matching_forward.3} parent=1 // pred_region
      %80 = vsyncadd [#allocation14], 0
      %s82 = sshll.u32 %s6, 4
      %s83 = int_to_ptr.hbm [resolvable:$true] %s82
      %s84 = sshll.u32 [#allocation13], 4
      %s85 = int_to_ptr.vmem [resolvable:$true] %s84
      %87 = dma.hbm_to_vmem [thread:$0]  %s83, 16, %s85, [#allocation14]
    $region29: #{image_text_matching_forward.3} parent=1 // pred_fallthru
      _
    // Predicated region
    $region30: #{image_text_matching_forward.3} parent=1 // pred_check
      _
    $region31: #{image_text_matching_forward.3} parent=1 // pred_check_branch
      %89 = sbr.rel (0) target = $region33
    $region32: #{image_text_matching_forward.3} parent=1 // pred_region
      %91 = dma.done [#allocation6], 18432
    $region33: #{image_text_matching_forward.3} parent=1 // pred_fallthru
      _
    // Predicated region
    $region34: #{image_text_matching_forward.3} parent=1 // pred_check
      _
    $region35: #{image_text_matching_forward.3} parent=1 // pred_check_branch
      %93 = sbr.rel (0) target = $region37
    $region36: #{image_text_matching_forward.3} parent=1 // pred_region
      %95 = dma.done [#allocation8], 16
    $region37: #{image_text_matching_forward.3} parent=1 // pred_fallthru
      _
    // Predicated region
    $region38: #{image_text_matching_forward.3} parent=1 // pred_check
      _
    $region39: #{image_text_matching_forward.3} parent=1 // pred_check_branch
      %97 = sbr.rel (0) target = $region41
    $region40: #{image_text_matching_forward.3} parent=1 // pred_region
      %99 = dma.done [#allocation8], 16
    $region41: #{image_text_matching_forward.3} parent=1 // pred_fallthru
      _
    // Predicated region
    $region42: #{image_text_matching_forward.3} parent=1 // pred_check
      _
    $region43: #{image_text_matching_forward.3} parent=1 // pred_check_branch
      %101 = sbr.rel (0) target = $region45
    $region44: #{image_text_matching_forward.3} parent=1 // pred_region
      %103 = dma.done [#allocation11], 16
    $region45: #{image_text_matching_forward.3} parent=1 // pred_fallthru
      _
    // Predicated region
    $region46: #{image_text_matching_forward.3} parent=1 // pred_check
      _
    $region47: #{image_text_matching_forward.3} parent=1 // pred_check_branch
      %105 = sbr.rel (0) target = $region49
    $region48: #{image_text_matching_forward.3} parent=1 // pred_region
      %107 = dma.done [#allocation11], 2048
    $region49: #{image_text_matching_forward.3} parent=1 // pred_fallthru
      _
    // Predicated region
    $region50: #{image_text_matching_forward.3} parent=1 // pred_check
      _
    $region51: #{image_text_matching_forward.3} parent=1 // pred_check_branch
      %109 = sbr.rel (0) target = $region53
    $region52: #{image_text_matching_forward.3} parent=1 // pred_region
      %111 = dma.done [#allocation14], 16
    $region53: #{image_text_matching_forward.3} parent=1 // pred_fallthru
      _
    %p112 = scmp.eq.s32.totalorder 0, 0
    // Predicated region
    $region54: #{image_text_matching_forward.3} parent=1 // pred_check
      %p113 = pneg %p112
    $region55: #{image_text_matching_forward.3} parent=1 // pred_check_branch
      %115 = sbr.rel (%p113) target = $region57
    $region56: #{image_text_matching_forward.3} parent=1 // pred_region
      %v116 = vld [vmem:[%s0] ss:$8 sm:$0xf]
      %v117 = vld [vmem:[%s0] ss:$8 sm:$0x30]
      %v118 = vor.u32 %v116, %v117
      %s119 = scalar_lea.vmem %s0, 48
      %v120 = vld [vmem:[%s119] ss:$8 sm:$0xf]
      %v121 = vld [vmem:[%s119] ss:$8 sm:$0x30]
      %v122 = vor.u32 %v120, %v121
      %s123 = scalar_lea.vmem %s0, 96
      %v124 = vld [vmem:[%s123] ss:$8 sm:$0xf]
      %v125 = vld [vmem:[%s123] ss:$8 sm:$0x30]
      %v126 = vor.u32 %v124, %v125
      %s127 = scalar_lea.vmem %s0, 144
      %v128 = vld [vmem:[%s127] ss:$8 sm:$0xf]
      %v129 = vld [vmem:[%s127] ss:$8 sm:$0x30]
      %v130 = vor.u32 %v128, %v129
      %s131 = scalar_lea.vmem %s0, 192
      %v132 = vld [vmem:[%s131] ss:$8 sm:$0xf]
      %v133 = vld [vmem:[%s131] ss:$8 sm:$0x30]
      %v134 = vor.u32 %v132, %v133
      %s135 = scalar_lea.vmem %s0, 240
      %v136 = vld [vmem:[%s135] ss:$8 sm:$0xf]
      %v137 = vld [vmem:[%s135] ss:$8 sm:$0x30]
      %v138 = vor.u32 %v136, %v137
      %s139 = scalar_lea.vmem %s0, 288
      %v140 = vld [vmem:[%s139] ss:$8 sm:$0xf]
      %v141 = vld [vmem:[%s139] ss:$8 sm:$0x30]
      %v142 = vor.u32 %v140, %v141
      %s143 = scalar_lea.vmem %s0, 336
      %v144 = vld [vmem:[%s143] ss:$8 sm:$0xf]
      %v145 = vld [vmem:[%s143] ss:$8 sm:$0x30]
      %v146 = vor.u32 %v144, %v145
      %155 = vst [vmem:[#allocation1] ss:$9 sm:$0xff] %v118
      %s156 = scalar_lea.vmem [#allocation1], 1
      %157 = vst [vmem:[%s156] ss:$9 sm:$0xff] %v122
      %s158 = scalar_lea.vmem [#allocation1], 2
      %159 = vst [vmem:[%s158] ss:$9 sm:$0xff] %v126
      %s160 = scalar_lea.vmem [#allocation1], 3
      %161 = vst [vmem:[%s160] ss:$9 sm:$0xff] %v130
      %s162 = scalar_lea.vmem [#allocation1], 4
      %163 = vst [vmem:[%s162] ss:$9 sm:$0xff] %v134
      %s164 = scalar_lea.vmem [#allocation1], 5
      %165 = vst [vmem:[%s164] ss:$9 sm:$0xff] %v138
      %s166 = scalar_lea.vmem [#allocation1], 6
      %167 = vst [vmem:[%s166] ss:$9 sm:$0xff] %v142
      %s168 = scalar_lea.vmem [#allocation1], 7
      %169 = vst [vmem:[%s168] ss:$9 sm:$0xff] %v146
      %v170 = vld [vmem:[#allocation1] sm:$0xff]
      %v171 = vld [vmem:[#allocation1 + $0x9] sm:$0xff]
      %v172 = vld [vmem:[#allocation1 + $0x12] sm:$0xff]
      %v173 = vld [vmem:[#allocation1 + $0x1b] sm:$0xff]
      %v174 = vld [vmem:[#allocation1 + $0x24] sm:$0xff]
      %v175 = vld [vmem:[#allocation1 + $0x2d] sm:$0xff]
      %182 = vst [vmem:[#allocation2] sm:$0xff] %v170
      %183 = vst [vmem:[#allocation2 + $0x8] sm:$0xff] %v171
      %184 = vst [vmem:[#allocation2 + $0x10] sm:$0xff] %v172
      %185 = vst [vmem:[#allocation2 + $0x18] sm:$0xff] %v173
      %186 = vst [vmem:[#allocation2 + $0x20] sm:$0xff] %v174
      %187 = vst [vmem:[#allocation2 + $0x28] sm:$0xff] %v175
      %188 = vst [vmem:[#allocation3] sm:$0xff] -inf
      %189 = vst [vmem:[#allocation3 + $0x8] sm:$0xff] -inf
      %190 = vst [vmem:[#allocation3 + $0x10] sm:$0xff] -inf
      %191 = vst [vmem:[#allocation3 + $0x18] sm:$0xff] -inf
      %192 = vst [vmem:[#allocation3 + $0x20] sm:$0xff] -inf
      %193 = vst [vmem:[#allocation3 + $0x28] sm:$0xff] -inf
      %194 = vst [vmem:[#allocation4] sm:$0xff] 0.0
      %195 = vst [vmem:[#allocation4 + $0x8] sm:$0xff] 0.0
      %196 = vst [vmem:[#allocation4 + $0x10] sm:$0xff] 0.0
      %197 = vst [vmem:[#allocation4 + $0x18] sm:$0xff] 0.0
      %198 = vst [vmem:[#allocation4 + $0x20] sm:$0xff] 0.0
      %199 = vst [vmem:[#allocation4 + $0x28] sm:$0xff] 0.0
    $region57: #{image_text_matching_forward.3} parent=1 // pred_fallthru
      _
    %v200 = vld [vmem:[%s0] sm:$0xff]
    %v201 = vld [vmem:[%s0 + $0x8] sm:$0xff]
    %v202 = vld [vmem:[%s0 + $0x10] sm:$0xff]
    %v203 = vld [vmem:[%s0 + $0x18] sm:$0xff]
    %v204 = vld [vmem:[%s0 + $0x20] sm:$0xff]
    %v205 = vld [vmem:[%s0 + $0x28] sm:$0xff]
    %v206 = vld [vmem:[%s0 + $0x30] sm:$0xff]
    %v207 = vld [vmem:[%s0 + $0x38] sm:$0xff]
    %v208 = vld [vmem:[%s0 + $0x40] sm:$0xff]
    %v209 = vld [vmem:[%s0 + $0x48] sm:$0xff]
    %v210 = vld [vmem:[%s0 + $0x50] sm:$0xff]
    %v211 = vld [vmem:[%s0 + $0x58] sm:$0xff]
    %v212 = vld [vmem:[%s0 + $0x60] sm:$0xff]
    %v213 = vld [vmem:[%s0 + $0x68] sm:$0xff]
    %v214 = vld [vmem:[%s0 + $0x70] sm:$0xff]
    %v215 = vld [vmem:[%s0 + $0x78] sm:$0xff]
    %v216 = vld [vmem:[%s0 + $0x80] sm:$0xff]
    %v217 = vld [vmem:[%s0 + $0x88] sm:$0xff]
    %v218 = vld [vmem:[%s0 + $0x90] sm:$0xff]
    %v219 = vld [vmem:[%s0 + $0x98] sm:$0xff]
    %v220 = vld [vmem:[%s0 + $0xa0] sm:$0xff]
    %v221 = vld [vmem:[%s0 + $0xa8] sm:$0xff]
    %v222 = vld [vmem:[%s0 + $0xb0] sm:$0xff]
    %v223 = vld [vmem:[%s0 + $0xb8] sm:$0xff]
    %v224 = vld [vmem:[%s0 + $0xc0] sm:$0xff]
    %v225 = vld [vmem:[%s0 + $0xc8] sm:$0xff]
    %v226 = vld [vmem:[%s0 + $0xd0] sm:$0xff]
    %v227 = vld [vmem:[%s0 + $0xd8] sm:$0xff]
    %v228 = vld [vmem:[%s0 + $0xe0] sm:$0xff]
    %v229 = vld [vmem:[%s0 + $0xe8] sm:$0xff]
    %v230 = vld [vmem:[%s0 + $0xf0] sm:$0xff]
    %v231 = vld [vmem:[%s0 + $0xf8] sm:$0xff]
    %v232 = vld [vmem:[%s0 + $0x100] sm:$0xff]
    %v233 = vld [vmem:[%s0 + $0x108] sm:$0xff]
    %v234 = vld [vmem:[%s0 + $0x110] sm:$0xff]
    %v235 = vld [vmem:[%s0 + $0x118] sm:$0xff]
    %v236 = vld [vmem:[%s0 + $0x120] sm:$0xff]
    %v237 = vld [vmem:[%s0 + $0x128] sm:$0xff]
    %v238 = vld [vmem:[%s0 + $0x130] sm:$0xff]
    %v239 = vld [vmem:[%s0 + $0x138] sm:$0xff]
    %v240 = vld [vmem:[%s0 + $0x140] sm:$0xff]
    %v241 = vld [vmem:[%s0 + $0x148] sm:$0xff]
    %v242 = vld [vmem:[%s0 + $0x150] sm:$0xff]
    %v243 = vld [vmem:[%s0 + $0x158] sm:$0xff]
    %v244 = vld [vmem:[%s0 + $0x160] sm:$0xff]
    %v245 = vld [vmem:[%s0 + $0x168] sm:$0xff]
    %v246 = vld [vmem:[%s0 + $0x170] sm:$0xff]
    %v247 = vld [vmem:[%s0 + $0x178] sm:$0xff]
    %v248 = vld [vmem:[#allocation3] sm:$0xff]
    %v249 = vld [vmem:[#allocation3 + $0x8] sm:$0xff]
    %v250 = vld [vmem:[#allocation3 + $0x10] sm:$0xff]
    %v251 = vld [vmem:[#allocation3 + $0x18] sm:$0xff]
    %v252 = vld [vmem:[#allocation3 + $0x20] sm:$0xff]
    %v253 = vld [vmem:[#allocation3 + $0x28] sm:$0xff]
    %v254 = vrot.slane %v200, 4
    %v255 = vmax.f32 %v200, %v254
    %v256 = vrot.slane %v255, 2
    %v257 = vmax.f32 %v255, %v256
    %v258 = vrot.slane %v257, 1
    %v259 = vmax.f32 %v257, %v258
    %v260 = vrot.slane %v201, 4
    %v261 = vmax.f32 %v201, %v260
    %v262 = vrot.slane %v261, 2
    %v263 = vmax.f32 %v261, %v262
    %v264 = vrot.slane %v263, 1
    %v265 = vmax.f32 %v263, %v264
    %v266 = vrot.slane %v202, 4
    %v267 = vmax.f32 %v202, %v266
    %v268 = vrot.slane %v267, 2
    %v269 = vmax.f32 %v267, %v268
    %v270 = vrot.slane %v269, 1
    %v271 = vmax.f32 %v269, %v270
    %v272 = vrot.slane %v203, 4
    %v273 = vmax.f32 %v203, %v272
    %v274 = vrot.slane %v273, 2
    %v275 = vmax.f32 %v273, %v274
    %v276 = vrot.slane %v275, 1
    %v277 = vmax.f32 %v275, %v276
    %v278 = vrot.slane %v204, 4
    %v279 = vmax.f32 %v204, %v278
    %v280 = vrot.slane %v279, 2
    %v281 = vmax.f32 %v279, %v280
    %v282 = vrot.slane %v281, 1
    %v283 = vmax.f32 %v281, %v282
    %v284 = vrot.slane %v205, 4
    %v285 = vmax.f32 %v205, %v284
    %v286 = vrot.slane %v285, 2
    %v287 = vmax.f32 %v285, %v286
    %v288 = vrot.slane %v287, 1
    %v289 = vmax.f32 %v287, %v288
    %v290 = vrot.slane %v206, 4
    %v291 = vmax.f32 %v206, %v290
    %v292 = vrot.slane %v291, 2
    %v293 = vmax.f32 %v291, %v292
    %v294 = vrot.slane %v293, 1
    %v295 = vmax.f32 %v293, %v294
    %v296 = vrot.slane %v207, 4
    %v297 = vmax.f32 %v207, %v296
    %v298 = vrot.slane %v297, 2
    %v299 = vmax.f32 %v297, %v298
    %v300 = vrot.slane %v299, 1
    %v301 = vmax.f32 %v299, %v300
    %v302 = vrot.slane %v208, 4
    %v303 = vmax.f32 %v208, %v302
    %v304 = vrot.slane %v303, 2
    %v305 = vmax.f32 %v303, %v304
    %v306 = vrot.slane %v305, 1
    %v307 = vmax.f32 %v305, %v306
    %v308 = vrot.slane %v209, 4
    %v309 = vmax.f32 %v209, %v308
    %v310 = vrot.slane %v309, 2
    %v311 = vmax.f32 %v309, %v310
    %v312 = vrot.slane %v311, 1
    %v313 = vmax.f32 %v311, %v312
    %v314 = vrot.slane %v210, 4
    %v315 = vmax.f32 %v210, %v314
    %v316 = vrot.slane %v315, 2
    %v317 = vmax.f32 %v315, %v316
    %v318 = vrot.slane %v317, 1
    %v319 = vmax.f32 %v317, %v318
    %v320 = vrot.slane %v211, 4
    %v321 = vmax.f32 %v211, %v320
    %v322 = vrot.slane %v321, 2
    %v323 = vmax.f32 %v321, %v322
    %v324 = vrot.slane %v323, 1
    %v325 = vmax.f32 %v323, %v324
    %v326 = vrot.slane %v212, 4
    %v327 = vmax.f32 %v212, %v326
    %v328 = vrot.slane %v327, 2
    %v329 = vmax.f32 %v327, %v328
    %v330 = vrot.slane %v329, 1
    %v331 = vmax.f32 %v329, %v330
    %v332 = vrot.slane %v213, 4
    %v333 = vmax.f32 %v213, %v332
    %v334 = vrot.slane %v333, 2
    %v335 = vmax.f32 %v333, %v334
    %v336 = vrot.slane %v335, 1
    %v337 = vmax.f32 %v335, %v336
    %v338 = vrot.slane %v214, 4
    %v339 = vmax.f32 %v214, %v338
    %v340 = vrot.slane %v339, 2
    %v341 = vmax.f32 %v339, %v340
    %v342 = vrot.slane %v341, 1
    %v343 = vmax.f32 %v341, %v342
    %v344 = vrot.slane %v215, 4
    %v345 = vmax.f32 %v215, %v344
    %v346 = vrot.slane %v345, 2
    %v347 = vmax.f32 %v345, %v346
    %v348 = vrot.slane %v347, 1
    %v349 = vmax.f32 %v347, %v348
    %v350 = vrot.slane %v216, 4
    %v351 = vmax.f32 %v216, %v350
    %v352 = vrot.slane %v351, 2
    %v353 = vmax.f32 %v351, %v352
    %v354 = vrot.slane %v353, 1
    %v355 = vmax.f32 %v353, %v354
    %v356 = vrot.slane %v217, 4
    %v357 = vmax.f32 %v217, %v356
    %v358 = vrot.slane %v357, 2
    %v359 = vmax.f32 %v357, %v358
    %v360 = vrot.slane %v359, 1
    %v361 = vmax.f32 %v359, %v360
    %v362 = vrot.slane %v218, 4
    %v363 = vmax.f32 %v218, %v362
    %v364 = vrot.slane %v363, 2
    %v365 = vmax.f32 %v363, %v364
    %v366 = vrot.slane %v365, 1
    %v367 = vmax.f32 %v365, %v366
    %v368 = vrot.slane %v219, 4
    %v369 = vmax.f32 %v219, %v368
    %v370 = vrot.slane %v369, 2
    %v371 = vmax.f32 %v369, %v370
    %v372 = vrot.slane %v371, 1
    %v373 = vmax.f32 %v371, %v372
    %v374 = vrot.slane %v220, 4
    %v375 = vmax.f32 %v220, %v374
    %v376 = vrot.slane %v375, 2
    %v377 = vmax.f32 %v375, %v376
    %v378 = vrot.slane %v377, 1
    %v379 = vmax.f32 %v377, %v378
    %v380 = vrot.slane %v221, 4
    %v381 = vmax.f32 %v221, %v380
    %v382 = vrot.slane %v381, 2
    %v383 = vmax.f32 %v381, %v382
    %v384 = vrot.slane %v383, 1
    %v385 = vmax.f32 %v383, %v384
    %v386 = vrot.slane %v222, 4
    %v387 = vmax.f32 %v222, %v386
    %v388 = vrot.slane %v387, 2
    %v389 = vmax.f32 %v387, %v388
    %v390 = vrot.slane %v389, 1
    %v391 = vmax.f32 %v389, %v390
    %v392 = vrot.slane %v223, 4
    %v393 = vmax.f32 %v223, %v392
    %v394 = vrot.slane %v393, 2
    %v395 = vmax.f32 %v393, %v394
    %v396 = vrot.slane %v395, 1
    %v397 = vmax.f32 %v395, %v396
    %v398 = vrot.slane %v224, 4
    %v399 = vmax.f32 %v224, %v398
    %v400 = vrot.slane %v399, 2
    %v401 = vmax.f32 %v399, %v400
    %v402 = vrot.slane %v401, 1
    %v403 = vmax.f32 %v401, %v402
    %v404 = vrot.slane %v225, 4
    %v405 = vmax.f32 %v225, %v404
    %v406 = vrot.slane %v405, 2
    %v407 = vmax.f32 %v405, %v406
    %v408 = vrot.slane %v407, 1
    %v409 = vmax.f32 %v407, %v408
    %v410 = vrot.slane %v226, 4
    %v411 = vmax.f32 %v226, %v410
    %v412 = vrot.slane %v411, 2
    %v413 = vmax.f32 %v411, %v412
    %v414 = vrot.slane %v413, 1
    %v415 = vmax.f32 %v413, %v414
    %v416 = vrot.slane %v227, 4
    %v417 = vmax.f32 %v227, %v416
    %v418 = vrot.slane %v417, 2
    %v419 = vmax.f32 %v417, %v418
    %v420 = vrot.slane %v419, 1
    %v421 = vmax.f32 %v419, %v420
    %v422 = vrot.slane %v228, 4
    %v423 = vmax.f32 %v228, %v422
    %v424 = vrot.slane %v423, 2
    %v425 = vmax.f32 %v423, %v424
    %v426 = vrot.slane %v425, 1
    %v427 = vmax.f32 %v425, %v426
    %v428 = vrot.slane %v229, 4
    %v429 = vmax.f32 %v229, %v428
    %v430 = vrot.slane %v429, 2
    %v431 = vmax.f32 %v429, %v430
    %v432 = vrot.slane %v431, 1
    %v433 = vmax.f32 %v431, %v432
    %v434 = vrot.slane %v230, 4
    %v435 = vmax.f32 %v230, %v434
    %v436 = vrot.slane %v435, 2
    %v437 = vmax.f32 %v435, %v436
    %v438 = vrot.slane %v437, 1
    %v439 = vmax.f32 %v437, %v438
    %v440 = vrot.slane %v231, 4
    %v441 = vmax.f32 %v231, %v440
    %v442 = vrot.slane %v441, 2
    %v443 = vmax.f32 %v441, %v442
    %v444 = vrot.slane %v443, 1
    %v445 = vmax.f32 %v443, %v444
    %v446 = vrot.slane %v232, 4
    %v447 = vmax.f32 %v232, %v446
    %v448 = vrot.slane %v447, 2
    %v449 = vmax.f32 %v447, %v448
    %v450 = vrot.slane %v449, 1
    %v451 = vmax.f32 %v449, %v450
    %v452 = vrot.slane %v233, 4
    %v453 = vmax.f32 %v233, %v452
    %v454 = vrot.slane %v453, 2
    %v455 = vmax.f32 %v453, %v454
    %v456 = vrot.slane %v455, 1
    %v457 = vmax.f32 %v455, %v456
    %v458 = vrot.slane %v234, 4
    %v459 = vmax.f32 %v234, %v458
    %v460 = vrot.slane %v459, 2
    %v461 = vmax.f32 %v459, %v460
    %v462 = vrot.slane %v461, 1
    %v463 = vmax.f32 %v461, %v462
    %v464 = vrot.slane %v235, 4
    %v465 = vmax.f32 %v235, %v464
    %v466 = vrot.slane %v465, 2
    %v467 = vmax.f32 %v465, %v466
    %v468 = vrot.slane %v467, 1
    %v469 = vmax.f32 %v467, %v468
    %v470 = vrot.slane %v236, 4
    %v471 = vmax.f32 %v236, %v470
    %v472 = vrot.slane %v471, 2
    %v473 = vmax.f32 %v471, %v472
    %v474 = vrot.slane %v473, 1
    %v475 = vmax.f32 %v473, %v474
    %v476 = vrot.slane %v237, 4
    %v477 = vmax.f32 %v237, %v476
    %v478 = vrot.slane %v477, 2
    %v479 = vmax.f32 %v477, %v478
    %v480 = vrot.slane %v479, 1
    %v481 = vmax.f32 %v479, %v480
    %v482 = vrot.slane %v238, 4
    %v483 = vmax.f32 %v238, %v482
    %v484 = vrot.slane %v483, 2
    %v485 = vmax.f32 %v483, %v484
    %v486 = vrot.slane %v485, 1
    %v487 = vmax.f32 %v485, %v486
    %v488 = vrot.slane %v239, 4
    %v489 = vmax.f32 %v239, %v488
    %v490 = vrot.slane %v489, 2
    %v491 = vmax.f32 %v489, %v490
    %v492 = vrot.slane %v491, 1
    %v493 = vmax.f32 %v491, %v492
    %v494 = vrot.slane %v240, 4
    %v495 = vmax.f32 %v240, %v494
    %v496 = vrot.slane %v495, 2
    %v497 = vmax.f32 %v495, %v496
    %v498 = vrot.slane %v497, 1
    %v499 = vmax.f32 %v497, %v498
    %v500 = vrot.slane %v241, 4
    %v501 = vmax.f32 %v241, %v500
    %v502 = vrot.slane %v501, 2
    %v503 = vmax.f32 %v501, %v502
    %v504 = vrot.slane %v503, 1
    %v505 = vmax.f32 %v503, %v504
    %v506 = vrot.slane %v242, 4
    %v507 = vmax.f32 %v242, %v506
    %v508 = vrot.slane %v507, 2
    %v509 = vmax.f32 %v507, %v508
    %v510 = vrot.slane %v509, 1
    %v511 = vmax.f32 %v509, %v510
    %v512 = vrot.slane %v243, 4
    %v513 = vmax.f32 %v243, %v512
    %v514 = vrot.slane %v513, 2
    %v515 = vmax.f32 %v513, %v514
    %v516 = vrot.slane %v515, 1
    %v517 = vmax.f32 %v515, %v516
    %v518 = vrot.slane %v244, 4
    %v519 = vmax.f32 %v244, %v518
    %v520 = vrot.slane %v519, 2
    %v521 = vmax.f32 %v519, %v520
    %v522 = vrot.slane %v521, 1
    %v523 = vmax.f32 %v521, %v522
    %v524 = vrot.slane %v245, 4
    %v525 = vmax.f32 %v245, %v524
    %v526 = vrot.slane %v525, 2
    %v527 = vmax.f32 %v525, %v526
    %v528 = vrot.slane %v527, 1
    %v529 = vmax.f32 %v527, %v528
    %v530 = vrot.slane %v246, 4
    %v531 = vmax.f32 %v246, %v530
    %v532 = vrot.slane %v531, 2
    %v533 = vmax.f32 %v531, %v532
    %v534 = vrot.slane %v533, 1
    %v535 = vmax.f32 %v533, %v534
    %v536 = vrot.slane %v247, 4
    %v537 = vmax.f32 %v247, %v536
    %v538 = vrot.slane %v537, 2
    %v539 = vmax.f32 %v537, %v538
    %v540 = vrot.slane %v539, 1
    %v541 = vmax.f32 %v539, %v540
    %vm590 = vcmask 1041409
    %v591 = vsel %vm590, %v295, %v259
    %vm592 = vcmask 1042434
    %v593 = vsel %vm592, %v331, %v591
    %vm594 = vcmask 1043459
    %v595 = vsel %vm594, %v367, %v593
    %vm596 = vcmask 1044484
    %v597 = vsel %vm596, %v403, %v595
    %vm598 = vcmask 1045509
    %v599 = vsel %vm598, %v439, %v597
    %vm600 = vcmask 1046534
    %v601 = vsel %vm600, %v475, %v599
    %vm602 = vcmask 1047559
    %v603 = vsel %vm602, %v511, %v601
    %v604 = vsel %vm590, %v301, %v265
    %v605 = vsel %vm592, %v337, %v604
    %v606 = vsel %vm594, %v373, %v605
    %v607 = vsel %vm596, %v409, %v606
    %v608 = vsel %vm598, %v445, %v607
    %v609 = vsel %vm600, %v481, %v608
    %v610 = vsel %vm602, %v517, %v609
    %v611 = vsel %vm590, %v307, %v271
    %v612 = vsel %vm592, %v343, %v611
    %v613 = vsel %vm594, %v379, %v612
    %v614 = vsel %vm596, %v415, %v613
    %v615 = vsel %vm598, %v451, %v614
    %v616 = vsel %vm600, %v487, %v615
    %v617 = vsel %vm602, %v523, %v616
    %v618 = vsel %vm590, %v313, %v277
    %v619 = vsel %vm592, %v349, %v618
    %v620 = vsel %vm594, %v385, %v619
    %v621 = vsel %vm596, %v421, %v620
    %v622 = vsel %vm598, %v457, %v621
    %v623 = vsel %vm600, %v493, %v622
    %v624 = vsel %vm602, %v529, %v623
    %v625 = vsel %vm590, %v319, %v283
    %v626 = vsel %vm592, %v355, %v625
    %v627 = vsel %vm594, %v391, %v626
    %v628 = vsel %vm596, %v427, %v627
    %v629 = vsel %vm598, %v463, %v628
    %v630 = vsel %vm600, %v499, %v629
    %v631 = vsel %vm602, %v535, %v630
    %v632 = vsel %vm590, %v325, %v289
    %v633 = vsel %vm592, %v361, %v632
    %v634 = vsel %vm594, %v397, %v633
    %v635 = vsel %vm596, %v433, %v634
    %v636 = vsel %vm598, %v469, %v635
    %v637 = vsel %vm600, %v505, %v636
    %v638 = vsel %vm602, %v541, %v637
    %v645 = vmax.f32 %v248, %v603
    %v646 = vmax.f32 %v249, %v610
    %v647 = vmax.f32 %v250, %v617
    %v648 = vmax.f32 %v251, %v624
    %v649 = vmax.f32 %v252, %v631
    %v650 = vmax.f32 %v253, %v638
    %651 = vst [vmem:[#allocation3] sm:$0xff] %v645
    %652 = vst [vmem:[#allocation3 + $0x8] sm:$0xff] %v646
    %653 = vst [vmem:[#allocation3 + $0x10] sm:$0xff] %v647
    %654 = vst [vmem:[#allocation3 + $0x18] sm:$0xff] %v648
    %655 = vst [vmem:[#allocation3 + $0x20] sm:$0xff] %v649
    %656 = vst [vmem:[#allocation3 + $0x28] sm:$0xff] %v650
    %v657 = vld [vmem:[#allocation4] sm:$0xff]
    %v658 = vld [vmem:[#allocation4 + $0x8] sm:$0xff]
    %v659 = vld [vmem:[#allocation4 + $0x10] sm:$0xff]
    %v660 = vld [vmem:[#allocation4 + $0x18] sm:$0xff]
    %v661 = vld [vmem:[#allocation4 + $0x20] sm:$0xff]
    %v662 = vld [vmem:[#allocation4 + $0x28] sm:$0xff]
    %v663 = vrot.slane %v200, 4
    %v664 = vadd.f32 %v200, %v663
    %v665 = vrot.slane %v664, 2
    %v666 = vadd.f32 %v664, %v665
    %v667 = vrot.slane %v666, 1
    %v668 = vadd.f32 %v666, %v667
    %v669 = vrot.slane %v201, 4
    %v670 = vadd.f32 %v201, %v669
    %v671 = vrot.slane %v670, 2
    %v672 = vadd.f32 %v670, %v671
    %v673 = vrot.slane %v672, 1
    %v674 = vadd.f32 %v672, %v673
    %v675 = vrot.slane %v202, 4
    %v676 = vadd.f32 %v202, %v675
    %v677 = vrot.slane %v676, 2
    %v678 = vadd.f32 %v676, %v677
    %v679 = vrot.slane %v678, 1
    %v680 = vadd.f32 %v678, %v679
    %v681 = vrot.slane %v203, 4
    %v682 = vadd.f32 %v203, %v681
    %v683 = vrot.slane %v682, 2
    %v684 = vadd.f32 %v682, %v683
    %v685 = vrot.slane %v684, 1
    %v686 = vadd.f32 %v684, %v685
    %v687 = vrot.slane %v204, 4
    %v688 = vadd.f32 %v204, %v687
    %v689 = vrot.slane %v688, 2
    %v690 = vadd.f32 %v688, %v689
    %v691 = vrot.slane %v690, 1
    %v692 = vadd.f32 %v690, %v691
    %v693 = vrot.slane %v205, 4
    %v694 = vadd.f32 %v205, %v693
    %v695 = vrot.slane %v694, 2
    %v696 = vadd.f32 %v694, %v695
    %v697 = vrot.slane %v696, 1
    %v698 = vadd.f32 %v696, %v697
    %v699 = vrot.slane %v206, 4
    %v700 = vadd.f32 %v206, %v699
    %v701 = vrot.slane %v700, 2
    %v702 = vadd.f32 %v700, %v701
    %v703 = vrot.slane %v702, 1
    %v704 = vadd.f32 %v702, %v703
    %v705 = vrot.slane %v207, 4
    %v706 = vadd.f32 %v207, %v705
    %v707 = vrot.slane %v706, 2
    %v708 = vadd.f32 %v706, %v707
    %v709 = vrot.slane %v708, 1
    %v710 = vadd.f32 %v708, %v709
    %v711 = vrot.slane %v208, 4
    %v712 = vadd.f32 %v208, %v711
    %v713 = vrot.slane %v712, 2
    %v714 = vadd.f32 %v712, %v713
    %v715 = vrot.slane %v714, 1
    %v716 = vadd.f32 %v714, %v715
    %v717 = vrot.slane %v209, 4
    %v718 = vadd.f32 %v209, %v717
    %v719 = vrot.slane %v718, 2
    %v720 = vadd.f32 %v718, %v719
    %v721 = vrot.slane %v720, 1
    %v722 = vadd.f32 %v720, %v721
    %v723 = vrot.slane %v210, 4
    %v724 = vadd.f32 %v210, %v723
    %v725 = vrot.slane %v724, 2
    %v726 = vadd.f32 %v724, %v725
    %v727 = vrot.slane %v726, 1
    %v728 = vadd.f32 %v726, %v727
    %v729 = vrot.slane %v211, 4
    %v730 = vadd.f32 %v211, %v729
    %v731 = vrot.slane %v730, 2
    %v732 = vadd.f32 %v730, %v731
    %v733 = vrot.slane %v732, 1
    %v734 = vadd.f32 %v732, %v733
    %v735 = vrot.slane %v212, 4
    %v736 = vadd.f32 %v212, %v735
    %v737 = vrot.slane %v736, 2
    %v738 = vadd.f32 %v736, %v737
    %v739 = vrot.slane %v738, 1
    %v740 = vadd.f32 %v738, %v739
    %v741 = vrot.slane %v213, 4
    %v742 = vadd.f32 %v213, %v741
    %v743 = vrot.slane %v742, 2
    %v744 = vadd.f32 %v742, %v743
    %v745 = vrot.slane %v744, 1
    %v746 = vadd.f32 %v744, %v745
    %v747 = vrot.slane %v214, 4
    %v748 = vadd.f32 %v214, %v747
    %v749 = vrot.slane %v748, 2
    %v750 = vadd.f32 %v748, %v749
    %v751 = vrot.slane %v750, 1
    %v752 = vadd.f32 %v750, %v751
    %v753 = vrot.slane %v215, 4
    %v754 = vadd.f32 %v215, %v753
    %v755 = vrot.slane %v754, 2
    %v756 = vadd.f32 %v754, %v755
    %v757 = vrot.slane %v756, 1
    %v758 = vadd.f32 %v756, %v757
    %v759 = vrot.slane %v216, 4
    %v760 = vadd.f32 %v216, %v759
    %v761 = vrot.slane %v760, 2
    %v762 = vadd.f32 %v760, %v761
    %v763 = vrot.slane %v762, 1
    %v764 = vadd.f32 %v762, %v763
    %v765 = vrot.slane %v217, 4
    %v766 = vadd.f32 %v217, %v765
    %v767 = vrot.slane %v766, 2
    %v768 = vadd.f32 %v766, %v767
    %v769 = vrot.slane %v768, 1
    %v770 = vadd.f32 %v768, %v769
    %v771 = vrot.slane %v218, 4
    %v772 = vadd.f32 %v218, %v771
    %v773 = vrot.slane %v772, 2
    %v774 = vadd.f32 %v772, %v773
    %v775 = vrot.slane %v774, 1
    %v776 = vadd.f32 %v774, %v775
    %v777 = vrot.slane %v219, 4
    %v778 = vadd.f32 %v219, %v777
    %v779 = vrot.slane %v778, 2
    %v780 = vadd.f32 %v778, %v779
    %v781 = vrot.slane %v780, 1
    %v782 = vadd.f32 %v780, %v781
    %v783 = vrot.slane %v220, 4
    %v784 = vadd.f32 %v220, %v783
    %v785 = vrot.slane %v784, 2
    %v786 = vadd.f32 %v784, %v785
    %v787 = vrot.slane %v786, 1
    %v788 = vadd.f32 %v786, %v787
    %v789 = vrot.slane %v221, 4
    %v790 = vadd.f32 %v221, %v789
    %v791 = vrot.slane %v790, 2
    %v792 = vadd.f32 %v790, %v791
    %v793 = vrot.slane %v792, 1
    %v794 = vadd.f32 %v792, %v793
    %v795 = vrot.slane %v222, 4
    %v796 = vadd.f32 %v222, %v795
    %v797 = vrot.slane %v796, 2
    %v798 = vadd.f32 %v796, %v797
    %v799 = vrot.slane %v798, 1
    %v800 = vadd.f32 %v798, %v799
    %v801 = vrot.slane %v223, 4
    %v802 = vadd.f32 %v223, %v801
    %v803 = vrot.slane %v802, 2
    %v804 = vadd.f32 %v802, %v803
    %v805 = vrot.slane %v804, 1
    %v806 = vadd.f32 %v804, %v805
    %v807 = vrot.slane %v224, 4
    %v808 = vadd.f32 %v224, %v807
    %v809 = vrot.slane %v808, 2
    %v810 = vadd.f32 %v808, %v809
    %v811 = vrot.slane %v810, 1
    %v812 = vadd.f32 %v810, %v811
    %v813 = vrot.slane %v225, 4
    %v814 = vadd.f32 %v225, %v813
    %v815 = vrot.slane %v814, 2
    %v816 = vadd.f32 %v814, %v815
    %v817 = vrot.slane %v816, 1
    %v818 = vadd.f32 %v816, %v817
    %v819 = vrot.slane %v226, 4
    %v820 = vadd.f32 %v226, %v819
    %v821 = vrot.slane %v820, 2
    %v822 = vadd.f32 %v820, %v821
    %v823 = vrot.slane %v822, 1
    %v824 = vadd.f32 %v822, %v823
    %v825 = vrot.slane %v227, 4
    %v826 = vadd.f32 %v227, %v825
    %v827 = vrot.slane %v826, 2
    %v828 = vadd.f32 %v826, %v827
    %v829 = vrot.slane %v828, 1
    %v830 = vadd.f32 %v828, %v829
    %v831 = vrot.slane %v228, 4
    %v832 = vadd.f32 %v228, %v831
    %v833 = vrot.slane %v832, 2
    %v834 = vadd.f32 %v832, %v833
    %v835 = vrot.slane %v834, 1
    %v836 = vadd.f32 %v834, %v835
    %v837 = vrot.slane %v229, 4
    %v838 = vadd.f32 %v229, %v837
    %v839 = vrot.slane %v838, 2
    %v840 = vadd.f32 %v838, %v839
    %v841 = vrot.slane %v840, 1
    %v842 = vadd.f32 %v840, %v841
    %v843 = vrot.slane %v230, 4
    %v844 = vadd.f32 %v230, %v843
    %v845 = vrot.slane %v844, 2
    %v846 = vadd.f32 %v844, %v845
    %v847 = vrot.slane %v846, 1
    %v848 = vadd.f32 %v846, %v847
    %v849 = vrot.slane %v231, 4
    %v850 = vadd.f32 %v231, %v849
    %v851 = vrot.slane %v850, 2
    %v852 = vadd.f32 %v850, %v851
    %v853 = vrot.slane %v852, 1
    %v854 = vadd.f32 %v852, %v853
    %v855 = vrot.slane %v232, 4
    %v856 = vadd.f32 %v232, %v855
    %v857 = vrot.slane %v856, 2
    %v858 = vadd.f32 %v856, %v857
    %v859 = vrot.slane %v858, 1
    %v860 = vadd.f32 %v858, %v859
    %v861 = vrot.slane %v233, 4
    %v862 = vadd.f32 %v233, %v861
    %v863 = vrot.slane %v862, 2
    %v864 = vadd.f32 %v862, %v863
    %v865 = vrot.slane %v864, 1
    %v866 = vadd.f32 %v864, %v865
    %v867 = vrot.slane %v234, 4
    %v868 = vadd.f32 %v234, %v867
    %v869 = vrot.slane %v868, 2
    %v870 = vadd.f32 %v868, %v869
    %v871 = vrot.slane %v870, 1
    %v872 = vadd.f32 %v870, %v871
    %v873 = vrot.slane %v235, 4
    %v874 = vadd.f32 %v235, %v873
    %v875 = vrot.slane %v874, 2
    %v876 = vadd.f32 %v874, %v875
    %v877 = vrot.slane %v876, 1
    %v878 = vadd.f32 %v876, %v877
    %v879 = vrot.slane %v236, 4
    %v880 = vadd.f32 %v236, %v879
    %v881 = vrot.slane %v880, 2
    %v882 = vadd.f32 %v880, %v881
    %v883 = vrot.slane %v882, 1
    %v884 = vadd.f32 %v882, %v883
    %v885 = vrot.slane %v237, 4
    %v886 = vadd.f32 %v237, %v885
    %v887 = vrot.slane %v886, 2
    %v888 = vadd.f32 %v886, %v887
    %v889 = vrot.slane %v888, 1
    %v890 = vadd.f32 %v888, %v889
    %v891 = vrot.slane %v238, 4
    %v892 = vadd.f32 %v238, %v891
    %v893 = vrot.slane %v892, 2
    %v894 = vadd.f32 %v892, %v893
    %v895 = vrot.slane %v894, 1
    %v896 = vadd.f32 %v894, %v895
    %v897 = vrot.slane %v239, 4
    %v898 = vadd.f32 %v239, %v897
    %v899 = vrot.slane %v898, 2
    %v900 = vadd.f32 %v898, %v899
    %v901 = vrot.slane %v900, 1
    %v902 = vadd.f32 %v900, %v901
    %v903 = vrot.slane %v240, 4
    %v904 = vadd.f32 %v240, %v903
    %v905 = vrot.slane %v904, 2
    %v906 = vadd.f32 %v904, %v905
    %v907 = vrot.slane %v906, 1
    %v908 = vadd.f32 %v906, %v907
    %v909 = vrot.slane %v241, 4
    %v910 = vadd.f32 %v241, %v909
    %v911 = vrot.slane %v910, 2
    %v912 = vadd.f32 %v910, %v911
    %v913 = vrot.slane %v912, 1
    %v914 = vadd.f32 %v912, %v913
    %v915 = vrot.slane %v242, 4
    %v916 = vadd.f32 %v242, %v915
    %v917 = vrot.slane %v916, 2
    %v918 = vadd.f32 %v916, %v917
    %v919 = vrot.slane %v918, 1
    %v920 = vadd.f32 %v918, %v919
    %v921 = vrot.slane %v243, 4
    %v922 = vadd.f32 %v243, %v921
    %v923 = vrot.slane %v922, 2
    %v924 = vadd.f32 %v922, %v923
    %v925 = vrot.slane %v924, 1
    %v926 = vadd.f32 %v924, %v925
    %v927 = vrot.slane %v244, 4
    %v928 = vadd.f32 %v244, %v927
    %v929 = vrot.slane %v928, 2
    %v930 = vadd.f32 %v928, %v929
    %v931 = vrot.slane %v930, 1
    %v932 = vadd.f32 %v930, %v931
    %v933 = vrot.slane %v245, 4
    %v934 = vadd.f32 %v245, %v933
    %v935 = vrot.slane %v934, 2
    %v936 = vadd.f32 %v934, %v935
    %v937 = vrot.slane %v936, 1
    %v938 = vadd.f32 %v936, %v937
    %v939 = vrot.slane %v246, 4
    %v940 = vadd.f32 %v246, %v939
    %v941 = vrot.slane %v940, 2
    %v942 = vadd.f32 %v940, %v941
    %v943 = vrot.slane %v942, 1
    %v944 = vadd.f32 %v942, %v943
    %v945 = vrot.slane %v247, 4
    %v946 = vadd.f32 %v247, %v945
    %v947 = vrot.slane %v946, 2
    %v948 = vadd.f32 %v946, %v947
    %v949 = vrot.slane %v948, 1
    %v950 = vadd.f32 %v948, %v949
    %v999 = vsel %vm590, %v704, %v668
    %v1000 = vsel %vm592, %v740, %v999
    %v1001 = vsel %vm594, %v776, %v1000
    %v1002 = vsel %vm596, %v812, %v1001
    %v1003 = vsel %vm598, %v848, %v1002
    %v1004 = vsel %vm600, %v884, %v1003
    %v1005 = vsel %vm602, %v920, %v1004
    %v1006 = vsel %vm590, %v710, %v674
    %v1007 = vsel %vm592, %v746, %v1006
    %v1008 = vsel %vm594, %v782, %v1007
    %v1009 = vsel %vm596, %v818, %v1008
    %v1010 = vsel %vm598, %v854, %v1009
    %v1011 = vsel %vm600, %v890, %v1010
    %v1012 = vsel %vm602, %v926, %v1011
    %v1013 = vsel %vm590, %v716, %v680
    %v1014 = vsel %vm592, %v752, %v1013
    %v1015 = vsel %vm594, %v788, %v1014
    %v1016 = vsel %vm596, %v824, %v1015
    %v1017 = vsel %vm598, %v860, %v1016
    %v1018 = vsel %vm600, %v896, %v1017
    %v1019 = vsel %vm602, %v932, %v1018
    %v1020 = vsel %vm590, %v722, %v686
    %v1021 = vsel %vm592, %v758, %v1020
    %v1022 = vsel %vm594, %v794, %v1021
    %v1023 = vsel %vm596, %v830, %v1022
    %v1024 = vsel %vm598, %v866, %v1023
    %v1025 = vsel %vm600, %v902, %v1024
    %v1026 = vsel %vm602, %v938, %v1025
    %v1027 = vsel %vm590, %v728, %v692
    %v1028 = vsel %vm592, %v764, %v1027
    %v1029 = vsel %vm594, %v800, %v1028
    %v1030 = vsel %vm596, %v836, %v1029
    %v1031 = vsel %vm598, %v872, %v1030
    %v1032 = vsel %vm600, %v908, %v1031
    %v1033 = vsel %vm602, %v944, %v1032
    %v1034 = vsel %vm590, %v734, %v698
    %v1035 = vsel %vm592, %v770, %v1034
    %v1036 = vsel %vm594, %v806, %v1035
    %v1037 = vsel %vm596, %v842, %v1036
    %v1038 = vsel %vm598, %v878, %v1037
    %v1039 = vsel %vm600, %v914, %v1038
    %v1040 = vsel %vm602, %v950, %v1039
    %v1047 = vadd.f32 %v657, %v1005
    %v1048 = vadd.f32 %v658, %v1012
    %v1049 = vadd.f32 %v659, %v1019
    %v1050 = vadd.f32 %v660, %v1026
    %v1051 = vadd.f32 %v661, %v1033
    %v1052 = vadd.f32 %v662, %v1040
    %1053 = vst [vmem:[#allocation4] sm:$0xff] %v1047
    %1054 = vst [vmem:[#allocation4 + $0x8] sm:$0xff] %v1048
    %1055 = vst [vmem:[#allocation4 + $0x10] sm:$0xff] %v1049
    %1056 = vst [vmem:[#allocation4 + $0x18] sm:$0xff] %v1050
    %1057 = vst [vmem:[#allocation4 + $0x20] sm:$0xff] %v1051
    %1058 = vst [vmem:[#allocation4 + $0x28] sm:$0xff] %v1052
    // Predicated region
    $region58: #{image_text_matching_forward.3} parent=1 // pred_check
      %p1059 = pneg %p112
    $region59: #{image_text_matching_forward.3} parent=1 // pred_check_branch
      %1061 = sbr.rel (%p1059) target = $region61
    $region60: #{image_text_matching_forward.3} parent=1 // pred_region
      %v1062 = vld [vmem:[#allocation2] sm:$0xff]
      %v1063 = vld [vmem:[#allocation2 + $0x8] sm:$0xff]
      %v1064 = vld [vmem:[#allocation2 + $0x10] sm:$0xff]
      %v1065 = vld [vmem:[#allocation2 + $0x18] sm:$0xff]
      %v1066 = vld [vmem:[#allocation2 + $0x20] sm:$0xff]
      %v1067 = vld [vmem:[#allocation2 + $0x28] sm:$0xff]
      %v1068 = vld [vmem:[#allocation3] sm:$0xff]
      %v1069 = vld [vmem:[#allocation3 + $0x8] sm:$0xff]
      %v1070 = vld [vmem:[#allocation3 + $0x10] sm:$0xff]
      %v1071 = vld [vmem:[#allocation3 + $0x18] sm:$0xff]
      %v1072 = vld [vmem:[#allocation3 + $0x20] sm:$0xff]
      %v1073 = vld [vmem:[#allocation3 + $0x28] sm:$0xff]
      %v1074 = vld [vmem:[#allocation4] sm:$0xff]
      %v1075 = vld [vmem:[#allocation4 + $0x8] sm:$0xff]
      %v1076 = vld [vmem:[#allocation4 + $0x10] sm:$0xff]
      %v1077 = vld [vmem:[#allocation4 + $0x18] sm:$0xff]
      %v1078 = vld [vmem:[#allocation4 + $0x20] sm:$0xff]
      %v1079 = vld [vmem:[#allocation4 + $0x28] sm:$0xff]
      %v1080 = vmul.f32 %v1074, 0.125
      %v1081 = vmul.f32 %v1075, 0.125
      %v1082 = vmul.f32 %v1076, 0.125
      %v1083 = vmul.f32 %v1077, 0.125
      %v1084 = vmul.f32 %v1078, 0.125
      %v1085 = vmul.f32 %v1079, 0.125
      %v1086 = vld [vmem:[#allocation5] sm:$0xf]
      %v1087 = vld [vmem:[#allocation5 + $0x4] sm:$0xf]
      %v1088 = vld [vmem:[#allocation5 + $0x8] sm:$0xf]
      %v1089 = vld [vmem:[#allocation5 + $0xc] sm:$0xf]
      %v1090 = vld [vmem:[#allocation5 + $0x10] sm:$0xf]
      %v1091 = vld [vmem:[#allocation5 + $0x14] sm:$0xf]
      %v1092 = vld [vmem:[#allocation5 + $0x18] sm:$0xf]
      %v1093 = vld [vmem:[#allocation5 + $0x1c] sm:$0xf]
      %v1094 = vld [vmem:[#allocation5 + $0x20] sm:$0xf]
      %v1095 = vld [vmem:[#allocation5 + $0x24] sm:$0xf]
      %v1096 = vld [vmem:[#allocation5 + $0x28] sm:$0xf]
      %v1097 = vld [vmem:[#allocation5 + $0x2c] sm:$0xf]
      %v1098 = vld [vmem:[#allocation5 + $0x30] sm:$0xf]
      %v1099 = vld [vmem:[#allocation5 + $0x34] sm:$0xf]
      %v1100 = vld [vmem:[#allocation5 + $0x38] sm:$0xf]
      %v1101 = vld [vmem:[#allocation5 + $0x3c] sm:$0xf]
      %v1102 = vld [vmem:[#allocation5 + $0x40] sm:$0xf]
      %v1103 = vld [vmem:[#allocation5 + $0x44] sm:$0xf]
      %v1104 = vld [vmem:[#allocation5 + $0x48] sm:$0xf]
      %v1105 = vld [vmem:[#allocation5 + $0x4c] sm:$0xf]
      %v1106 = vld [vmem:[#allocation5 + $0x50] sm:$0xf]
      %v1107 = vld [vmem:[#allocation5 + $0x54] sm:$0xf]
      %v1108 = vld [vmem:[#allocation5 + $0x58] sm:$0xf]
      %v1109 = vld [vmem:[#allocation5 + $0x5c] sm:$0xf]
      %v1110 = vld [vmem:[#allocation5 + $0x60] sm:$0xf]
      %v1111 = vld [vmem:[#allocation5 + $0x64] sm:$0xf]
      %v1112 = vld [vmem:[#allocation5 + $0x68] sm:$0xf]
      %v1113 = vld [vmem:[#allocation5 + $0x6c] sm:$0xf]
      %v1114 = vld [vmem:[#allocation5 + $0x70] sm:$0xf]
      %v1115 = vld [vmem:[#allocation5 + $0x74] sm:$0xf]
      %v1116 = vld [vmem:[#allocation5 + $0x78] sm:$0xf]
      %v1117 = vld [vmem:[#allocation5 + $0x7c] sm:$0xf]
      %v1118 = vld [vmem:[#allocation5 + $0x80] sm:$0xf]
      %v1119 = vld [vmem:[#allocation5 + $0x84] sm:$0xf]
      %v1120 = vld [vmem:[#allocation5 + $0x88] sm:$0xf]
      %v1121 = vld [vmem:[#allocation5 + $0x8c] sm:$0xf]
      %v1122 = vld [vmem:[#allocation5 + $0x90] sm:$0xf]
      %v1123 = vld [vmem:[#allocation5 + $0x94] sm:$0xf]
      %v1124 = vld [vmem:[#allocation5 + $0x98] sm:$0xf]
      %v1125 = vld [vmem:[#allocation5 + $0x9c] sm:$0xf]
      %v1126 = vld [vmem:[#allocation5 + $0xa0] sm:$0xf]
      %v1127 = vld [vmem:[#allocation5 + $0xa4] sm:$0xf]
      %v1128 = vld [vmem:[#allocation5 + $0xa8] sm:$0xf]
      %v1129 = vld [vmem:[#allocation5 + $0xac] sm:$0xf]
      %v1130 = vld [vmem:[#allocation5 + $0xb0] sm:$0xf]
      %v1131 = vld [vmem:[#allocation5 + $0xb4] sm:$0xf]
      %v1132 = vld [vmem:[#allocation5 + $0xb8] sm:$0xf]
      %v1133 = vld [vmem:[#allocation5 + $0xbc] sm:$0xf]
      %v1134 = vld [vmem:[#allocation5 + $0xc0] sm:$0xf]
      %v1135 = vld [vmem:[#allocation5 + $0xc4] sm:$0xf]
      %v1136 = vld [vmem:[#allocation5 + $0xc8] sm:$0xf]
      %v1137 = vld [vmem:[#allocation5 + $0xcc] sm:$0xf]
      %v1138 = vld [vmem:[#allocation5 + $0xd0] sm:$0xf]
      %v1139 = vld [vmem:[#allocation5 + $0xd4] sm:$0xf]
      %v1140 = vld [vmem:[#allocation5 + $0xd8] sm:$0xf]
      %v1141 = vld [vmem:[#allocation5 + $0xdc] sm:$0xf]
      %v1142 = vld [vmem:[#allocation5 + $0xe0] sm:$0xf]
      %v1143 = vld [vmem:[#allocation5 + $0xe4] sm:$0xf]
      %v1144 = vld [vmem:[#allocation5 + $0xe8] sm:$0xf]
      %v1145 = vld [vmem:[#allocation5 + $0xec] sm:$0xf]
      %v1146 = vld [vmem:[#allocation5 + $0xf0] sm:$0xf]
      %v1147 = vld [vmem:[#allocation5 + $0xf4] sm:$0xf]
      %v1148 = vld [vmem:[#allocation5 + $0xf8] sm:$0xf]
      %v1149 = vld [vmem:[#allocation5 + $0xfc] sm:$0xf]
      %v1150 = vld [vmem:[#allocation5 + $0x100] sm:$0xf]
      %v1151 = vld [vmem:[#allocation5 + $0x104] sm:$0xf]
      %v1152 = vld [vmem:[#allocation5 + $0x108] sm:$0xf]
      %v1153 = vld [vmem:[#allocation5 + $0x10c] sm:$0xf]
      %v1154 = vld [vmem:[#allocation5 + $0x110] sm:$0xf]
      %v1155 = vld [vmem:[#allocation5 + $0x114] sm:$0xf]
      %v1156 = vld [vmem:[#allocation5 + $0x118] sm:$0xf]
      %v1157 = vld [vmem:[#allocation5 + $0x11c] sm:$0xf]
      %v1158 = vld [vmem:[#allocation5 + $0x120] sm:$0xf]
      %v1159 = vld [vmem:[#allocation5 + $0x124] sm:$0xf]
      %v1160 = vld [vmem:[#allocation5 + $0x128] sm:$0xf]
      %v1161 = vld [vmem:[#allocation5 + $0x12c] sm:$0xf]
      %v1162 = vld [vmem:[#allocation5 + $0x130] sm:$0xf]
      %v1163 = vld [vmem:[#allocation5 + $0x134] sm:$0xf]
      %v1164 = vld [vmem:[#allocation5 + $0x138] sm:$0xf]
      %v1165 = vld [vmem:[#allocation5 + $0x13c] sm:$0xf]
      %v1166 = vld [vmem:[#allocation5 + $0x140] sm:$0xf]
      %v1167 = vld [vmem:[#allocation5 + $0x144] sm:$0xf]
      %v1168 = vld [vmem:[#allocation5 + $0x148] sm:$0xf]
      %v1169 = vld [vmem:[#allocation5 + $0x14c] sm:$0xf]
      %v1170 = vld [vmem:[#allocation5 + $0x150] sm:$0xf]
      %v1171 = vld [vmem:[#allocation5 + $0x154] sm:$0xf]
      %v1172 = vld [vmem:[#allocation5 + $0x158] sm:$0xf]
      %v1173 = vld [vmem:[#allocation5 + $0x15c] sm:$0xf]
      %v1174 = vld [vmem:[#allocation5 + $0x160] sm:$0xf]
      %v1175 = vld [vmem:[#allocation5 + $0x164] sm:$0xf]
      %v1176 = vld [vmem:[#allocation5 + $0x168] sm:$0xf]
      %v1177 = vld [vmem:[#allocation5 + $0x16c] sm:$0xf]
      %v1178 = vld [vmem:[#allocation5 + $0x170] sm:$0xf]
      %v1179 = vld [vmem:[#allocation5 + $0x174] sm:$0xf]
      %v1180 = vld [vmem:[#allocation5 + $0x178] sm:$0xf]
      %v1181 = vld [vmem:[#allocation5 + $0x17c] sm:$0xf]
      %v1182 = vld [vmem:[#allocation5 + $0x180] sm:$0xf]
      %v1183 = vld [vmem:[#allocation5 + $0x184] sm:$0xf]
      %v1184 = vld [vmem:[#allocation5 + $0x188] sm:$0xf]
      %v1185 = vld [vmem:[#allocation5 + $0x18c] sm:$0xf]
      %v1186 = vld [vmem:[#allocation5 + $0x190] sm:$0xf]
      %v1187 = vld [vmem:[#allocation5 + $0x194] sm:$0xf]
      %v1188 = vld [vmem:[#allocation5 + $0x198] sm:$0xf]
      %v1189 = vld [vmem:[#allocation5 + $0x19c] sm:$0xf]
      %v1190 = vld [vmem:[#allocation5 + $0x1a0] sm:$0xf]
      %v1191 = vld [vmem:[#allocation5 + $0x1a4] sm:$0xf]
      %v1192 = vld [vmem:[#allocation5 + $0x1a8] sm:$0xf]
      %v1193 = vld [vmem:[#allocation5 + $0x1ac] sm:$0xf]
      %v1194 = vld [vmem:[#allocation5 + $0x1b0] sm:$0xf]
      %v1195 = vld [vmem:[#allocation5 + $0x1b4] sm:$0xf]
      %v1196 = vld [vmem:[#allocation5 + $0x1b8] sm:$0xf]
      %v1197 = vld [vmem:[#allocation5 + $0x1bc] sm:$0xf]
      %v1198 = vld [vmem:[#allocation5 + $0x1c0] sm:$0xf]
      %v1199 = vld [vmem:[#allocation5 + $0x1c4] sm:$0xf]
      %v1200 = vld [vmem:[#allocation5 + $0x1c8] sm:$0xf]
      %v1201 = vld [vmem:[#allocation5 + $0x1cc] sm:$0xf]
      %v1202 = vld [vmem:[#allocation5 + $0x1d0] sm:$0xf]
      %v1203 = vld [vmem:[#allocation5 + $0x1d4] sm:$0xf]
      %v1204 = vld [vmem:[#allocation5 + $0x1d8] sm:$0xf]
      %v1205 = vld [vmem:[#allocation5 + $0x1dc] sm:$0xf]
      %v1206 = vld [vmem:[#allocation5 + $0x1e0] sm:$0xf]
      %v1207 = vld [vmem:[#allocation5 + $0x1e4] sm:$0xf]
      %v1208 = vld [vmem:[#allocation5 + $0x1e8] sm:$0xf]
      %v1209 = vld [vmem:[#allocation5 + $0x1ec] sm:$0xf]
      %v1210 = vld [vmem:[#allocation5 + $0x1f0] sm:$0xf]
      %v1211 = vld [vmem:[#allocation5 + $0x1f4] sm:$0xf]
      %v1212 = vld [vmem:[#allocation5 + $0x1f8] sm:$0xf]
      %v1213 = vld [vmem:[#allocation5 + $0x1fc] sm:$0xf]
      %v1214 = vld [vmem:[#allocation5 + $0x200] sm:$0xf]
      %v1215 = vld [vmem:[#allocation5 + $0x204] sm:$0xf]
      %v1216 = vld [vmem:[#allocation5 + $0x208] sm:$0xf]
      %v1217 = vld [vmem:[#allocation5 + $0x20c] sm:$0xf]
      %v1218 = vld [vmem:[#allocation5 + $0x210] sm:$0xf]
      %v1219 = vld [vmem:[#allocation5 + $0x214] sm:$0xf]
      %v1220 = vld [vmem:[#allocation5 + $0x218] sm:$0xf]
      %v1221 = vld [vmem:[#allocation5 + $0x21c] sm:$0xf]
      %v1222 = vld [vmem:[#allocation5 + $0x220] sm:$0xf]
      %v1223 = vld [vmem:[#allocation5 + $0x224] sm:$0xf]
      %v1224 = vld [vmem:[#allocation5 + $0x228] sm:$0xf]
      %v1225 = vld [vmem:[#allocation5 + $0x22c] sm:$0xf]
      %v1226 = vld [vmem:[#allocation5 + $0x230] sm:$0xf]
      %v1227 = vld [vmem:[#allocation5 + $0x234] sm:$0xf]
      %v1228 = vld [vmem:[#allocation5 + $0x238] sm:$0xf]
      %v1229 = vld [vmem:[#allocation5 + $0x23c] sm:$0xf]
      %v1230 = vld [vmem:[#allocation5 + $0x240] sm:$0xf]
      %v1231 = vld [vmem:[#allocation5 + $0x244] sm:$0xf]
      %v1232 = vld [vmem:[#allocation5 + $0x248] sm:$0xf]
      %v1233 = vld [vmem:[#allocation5 + $0x24c] sm:$0xf]
      %v1234 = vld [vmem:[#allocation5 + $0x250] sm:$0xf]
      %v1235 = vld [vmem:[#allocation5 + $0x254] sm:$0xf]
      %v1236 = vld [vmem:[#allocation5 + $0x258] sm:$0xf]
      %v1237 = vld [vmem:[#allocation5 + $0x25c] sm:$0xf]
      %v1238 = vld [vmem:[#allocation5 + $0x260] sm:$0xf]
      %v1239 = vld [vmem:[#allocation5 + $0x264] sm:$0xf]
      %v1240 = vld [vmem:[#allocation5 + $0x268] sm:$0xf]
      %v1241 = vld [vmem:[#allocation5 + $0x26c] sm:$0xf]
      %v1242 = vld [vmem:[#allocation5 + $0x270] sm:$0xf]
      %v1243 = vld [vmem:[#allocation5 + $0x274] sm:$0xf]
      %v1244 = vld [vmem:[#allocation5 + $0x278] sm:$0xf]
      %v1245 = vld [vmem:[#allocation5 + $0x27c] sm:$0xf]
      %v1246 = vld [vmem:[#allocation5 + $0x280] sm:$0xf]
      %v1247 = vld [vmem:[#allocation5 + $0x284] sm:$0xf]
      %v1248 = vld [vmem:[#allocation5 + $0x288] sm:$0xf]
      %v1249 = vld [vmem:[#allocation5 + $0x28c] sm:$0xf]
      %v1250 = vld [vmem:[#allocation5 + $0x290] sm:$0xf]
      %v1251 = vld [vmem:[#allocation5 + $0x294] sm:$0xf]
      %v1252 = vld [vmem:[#allocation5 + $0x298] sm:$0xf]
      %v1253 = vld [vmem:[#allocation5 + $0x29c] sm:$0xf]
      %v1254 = vld [vmem:[#allocation5 + $0x2a0] sm:$0xf]
      %v1255 = vld [vmem:[#allocation5 + $0x2a4] sm:$0xf]
      %v1256 = vld [vmem:[#allocation5 + $0x2a8] sm:$0xf]
      %v1257 = vld [vmem:[#allocation5 + $0x2ac] sm:$0xf]
      %v1258 = vld [vmem:[#allocation5 + $0x2b0] sm:$0xf]
      %v1259 = vld [vmem:[#allocation5 + $0x2b4] sm:$0xf]
      %v1260 = vld [vmem:[#allocation5 + $0x2b8] sm:$0xf]
      %v1261 = vld [vmem:[#allocation5 + $0x2bc] sm:$0xf]
      %v1262 = vld [vmem:[#allocation5 + $0x2c0] sm:$0xf]
      %v1263 = vld [vmem:[#allocation5 + $0x2c4] sm:$0xf]
      %v1264 = vld [vmem:[#allocation5 + $0x2c8] sm:$0xf]
      %v1265 = vld [vmem:[#allocation5 + $0x2cc] sm:$0xf]
      %v1266 = vld [vmem:[#allocation5 + $0x2d0] sm:$0xf]
      %v1267 = vld [vmem:[#allocation5 + $0x2d4] sm:$0xf]
      %v1268 = vld [vmem:[#allocation5 + $0x2d8] sm:$0xf]
      %v1269 = vld [vmem:[#allocation5 + $0x2dc] sm:$0xf]
      %v1270 = vld [vmem:[#allocation5 + $0x2e0] sm:$0xf]
      %v1271 = vld [vmem:[#allocation5 + $0x2e4] sm:$0xf]
      %v1272 = vld [vmem:[#allocation5 + $0x2e8] sm:$0xf]
      %v1273 = vld [vmem:[#allocation5 + $0x2ec] sm:$0xf]
      %v1274 = vld [vmem:[#allocation5 + $0x2f0] sm:$0xf]
      %v1275 = vld [vmem:[#allocation5 + $0x2f4] sm:$0xf]
      %v1276 = vld [vmem:[#allocation5 + $0x2f8] sm:$0xf]
      %v1277 = vld [vmem:[#allocation5 + $0x2fc] sm:$0xf]
      %v1278 = vld [vmem:[#allocation5 + $0x300] sm:$0xf]
      %v1279 = vld [vmem:[#allocation5 + $0x304] sm:$0xf]
      %v1280 = vld [vmem:[#allocation5 + $0x308] sm:$0xf]
      %v1281 = vld [vmem:[#allocation5 + $0x30c] sm:$0xf]
      %v1282 = vld [vmem:[#allocation5 + $0x310] sm:$0xf]
      %v1283 = vld [vmem:[#allocation5 + $0x314] sm:$0xf]
      %v1284 = vld [vmem:[#allocation5 + $0x318] sm:$0xf]
      %v1285 = vld [vmem:[#allocation5 + $0x31c] sm:$0xf]
      %v1286 = vld [vmem:[#allocation5 + $0x320] sm:$0xf]
      %v1287 = vld [vmem:[#allocation5 + $0x324] sm:$0xf]
      %v1288 = vld [vmem:[#allocation5 + $0x328] sm:$0xf]
      %v1289 = vld [vmem:[#allocation5 + $0x32c] sm:$0xf]
      %v1290 = vld [vmem:[#allocation5 + $0x330] sm:$0xf]
      %v1291 = vld [vmem:[#allocation5 + $0x334] sm:$0xf]
      %v1292 = vld [vmem:[#allocation5 + $0x338] sm:$0xf]
      %v1293 = vld [vmem:[#allocation5 + $0x33c] sm:$0xf]
      %v1294 = vld [vmem:[#allocation5 + $0x340] sm:$0xf]
      %v1295 = vld [vmem:[#allocation5 + $0x344] sm:$0xf]
      %v1296 = vld [vmem:[#allocation5 + $0x348] sm:$0xf]
      %v1297 = vld [vmem:[#allocation5 + $0x34c] sm:$0xf]
      %v1298 = vld [vmem:[#allocation5 + $0x350] sm:$0xf]
      %v1299 = vld [vmem:[#allocation5 + $0x354] sm:$0xf]
      %v1300 = vld [vmem:[#allocation5 + $0x358] sm:$0xf]
      %v1301 = vld [vmem:[#allocation5 + $0x35c] sm:$0xf]
      %v1302 = vld [vmem:[#allocation5 + $0x360] sm:$0xf]
      %v1303 = vld [vmem:[#allocation5 + $0x364] sm:$0xf]
      %v1304 = vld [vmem:[#allocation5 + $0x368] sm:$0xf]
      %v1305 = vld [vmem:[#allocation5 + $0x36c] sm:$0xf]
      %v1306 = vld [vmem:[#allocation5 + $0x370] sm:$0xf]
      %v1307 = vld [vmem:[#allocation5 + $0x374] sm:$0xf]
      %v1308 = vld [vmem:[#allocation5 + $0x378] sm:$0xf]
      %v1309 = vld [vmem:[#allocation5 + $0x37c] sm:$0xf]
      %v1310 = vld [vmem:[#allocation5 + $0x380] sm:$0xf]
      %v1311 = vld [vmem:[#allocation5 + $0x384] sm:$0xf]
      %v1312 = vld [vmem:[#allocation5 + $0x388] sm:$0xf]
      %v1313 = vld [vmem:[#allocation5 + $0x38c] sm:$0xf]
      %v1314 = vld [vmem:[#allocation5 + $0x390] sm:$0xf]
      %v1315 = vld [vmem:[#allocation5 + $0x394] sm:$0xf]
      %v1316 = vld [vmem:[#allocation5 + $0x398] sm:$0xf]
      %v1317 = vld [vmem:[#allocation5 + $0x39c] sm:$0xf]
      %v1318 = vld [vmem:[#allocation5 + $0x3a0] sm:$0xf]
      %v1319 = vld [vmem:[#allocation5 + $0x3a4] sm:$0xf]
      %v1320 = vld [vmem:[#allocation5 + $0x3a8] sm:$0xf]
      %v1321 = vld [vmem:[#allocation5 + $0x3ac] sm:$0xf]
      %v1322 = vld [vmem:[#allocation5 + $0x3b0] sm:$0xf]
      %v1323 = vld [vmem:[#allocation5 + $0x3b4] sm:$0xf]
      %v1324 = vld [vmem:[#allocation5 + $0x3b8] sm:$0xf]
      %v1325 = vld [vmem:[#allocation5 + $0x3bc] sm:$0xf]
      %v1326 = vld [vmem:[#allocation5 + $0x3c0] sm:$0xf]
      %v1327 = vld [vmem:[#allocation5 + $0x3c4] sm:$0xf]
      %v1328 = vld [vmem:[#allocation5 + $0x3c8] sm:$0xf]
      %v1329 = vld [vmem:[#allocation5 + $0x3cc] sm:$0xf]
      %v1330 = vld [vmem:[#allocation5 + $0x3d0] sm:$0xf]
      %v1331 = vld [vmem:[#allocation5 + $0x3d4] sm:$0xf]
      %v1332 = vld [vmem:[#allocation5 + $0x3d8] sm:$0xf]
      %v1333 = vld [vmem:[#allocation5 + $0x3dc] sm:$0xf]
      %v1334 = vld [vmem:[#allocation5 + $0x3e0] sm:$0xf]
      %v1335 = vld [vmem:[#allocation5 + $0x3e4] sm:$0xf]
      %v1336 = vld [vmem:[#allocation5 + $0x3e8] sm:$0xf]
      %v1337 = vld [vmem:[#allocation5 + $0x3ec] sm:$0xf]
      %v1338 = vld [vmem:[#allocation5 + $0x3f0] sm:$0xf]
      %v1339 = vld [vmem:[#allocation5 + $0x3f4] sm:$0xf]
      %v1340 = vld [vmem:[#allocation5 + $0x3f8] sm:$0xf]
      %v1341 = vld [vmem:[#allocation5 + $0x3fc] sm:$0xf]
      %v1342 = vld [vmem:[#allocation5 + $0x400] sm:$0xf]
      %v1343 = vld [vmem:[#allocation5 + $0x404] sm:$0xf]
      %v1344 = vld [vmem:[#allocation5 + $0x408] sm:$0xf]
      %v1345 = vld [vmem:[#allocation5 + $0x40c] sm:$0xf]
      %v1346 = vld [vmem:[#allocation5 + $0x410] sm:$0xf]
      %v1347 = vld [vmem:[#allocation5 + $0x414] sm:$0xf]
      %v1348 = vld [vmem:[#allocation5 + $0x418] sm:$0xf]
      %v1349 = vld [vmem:[#allocation5 + $0x41c] sm:$0xf]
      %v1350 = vld [vmem:[#allocation5 + $0x420] sm:$0xf]
      %v1351 = vld [vmem:[#allocation5 + $0x424] sm:$0xf]
      %v1352 = vld [vmem:[#allocation5 + $0x428] sm:$0xf]
      %v1353 = vld [vmem:[#allocation5 + $0x42c] sm:$0xf]
      %v1354 = vld [vmem:[#allocation5 + $0x430] sm:$0xf]
      %v1355 = vld [vmem:[#allocation5 + $0x434] sm:$0xf]
      %v1356 = vld [vmem:[#allocation5 + $0x438] sm:$0xf]
      %v1357 = vld [vmem:[#allocation5 + $0x43c] sm:$0xf]
      %v1358 = vld [vmem:[#allocation5 + $0x440] sm:$0xf]
      %v1359 = vld [vmem:[#allocation5 + $0x444] sm:$0xf]
      %v1360 = vld [vmem:[#allocation5 + $0x448] sm:$0xf]
      %v1361 = vld [vmem:[#allocation5 + $0x44c] sm:$0xf]
      %v1362 = vld [vmem:[#allocation5 + $0x450] sm:$0xf]
      %v1363 = vld [vmem:[#allocation5 + $0x454] sm:$0xf]
      %v1364 = vld [vmem:[#allocation5 + $0x458] sm:$0xf]
      %v1365 = vld [vmem:[#allocation5 + $0x45c] sm:$0xf]
      %v1366 = vld [vmem:[#allocation5 + $0x460] sm:$0xf]
      %v1367 = vld [vmem:[#allocation5 + $0x464] sm:$0xf]
      %v1368 = vld [vmem:[#allocation5 + $0x468] sm:$0xf]
      %v1369 = vld [vmem:[#allocation5 + $0x46c] sm:$0xf]
      %v1370 = vld [vmem:[#allocation5 + $0x470] sm:$0xf]
      %v1371 = vld [vmem:[#allocation5 + $0x474] sm:$0xf]
      %v1372 = vld [vmem:[#allocation5 + $0x478] sm:$0xf]
      %v1373 = vld [vmem:[#allocation5 + $0x47c] sm:$0xf]
      %v1374 = vld [vmem:[#allocation7] sm:$0x1]
      %v1375 = vld [vmem:[#allocation9] sm:$0x1]
      %v1376 = vld [vmem:[#allocation10] sm:$0x1]
      %v1377 = vld [vmem:[#allocation12] sm:$0xff]
      %v1378 = vld [vmem:[#allocation12 + $0x8] sm:$0xff]
      %v1379 = vld [vmem:[#allocation12 + $0x10] sm:$0xff]
      %v1380 = vld [vmem:[#allocation12 + $0x18] sm:$0xff]
      %v1381 = vld [vmem:[#allocation12 + $0x20] sm:$0xff]
      %v1382 = vld [vmem:[#allocation12 + $0x28] sm:$0xff]
      %v1383 = vld [vmem:[#allocation12 + $0x30] sm:$0xff]
      %v1384 = vld [vmem:[#allocation12 + $0x38] sm:$0xff]
      %v1385 = vld [vmem:[#allocation12 + $0x40] sm:$0xff]
      %v1386 = vld [vmem:[#allocation12 + $0x48] sm:$0xff]
      %v1387 = vld [vmem:[#allocation12 + $0x50] sm:$0xff]
      %v1388 = vld [vmem:[#allocation12 + $0x58] sm:$0xff]
      %v1389 = vld [vmem:[#allocation12 + $0x60] sm:$0xff]
      %v1390 = vld [vmem:[#allocation12 + $0x68] sm:$0xff]
      %v1391 = vld [vmem:[#allocation12 + $0x70] sm:$0xff]
      %v1392 = vld [vmem:[#allocation12 + $0x78] sm:$0xff]
      %v1393 = vld [vmem:[#allocation13] sm:$0x1]
      %v1394 = vpack.c.bf16 %v1062, %v1062
      %v1395 = vpack.c.bf16 %v1063, %v1063
      %v1396 = vpack.c.bf16 %v1064, %v1064
      %v1397 = vpack.c.bf16 %v1065, %v1065
      %v1398 = vpack.c.bf16 %v1066, %v1066
      %v1399 = vpack.c.bf16 %v1067, %v1067
      %v1400 = vpack.c.bf16 %v1068, %v1068
      %v1401 = vpack.c.bf16 %v1069, %v1069
      %v1402 = vpack.c.bf16 %v1070, %v1070
      %v1403 = vpack.c.bf16 %v1071, %v1071
      %v1404 = vpack.c.bf16 %v1072, %v1072
      %v1405 = vpack.c.bf16 %v1073, %v1073
      %v1406 = vpack.c.bf16 %v1080, %v1080
      %v1407 = vpack.c.bf16 %v1081, %v1081
      %v1408 = vpack.c.bf16 %v1082, %v1082
      %v1409 = vpack.c.bf16 %v1083, %v1083
      %v1410 = vpack.c.bf16 %v1084, %v1084
      %v1411 = vpack.c.bf16 %v1085, %v1085
      %v1413 = vperm.slane %v1374, 0
      %v1703 = vunpack.c.l.b16 %v1086
      %v1704 = vunpack.c.l.b16 %v1087
      %v1705 = vunpack.c.l.b16 %v1088
      %v1706 = vunpack.c.l.b16 %v1089
      %v1707 = vunpack.c.l.b16 %v1090
      %v1708 = vunpack.c.l.b16 %v1091
      %v1709 = vunpack.c.l.b16 %v1092
      %v1710 = vunpack.c.l.b16 %v1093
      %v1711 = vunpack.c.l.b16 %v1094
      %v1712 = vunpack.c.l.b16 %v1095
      %v1713 = vunpack.c.l.b16 %v1096
      %v1714 = vunpack.c.l.b16 %v1097
      %v1715 = vunpack.c.l.b16 %v1098
      %v1716 = vunpack.c.l.b16 %v1099
      %v1717 = vunpack.c.l.b16 %v1100
      %v1718 = vunpack.c.l.b16 %v1101
      %v1719 = vunpack.c.l.b16 %v1102
      %v1720 = vunpack.c.l.b16 %v1103
      %v1721 = vunpack.c.l.b16 %v1104
      %v1722 = vunpack.c.l.b16 %v1105
      %v1723 = vunpack.c.l.b16 %v1106
      %v1724 = vunpack.c.l.b16 %v1107
      %v1725 = vunpack.c.l.b16 %v1108
      %v1726 = vunpack.c.l.b16 %v1109
      %v1727 = vunpack.c.l.b16 %v1110
      %v1728 = vunpack.c.l.b16 %v1111
      %v1729 = vunpack.c.l.b16 %v1112
      %v1730 = vunpack.c.l.b16 %v1113
      %v1731 = vunpack.c.l.b16 %v1114
      %v1732 = vunpack.c.l.b16 %v1115
      %v1733 = vunpack.c.l.b16 %v1116
      %v1734 = vunpack.c.l.b16 %v1117
      %v1735 = vunpack.c.l.b16 %v1118
      %v1736 = vunpack.c.l.b16 %v1119
      %v1737 = vunpack.c.l.b16 %v1120
      %v1738 = vunpack.c.l.b16 %v1121
      %v1739 = vunpack.c.l.b16 %v1122
      %v1740 = vunpack.c.l.b16 %v1123
      %v1741 = vunpack.c.l.b16 %v1124
      %v1742 = vunpack.c.l.b16 %v1125
      %v1743 = vunpack.c.l.b16 %v1126
      %v1744 = vunpack.c.l.b16 %v1127
      %v1745 = vunpack.c.l.b16 %v1128
      %v1746 = vunpack.c.l.b16 %v1129
      %v1747 = vunpack.c.l.b16 %v1130
      %v1748 = vunpack.c.l.b16 %v1131
      %v1749 = vunpack.c.l.b16 %v1132
      %v1750 = vunpack.c.l.b16 %v1133
      %v1751 = vunpack.c.l.b16 %v1134
      %v1752 = vunpack.c.l.b16 %v1135
      %v1753 = vunpack.c.l.b16 %v1136
      %v1754 = vunpack.c.l.b16 %v1137
      %v1755 = vunpack.c.l.b16 %v1138
      %v1756 = vunpack.c.l.b16 %v1139
      %v1757 = vunpack.c.l.b16 %v1140
      %v1758 = vunpack.c.l.b16 %v1141
      %v1759 = vunpack.c.l.b16 %v1142
      %v1760 = vunpack.c.l.b16 %v1143
      %v1761 = vunpack.c.l.b16 %v1144
      %v1762 = vunpack.c.l.b16 %v1145
      %v1763 = vunpack.c.l.b16 %v1146
      %v1764 = vunpack.c.l.b16 %v1147
      %v1765 = vunpack.c.l.b16 %v1148
      %v1766 = vunpack.c.l.b16 %v1149
      %v1767 = vunpack.c.l.b16 %v1150
      %v1768 = vunpack.c.l.b16 %v1151
      %v1769 = vunpack.c.l.b16 %v1152
      %v1770 = vunpack.c.l.b16 %v1153
      %v1771 = vunpack.c.l.b16 %v1154
      %v1772 = vunpack.c.l.b16 %v1155
      %v1773 = vunpack.c.l.b16 %v1156
      %v1774 = vunpack.c.l.b16 %v1157
      %v1775 = vunpack.c.l.b16 %v1158
      %v1776 = vunpack.c.l.b16 %v1159
      %v1777 = vunpack.c.l.b16 %v1160
      %v1778 = vunpack.c.l.b16 %v1161
      %v1779 = vunpack.c.l.b16 %v1162
      %v1780 = vunpack.c.l.b16 %v1163
      %v1781 = vunpack.c.l.b16 %v1164
      %v1782 = vunpack.c.l.b16 %v1165
      %v1783 = vunpack.c.l.b16 %v1166
      %v1784 = vunpack.c.l.b16 %v1167
      %v1785 = vunpack.c.l.b16 %v1168
      %v1786 = vunpack.c.l.b16 %v1169
      %v1787 = vunpack.c.l.b16 %v1170
      %v1788 = vunpack.c.l.b16 %v1171
      %v1789 = vunpack.c.l.b16 %v1172
      %v1790 = vunpack.c.l.b16 %v1173
      %v1791 = vunpack.c.l.b16 %v1174
      %v1792 = vunpack.c.l.b16 %v1175
      %v1793 = vunpack.c.l.b16 %v1176
      %v1794 = vunpack.c.l.b16 %v1177
      %v1795 = vunpack.c.l.b16 %v1178
      %v1796 = vunpack.c.l.b16 %v1179
      %v1797 = vunpack.c.l.b16 %v1180
      %v1798 = vunpack.c.l.b16 %v1181
      %v1799 = vunpack.c.l.b16 %v1182
      %v1800 = vunpack.c.l.b16 %v1183
      %v1801 = vunpack.c.l.b16 %v1184
      %v1802 = vunpack.c.l.b16 %v1185
      %v1803 = vunpack.c.l.b16 %v1186
      %v1804 = vunpack.c.l.b16 %v1187
      %v1805 = vunpack.c.l.b16 %v1188
      %v1806 = vunpack.c.l.b16 %v1189
      %v1807 = vunpack.c.l.b16 %v1190
      %v1808 = vunpack.c.l.b16 %v1191
      %v1809 = vunpack.c.l.b16 %v1192
      %v1810 = vunpack.c.l.b16 %v1193
      %v1811 = vunpack.c.l.b16 %v1194
      %v1812 = vunpack.c.l.b16 %v1195
      %v1813 = vunpack.c.l.b16 %v1196
      %v1814 = vunpack.c.l.b16 %v1197
      %v1815 = vunpack.c.l.b16 %v1198
      %v1816 = vunpack.c.l.b16 %v1199
      %v1817 = vunpack.c.l.b16 %v1200
      %v1818 = vunpack.c.l.b16 %v1201
      %v1819 = vunpack.c.l.b16 %v1202
      %v1820 = vunpack.c.l.b16 %v1203
      %v1821 = vunpack.c.l.b16 %v1204
      %v1822 = vunpack.c.l.b16 %v1205
      %v1823 = vunpack.c.l.b16 %v1206
      %v1824 = vunpack.c.l.b16 %v1207
      %v1825 = vunpack.c.l.b16 %v1208
      %v1826 = vunpack.c.l.b16 %v1209
      %v1827 = vunpack.c.l.b16 %v1210
      %v1828 = vunpack.c.l.b16 %v1211
      %v1829 = vunpack.c.l.b16 %v1212
      %v1830 = vunpack.c.l.b16 %v1213
      %v1831 = vunpack.c.l.b16 %v1214
      %v1832 = vunpack.c.l.b16 %v1215
      %v1833 = vunpack.c.l.b16 %v1216
      %v1834 = vunpack.c.l.b16 %v1217
      %v1835 = vunpack.c.l.b16 %v1218
      %v1836 = vunpack.c.l.b16 %v1219
      %v1837 = vunpack.c.l.b16 %v1220
      %v1838 = vunpack.c.l.b16 %v1221
      %v1839 = vunpack.c.l.b16 %v1222
      %v1840 = vunpack.c.l.b16 %v1223
      %v1841 = vunpack.c.l.b16 %v1224
      %v1842 = vunpack.c.l.b16 %v1225
      %v1843 = vunpack.c.l.b16 %v1226
      %v1844 = vunpack.c.l.b16 %v1227
      %v1845 = vunpack.c.l.b16 %v1228
      %v1846 = vunpack.c.l.b16 %v1229
      %v1847 = vunpack.c.l.b16 %v1230
      %v1848 = vunpack.c.l.b16 %v1231
      %v1849 = vunpack.c.l.b16 %v1232
      %v1850 = vunpack.c.l.b16 %v1233
      %v1851 = vunpack.c.l.b16 %v1234
      %v1852 = vunpack.c.l.b16 %v1235
      %v1853 = vunpack.c.l.b16 %v1236
      %v1854 = vunpack.c.l.b16 %v1237
      %v1855 = vunpack.c.l.b16 %v1238
      %v1856 = vunpack.c.l.b16 %v1239
      %v1857 = vunpack.c.l.b16 %v1240
      %v1858 = vunpack.c.l.b16 %v1241
      %v1859 = vunpack.c.l.b16 %v1242
      %v1860 = vunpack.c.l.b16 %v1243
      %v1861 = vunpack.c.l.b16 %v1244
      %v1862 = vunpack.c.l.b16 %v1245
      %v1863 = vunpack.c.l.b16 %v1246
      %v1864 = vunpack.c.l.b16 %v1247
      %v1865 = vunpack.c.l.b16 %v1248
      %v1866 = vunpack.c.l.b16 %v1249
      %v1867 = vunpack.c.l.b16 %v1250
      %v1868 = vunpack.c.l.b16 %v1251
      %v1869 = vunpack.c.l.b16 %v1252
      %v1870 = vunpack.c.l.b16 %v1253
      %v1871 = vunpack.c.l.b16 %v1254
      %v1872 = vunpack.c.l.b16 %v1255
      %v1873 = vunpack.c.l.b16 %v1256
      %v1874 = vunpack.c.l.b16 %v1257
      %v1875 = vunpack.c.l.b16 %v1258
      %v1876 = vunpack.c.l.b16 %v1259
      %v1877 = vunpack.c.l.b16 %v1260
      %v1878 = vunpack.c.l.b16 %v1261
      %v1879 = vunpack.c.l.b16 %v1262
      %v1880 = vunpack.c.l.b16 %v1263
      %v1881 = vunpack.c.l.b16 %v1264
      %v1882 = vunpack.c.l.b16 %v1265
      %v1883 = vunpack.c.l.b16 %v1266
      %v1884 = vunpack.c.l.b16 %v1267
      %v1885 = vunpack.c.l.b16 %v1268
      %v1886 = vunpack.c.l.b16 %v1269
      %v1887 = vunpack.c.l.b16 %v1270
      %v1888 = vunpack.c.l.b16 %v1271
      %v1889 = vunpack.c.l.b16 %v1272
      %v1890 = vunpack.c.l.b16 %v1273
      %v1891 = vunpack.c.l.b16 %v1274
      %v1892 = vunpack.c.l.b16 %v1275
      %v1893 = vunpack.c.l.b16 %v1276
      %v1894 = vunpack.c.l.b16 %v1277
      %v1895 = vunpack.c.l.b16 %v1278
      %v1896 = vunpack.c.l.b16 %v1279
      %v1897 = vunpack.c.l.b16 %v1280
      %v1898 = vunpack.c.l.b16 %v1281
      %v1899 = vunpack.c.l.b16 %v1282
      %v1900 = vunpack.c.l.b16 %v1283
      %v1901 = vunpack.c.l.b16 %v1284
      %v1902 = vunpack.c.l.b16 %v1285
      %v1903 = vunpack.c.l.b16 %v1286
      %v1904 = vunpack.c.l.b16 %v1287
      %v1905 = vunpack.c.l.b16 %v1288
      %v1906 = vunpack.c.l.b16 %v1289
      %v1907 = vunpack.c.l.b16 %v1290
      %v1908 = vunpack.c.l.b16 %v1291
      %v1909 = vunpack.c.l.b16 %v1292
      %v1910 = vunpack.c.l.b16 %v1293
      %v1911 = vunpack.c.l.b16 %v1294
      %v1912 = vunpack.c.l.b16 %v1295
      %v1913 = vunpack.c.l.b16 %v1296
      %v1914 = vunpack.c.l.b16 %v1297
      %v1915 = vunpack.c.l.b16 %v1298
      %v1916 = vunpack.c.l.b16 %v1299
      %v1917 = vunpack.c.l.b16 %v1300
      %v1918 = vunpack.c.l.b16 %v1301
      %v1919 = vunpack.c.l.b16 %v1302
      %v1920 = vunpack.c.l.b16 %v1303
      %v1921 = vunpack.c.l.b16 %v1304
      %v1922 = vunpack.c.l.b16 %v1305
      %v1923 = vunpack.c.l.b16 %v1306
      %v1924 = vunpack.c.l.b16 %v1307
      %v1925 = vunpack.c.l.b16 %v1308
      %v1926 = vunpack.c.l.b16 %v1309
      %v1927 = vunpack.c.l.b16 %v1310
      %v1928 = vunpack.c.l.b16 %v1311
      %v1929 = vunpack.c.l.b16 %v1312
      %v1930 = vunpack.c.l.b16 %v1313
      %v1931 = vunpack.c.l.b16 %v1314
      %v1932 = vunpack.c.l.b16 %v1315
      %v1933 = vunpack.c.l.b16 %v1316
      %v1934 = vunpack.c.l.b16 %v1317
      %v1935 = vunpack.c.l.b16 %v1318
      %v1936 = vunpack.c.l.b16 %v1319
      %v1937 = vunpack.c.l.b16 %v1320
      %v1938 = vunpack.c.l.b16 %v1321
      %v1939 = vunpack.c.l.b16 %v1322
      %v1940 = vunpack.c.l.b16 %v1323
      %v1941 = vunpack.c.l.b16 %v1324
      %v1942 = vunpack.c.l.b16 %v1325
      %v1943 = vunpack.c.l.b16 %v1326
      %v1944 = vunpack.c.l.b16 %v1327
      %v1945 = vunpack.c.l.b16 %v1328
      %v1946 = vunpack.c.l.b16 %v1329
      %v1947 = vunpack.c.l.b16 %v1330
      %v1948 = vunpack.c.l.b16 %v1331
      %v1949 = vunpack.c.l.b16 %v1332
      %v1950 = vunpack.c.l.b16 %v1333
      %v1951 = vunpack.c.l.b16 %v1334
      %v1952 = vunpack.c.l.b16 %v1335
      %v1953 = vunpack.c.l.b16 %v1336
      %v1954 = vunpack.c.l.b16 %v1337
      %v1955 = vunpack.c.l.b16 %v1338
      %v1956 = vunpack.c.l.b16 %v1339
      %v1957 = vunpack.c.l.b16 %v1340
      %v1958 = vunpack.c.l.b16 %v1341
      %v1959 = vunpack.c.l.b16 %v1342
      %v1960 = vunpack.c.l.b16 %v1343
      %v1961 = vunpack.c.l.b16 %v1344
      %v1962 = vunpack.c.l.b16 %v1345
      %v1963 = vunpack.c.l.b16 %v1346
      %v1964 = vunpack.c.l.b16 %v1347
      %v1965 = vunpack.c.l.b16 %v1348
      %v1966 = vunpack.c.l.b16 %v1349
      %v1967 = vunpack.c.l.b16 %v1350
      %v1968 = vunpack.c.l.b16 %v1351
      %v1969 = vunpack.c.l.b16 %v1352
      %v1970 = vunpack.c.l.b16 %v1353
      %v1971 = vunpack.c.l.b16 %v1354
      %v1972 = vunpack.c.l.b16 %v1355
      %v1973 = vunpack.c.l.b16 %v1356
      %v1974 = vunpack.c.l.b16 %v1357
      %v1975 = vunpack.c.l.b16 %v1358
      %v1976 = vunpack.c.l.b16 %v1359
      %v1977 = vunpack.c.l.b16 %v1360
      %v1978 = vunpack.c.l.b16 %v1361
      %v1979 = vunpack.c.l.b16 %v1362
      %v1980 = vunpack.c.l.b16 %v1363
      %v1981 = vunpack.c.l.b16 %v1364
      %v1982 = vunpack.c.l.b16 %v1365
      %v1983 = vunpack.c.l.b16 %v1366
      %v1984 = vunpack.c.l.b16 %v1367
      %v1985 = vunpack.c.l.b16 %v1368
      %v1986 = vunpack.c.l.b16 %v1369
      %v1987 = vunpack.c.l.b16 %v1370
      %v1988 = vunpack.c.l.b16 %v1371
      %v1989 = vunpack.c.l.b16 %v1372
      %v1990 = vunpack.c.l.b16 %v1373
      %v1991 = vpack.c.b16 %v1704, %v1703
      %v1992 = vpack.c.b16 %v1706, %v1705
      %v1993 = vpack.c.b16 %v1708, %v1707
      %v1994 = vpack.c.b16 %v1710, %v1709
      %v1995 = vpack.c.b16 %v1712, %v1711
      %v1996 = vpack.c.b16 %v1714, %v1713
      %v1997 = vpack.c.b16 %v1716, %v1715
      %v1998 = vpack.c.b16 %v1718, %v1717
      %v1999 = vpack.c.b16 %v1720, %v1719
      %v2000 = vpack.c.b16 %v1722, %v1721
      %v2001 = vpack.c.b16 %v1724, %v1723
      %v2002 = vpack.c.b16 %v1726, %v1725
      %v2003 = vpack.c.b16 %v1728, %v1727
      %v2004 = vpack.c.b16 %v1730, %v1729
      %v2005 = vpack.c.b16 %v1732, %v1731
      %v2006 = vpack.c.b16 %v1734, %v1733
      %v2007 = vpack.c.b16 %v1736, %v1735
      %v2008 = vpack.c.b16 %v1738, %v1737
      %v2009 = vpack.c.b16 %v1740, %v1739
      %v2010 = vpack.c.b16 %v1742, %v1741
      %v2011 = vpack.c.b16 %v1744, %v1743
      %v2012 = vpack.c.b16 %v1746, %v1745
      %v2013 = vpack.c.b16 %v1748, %v1747
      %v2014 = vpack.c.b16 %v1750, %v1749
      %v2015 = vpack.c.b16 %v1752, %v1751
      %v2016 = vpack.c.b16 %v1754, %v1753
      %v2017 = vpack.c.b16 %v1756, %v1755
      %v2018 = vpack.c.b16 %v1758, %v1757
      %v2019 = vpack.c.b16 %v1760, %v1759
      %v2020 = vpack.c.b16 %v1762, %v1761
      %v2021 = vpack.c.b16 %v1764, %v1763
      %v2022 = vpack.c.b16 %v1766, %v1765
      %v2023 = vpack.c.b16 %v1768, %v1767
      %v2024 = vpack.c.b16 %v1770, %v1769
      %v2025 = vpack.c.b16 %v1772, %v1771
      %v2026 = vpack.c.b16 %v1774, %v1773
      %v2027 = vpack.c.b16 %v1776, %v1775
      %v2028 = vpack.c.b16 %v1778, %v1777
      %v2029 = vpack.c.b16 %v1780, %v1779
      %v2030 = vpack.c.b16 %v1782, %v1781
      %v2031 = vpack.c.b16 %v1784, %v1783
      %v2032 = vpack.c.b16 %v1786, %v1785
      %v2033 = vpack.c.b16 %v1788, %v1787
      %v2034 = vpack.c.b16 %v1790, %v1789
      %v2035 = vpack.c.b16 %v1792, %v1791
      %v2036 = vpack.c.b16 %v1794, %v1793
      %v2037 = vpack.c.b16 %v1796, %v1795
      %v2038 = vpack.c.b16 %v1798, %v1797
      %v2039 = vpack.c.b16 %v1800, %v1799
      %v2040 = vpack.c.b16 %v1802, %v1801
      %v2041 = vpack.c.b16 %v1804, %v1803
      %v2042 = vpack.c.b16 %v1806, %v1805
      %v2043 = vpack.c.b16 %v1808, %v1807
      %v2044 = vpack.c.b16 %v1810, %v1809
      %v2045 = vpack.c.b16 %v1812, %v1811
      %v2046 = vpack.c.b16 %v1814, %v1813
      %v2047 = vpack.c.b16 %v1816, %v1815
      %v2048 = vpack.c.b16 %v1818, %v1817
      %v2049 = vpack.c.b16 %v1820, %v1819
      %v2050 = vpack.c.b16 %v1822, %v1821
      %v2051 = vpack.c.b16 %v1824, %v1823
      %v2052 = vpack.c.b16 %v1826, %v1825
      %v2053 = vpack.c.b16 %v1828, %v1827
      %v2054 = vpack.c.b16 %v1830, %v1829
      %v2055 = vpack.c.b16 %v1832, %v1831
      %v2056 = vpack.c.b16 %v1834, %v1833
      %v2057 = vpack.c.b16 %v1836, %v1835
      %v2058 = vpack.c.b16 %v1838, %v1837
      %v2059 = vpack.c.b16 %v1840, %v1839
      %v2060 = vpack.c.b16 %v1842, %v1841
      %v2061 = vpack.c.b16 %v1844, %v1843
      %v2062 = vpack.c.b16 %v1846, %v1845
      %v2063 = vpack.c.b16 %v1848, %v1847
      %v2064 = vpack.c.b16 %v1850, %v1849
      %v2065 = vpack.c.b16 %v1852, %v1851
      %v2066 = vpack.c.b16 %v1854, %v1853
      %v2067 = vpack.c.b16 %v1856, %v1855
      %v2068 = vpack.c.b16 %v1858, %v1857
      %v2069 = vpack.c.b16 %v1860, %v1859
      %v2070 = vpack.c.b16 %v1862, %v1861
      %v2071 = vpack.c.b16 %v1864, %v1863
      %v2072 = vpack.c.b16 %v1866, %v1865
      %v2073 = vpack.c.b16 %v1868, %v1867
      %v2074 = vpack.c.b16 %v1870, %v1869
      %v2075 = vpack.c.b16 %v1872, %v1871
      %v2076 = vpack.c.b16 %v1874, %v1873
      %v2077 = vpack.c.b16 %v1876, %v1875
      %v2078 = vpack.c.b16 %v1878, %v1877
      %v2079 = vpack.c.b16 %v1880, %v1879
      %v2080 = vpack.c.b16 %v1882, %v1881
      %v2081 = vpack.c.b16 %v1884, %v1883
      %v2082 = vpack.c.b16 %v1886, %v1885
      %v2083 = vpack.c.b16 %v1888, %v1887
      %v2084 = vpack.c.b16 %v1890, %v1889
      %v2085 = vpack.c.b16 %v1892, %v1891
      %v2086 = vpack.c.b16 %v1894, %v1893
      %v2087 = vpack.c.b16 %v1896, %v1895
      %v2088 = vpack.c.b16 %v1898, %v1897
      %v2089 = vpack.c.b16 %v1900, %v1899
      %v2090 = vpack.c.b16 %v1902, %v1901
      %v2091 = vpack.c.b16 %v1904, %v1903
      %v2092 = vpack.c.b16 %v1906, %v1905
      %v2093 = vpack.c.b16 %v1908, %v1907
      %v2094 = vpack.c.b16 %v1910, %v1909
      %v2095 = vpack.c.b16 %v1912, %v1911
      %v2096 = vpack.c.b16 %v1914, %v1913
      %v2097 = vpack.c.b16 %v1916, %v1915
      %v2098 = vpack.c.b16 %v1918, %v1917
      %v2099 = vpack.c.b16 %v1920, %v1919
      %v2100 = vpack.c.b16 %v1922, %v1921
      %v2101 = vpack.c.b16 %v1924, %v1923
      %v2102 = vpack.c.b16 %v1926, %v1925
      %v2103 = vpack.c.b16 %v1928, %v1927
      %v2104 = vpack.c.b16 %v1930, %v1929
      %v2105 = vpack.c.b16 %v1932, %v1931
      %v2106 = vpack.c.b16 %v1934, %v1933
      %v2107 = vpack.c.b16 %v1936, %v1935
      %v2108 = vpack.c.b16 %v1938, %v1937
      %v2109 = vpack.c.b16 %v1940, %v1939
      %v2110 = vpack.c.b16 %v1942, %v1941
      %v2111 = vpack.c.b16 %v1944, %v1943
      %v2112 = vpack.c.b16 %v1946, %v1945
      %v2113 = vpack.c.b16 %v1948, %v1947
      %v2114 = vpack.c.b16 %v1950, %v1949
      %v2115 = vpack.c.b16 %v1952, %v1951
      %v2116 = vpack.c.b16 %v1954, %v1953
      %v2117 = vpack.c.b16 %v1956, %v1955
      %v2118 = vpack.c.b16 %v1958, %v1957
      %v2119 = vpack.c.b16 %v1960, %v1959
      %v2120 = vpack.c.b16 %v1962, %v1961
      %v2121 = vpack.c.b16 %v1964, %v1963
      %v2122 = vpack.c.b16 %v1966, %v1965
      %v2123 = vpack.c.b16 %v1968, %v1967
      %v2124 = vpack.c.b16 %v1970, %v1969
      %v2125 = vpack.c.b16 %v1972, %v1971
      %v2126 = vpack.c.b16 %v1974, %v1973
      %v2127 = vpack.c.b16 %v1976, %v1975
      %v2128 = vpack.c.b16 %v1978, %v1977
      %v2129 = vpack.c.b16 %v1980, %v1979
      %v2130 = vpack.c.b16 %v1982, %v1981
      %v2131 = vpack.c.b16 %v1984, %v1983
      %v2132 = vpack.c.b16 %v1986, %v1985
      %v2133 = vpack.c.b16 %v1988, %v1987
      %v2134 = vpack.c.b16 %v1990, %v1989
      %2279 = vmatpush.bf16.msra.mxu0 %v1998
      %2280 = vmatpush.bf16.msra.mxu0 %v1997
      %2281 = vmatpush.bf16.msra.mxu0 %v1996
      %2282 = vmatpush.bf16.msra.mxu0 %v1995
      %2283 = vmatpush.bf16.msra.mxu0 %v1994
      %2284 = vmatpush.bf16.msra.mxu0 %v1993
      %2285 = vmatpush.bf16.msra.mxu0 %v1992
      %2286 = vmatpush.bf16.msra.mxu0 %v1991
      %2287 = vmatmul.bf16.gmra.mxu0 %v1394
      %v2288 = vpop.f32.mrf.mxu0
      %v2289 = vadd.f32 %v1413, %v2288
      %v2290 = vpop.f32.mrf.mxu0
      %2291 = vdwg.mxu0
      %2292 = vmatpush.bf16.msra.mxu0 %v2006
      %2293 = vmatpush.bf16.msra.mxu0 %v2005
      %2294 = vmatpush.bf16.msra.mxu0 %v2004
      %2295 = vmatpush.bf16.msra.mxu0 %v2003
      %2296 = vmatpush.bf16.msra.mxu0 %v2002
      %2297 = vmatpush.bf16.msra.mxu0 %v2001
      %2298 = vmatpush.bf16.msra.mxu0 %v2000
      %2299 = vmatpush.bf16.msra.mxu0 %v1999
      %2300 = vmatmul.bf16.gmra.mxu0 %v1395
      %v2301 = vpop.f32.mrf.mxu0
      %v2302 = vadd.f32 %v2289, %v2301
      %v2303 = vpop.f32.mrf.mxu0
      %2304 = vdwg.mxu0
      %2305 = vmatpush.bf16.msra.mxu0 %v2014
      %2306 = vmatpush.bf16.msra.mxu0 %v2013
      %2307 = vmatpush.bf16.msra.mxu0 %v2012
      %2308 = vmatpush.bf16.msra.mxu0 %v2011
      %2309 = vmatpush.bf16.msra.mxu0 %v2010
      %2310 = vmatpush.bf16.msra.mxu0 %v2009
      %2311 = vmatpush.bf16.msra.mxu0 %v2008
      %2312 = vmatpush.bf16.msra.mxu0 %v2007
      %2313 = vmatmul.bf16.gmra.mxu0 %v1396
      %v2314 = vpop.f32.mrf.mxu0
      %v2315 = vadd.f32 %v2302, %v2314
      %v2316 = vpop.f32.mrf.mxu0
      %2317 = vdwg.mxu0
      %2318 = vmatpush.bf16.msra.mxu0 %v2022
      %2319 = vmatpush.bf16.msra.mxu0 %v2021
      %2320 = vmatpush.bf16.msra.mxu0 %v2020
      %2321 = vmatpush.bf16.msra.mxu0 %v2019
      %2322 = vmatpush.bf16.msra.mxu0 %v2018
      %2323 = vmatpush.bf16.msra.mxu0 %v2017
      %2324 = vmatpush.bf16.msra.mxu0 %v2016
      %2325 = vmatpush.bf16.msra.mxu0 %v2015
      %2326 = vmatmul.bf16.gmra.mxu0 %v1397
      %v2327 = vpop.f32.mrf.mxu0
      %v2328 = vadd.f32 %v2315, %v2327
      %v2329 = vpop.f32.mrf.mxu0
      %2330 = vdwg.mxu0
      %2331 = vmatpush.bf16.msra.mxu0 %v2030
      %2332 = vmatpush.bf16.msra.mxu0 %v2029
      %2333 = vmatpush.bf16.msra.mxu0 %v2028
      %2334 = vmatpush.bf16.msra.mxu0 %v2027
      %2335 = vmatpush.bf16.msra.mxu0 %v2026
      %2336 = vmatpush.bf16.msra.mxu0 %v2025
      %2337 = vmatpush.bf16.msra.mxu0 %v2024
      %2338 = vmatpush.bf16.msra.mxu0 %v2023
      %2339 = vmatmul.bf16.gmra.mxu0 %v1398
      %v2340 = vpop.f32.mrf.mxu0
      %v2341 = vadd.f32 %v2328, %v2340
      %v2342 = vpop.f32.mrf.mxu0
      %2343 = vdwg.mxu0
      %2344 = vmatpush.bf16.msra.mxu0 %v2038
      %2345 = vmatpush.bf16.msra.mxu0 %v2037
      %2346 = vmatpush.bf16.msra.mxu0 %v2036
      %2347 = vmatpush.bf16.msra.mxu0 %v2035
      %2348 = vmatpush.bf16.msra.mxu0 %v2034
      %2349 = vmatpush.bf16.msra.mxu0 %v2033
      %2350 = vmatpush.bf16.msra.mxu0 %v2032
      %2351 = vmatpush.bf16.msra.mxu0 %v2031
      %2352 = vmatmul.bf16.gmra.mxu0 %v1399
      %v2353 = vpop.f32.mrf.mxu0
      %v2354 = vadd.f32 %v2341, %v2353
      %v2355 = vpop.f32.mrf.mxu0
      %2356 = vdwg.mxu0
      %2357 = vmatpush.bf16.msra.mxu0 %v2046
      %2358 = vmatpush.bf16.msra.mxu0 %v2045
      %2359 = vmatpush.bf16.msra.mxu0 %v2044
      %2360 = vmatpush.bf16.msra.mxu0 %v2043
      %2361 = vmatpush.bf16.msra.mxu0 %v2042
      %2362 = vmatpush.bf16.msra.mxu0 %v2041
      %2363 = vmatpush.bf16.msra.mxu0 %v2040
      %2364 = vmatpush.bf16.msra.mxu0 %v2039
      %2365 = vmatmul.bf16.gmra.mxu0 %v1400
      %v2366 = vpop.f32.mrf.mxu0
      %v2367 = vadd.f32 %v2354, %v2366
      %v2368 = vpop.f32.mrf.mxu0
      %2369 = vdwg.mxu0
      %2370 = vmatpush.bf16.msra.mxu0 %v2054
      %2371 = vmatpush.bf16.msra.mxu0 %v2053
      %2372 = vmatpush.bf16.msra.mxu0 %v2052
      %2373 = vmatpush.bf16.msra.mxu0 %v2051
      %2374 = vmatpush.bf16.msra.mxu0 %v2050
      %2375 = vmatpush.bf16.msra.mxu0 %v2049
      %2376 = vmatpush.bf16.msra.mxu0 %v2048
      %2377 = vmatpush.bf16.msra.mxu0 %v2047
      %2378 = vmatmul.bf16.gmra.mxu0 %v1401
      %v2379 = vpop.f32.mrf.mxu0
      %v2380 = vadd.f32 %v2367, %v2379
      %v2381 = vpop.f32.mrf.mxu0
      %2382 = vdwg.mxu0
      %2383 = vmatpush.bf16.msra.mxu0 %v2062
      %2384 = vmatpush.bf16.msra.mxu0 %v2061
      %2385 = vmatpush.bf16.msra.mxu0 %v2060
      %2386 = vmatpush.bf16.msra.mxu0 %v2059
      %2387 = vmatpush.bf16.msra.mxu0 %v2058
      %2388 = vmatpush.bf16.msra.mxu0 %v2057
      %2389 = vmatpush.bf16.msra.mxu0 %v2056
      %2390 = vmatpush.bf16.msra.mxu0 %v2055
      %2391 = vmatmul.bf16.gmra.mxu0 %v1402
      %v2392 = vpop.f32.mrf.mxu0
      %v2393 = vadd.f32 %v2380, %v2392
      %v2394 = vpop.f32.mrf.mxu0
      %2395 = vdwg.mxu0
      %2396 = vmatpush.bf16.msra.mxu0 %v2070
      %2397 = vmatpush.bf16.msra.mxu0 %v2069
      %2398 = vmatpush.bf16.msra.mxu0 %v2068
      %2399 = vmatpush.bf16.msra.mxu0 %v2067
      %2400 = vmatpush.bf16.msra.mxu0 %v2066
      %2401 = vmatpush.bf16.msra.mxu0 %v2065
      %2402 = vmatpush.bf16.msra.mxu0 %v2064
      %2403 = vmatpush.bf16.msra.mxu0 %v2063
      %2404 = vmatmul.bf16.gmra.mxu0 %v1403
      %v2405 = vpop.f32.mrf.mxu0
      %v2406 = vadd.f32 %v2393, %v2405
      %v2407 = vpop.f32.mrf.mxu0
      %2408 = vdwg.mxu0
      %2409 = vmatpush.bf16.msra.mxu0 %v2078
      %2410 = vmatpush.bf16.msra.mxu0 %v2077
      %2411 = vmatpush.bf16.msra.mxu0 %v2076
      %2412 = vmatpush.bf16.msra.mxu0 %v2075
      %2413 = vmatpush.bf16.msra.mxu0 %v2074
      %2414 = vmatpush.bf16.msra.mxu0 %v2073
      %2415 = vmatpush.bf16.msra.mxu0 %v2072
      %2416 = vmatpush.bf16.msra.mxu0 %v2071
      %2417 = vmatmul.bf16.gmra.mxu0 %v1404
      %v2418 = vpop.f32.mrf.mxu0
      %v2419 = vadd.f32 %v2406, %v2418
      %v2420 = vpop.f32.mrf.mxu0
      %2421 = vdwg.mxu0
      %2422 = vmatpush.bf16.msra.mxu0 %v2086
      %2423 = vmatpush.bf16.msra.mxu0 %v2085
      %2424 = vmatpush.bf16.msra.mxu0 %v2084
      %2425 = vmatpush.bf16.msra.mxu0 %v2083
      %2426 = vmatpush.bf16.msra.mxu0 %v2082
      %2427 = vmatpush.bf16.msra.mxu0 %v2081
      %2428 = vmatpush.bf16.msra.mxu0 %v2080
      %2429 = vmatpush.bf16.msra.mxu0 %v2079
      %2430 = vmatmul.bf16.gmra.mxu0 %v1405
      %v2431 = vpop.f32.mrf.mxu0
      %v2432 = vadd.f32 %v2419, %v2431
      %v2433 = vpop.f32.mrf.mxu0
      %2434 = vdwg.mxu0
      %2435 = vmatpush.bf16.msra.mxu0 %v2094
      %2436 = vmatpush.bf16.msra.mxu0 %v2093
      %2437 = vmatpush.bf16.msra.mxu0 %v2092
      %2438 = vmatpush.bf16.msra.mxu0 %v2091
      %2439 = vmatpush.bf16.msra.mxu0 %v2090
      %2440 = vmatpush.bf16.msra.mxu0 %v2089
      %2441 = vmatpush.bf16.msra.mxu0 %v2088
      %2442 = vmatpush.bf16.msra.mxu0 %v2087
      %2443 = vmatmul.bf16.gmra.mxu0 %v1406
      %v2444 = vpop.f32.mrf.mxu0
      %v2445 = vadd.f32 %v2432, %v2444
      %v2446 = vpop.f32.mrf.mxu0
      %2447 = vdwg.mxu0
      %2448 = vmatpush.bf16.msra.mxu0 %v2102
      %2449 = vmatpush.bf16.msra.mxu0 %v2101
      %2450 = vmatpush.bf16.msra.mxu0 %v2100
      %2451 = vmatpush.bf16.msra.mxu0 %v2099
      %2452 = vmatpush.bf16.msra.mxu0 %v2098
      %2453 = vmatpush.bf16.msra.mxu0 %v2097
      %2454 = vmatpush.bf16.msra.mxu0 %v2096
      %2455 = vmatpush.bf16.msra.mxu0 %v2095
      %2456 = vmatmul.bf16.gmra.mxu0 %v1407
      %v2457 = vpop.f32.mrf.mxu0
      %v2458 = vadd.f32 %v2445, %v2457
      %v2459 = vpop.f32.mrf.mxu0
      %2460 = vdwg.mxu0
      %2461 = vmatpush.bf16.msra.mxu0 %v2110
      %2462 = vmatpush.bf16.msra.mxu0 %v2109
      %2463 = vmatpush.bf16.msra.mxu0 %v2108
      %2464 = vmatpush.bf16.msra.mxu0 %v2107
      %2465 = vmatpush.bf16.msra.mxu0 %v2106
      %2466 = vmatpush.bf16.msra.mxu0 %v2105
      %2467 = vmatpush.bf16.msra.mxu0 %v2104
      %2468 = vmatpush.bf16.msra.mxu0 %v2103
      %2469 = vmatmul.bf16.gmra.mxu0 %v1408
      %v2470 = vpop.f32.mrf.mxu0
      %v2471 = vadd.f32 %v2458, %v2470
      %v2472 = vpop.f32.mrf.mxu0
      %2473 = vdwg.mxu0
      %2474 = vmatpush.bf16.msra.mxu0 %v2118
      %2475 = vmatpush.bf16.msra.mxu0 %v2117
      %2476 = vmatpush.bf16.msra.mxu0 %v2116
      %2477 = vmatpush.bf16.msra.mxu0 %v2115
      %2478 = vmatpush.bf16.msra.mxu0 %v2114
      %2479 = vmatpush.bf16.msra.mxu0 %v2113
      %2480 = vmatpush.bf16.msra.mxu0 %v2112
      %2481 = vmatpush.bf16.msra.mxu0 %v2111
      %2482 = vmatmul.bf16.gmra.mxu0 %v1409
      %v2483 = vpop.f32.mrf.mxu0
      %v2484 = vadd.f32 %v2471, %v2483
      %v2485 = vpop.f32.mrf.mxu0
      %2486 = vdwg.mxu0
      %2487 = vmatpush.bf16.msra.mxu0 %v2126
      %2488 = vmatpush.bf16.msra.mxu0 %v2125
      %2489 = vmatpush.bf16.msra.mxu0 %v2124
      %2490 = vmatpush.bf16.msra.mxu0 %v2123
      %2491 = vmatpush.bf16.msra.mxu0 %v2122
      %2492 = vmatpush.bf16.msra.mxu0 %v2121
      %2493 = vmatpush.bf16.msra.mxu0 %v2120
      %2494 = vmatpush.bf16.msra.mxu0 %v2119
      %2495 = vmatmul.bf16.gmra.mxu0 %v1410
      %v2496 = vpop.f32.mrf.mxu0
      %v2497 = vadd.f32 %v2484, %v2496
      %v2498 = vpop.f32.mrf.mxu0
      %2499 = vdwg.mxu0
      %2500 = vmatpush.bf16.msra.mxu0 %v2134
      %2501 = vmatpush.bf16.msra.mxu0 %v2133
      %2502 = vmatpush.bf16.msra.mxu0 %v2132
      %2503 = vmatpush.bf16.msra.mxu0 %v2131
      %2504 = vmatpush.bf16.msra.mxu0 %v2130
      %2505 = vmatpush.bf16.msra.mxu0 %v2129
      %2506 = vmatpush.bf16.msra.mxu0 %v2128
      %2507 = vmatpush.bf16.msra.mxu0 %v2127
      %2508 = vmatmul.bf16.gmra.mxu0 %v1411
      %v2509 = vpop.f32.mrf.mxu0
      %v2510 = vadd.f32 %v2497, %v2509
      %v2511 = vpop.f32.mrf.mxu0
      %2512 = vdwg.mxu0
      %v2513 = vmax.f32 %v2510, 0.0
      %v2514 = vlaneseq
      %v2515 = vshrl.u32 %v2514, 7
      %vm2516 = vcmp.lt.s32.totalorder %v2515, 2
      %v2517 = vsel %vm2516, 1, 0
      %v2518 = vcvt.s32.f32 %v2517
      %v2519 = vmul.f32 %v2513, %v2518
      %v2520 = vrot.slane %v2519, 4
      %v2521 = vadd.f32 %v2519, %v2520
      %v2522 = vrot.slane %v2521, 2
      %v2523 = vadd.f32 %v2521, %v2522
      %v2524 = vrot.slane %v2523, 1
      %v2525 = vadd.f32 %v2523, %v2524
      %v2526 = vmul.f32 %v2525, 0.5
      %v2527 = vsub.f32 %v2513, %v2526
      %v2528 = vmul.f32 %v2527, %v2527
      %v2529 = vmul.f32 %v2528, %v2518
      %v2530 = vrot.slane %v2529, 4
      %v2531 = vadd.f32 %v2529, %v2530
      %v2532 = vrot.slane %v2531, 2
      %v2533 = vadd.f32 %v2531, %v2532
      %v2534 = vrot.slane %v2533, 1
      %v2535 = vadd.f32 %v2533, %v2534
      %v2536 = vmul.f32 %v2535, 0.5
      %v2537 = vadd.f32 %v2536, 1e-05
      %v2538 = vrsqrt.pop %v2537
      %v2539 = vmul.f32 %v2538, %v2537
      %v2540 = vmul.f32 %v2539, %v2538
      %v2541 = vmul.f32 0.5, %v2540
      %v2542 = vsub.f32 1.5, %v2541
      %v2543 = vmul.f32 %v2538, %v2542
      %vm2544 = vweird.f32 %v2537
      %vm2545 = vweird.f32 %v2538
      %vm2546 = vmor %vm2544, %vm2545
      %v2547 = vsel %vm2546, %v2538, %v2543
      %v2548 = vmul.f32 %v2527, %v2547
      %v2550 = vperm.slane %v1375, 0
      %v2552 = vmul.f32 %v2548, %v2550
      %v2554 = vperm.slane %v1376, 0
      %v2556 = vadd.f32 %v2552, %v2554
      %v2558 = vperm.slane %v1393, 0
      %2560 = vmatpush.msra.mxu0 %v1392
      %2561 = vmatpush.msra.mxu0 %v1391
      %2562 = vmatpush.msra.mxu0 %v1390
      %2563 = vmatpush.msra.mxu0 %v1389
      %2564 = vmatpush.msra.mxu0 %v1388
      %2565 = vmatpush.msra.mxu0 %v1387
      %2566 = vmatpush.msra.mxu0 %v1386
      %2567 = vmatpush.msra.mxu0 %v1385
      %2568 = vmatpush.msra.mxu0 %v1384
      %2569 = vmatpush.msra.mxu0 %v1383
      %2570 = vmatpush.msra.mxu0 %v1382
      %2571 = vmatpush.msra.mxu0 %v1381
      %2572 = vmatpush.msra.mxu0 %v1380
      %2573 = vmatpush.msra.mxu0 %v1379
      %2574 = vmatpush.msra.mxu0 %v1378
      %2575 = vmatpush.msra.mxu0 %v1377
      %2576 = vmatmul.f32.gmra.mxu0 %v2556
      %v2577 = vpop.f32.mrf.mxu0
      %v2578 = vadd.f32 %v2558, %v2577
      %2579 = vdwg.mxu0
      %v2580 = vmul.f32 %v2578, %v2578
      %2581 = vadd.xlane.f32.xlu0 %v2580
      %v2582 = vpop.xlane.xlu0 %2581
      %v2583 = vadd.f32 %v2582, 1e-12
      %v2584 = vrsqrt.pop %v2583
      %v2585 = vmul.f32 %v2584, %v2583
      %v2586 = vmul.f32 %v2585, %v2584
      %v2587 = vmul.f32 0.5, %v2586
      %v2588 = vsub.f32 1.5, %v2587
      %v2589 = vmul.f32 %v2584, %v2588
      %vm2590 = vweird.f32 %v2583
      %vm2591 = vweird.f32 %v2584
      %vm2592 = vmor %vm2590, %vm2591
      %v2593 = vsel %vm2592, %v2584, %v2589
      %v2594 = vmul.f32 %v2578, %v2593
      %2595 = vst [vmem:[%s7] sm:$0xff] %v2594
    $region61: #{image_text_matching_forward.3} parent=1 // pred_fallthru
      _
    // Predicated region
    $region62: #{image_text_matching_forward.3} parent=1 // pred_check
      _
    $region63: #{image_text_matching_forward.3} parent=1 // pred_check_branch
      %2597 = sbr.rel (0) target = $region65
    $region64: #{image_text_matching_forward.3} parent=1 // pred_region
      _
    $region65: #{image_text_matching_forward.3} parent=1 // pred_fallthru
      _
    // Predicated region
    $region66: #{image_text_matching_forward.3} parent=1 // pred_check
      _
    $region67: #{image_text_matching_forward.3} parent=1 // pred_check_branch
      %2599 = sbr.rel (0) target = $region69
    $region68: #{image_text_matching_forward.3} parent=1 // pred_region
      _
    $region69: #{image_text_matching_forward.3} parent=1 // pred_fallthru
      _
    %2600 = vsyncpa [#allocation6], 1
    %2601 = vsyncpa [#allocation8], 1
    %2602 = vsyncpa [#allocation11], 1
    %2603 = vsyncpa [#allocation14], 1

// kernel: image_text_matching_forward.2
$region0: #{image_text_matching_forward.2}
  #allocation0 [shape = 'u32[]', space=smem, size = 0x4, offset = 0x4, fixed_abs, tag = 'smem constant byte address 0x4 - core index']
  #allocation1 [shape = 'u32[72,128]{1,0:T(1,128)}', space=vmem, size = 0x9000, scoped, tag = 'internal scratch']
  #allocation2 [shape = 'f32[8,2048]{1,0:T(8,128)}', space=vmem, size = 0x10000, scoped, tag = 'scratch operand']
  %s0 = inlined_call_operand.vmem [shape: f32[2048,8], index: 0, kind: input, shape index: {}]
  %s1 = inlined_call_operand.hbm [shape: bf16[8,2048], index: 1, kind: input, shape index: {}]
  %s2 = inlined_call_operand.hbm [shape: f32[1,2048], index: 2, kind: input, shape index: {}]
  %s3 = inlined_call_operand.vmem [shape: f32[8,512], index: 3, kind: input, shape index: {}]
  %s4 = inlined_call_operand.hbm [shape: bf16[2048,128], index: 4, kind: input, shape index: {}]
  %s5 = inlined_call_operand.hbm [shape: f32[1,128], index: 5, kind: input, shape index: {}]
  %s6 = inlined_call_operand.hbm [shape: f32[1,128], index: 6, kind: input, shape index: {}]
  %s7 = inlined_call_operand.hbm [shape: f32[1,128], index: 7, kind: input, shape index: {}]
  %s8 = inlined_call_operand.hbm [shape: f32[128,128], index: 8, kind: input, shape index: {}]
  %s9 = inlined_call_operand.hbm [shape: f32[1,128], index: 9, kind: input, shape index: {}]
  %s10 = inlined_call_operand.vmem [shape: f32[8,128], index: 10, kind: output, shape index: {}]
  %s11 = sld [smem:[#allocation0]]
  $region113: #{image_text_matching_forward.2} parent=0
    _
  %s13 = ssub.s32 1, %s11
  %s14 = scalar_select 0, %s13, %s11
  $region1: #{image_text_matching_forward.2} parent=0
    #allocation3 [shape = 'u8[32768]{0}', space=vmem, size = 0x8000, scoped, tag = 'input window, operand 1, single buffered']
    #allocation4 [shape = 's32[2]{0}', space=sflag, size = 0x8, scoped, tag = 'scoped memory for image_text_matching_forward.2']
    #allocation5 [shape = 'u8[8192]{0}', space=vmem, size = 0x2000, scoped, tag = 'input window, operand 2, single buffered']
    #allocation6 [shape = 's32[1]{0}', space=sflag, size = 0x4, scoped, tag = 'scoped memory for image_text_matching_forward.2']
    #allocation7 [shape = 'u8[524288]{0}', space=vmem, size = 0x80000, scoped, tag = 'input window, operand 4, single buffered']
    #allocation8 [shape = 'u8[512]{0}', space=vmem, size = 0x400, scoped, tag = 'input window, operand 5, single buffered']
    #allocation9 [shape = 's32[1]{0}', space=sflag, size = 0x4, scoped, tag = 'scoped memory for image_text_matching_forward.2']
    #allocation10 [shape = 'u8[512]{0}', space=vmem, size = 0x400, scoped, tag = 'input window, operand 6, single buffered']
    #allocation11 [shape = 'u8[512]{0}', space=vmem, size = 0x400, scoped, tag = 'input window, operand 7, single buffered']
    #allocation12 [shape = 's32[1]{0}', space=sflag, size = 0x4, scoped, tag = 'scoped memory for image_text_matching_forward.2']
    #allocation13 [shape = 'u8[65536]{0}', space=vmem, size = 0x10000, scoped, tag = 'input window, operand 8, single buffered']
    #allocation14 [shape = 'u8[512]{0}', space=vmem, size = 0x400, scoped, tag = 'input window, operand 9, single buffered']
    #allocation15 [shape = 's32[1]{0}', space=sflag, size = 0x4, scoped, tag = 'scoped memory for image_text_matching_forward.2']
    %15 = vsyncpa [#allocation4], 0
    %16 = vsyncpa [#allocation6], 0
    %17 = vsyncpa [#allocation9], 0
    %18 = vsyncpa [#allocation12], 0
    %19 = vsyncpa [#allocation15], 0
    loop: start=0, step=1, limit=6
    $region2: #{image_text_matching_forward.2} parent=1 // loop_pre_header
      _
    $region3: #{image_text_matching_forward.2} parent=1 // loop_header
      %s21 = sphi 0, %s25
      %p22 = scmp.ge.s32.totalorder %s21, 6
      %s31 = sphi 0, %s33
      %s34 = sphi 0, %s31
      %s35 = sphi 0, %s34
      %s51 = sphi 0, %s35
      %s55 = sphi 0, %s55
      %s57 = sphi 0, %s55
      %s58 = sphi 0, %s57
      %s72 = sphi 0, %s58
      %s76 = sphi 0, %s76
      %s78 = sphi 0, %s76
      %s79 = sphi 0, %s78
      %s93 = sphi 0, %s79
      %s97 = sphi 0, %s97
      %s99 = sphi 0, %s97
      %s100 = sphi 0, %s99
      %s114 = sphi 0, %s100
      %s118 = sphi 0, %s118
      %s120 = sphi 0, %s118
      %s121 = sphi 0, %s120
      %s135 = sphi 0, %s121
      %s139 = sphi 0, %s139
      %s141 = sphi 0, %s139
      %s142 = sphi 0, %s141
      %s156 = sphi 0, %s142
      %s160 = sphi 0, %s160
      %s162 = sphi 0, %s160
      %s163 = sphi 0, %s162
      %s177 = sphi 0, %s163
      %s181 = sphi 0, %s181
      %s183 = sphi 0, %s181
      %s184 = sphi 0, %s183
      %s198 = sphi 0, %s184
      %s202 = sphi 0, %s202
      %s204 = sphi 0, %s202
      %s205 = sphi 0, %s204
      %s219 = sphi 0, %s205
      %s223 = sphi 0, %s223
      %s225 = sphi 0, %s223
      %s226 = sphi 0, %s225
      %s240 = sphi 0, %s226
      %s244 = sphi 0, %s244
      %s246 = sphi 0, %s244
      %s247 = sphi 0, %s246
      %s261 = sphi 0, %s247
    $region4: #{image_text_matching_forward.2} parent=1 // loop_header_branch
      %24 = sbr.rel (%p22) target = $region8
    $region5: #{image_text_matching_forward.2} parent=1 // loop_body
      %s26 = ssub.s32 %s21, 1
      %s27 = ssub.s32 %s21, 2
      %s28 = sadd.s32 %s21, 1
      %s29 = ssub.s32 %s21, %s28
      %p30 = scmp.eq.s32.totalorder %s29, 0
      %s32 = sadd.s32 %s31, 1
      %s33 = scalar_select %p30, %s31, %s32
      %p36 = pneg %p30
      %p37 = scmp.eq.s32.totalorder %s21, 3
      %p38 = por %p36, %p37
      %p39 = scmp.ne.s32.totalorder %s31, %s34
      %p40 = scmp.eq.s32.totalorder %s21, 0
      %p41 = por %p39, %p40
      %p42 = scmp.ne.s32.totalorder %s31, %s34
      %p43 = scmp.eq.s32.totalorder %s26, 3
      %p44 = por %p42, %p43
      %p45 = scmp.ne.s32.totalorder %s34, %s35
      %p46 = scmp.eq.s32.totalorder %s26, 0
      %p47 = por %p45, %p46
      %p48 = scmp.ne.s32.totalorder %s34, %s35
      %p49 = scmp.eq.s32.totalorder %s27, 3
      %p50 = por %p48, %p49
      %p52 = scmp.ne.s32.totalorder %s35, %s51
      %p53 = scmp.eq.s32.totalorder %s27, 0
      %p54 = por %p52, %p53
      %s56 = sadd.s32 %s55, 1
      %p59 = scmp.eq.s32.totalorder %s21, 3
      %p60 = scmp.ne.s32.totalorder %s55, %s57
      %p61 = scmp.eq.s32.totalorder %s21, 0
      %p62 = por %p60, %p61
      %p63 = scmp.ne.s32.totalorder %s55, %s57
      %p64 = scmp.eq.s32.totalorder %s26, 3
      %p65 = por %p63, %p64
      %p66 = scmp.ne.s32.totalorder %s57, %s58
      %p67 = scmp.eq.s32.totalorder %s26, 0
      %p68 = por %p66, %p67
      %p69 = scmp.ne.s32.totalorder %s57, %s58
      %p70 = scmp.eq.s32.totalorder %s27, 3
      %p71 = por %p69, %p70
      %p73 = scmp.ne.s32.totalorder %s58, %s72
      %p74 = scmp.eq.s32.totalorder %s27, 0
      %p75 = por %p73, %p74
      %s77 = sadd.s32 %s76, 1
      %p80 = scmp.eq.s32.totalorder %s21, 3
      %p81 = scmp.ne.s32.totalorder %s76, %s78
      %p82 = scmp.eq.s32.totalorder %s21, 0
      %p83 = por %p81, %p82
      %p84 = scmp.ne.s32.totalorder %s76, %s78
      %p85 = scmp.eq.s32.totalorder %s26, 3
      %p86 = por %p84, %p85
      %p87 = scmp.ne.s32.totalorder %s78, %s79
      %p88 = scmp.eq.s32.totalorder %s26, 0
      %p89 = por %p87, %p88
      %p90 = scmp.ne.s32.totalorder %s78, %s79
      %p91 = scmp.eq.s32.totalorder %s27, 3
      %p92 = por %p90, %p91
      %p94 = scmp.ne.s32.totalorder %s79, %s93
      %p95 = scmp.eq.s32.totalorder %s27, 0
      %p96 = por %p94, %p95
      %s98 = sadd.s32 %s97, 1
      %p101 = scmp.eq.s32.totalorder %s21, 3
      %p102 = scmp.ne.s32.totalorder %s97, %s99
      %p103 = scmp.eq.s32.totalorder %s21, 0
      %p104 = por %p102, %p103
      %p105 = scmp.ne.s32.totalorder %s97, %s99
      %p106 = scmp.eq.s32.totalorder %s26, 3
      %p107 = por %p105, %p106
      %p108 = scmp.ne.s32.totalorder %s99, %s100
      %p109 = scmp.eq.s32.totalorder %s26, 0
      %p110 = por %p108, %p109
      %p111 = scmp.ne.s32.totalorder %s99, %s100
      %p112 = scmp.eq.s32.totalorder %s27, 3
      %p113 = por %p111, %p112
      %p115 = scmp.ne.s32.totalorder %s100, %s114
      %p116 = scmp.eq.s32.totalorder %s27, 0
      %p117 = por %p115, %p116
      %s119 = sadd.s32 %s118, 1
      %p122 = scmp.eq.s32.totalorder %s21, 3
      %p123 = scmp.ne.s32.totalorder %s118, %s120
      %p124 = scmp.eq.s32.totalorder %s21, 0
      %p125 = por %p123, %p124
      %p126 = scmp.ne.s32.totalorder %s118, %s120
      %p127 = scmp.eq.s32.totalorder %s26, 3
      %p128 = por %p126, %p127
      %p129 = scmp.ne.s32.totalorder %s120, %s121
      %p130 = scmp.eq.s32.totalorder %s26, 0
      %p131 = por %p129, %p130
      %p132 = scmp.ne.s32.totalorder %s120, %s121
      %p133 = scmp.eq.s32.totalorder %s27, 3
      %p134 = por %p132, %p133
      %p136 = scmp.ne.s32.totalorder %s121, %s135
      %p137 = scmp.eq.s32.totalorder %s27, 0
      %p138 = por %p136, %p137
      %s140 = sadd.s32 %s139, 1
      %p143 = scmp.eq.s32.totalorder %s21, 3
      %p144 = scmp.ne.s32.totalorder %s139, %s141
      %p145 = scmp.eq.s32.totalorder %s21, 0
      %p146 = por %p144, %p145
      %p147 = scmp.ne.s32.totalorder %s139, %s141
      %p148 = scmp.eq.s32.totalorder %s26, 3
      %p149 = por %p147, %p148
      %p150 = scmp.ne.s32.totalorder %s141, %s142
      %p151 = scmp.eq.s32.totalorder %s26, 0
      %p152 = por %p150, %p151
      %p153 = scmp.ne.s32.totalorder %s141, %s142
      %p154 = scmp.eq.s32.totalorder %s27, 3
      %p155 = por %p153, %p154
      %p157 = scmp.ne.s32.totalorder %s142, %s156
      %p158 = scmp.eq.s32.totalorder %s27, 0
      %p159 = por %p157, %p158
      %s161 = sadd.s32 %s160, 1
      %p164 = scmp.eq.s32.totalorder %s21, 3
      %p165 = scmp.ne.s32.totalorder %s160, %s162
      %p166 = scmp.eq.s32.totalorder %s21, 0
      %p167 = por %p165, %p166
      %p168 = scmp.ne.s32.totalorder %s160, %s162
      %p169 = scmp.eq.s32.totalorder %s26, 3
      %p170 = por %p168, %p169
      %p171 = scmp.ne.s32.totalorder %s162, %s163
      %p172 = scmp.eq.s32.totalorder %s26, 0
      %p173 = por %p171, %p172
      %p174 = scmp.ne.s32.totalorder %s162, %s163
      %p175 = scmp.eq.s32.totalorder %s27, 3
      %p176 = por %p174, %p175
      %p178 = scmp.ne.s32.totalorder %s163, %s177
      %p179 = scmp.eq.s32.totalorder %s27, 0
      %p180 = por %p178, %p179
      %s182 = sadd.s32 %s181, 1
      %p185 = scmp.eq.s32.totalorder %s21, 3
      %p186 = scmp.ne.s32.totalorder %s181, %s183
      %p187 = scmp.eq.s32.totalorder %s21, 0
      %p188 = por %p186, %p187
      %p189 = scmp.ne.s32.totalorder %s181, %s183
      %p190 = scmp.eq.s32.totalorder %s26, 3
      %p191 = por %p189, %p190
      %p192 = scmp.ne.s32.totalorder %s183, %s184
      %p193 = scmp.eq.s32.totalorder %s26, 0
      %p194 = por %p192, %p193
      %p195 = scmp.ne.s32.totalorder %s183, %s184
      %p196 = scmp.eq.s32.totalorder %s27, 3
      %p197 = por %p195, %p196
      %p199 = scmp.ne.s32.totalorder %s184, %s198
      %p200 = scmp.eq.s32.totalorder %s27, 0
      %p201 = por %p199, %p200
      %s203 = sadd.s32 %s202, 1
      %p206 = scmp.eq.s32.totalorder %s21, 3
      %p207 = scmp.ne.s32.totalorder %s202, %s204
      %p208 = scmp.eq.s32.totalorder %s21, 0
      %p209 = por %p207, %p208
      %p210 = scmp.ne.s32.totalorder %s202, %s204
      %p211 = scmp.eq.s32.totalorder %s26, 3
      %p212 = por %p210, %p211
      %p213 = scmp.ne.s32.totalorder %s204, %s205
      %p214 = scmp.eq.s32.totalorder %s26, 0
      %p215 = por %p213, %p214
      %p216 = scmp.ne.s32.totalorder %s204, %s205
      %p217 = scmp.eq.s32.totalorder %s27, 3
      %p218 = por %p216, %p217
      %p220 = scmp.ne.s32.totalorder %s205, %s219
      %p221 = scmp.eq.s32.totalorder %s27, 0
      %p222 = por %p220, %p221
      %s224 = sadd.s32 %s223, 1
      %p227 = scmp.eq.s32.totalorder %s21, 3
      %p228 = scmp.ne.s32.totalorder %s223, %s225
      %p229 = scmp.eq.s32.totalorder %s21, 0
      %p230 = por %p228, %p229
      %p231 = scmp.ne.s32.totalorder %s223, %s225
      %p232 = scmp.eq.s32.totalorder %s26, 3
      %p233 = por %p231, %p232
      %p234 = scmp.ne.s32.totalorder %s225, %s226
      %p235 = scmp.eq.s32.totalorder %s26, 0
      %p236 = por %p234, %p235
      %p237 = scmp.ne.s32.totalorder %s225, %s226
      %p238 = scmp.eq.s32.totalorder %s27, 3
      %p239 = por %p237, %p238
      %p241 = scmp.ne.s32.totalorder %s226, %s240
      %p242 = scmp.eq.s32.totalorder %s27, 0
      %p243 = por %p241, %p242
      %s245 = sadd.s32 %s244, 1
      %p248 = scmp.eq.s32.totalorder %s21, 3
      %p249 = scmp.ne.s32.totalorder %s244, %s246
      %p250 = scmp.eq.s32.totalorder %s21, 0
      %p251 = por %p249, %p250
      %p252 = scmp.ne.s32.totalorder %s244, %s246
      %p253 = scmp.eq.s32.totalorder %s26, 3
      %p254 = por %p252, %p253
      %p255 = scmp.ne.s32.totalorder %s246, %s247
      %p256 = scmp.eq.s32.totalorder %s26, 0
      %p257 = por %p255, %p256
      %p258 = scmp.ne.s32.totalorder %s246, %s247
      %p259 = scmp.eq.s32.totalorder %s27, 3
      %p260 = por %p258, %p259
      %p262 = scmp.ne.s32.totalorder %s247, %s261
      %p263 = scmp.eq.s32.totalorder %s27, 0
      %p264 = por %p262, %p263
      %p265 = scmp.le.s32.totalorder 1, %s21
      %p266 = scmp.lt.s32.totalorder %s21, 5
      %p267 = pnand %p265, %p266
      %p268 = pneg %p267
      // Predicated region
      $region9: #{image_text_matching_forward.2} parent=5 // pred_check
        _
      $region10: #{image_text_matching_forward.2} parent=5 // pred_check_branch
        %270 = sbr.rel (%p267) target = $region12
      $region11: #{image_text_matching_forward.2} parent=5 // pred_region
        %s271 = ssub.s32 %s21, 1
        // Predicated region
        $region13: #{image_text_matching_forward.2} parent=11 // pred_check
          %p272 = pneg %p68
        $region14: #{image_text_matching_forward.2} parent=11 // pred_check_branch
          %274 = sbr.rel (%p272) target = $region16
        $region15: #{image_text_matching_forward.2} parent=11 // pred_region
          %276 = vsyncadd [#allocation4], 0
          %s278 = sshll.u32 %s1, 4
          %s279 = int_to_ptr.hbm [resolvable:$true] %s278
          %s280 = sshll.u32 [#allocation3], 4
          %s281 = int_to_ptr.vmem [resolvable:$true] %s280
          %283 = dma.hbm_to_vmem [thread:$0]  %s279, 1024, %s281, [#allocation4]
        $region16: #{image_text_matching_forward.2} parent=11 // pred_fallthru
          _
        // Predicated region
        $region17: #{image_text_matching_forward.2} parent=11 // pred_check
          %p284 = pneg %p89
        $region18: #{image_text_matching_forward.2} parent=11 // pred_check_branch
          %286 = sbr.rel (%p284) target = $region20
        $region19: #{image_text_matching_forward.2} parent=11 // pred_region
          %288 = vsyncadd [#allocation6], 0
          %s290 = sshll.u32 %s2, 4
          %s291 = int_to_ptr.hbm [resolvable:$true] %s290
          %s292 = sshll.u32 [#allocation5], 4
          %s293 = int_to_ptr.vmem [resolvable:$true] %s292
          %295 = dma.hbm_to_vmem [thread:$0]  %s291, 256, %s293, [#allocation6]
        $region20: #{image_text_matching_forward.2} parent=11 // pred_fallthru
          _
        // Predicated region
        $region21: #{image_text_matching_forward.2} parent=11 // pred_check
          %p296 = pneg %p110
        $region22: #{image_text_matching_forward.2} parent=11 // pred_check_branch
          %298 = sbr.rel (%p296) target = $region24
        $region23: #{image_text_matching_forward.2} parent=11 // pred_region
          _
        $region24: #{image_text_matching_forward.2} parent=11 // pred_fallthru
          _
        // Predicated region
        $region25: #{image_text_matching_forward.2} parent=11 // pred_check
          %p299 = pneg %p131
        $region26: #{image_text_matching_forward.2} parent=11 // pred_check_branch
          %301 = sbr.rel (%p299) target = $region28
        $region27: #{image_text_matching_forward.2} parent=11 // pred_region
          %303 = vsyncadd [#allocation6], 0
          %s304 = sshll.u32 %s4, 4
          %s305 = int_to_ptr.hbm [resolvable:$true] %s304
          %s306 = sshll.u32 [#allocation7], 4
          %s307 = int_to_ptr.vmem [resolvable:$true] %s306
          %312 = dma.hbm_to_vmem [thread:$0]  %s305, 16384, %s307, [#allocation6], 64, 64, 4
        $region28: #{image_text_matching_forward.2} parent=11 // pred_fallthru
          _
        // Predicated region
        $region29: #{image_text_matching_forward.2} parent=11 // pred_check
          %p313 = pneg %p152
        $region30: #{image_text_matching_forward.2} parent=11 // pred_check_branch
          %315 = sbr.rel (%p313) target = $region32
        $region31: #{image_text_matching_forward.2} parent=11 // pred_region
          %317 = vsyncadd [#allocation9], 0
          %s319 = sshll.u32 %s5, 4
          %s320 = int_to_ptr.hbm [resolvable:$true] %s319
          %s321 = sshll.u32 [#allocation8], 4
          %s322 = int_to_ptr.vmem [resolvable:$true] %s321
          %324 = dma.hbm_to_vmem [thread:$0]  %s320, 16, %s322, [#allocation9]
        $region32: #{image_text_matching_forward.2} parent=11 // pred_fallthru
          _
        // Predicated region
        $region33: #{image_text_matching_forward.2} parent=11 // pred_check
          %p325 = pneg %p173
        $region34: #{image_text_matching_forward.2} parent=11 // pred_check_branch
          %327 = sbr.rel (%p325) target = $region36
        $region35: #{image_text_matching_forward.2} parent=11 // pred_region
          %329 = vsyncadd [#allocation9], 0
          %s331 = sshll.u32 %s6, 4
          %s332 = int_to_ptr.hbm [resolvable:$true] %s331
          %s333 = sshll.u32 [#allocation10], 4
          %s334 = int_to_ptr.vmem [resolvable:$true] %s333
          %336 = dma.hbm_to_vmem [thread:$0]  %s332, 16, %s334, [#allocation9]
        $region36: #{image_text_matching_forward.2} parent=11 // pred_fallthru
          _
        // Predicated region
        $region37: #{image_text_matching_forward.2} parent=11 // pred_check
          %p337 = pneg %p194
        $region38: #{image_text_matching_forward.2} parent=11 // pred_check_branch
          %339 = sbr.rel (%p337) target = $region40
        $region39: #{image_text_matching_forward.2} parent=11 // pred_region
          %341 = vsyncadd [#allocation12], 0
          %s343 = sshll.u32 %s7, 4
          %s344 = int_to_ptr.hbm [resolvable:$true] %s343
          %s345 = sshll.u32 [#allocation11], 4
          %s346 = int_to_ptr.vmem [resolvable:$true] %s345
          %348 = dma.hbm_to_vmem [thread:$0]  %s344, 16, %s346, [#allocation12]
        $region40: #{image_text_matching_forward.2} parent=11 // pred_fallthru
          _
        // Predicated region
        $region41: #{image_text_matching_forward.2} parent=11 // pred_check
          %p349 = pneg %p215
        $region42: #{image_text_matching_forward.2} parent=11 // pred_check_branch
          %351 = sbr.rel (%p349) target = $region44
        $region43: #{image_text_matching_forward.2} parent=11 // pred_region
          %353 = vsyncadd [#allocation12], 0
          %s354 = sshll.u32 %s8, 4
          %s355 = int_to_ptr.hbm [resolvable:$true] %s354
          %s356 = sshll.u32 [#allocation13], 4
          %s357 = int_to_ptr.vmem [resolvable:$true] %s356
          %362 = dma.hbm_to_vmem [thread:$0]  %s355, 2048, %s357, [#allocation12], 128, 128, 8
        $region44: #{image_text_matching_forward.2} parent=11 // pred_fallthru
          _
        // Predicated region
        $region45: #{image_text_matching_forward.2} parent=11 // pred_check
          %p363 = pneg %p236
        $region46: #{image_text_matching_forward.2} parent=11 // pred_check_branch
          %365 = sbr.rel (%p363) target = $region48
        $region47: #{image_text_matching_forward.2} parent=11 // pred_region
          %367 = vsyncadd [#allocation15], 0
          %s369 = sshll.u32 %s9, 4
          %s370 = int_to_ptr.hbm [resolvable:$true] %s369
          %s371 = sshll.u32 [#allocation14], 4
          %s372 = int_to_ptr.vmem [resolvable:$true] %s371
          %374 = dma.hbm_to_vmem [thread:$0]  %s370, 16, %s372, [#allocation15]
        $region48: #{image_text_matching_forward.2} parent=11 // pred_fallthru
          _
      $region12: #{image_text_matching_forward.2} parent=5 // pred_fallthru
        _
      %p375 = scmp.lt.s32.totalorder %s21, 4
      // Predicated region
      $region49: #{image_text_matching_forward.2} parent=5 // pred_check
        %p376 = pneg %p375
      $region50: #{image_text_matching_forward.2} parent=5 // pred_check_branch
        %378 = sbr.rel (%p376) target = $region52
      $region51: #{image_text_matching_forward.2} parent=5 // pred_region
        // Predicated region
        $region53: #{image_text_matching_forward.2} parent=51 // pred_check
          %p379 = pneg %p41
        $region54: #{image_text_matching_forward.2} parent=51 // pred_check_branch
          %381 = sbr.rel (%p379) target = $region56
        $region55: #{image_text_matching_forward.2} parent=51 // pred_region
          %s382 = smul.u32 64, %s21
          %p383 = scmp.lt.s32.totalorder %s382, 255
          %s384 = scalar_select %p383, %s382, 255
          %s385 = smul.addr %s384, 8
          %s386 = scalar_lea.vmem %s0, %s385
          %s387 = smul.u32 64, %s21
        $region56: #{image_text_matching_forward.2} parent=51 // pred_fallthru
          _
      $region52: #{image_text_matching_forward.2} parent=5 // pred_fallthru
        _
      %p388 = scmp.le.s32.totalorder 1, %s21
      %p389 = scmp.lt.s32.totalorder %s21, 5
      %p390 = pnand %p388, %p389
      %p391 = pneg %p390
      // Predicated region
      $region57: #{image_text_matching_forward.2} parent=5 // pred_check
        _
      $region58: #{image_text_matching_forward.2} parent=5 // pred_check_branch
        %393 = sbr.rel (%p390) target = $region60
      $region59: #{image_text_matching_forward.2} parent=5 // pred_region
        %s394 = ssub.s32 %s21, 1
        // Predicated region
        $region61: #{image_text_matching_forward.2} parent=59 // pred_check
          %p395 = pneg %p68
        $region62: #{image_text_matching_forward.2} parent=59 // pred_check_branch
          %397 = sbr.rel (%p395) target = $region64
        $region63: #{image_text_matching_forward.2} parent=59 // pred_region
          %399 = dma.done [#allocation4], 1024
        $region64: #{image_text_matching_forward.2} parent=59 // pred_fallthru
          _
        // Predicated region
        $region65: #{image_text_matching_forward.2} parent=59 // pred_check
          %p400 = pneg %p89
        $region66: #{image_text_matching_forward.2} parent=59 // pred_check_branch
          %402 = sbr.rel (%p400) target = $region68
        $region67: #{image_text_matching_forward.2} parent=59 // pred_region
          %404 = dma.done [#allocation6], 256
        $region68: #{image_text_matching_forward.2} parent=59 // pred_fallthru
          _
        // Predicated region
        $region69: #{image_text_matching_forward.2} parent=59 // pred_check
          %p405 = pneg %p131
        $region70: #{image_text_matching_forward.2} parent=59 // pred_check_branch
          %407 = sbr.rel (%p405) target = $region72
        $region71: #{image_text_matching_forward.2} parent=59 // pred_region
          %409 = dma.done [#allocation6], 16384
        $region72: #{image_text_matching_forward.2} parent=59 // pred_fallthru
          _
        // Predicated region
        $region73: #{image_text_matching_forward.2} parent=59 // pred_check
          %p410 = pneg %p152
        $region74: #{image_text_matching_forward.2} parent=59 // pred_check_branch
          %412 = sbr.rel (%p410) target = $region76
        $region75: #{image_text_matching_forward.2} parent=59 // pred_region
          %414 = dma.done [#allocation9], 16
        $region76: #{image_text_matching_forward.2} parent=59 // pred_fallthru
          _
        // Predicated region
        $region77: #{image_text_matching_forward.2} parent=59 // pred_check
          %p415 = pneg %p173
        $region78: #{image_text_matching_forward.2} parent=59 // pred_check_branch
          %417 = sbr.rel (%p415) target = $region80
        $region79: #{image_text_matching_forward.2} parent=59 // pred_region
          %419 = dma.done [#allocation9], 16
        $region80: #{image_text_matching_forward.2} parent=59 // pred_fallthru
          _
        // Predicated region
        $region81: #{image_text_matching_forward.2} parent=59 // pred_check
          %p420 = pneg %p194
        $region82: #{image_text_matching_forward.2} parent=59 // pred_check_branch
          %422 = sbr.rel (%p420) target = $region84
        $region83: #{image_text_matching_forward.2} parent=59 // pred_region
          %424 = dma.done [#allocation12], 16
        $region84: #{image_text_matching_forward.2} parent=59 // pred_fallthru
          _
        // Predicated region
        $region85: #{image_text_matching_forward.2} parent=59 // pred_check
          %p425 = pneg %p215
        $region86: #{image_text_matching_forward.2} parent=59 // pred_check_branch
          %427 = sbr.rel (%p425) target = $region88
        $region87: #{image_text_matching_forward.2} parent=59 // pred_region
          %429 = dma.done [#allocation12], 2048
        $region88: #{image_text_matching_forward.2} parent=59 // pred_fallthru
          _
        // Predicated region
        $region89: #{image_text_matching_forward.2} parent=59 // pred_check
          %p430 = pneg %p236
        $region90: #{image_text_matching_forward.2} parent=59 // pred_check_branch
          %432 = sbr.rel (%p430) target = $region92
        $region91: #{image_text_matching_forward.2} parent=59 // pred_region
          %434 = dma.done [#allocation15], 16
        $region92: #{image_text_matching_forward.2} parent=59 // pred_fallthru
          _
        %s435 = smul.u32 64, %s26
        %p436 = scmp.lt.s32.totalorder %s435, 255
        %s437 = scalar_select %p436, %s435, 255
        %s438 = smul.addr %s437, 8
        %s439 = scalar_lea.vmem %s0, %s438
        %p440 = pneg %p47
        %p441 = pneg %p44
        %p442 = pneg %p68
        %p443 = pneg %p65
        %p444 = pneg %p89
        %p445 = pneg %p86
        %p446 = pneg %p110
        %p447 = pneg %p107
        %p448 = pneg %p131
        %p449 = pneg %p128
        %p450 = pneg %p152
        %p451 = pneg %p149
        %p452 = pneg %p173
        %p453 = pneg %p170
        %p454 = pneg %p194
        %p455 = pneg %p191
        %p456 = pneg %p215
        %p457 = pneg %p212
        %p458 = pneg %p236
        %p459 = pneg %p233
        %p460 = pneg %p257
        %p461 = pneg %p254
        %s462 = smul.u32 64, %s26
        %p463 = scmp.lt.s32.totalorder %s462, 255
        %s464 = scalar_select %p463, %s462, 255
        %s465 = smul.addr %s464, 8
        %s466 = scalar_lea.vmem %s0, %s465
        %s467 = smul.u32 64, %s26
        %p469 = scmp.eq.s32.totalorder %s26, 0
        // Predicated region
        $region93: #{image_text_matching_forward.2} parent=59 // pred_check
          %p470 = pneg %p469
        $region94: #{image_text_matching_forward.2} parent=59 // pred_check_branch
          %472 = sbr.rel (%p470) target = $region96
        $region95: #{image_text_matching_forward.2} parent=59 // pred_region
          %473 = vst [vmem:[#allocation2] sm:$0xff] 0.0
          %474 = vst [vmem:[#allocation2 + $0x8] sm:$0xff] 0.0
          %475 = vst [vmem:[#allocation2 + $0x10] sm:$0xff] 0.0
          %476 = vst [vmem:[#allocation2 + $0x18] sm:$0xff] 0.0
          %477 = vst [vmem:[#allocation2 + $0x20] sm:$0xff] 0.0
          %478 = vst [vmem:[#allocation2 + $0x28] sm:$0xff] 0.0
          %479 = vst [vmem:[#allocation2 + $0x30] sm:$0xff] 0.0
          %480 = vst [vmem:[#allocation2 + $0x38] sm:$0xff] 0.0
          %481 = vst [vmem:[#allocation2 + $0x40] sm:$0xff] 0.0
          %482 = vst [vmem:[#allocation2 + $0x48] sm:$0xff] 0.0
          %483 = vst [vmem:[#allocation2 + $0x50] sm:$0xff] 0.0
          %484 = vst [vmem:[#allocation2 + $0x58] sm:$0xff] 0.0
          %485 = vst [vmem:[#allocation2 + $0x60] sm:$0xff] 0.0
          %486 = vst [vmem:[#allocation2 + $0x68] sm:$0xff] 0.0
          %487 = vst [vmem:[#allocation2 + $0x70] sm:$0xff] 0.0
          %488 = vst [vmem:[#allocation2 + $0x78] sm:$0xff] 0.0
        $region96: #{image_text_matching_forward.2} parent=59 // pred_fallthru
          _
        %v489 = vld [vmem:[%s466] sm:$0xff]
        %v490 = vld [vmem:[%s466 + $0x8] sm:$0xff]
        %v491 = vld [vmem:[%s466 + $0x10] sm:$0xff]
        %v492 = vld [vmem:[%s466 + $0x18] sm:$0xff]
        %v493 = vld [vmem:[%s466 + $0x20] sm:$0xff]
        %v494 = vld [vmem:[%s466 + $0x28] sm:$0xff]
        %v495 = vld [vmem:[%s466 + $0x30] sm:$0xff]
        %v496 = vld [vmem:[%s466 + $0x38] sm:$0xff]
        %v497 = vld [vmem:[%s466 + $0x40] sm:$0xff]
        %v498 = vld [vmem:[%s466 + $0x48] sm:$0xff]
        %v499 = vld [vmem:[%s466 + $0x50] sm:$0xff]
        %v500 = vld [vmem:[%s466 + $0x58] sm:$0xff]
        %v501 = vld [vmem:[%s466 + $0x60] sm:$0xff]
        %v502 = vld [vmem:[%s466 + $0x68] sm:$0xff]
        %v503 = vld [vmem:[%s466 + $0x70] sm:$0xff]
        %v504 = vld [vmem:[%s466 + $0x78] sm:$0xff]
        %v505 = vld [vmem:[%s466 + $0x80] sm:$0xff]
        %v506 = vld [vmem:[%s466 + $0x88] sm:$0xff]
        %v507 = vld [vmem:[%s466 + $0x90] sm:$0xff]
        %v508 = vld [vmem:[%s466 + $0x98] sm:$0xff]
        %v509 = vld [vmem:[%s466 + $0xa0] sm:$0xff]
        %v510 = vld [vmem:[%s466 + $0xa8] sm:$0xff]
        %v511 = vld [vmem:[%s466 + $0xb0] sm:$0xff]
        %v512 = vld [vmem:[%s466 + $0xb8] sm:$0xff]
        %v513 = vld [vmem:[%s466 + $0xc0] sm:$0xff]
        %v514 = vld [vmem:[%s466 + $0xc8] sm:$0xff]
        %v515 = vld [vmem:[%s466 + $0xd0] sm:$0xff]
        %v516 = vld [vmem:[%s466 + $0xd8] sm:$0xff]
        %v517 = vld [vmem:[%s466 + $0xe0] sm:$0xff]
        %v518 = vld [vmem:[%s466 + $0xe8] sm:$0xff]
        %v519 = vld [vmem:[%s466 + $0xf0] sm:$0xff]
        %v520 = vld [vmem:[%s466 + $0xf8] sm:$0xff]
        %v521 = vld [vmem:[%s466 + $0x100] sm:$0xff]
        %v522 = vld [vmem:[%s466 + $0x108] sm:$0xff]
        %v523 = vld [vmem:[%s466 + $0x110] sm:$0xff]
        %v524 = vld [vmem:[%s466 + $0x118] sm:$0xff]
        %v525 = vld [vmem:[%s466 + $0x120] sm:$0xff]
        %v526 = vld [vmem:[%s466 + $0x128] sm:$0xff]
        %v527 = vld [vmem:[%s466 + $0x130] sm:$0xff]
        %v528 = vld [vmem:[%s466 + $0x138] sm:$0xff]
        %v529 = vld [vmem:[%s466 + $0x140] sm:$0xff]
        %v530 = vld [vmem:[%s466 + $0x148] sm:$0xff]
        %v531 = vld [vmem:[%s466 + $0x150] sm:$0xff]
        %v532 = vld [vmem:[%s466 + $0x158] sm:$0xff]
        %v533 = vld [vmem:[%s466 + $0x160] sm:$0xff]
        %v534 = vld [vmem:[%s466 + $0x168] sm:$0xff]
        %v535 = vld [vmem:[%s466 + $0x170] sm:$0xff]
        %v536 = vld [vmem:[%s466 + $0x178] sm:$0xff]
        %v537 = vld [vmem:[%s466 + $0x180] sm:$0xff]
        %v538 = vld [vmem:[%s466 + $0x188] sm:$0xff]
        %v539 = vld [vmem:[%s466 + $0x190] sm:$0xff]
        %v540 = vld [vmem:[%s466 + $0x198] sm:$0xff]
        %v541 = vld [vmem:[%s466 + $0x1a0] sm:$0xff]
        %v542 = vld [vmem:[%s466 + $0x1a8] sm:$0xff]
        %v543 = vld [vmem:[%s466 + $0x1b0] sm:$0xff]
        %v544 = vld [vmem:[%s466 + $0x1b8] sm:$0xff]
        %v545 = vld [vmem:[%s466 + $0x1c0] sm:$0xff]
        %v546 = vld [vmem:[%s466 + $0x1c8] sm:$0xff]
        %v547 = vld [vmem:[%s466 + $0x1d0] sm:$0xff]
        %v548 = vld [vmem:[%s466 + $0x1d8] sm:$0xff]
        %v549 = vld [vmem:[%s466 + $0x1e0] sm:$0xff]
        %v550 = vld [vmem:[%s466 + $0x1e8] sm:$0xff]
        %v551 = vld [vmem:[%s466 + $0x1f0] sm:$0xff]
        %v552 = vld [vmem:[%s466 + $0x1f8] sm:$0xff]
        %v553 = vpack.c.bf16 %v490, %v489
        %v554 = vpack.c.bf16 %v492, %v491
        %v555 = vpack.c.bf16 %v494, %v493
        %v556 = vpack.c.bf16 %v496, %v495
        %v557 = vpack.c.bf16 %v498, %v497
        %v558 = vpack.c.bf16 %v500, %v499
        %v559 = vpack.c.bf16 %v502, %v501
        %v560 = vpack.c.bf16 %v504, %v503
        %v561 = vpack.c.bf16 %v506, %v505
        %v562 = vpack.c.bf16 %v508, %v507
        %v563 = vpack.c.bf16 %v510, %v509
        %v564 = vpack.c.bf16 %v512, %v511
        %v565 = vpack.c.bf16 %v514, %v513
        %v566 = vpack.c.bf16 %v516, %v515
        %v567 = vpack.c.bf16 %v518, %v517
        %v568 = vpack.c.bf16 %v520, %v519
        %v569 = vpack.c.bf16 %v522, %v521
        %v570 = vpack.c.bf16 %v524, %v523
        %v571 = vpack.c.bf16 %v526, %v525
        %v572 = vpack.c.bf16 %v528, %v527
        %v573 = vpack.c.bf16 %v530, %v529
        %v574 = vpack.c.bf16 %v532, %v531
        %v575 = vpack.c.bf16 %v534, %v533
        %v576 = vpack.c.bf16 %v536, %v535
        %v577 = vpack.c.bf16 %v538, %v537
        %v578 = vpack.c.bf16 %v540, %v539
        %v579 = vpack.c.bf16 %v542, %v541
        %v580 = vpack.c.bf16 %v544, %v543
        %v581 = vpack.c.bf16 %v546, %v545
        %v582 = vpack.c.bf16 %v548, %v547
        %v583 = vpack.c.bf16 %v550, %v549
        %v584 = vpack.c.bf16 %v552, %v551
        %v585 = vld [vmem:[#allocation3] sm:$0xff]
        %v586 = vld [vmem:[#allocation3 + $0x8] sm:$0xff]
        %v587 = vld [vmem:[#allocation3 + $0x10] sm:$0xff]
        %v588 = vld [vmem:[#allocation3 + $0x18] sm:$0xff]
        %v589 = vld [vmem:[#allocation3 + $0x20] sm:$0xff]
        %v590 = vld [vmem:[#allocation3 + $0x28] sm:$0xff]
        %v591 = vld [vmem:[#allocation3 + $0x30] sm:$0xff]
        %v592 = vld [vmem:[#allocation3 + $0x38] sm:$0xff]
        %v593 = vld [vmem:[#allocation5] sm:$0xff]
        %v594 = vld [vmem:[#allocation5 + $0x8] sm:$0xff]
        %v597 = vperm.slane %v593, 0
        %v598 = vperm.slane %v593, 1
        %v599 = vperm.slane %v593, 2
        %v600 = vperm.slane %v593, 3
        %v601 = vperm.slane %v593, 4
        %v602 = vperm.slane %v593, 5
        %v603 = vperm.slane %v593, 6
        %v604 = vperm.slane %v593, 7
        %v605 = vperm.slane %v594, 0
        %v606 = vperm.slane %v594, 1
        %v607 = vperm.slane %v594, 2
        %v608 = vperm.slane %v594, 3
        %v609 = vperm.slane %v594, 4
        %v610 = vperm.slane %v594, 5
        %v611 = vperm.slane %v594, 6
        %v612 = vperm.slane %v594, 7
        %v637 = vunpack.c.l.b16 %v585
        %v638 = vunpack.c.h.b16 %v585
        %v639 = vunpack.c.l.b16 %v586
        %v640 = vunpack.c.h.b16 %v586
        %v641 = vunpack.c.l.b16 %v587
        %v642 = vunpack.c.h.b16 %v587
        %v643 = vunpack.c.l.b16 %v588
        %v644 = vunpack.c.h.b16 %v588
        %v645 = vunpack.c.l.b16 %v589
        %v646 = vunpack.c.h.b16 %v589
        %v647 = vunpack.c.l.b16 %v590
        %v648 = vunpack.c.h.b16 %v590
        %v649 = vunpack.c.l.b16 %v591
        %v650 = vunpack.c.h.b16 %v591
        %v651 = vunpack.c.l.b16 %v592
        %v652 = vunpack.c.h.b16 %v592
        %v653 = vpack.c.b16 %v637, %v637
        %v654 = vpack.c.b16 %v638, %v638
        %v655 = vpack.c.b16 %v639, %v639
        %v656 = vpack.c.b16 %v640, %v640
        %v657 = vpack.c.b16 %v641, %v641
        %v658 = vpack.c.b16 %v642, %v642
        %v659 = vpack.c.b16 %v643, %v643
        %v660 = vpack.c.b16 %v644, %v644
        %v661 = vpack.c.b16 %v645, %v645
        %v662 = vpack.c.b16 %v646, %v646
        %v663 = vpack.c.b16 %v647, %v647
        %v664 = vpack.c.b16 %v648, %v648
        %v665 = vpack.c.b16 %v649, %v649
        %v666 = vpack.c.b16 %v650, %v650
        %v667 = vpack.c.b16 %v651, %v651
        %v668 = vpack.c.b16 %v652, %v652
        %vm669 = vcmask 64512
        %v671 = vsel %vm669, %v553, 0
        %v674 = vsel %vm669, %v554, 0
        %v677 = vsel %vm669, %v555, 0
        %v680 = vsel %vm669, %v556, 0
        %v683 = vsel %vm669, %v557, 0
        %v686 = vsel %vm669, %v558, 0
        %v689 = vsel %vm669, %v559, 0
        %v692 = vsel %vm669, %v560, 0
        %v695 = vsel %vm669, %v561, 0
        %v698 = vsel %vm669, %v562, 0
        %v701 = vsel %vm669, %v563, 0
        %v704 = vsel %vm669, %v564, 0
        %v707 = vsel %vm669, %v565, 0
        %v710 = vsel %vm669, %v566, 0
        %v713 = vsel %vm669, %v567, 0
        %v716 = vsel %vm669, %v568, 0
        %v719 = vsel %vm669, %v569, 0
        %v722 = vsel %vm669, %v570, 0
        %v725 = vsel %vm669, %v571, 0
        %v728 = vsel %vm669, %v572, 0
        %v731 = vsel %vm669, %v573, 0
        %v734 = vsel %vm669, %v574, 0
        %v737 = vsel %vm669, %v575, 0
        %v740 = vsel %vm669, %v576, 0
        %v743 = vsel %vm669, %v577, 0
        %v746 = vsel %vm669, %v578, 0
        %v749 = vsel %vm669, %v579, 0
        %v752 = vsel %vm669, %v580, 0
        %v755 = vsel %vm669, %v581, 0
        %v758 = vsel %vm669, %v582, 0
        %v761 = vsel %vm669, %v583, 0
        %v764 = vsel %vm669, %v584, 0
        %vm766 = vcmask 1043456
        %v768 = vsel %vm766, %v653, 0
        %v771 = vsel %vm766, %v654, 0
        %v774 = vsel %vm766, %v655, 0
        %v777 = vsel %vm766, %v656, 0
        %v780 = vsel %vm766, %v657, 0
        %v783 = vsel %vm766, %v658, 0
        %v786 = vsel %vm766, %v659, 0
        %v789 = vsel %vm766, %v660, 0
        %v792 = vsel %vm766, %v661, 0
        %v795 = vsel %vm766, %v662, 0
        %v798 = vsel %vm766, %v663, 0
        %v801 = vsel %vm766, %v664, 0
        %v804 = vsel %vm766, %v665, 0
        %v807 = vsel %vm766, %v666, 0
        %v810 = vsel %vm766, %v667, 0
        %v813 = vsel %vm766, %v668, 0
        %815 = vmatpush.bf16.msra.mxu0 0
        %816 = vmatpush.bf16.msra.mxu0 0
        %817 = vmatpush.bf16.msra.mxu0 0
        %818 = vmatpush.bf16.msra.mxu0 0
        %819 = vmatpush.bf16.msra.mxu0 0
        %820 = vmatpush.bf16.msra.mxu0 0
        %821 = vmatpush.bf16.msra.mxu0 0
        %822 = vmatpush.bf16.msra.mxu0 %v768
        %823 = vmatmul.bf16.gmra.mxu0 %v671
        %v824 = vpop.f32.mrf.mxu0
        %v825 = vadd.f32 %v597, %v824
        %v826 = vpop.f32.mrf.mxu0
        %v827 = vadd.f32 %v597, %v826
        %828 = vmatmul.bf16.gmra.mxu0 %v674
        %v829 = vpop.f32.mrf.mxu0
        %v830 = vadd.f32 %v597, %v829
        %v831 = vpop.f32.mrf.mxu0
        %v832 = vadd.f32 %v597, %v831
        %833 = vmatmul.bf16.gmra.mxu0 %v677
        %v834 = vpop.f32.mrf.mxu0
        %v835 = vadd.f32 %v597, %v834
        %v836 = vpop.f32.mrf.mxu0
        %v837 = vadd.f32 %v597, %v836
        %838 = vmatmul.bf16.gmra.mxu0 %v680
        %v839 = vpop.f32.mrf.mxu0
        %v840 = vadd.f32 %v597, %v839
        %v841 = vpop.f32.mrf.mxu0
        %v842 = vadd.f32 %v597, %v841
        %843 = vmatmul.bf16.gmra.mxu0 %v683
        %v844 = vpop.f32.mrf.mxu0
        %v845 = vadd.f32 %v597, %v844
        %v846 = vpop.f32.mrf.mxu0
        %v847 = vadd.f32 %v597, %v846
        %848 = vmatmul.bf16.gmra.mxu0 %v686
        %v849 = vpop.f32.mrf.mxu0
        %v850 = vadd.f32 %v597, %v849
        %v851 = vpop.f32.mrf.mxu0
        %v852 = vadd.f32 %v597, %v851
        %853 = vmatmul.bf16.gmra.mxu0 %v689
        %v854 = vpop.f32.mrf.mxu0
        %v855 = vadd.f32 %v597, %v854
        %v856 = vpop.f32.mrf.mxu0
        %v857 = vadd.f32 %v597, %v856
        %858 = vmatmul.bf16.gmra.mxu0 %v692
        %v859 = vpop.f32.mrf.mxu0
        %v860 = vadd.f32 %v597, %v859
        %v861 = vpop.f32.mrf.mxu0
        %v862 = vadd.f32 %v597, %v861
        %863 = vmatmul.bf16.gmra.mxu0 %v695
        %v864 = vpop.f32.mrf.mxu0
        %v865 = vadd.f32 %v597, %v864
        %v866 = vpop.f32.mrf.mxu0
        %v867 = vadd.f32 %v597, %v866
        %868 = vmatmul.bf16.gmra.mxu0 %v698
        %v869 = vpop.f32.mrf.mxu0
        %v870 = vadd.f32 %v597, %v869
        %v871 = vpop.f32.mrf.mxu0
        %v872 = vadd.f32 %v597, %v871
        %873 = vmatmul.bf16.gmra.mxu0 %v701
        %v874 = vpop.f32.mrf.mxu0
        %v875 = vadd.f32 %v597, %v874
        %v876 = vpop.f32.mrf.mxu0
        %v877 = vadd.f32 %v597, %v876
        %878 = vmatmul.bf16.gmra.mxu0 %v704
        %v879 = vpop.f32.mrf.mxu0
        %v880 = vadd.f32 %v597, %v879
        %v881 = vpop.f32.mrf.mxu0
        %v882 = vadd.f32 %v597, %v881
        %883 = vmatmul.bf16.gmra.mxu0 %v707
        %v884 = vpop.f32.mrf.mxu0
        %v885 = vadd.f32 %v597, %v884
        %v886 = vpop.f32.mrf.mxu0
        %v887 = vadd.f32 %v597, %v886
        %888 = vmatmul.bf16.gmra.mxu0 %v710
        %v889 = vpop.f32.mrf.mxu0
        %v890 = vadd.f32 %v597, %v889
        %v891 = vpop.f32.mrf.mxu0
        %v892 = vadd.f32 %v597, %v891
        %893 = vmatmul.bf16.gmra.mxu0 %v713
        %v894 = vpop.f32.mrf.mxu0
        %v895 = vadd.f32 %v597, %v894
        %v896 = vpop.f32.mrf.mxu0
        %v897 = vadd.f32 %v597, %v896
        %898 = vmatmul.bf16.gmra.mxu0 %v716
        %v899 = vpop.f32.mrf.mxu0
        %v900 = vadd.f32 %v597, %v899
        %v901 = vpop.f32.mrf.mxu0
        %v902 = vadd.f32 %v597, %v901
        %903 = vmatmul.bf16.gmra.mxu0 %v719
        %v904 = vpop.f32.mrf.mxu0
        %v905 = vadd.f32 %v597, %v904
        %v906 = vpop.f32.mrf.mxu0
        %v907 = vadd.f32 %v597, %v906
        %908 = vmatmul.bf16.gmra.mxu0 %v722
        %v909 = vpop.f32.mrf.mxu0
        %v910 = vadd.f32 %v597, %v909
        %v911 = vpop.f32.mrf.mxu0
        %v912 = vadd.f32 %v597, %v911
        %913 = vmatmul.bf16.gmra.mxu0 %v725
        %v914 = vpop.f32.mrf.mxu0
        %v915 = vadd.f32 %v597, %v914
        %v916 = vpop.f32.mrf.mxu0
        %v917 = vadd.f32 %v597, %v916
        %918 = vmatmul.bf16.gmra.mxu0 %v728
        %v919 = vpop.f32.mrf.mxu0
        %v920 = vadd.f32 %v597, %v919
        %v921 = vpop.f32.mrf.mxu0
        %v922 = vadd.f32 %v597, %v921
        %923 = vmatmul.bf16.gmra.mxu0 %v731
        %v924 = vpop.f32.mrf.mxu0
        %v925 = vadd.f32 %v597, %v924
        %v926 = vpop.f32.mrf.mxu0
        %v927 = vadd.f32 %v597, %v926
        %928 = vmatmul.bf16.gmra.mxu0 %v734
        %v929 = vpop.f32.mrf.mxu0
        %v930 = vadd.f32 %v597, %v929
        %v931 = vpop.f32.mrf.mxu0
        %v932 = vadd.f32 %v597, %v931
        %933 = vmatmul.bf16.gmra.mxu0 %v737
        %v934 = vpop.f32.mrf.mxu0
        %v935 = vadd.f32 %v597, %v934
        %v936 = vpop.f32.mrf.mxu0
        %v937 = vadd.f32 %v597, %v936
        %938 = vmatmul.bf16.gmra.mxu0 %v740
        %v939 = vpop.f32.mrf.mxu0
        %v940 = vadd.f32 %v597, %v939
        %v941 = vpop.f32.mrf.mxu0
        %v942 = vadd.f32 %v597, %v941
        %943 = vmatmul.bf16.gmra.mxu0 %v743
        %v944 = vpop.f32.mrf.mxu0
        %v945 = vadd.f32 %v597, %v944
        %v946 = vpop.f32.mrf.mxu0
        %v947 = vadd.f32 %v597, %v946
        %948 = vmatmul.bf16.gmra.mxu0 %v746
        %v949 = vpop.f32.mrf.mxu0
        %v950 = vadd.f32 %v597, %v949
        %v951 = vpop.f32.mrf.mxu0
        %v952 = vadd.f32 %v597, %v951
        %953 = vmatmul.bf16.gmra.mxu0 %v749
        %v954 = vpop.f32.mrf.mxu0
        %v955 = vadd.f32 %v597, %v954
        %v956 = vpop.f32.mrf.mxu0
        %v957 = vadd.f32 %v597, %v956
        %958 = vmatmul.bf16.gmra.mxu0 %v752
        %v959 = vpop.f32.mrf.mxu0
        %v960 = vadd.f32 %v597, %v959
        %v961 = vpop.f32.mrf.mxu0
        %v962 = vadd.f32 %v597, %v961
        %963 = vmatmul.bf16.gmra.mxu0 %v755
        %v964 = vpop.f32.mrf.mxu0
        %v965 = vadd.f32 %v597, %v964
        %v966 = vpop.f32.mrf.mxu0
        %v967 = vadd.f32 %v597, %v966
        %968 = vmatmul.bf16.gmra.mxu0 %v758
        %v969 = vpop.f32.mrf.mxu0
        %v970 = vadd.f32 %v597, %v969
        %v971 = vpop.f32.mrf.mxu0
        %v972 = vadd.f32 %v597, %v971
        %973 = vmatmul.bf16.gmra.mxu0 %v761
        %v974 = vpop.f32.mrf.mxu0
        %v975 = vadd.f32 %v597, %v974
        %v976 = vpop.f32.mrf.mxu0
        %v977 = vadd.f32 %v597, %v976
        %978 = vmatmul.bf16.gmra.mxu0 %v764
        %v979 = vpop.f32.mrf.mxu0
        %v980 = vadd.f32 %v597, %v979
        %v981 = vpop.f32.mrf.mxu0
        %v982 = vadd.f32 %v597, %v981
        %983 = vdwg.mxu0
        %984 = vmatpush.bf16.msra.mxu0 0
        %985 = vmatpush.bf16.msra.mxu0 0
        %986 = vmatpush.bf16.msra.mxu0 0
        %987 = vmatpush.bf16.msra.mxu0 0
        %988 = vmatpush.bf16.msra.mxu0 0
        %989 = vmatpush.bf16.msra.mxu0 0
        %990 = vmatpush.bf16.msra.mxu0 0
        %991 = vmatpush.bf16.msra.mxu0 %v771
        %992 = vmatmul.bf16.gmra.mxu0 %v671
        %v993 = vpop.f32.mrf.mxu0
        %v994 = vadd.f32 %v598, %v993
        %v995 = vpop.f32.mrf.mxu0
        %v996 = vadd.f32 %v598, %v995
        %997 = vmatmul.bf16.gmra.mxu0 %v674
        %v998 = vpop.f32.mrf.mxu0
        %v999 = vadd.f32 %v598, %v998
        %v1000 = vpop.f32.mrf.mxu0
        %v1001 = vadd.f32 %v598, %v1000
        %1002 = vmatmul.bf16.gmra.mxu0 %v677
        %v1003 = vpop.f32.mrf.mxu0
        %v1004 = vadd.f32 %v598, %v1003
        %v1005 = vpop.f32.mrf.mxu0
        %v1006 = vadd.f32 %v598, %v1005
        %1007 = vmatmul.bf16.gmra.mxu0 %v680
        %v1008 = vpop.f32.mrf.mxu0
        %v1009 = vadd.f32 %v598, %v1008
        %v1010 = vpop.f32.mrf.mxu0
        %v1011 = vadd.f32 %v598, %v1010
        %1012 = vmatmul.bf16.gmra.mxu0 %v683
        %v1013 = vpop.f32.mrf.mxu0
        %v1014 = vadd.f32 %v598, %v1013
        %v1015 = vpop.f32.mrf.mxu0
        %v1016 = vadd.f32 %v598, %v1015
        %1017 = vmatmul.bf16.gmra.mxu0 %v686
        %v1018 = vpop.f32.mrf.mxu0
        %v1019 = vadd.f32 %v598, %v1018
        %v1020 = vpop.f32.mrf.mxu0
        %v1021 = vadd.f32 %v598, %v1020
        %1022 = vmatmul.bf16.gmra.mxu0 %v689
        %v1023 = vpop.f32.mrf.mxu0
        %v1024 = vadd.f32 %v598, %v1023
        %v1025 = vpop.f32.mrf.mxu0
        %v1026 = vadd.f32 %v598, %v1025
        %1027 = vmatmul.bf16.gmra.mxu0 %v692
        %v1028 = vpop.f32.mrf.mxu0
        %v1029 = vadd.f32 %v598, %v1028
        %v1030 = vpop.f32.mrf.mxu0
        %v1031 = vadd.f32 %v598, %v1030
        %1032 = vmatmul.bf16.gmra.mxu0 %v695
        %v1033 = vpop.f32.mrf.mxu0
        %v1034 = vadd.f32 %v598, %v1033
        %v1035 = vpop.f32.mrf.mxu0
        %v1036 = vadd.f32 %v598, %v1035
        %1037 = vmatmul.bf16.gmra.mxu0 %v698
        %v1038 = vpop.f32.mrf.mxu0
        %v1039 = vadd.f32 %v598, %v1038
        %v1040 = vpop.f32.mrf.mxu0
        %v1041 = vadd.f32 %v598, %v1040
        %1042 = vmatmul.bf16.gmra.mxu0 %v701
        %v1043 = vpop.f32.mrf.mxu0
        %v1044 = vadd.f32 %v598, %v1043
        %v1045 = vpop.f32.mrf.mxu0
        %v1046 = vadd.f32 %v598, %v1045
        %1047 = vmatmul.bf16.gmra.mxu0 %v704
        %v1048 = vpop.f32.mrf.mxu0
        %v1049 = vadd.f32 %v598, %v1048
        %v1050 = vpop.f32.mrf.mxu0
        %v1051 = vadd.f32 %v598, %v1050
        %1052 = vmatmul.bf16.gmra.mxu0 %v707
        %v1053 = vpop.f32.mrf.mxu0
        %v1054 = vadd.f32 %v598, %v1053
        %v1055 = vpop.f32.mrf.mxu0
        %v1056 = vadd.f32 %v598, %v1055
        %1057 = vmatmul.bf16.gmra.mxu0 %v710
        %v1058 = vpop.f32.mrf.mxu0
        %v1059 = vadd.f32 %v598, %v1058
        %v1060 = vpop.f32.mrf.mxu0
        %v1061 = vadd.f32 %v598, %v1060
        %1062 = vmatmul.bf16.gmra.mxu0 %v713
        %v1063 = vpop.f32.mrf.mxu0
        %v1064 = vadd.f32 %v598, %v1063
        %v1065 = vpop.f32.mrf.mxu0
        %v1066 = vadd.f32 %v598, %v1065
        %1067 = vmatmul.bf16.gmra.mxu0 %v716
        %v1068 = vpop.f32.mrf.mxu0
        %v1069 = vadd.f32 %v598, %v1068
        %v1070 = vpop.f32.mrf.mxu0
        %v1071 = vadd.f32 %v598, %v1070
        %1072 = vmatmul.bf16.gmra.mxu0 %v719
        %v1073 = vpop.f32.mrf.mxu0
        %v1074 = vadd.f32 %v598, %v1073
        %v1075 = vpop.f32.mrf.mxu0
        %v1076 = vadd.f32 %v598, %v1075
        %1077 = vmatmul.bf16.gmra.mxu0 %v722
        %v1078 = vpop.f32.mrf.mxu0
        %v1079 = vadd.f32 %v598, %v1078
        %v1080 = vpop.f32.mrf.mxu0
        %v1081 = vadd.f32 %v598, %v1080
        %1082 = vmatmul.bf16.gmra.mxu0 %v725
        %v1083 = vpop.f32.mrf.mxu0
        %v1084 = vadd.f32 %v598, %v1083
        %v1085 = vpop.f32.mrf.mxu0
        %v1086 = vadd.f32 %v598, %v1085
        %1087 = vmatmul.bf16.gmra.mxu0 %v728
        %v1088 = vpop.f32.mrf.mxu0
        %v1089 = vadd.f32 %v598, %v1088
        %v1090 = vpop.f32.mrf.mxu0
        %v1091 = vadd.f32 %v598, %v1090
        %1092 = vmatmul.bf16.gmra.mxu0 %v731
        %v1093 = vpop.f32.mrf.mxu0
        %v1094 = vadd.f32 %v598, %v1093
        %v1095 = vpop.f32.mrf.mxu0
        %v1096 = vadd.f32 %v598, %v1095
        %1097 = vmatmul.bf16.gmra.mxu0 %v734
        %v1098 = vpop.f32.mrf.mxu0
        %v1099 = vadd.f32 %v598, %v1098
        %v1100 = vpop.f32.mrf.mxu0
        %v1101 = vadd.f32 %v598, %v1100
        %1102 = vmatmul.bf16.gmra.mxu0 %v737
        %v1103 = vpop.f32.mrf.mxu0
        %v1104 = vadd.f32 %v598, %v1103
        %v1105 = vpop.f32.mrf.mxu0
        %v1106 = vadd.f32 %v598, %v1105
        %1107 = vmatmul.bf16.gmra.mxu0 %v740
        %v1108 = vpop.f32.mrf.mxu0
        %v1109 = vadd.f32 %v598, %v1108
        %v1110 = vpop.f32.mrf.mxu0
        %v1111 = vadd.f32 %v598, %v1110
        %1112 = vmatmul.bf16.gmra.mxu0 %v743
        %v1113 = vpop.f32.mrf.mxu0
        %v1114 = vadd.f32 %v598, %v1113
        %v1115 = vpop.f32.mrf.mxu0
        %v1116 = vadd.f32 %v598, %v1115
        %1117 = vmatmul.bf16.gmra.mxu0 %v746
        %v1118 = vpop.f32.mrf.mxu0
        %v1119 = vadd.f32 %v598, %v1118
        %v1120 = vpop.f32.mrf.mxu0
        %v1121 = vadd.f32 %v598, %v1120
        %1122 = vmatmul.bf16.gmra.mxu0 %v749
        %v1123 = vpop.f32.mrf.mxu0
        %v1124 = vadd.f32 %v598, %v1123
        %v1125 = vpop.f32.mrf.mxu0
        %v1126 = vadd.f32 %v598, %v1125
        %1127 = vmatmul.bf16.gmra.mxu0 %v752
        %v1128 = vpop.f32.mrf.mxu0
        %v1129 = vadd.f32 %v598, %v1128
        %v1130 = vpop.f32.mrf.mxu0
        %v1131 = vadd.f32 %v598, %v1130
        %1132 = vmatmul.bf16.gmra.mxu0 %v755
        %v1133 = vpop.f32.mrf.mxu0
        %v1134 = vadd.f32 %v598, %v1133
        %v1135 = vpop.f32.mrf.mxu0
        %v1136 = vadd.f32 %v598, %v1135
        %1137 = vmatmul.bf16.gmra.mxu0 %v758
        %v1138 = vpop.f32.mrf.mxu0
        %v1139 = vadd.f32 %v598, %v1138
        %v1140 = vpop.f32.mrf.mxu0
        %v1141 = vadd.f32 %v598, %v1140
        %1142 = vmatmul.bf16.gmra.mxu0 %v761
        %v1143 = vpop.f32.mrf.mxu0
        %v1144 = vadd.f32 %v598, %v1143
        %v1145 = vpop.f32.mrf.mxu0
        %v1146 = vadd.f32 %v598, %v1145
        %1147 = vmatmul.bf16.gmra.mxu0 %v764
        %v1148 = vpop.f32.mrf.mxu0
        %v1149 = vadd.f32 %v598, %v1148
        %v1150 = vpop.f32.mrf.mxu0
        %v1151 = vadd.f32 %v598, %v1150
        %1152 = vdwg.mxu0
        %1153 = vmatpush.bf16.msra.mxu0 0
        %1154 = vmatpush.bf16.msra.mxu0 0
        %1155 = vmatpush.bf16.msra.mxu0 0
        %1156 = vmatpush.bf16.msra.mxu0 0
        %1157 = vmatpush.bf16.msra.mxu0 0
        %1158 = vmatpush.bf16.msra.mxu0 0
        %1159 = vmatpush.bf16.msra.mxu0 0
        %1160 = vmatpush.bf16.msra.mxu0 %v774
        %1161 = vmatmul.bf16.gmra.mxu0 %v671
        %v1162 = vpop.f32.mrf.mxu0
        %v1163 = vadd.f32 %v599, %v1162
        %v1164 = vpop.f32.mrf.mxu0
        %v1165 = vadd.f32 %v599, %v1164
        %1166 = vmatmul.bf16.gmra.mxu0 %v674
        %v1167 = vpop.f32.mrf.mxu0
        %v1168 = vadd.f32 %v599, %v1167
        %v1169 = vpop.f32.mrf.mxu0
        %v1170 = vadd.f32 %v599, %v1169
        %1171 = vmatmul.bf16.gmra.mxu0 %v677
        %v1172 = vpop.f32.mrf.mxu0
        %v1173 = vadd.f32 %v599, %v1172
        %v1174 = vpop.f32.mrf.mxu0
        %v1175 = vadd.f32 %v599, %v1174
        %1176 = vmatmul.bf16.gmra.mxu0 %v680
        %v1177 = vpop.f32.mrf.mxu0
        %v1178 = vadd.f32 %v599, %v1177
        %v1179 = vpop.f32.mrf.mxu0
        %v1180 = vadd.f32 %v599, %v1179
        %1181 = vmatmul.bf16.gmra.mxu0 %v683
        %v1182 = vpop.f32.mrf.mxu0
        %v1183 = vadd.f32 %v599, %v1182
        %v1184 = vpop.f32.mrf.mxu0
        %v1185 = vadd.f32 %v599, %v1184
        %1186 = vmatmul.bf16.gmra.mxu0 %v686
        %v1187 = vpop.f32.mrf.mxu0
        %v1188 = vadd.f32 %v599, %v1187
        %v1189 = vpop.f32.mrf.mxu0
        %v1190 = vadd.f32 %v599, %v1189
        %1191 = vmatmul.bf16.gmra.mxu0 %v689
        %v1192 = vpop.f32.mrf.mxu0
        %v1193 = vadd.f32 %v599, %v1192
        %v1194 = vpop.f32.mrf.mxu0
        %v1195 = vadd.f32 %v599, %v1194
        %1196 = vmatmul.bf16.gmra.mxu0 %v692
        %v1197 = vpop.f32.mrf.mxu0
        %v1198 = vadd.f32 %v599, %v1197
        %v1199 = vpop.f32.mrf.mxu0
        %v1200 = vadd.f32 %v599, %v1199
        %1201 = vmatmul.bf16.gmra.mxu0 %v695
        %v1202 = vpop.f32.mrf.mxu0
        %v1203 = vadd.f32 %v599, %v1202
        %v1204 = vpop.f32.mrf.mxu0
        %v1205 = vadd.f32 %v599, %v1204
        %1206 = vmatmul.bf16.gmra.mxu0 %v698
        %v1207 = vpop.f32.mrf.mxu0
        %v1208 = vadd.f32 %v599, %v1207
        %v1209 = vpop.f32.mrf.mxu0
        %v1210 = vadd.f32 %v599, %v1209
        %1211 = vmatmul.bf16.gmra.mxu0 %v701
        %v1212 = vpop.f32.mrf.mxu0
        %v1213 = vadd.f32 %v599, %v1212
        %v1214 = vpop.f32.mrf.mxu0
        %v1215 = vadd.f32 %v599, %v1214
        %1216 = vmatmul.bf16.gmra.mxu0 %v704
        %v1217 = vpop.f32.mrf.mxu0
        %v1218 = vadd.f32 %v599, %v1217
        %v1219 = vpop.f32.mrf.mxu0
        %v1220 = vadd.f32 %v599, %v1219
        %1221 = vmatmul.bf16.gmra.mxu0 %v707
        %v1222 = vpop.f32.mrf.mxu0
        %v1223 = vadd.f32 %v599, %v1222
        %v1224 = vpop.f32.mrf.mxu0
        %v1225 = vadd.f32 %v599, %v1224
        %1226 = vmatmul.bf16.gmra.mxu0 %v710
        %v1227 = vpop.f32.mrf.mxu0
        %v1228 = vadd.f32 %v599, %v1227
        %v1229 = vpop.f32.mrf.mxu0
        %v1230 = vadd.f32 %v599, %v1229
        %1231 = vmatmul.bf16.gmra.mxu0 %v713
        %v1232 = vpop.f32.mrf.mxu0
        %v1233 = vadd.f32 %v599, %v1232
        %v1234 = vpop.f32.mrf.mxu0
        %v1235 = vadd.f32 %v599, %v1234
        %1236 = vmatmul.bf16.gmra.mxu0 %v716
        %v1237 = vpop.f32.mrf.mxu0
        %v1238 = vadd.f32 %v599, %v1237
        %v1239 = vpop.f32.mrf.mxu0
        %v1240 = vadd.f32 %v599, %v1239
        %1241 = vmatmul.bf16.gmra.mxu0 %v719
        %v1242 = vpop.f32.mrf.mxu0
        %v1243 = vadd.f32 %v599, %v1242
        %v1244 = vpop.f32.mrf.mxu0
        %v1245 = vadd.f32 %v599, %v1244
        %1246 = vmatmul.bf16.gmra.mxu0 %v722
        %v1247 = vpop.f32.mrf.mxu0
        %v1248 = vadd.f32 %v599, %v1247
        %v1249 = vpop.f32.mrf.mxu0
        %v1250 = vadd.f32 %v599, %v1249
        %1251 = vmatmul.bf16.gmra.mxu0 %v725
        %v1252 = vpop.f32.mrf.mxu0
        %v1253 = vadd.f32 %v599, %v1252
        %v1254 = vpop.f32.mrf.mxu0
        %v1255 = vadd.f32 %v599, %v1254
        %1256 = vmatmul.bf16.gmra.mxu0 %v728
        %v1257 = vpop.f32.mrf.mxu0
        %v1258 = vadd.f32 %v599, %v1257
        %v1259 = vpop.f32.mrf.mxu0
        %v1260 = vadd.f32 %v599, %v1259
        %1261 = vmatmul.bf16.gmra.mxu0 %v731
        %v1262 = vpop.f32.mrf.mxu0
        %v1263 = vadd.f32 %v599, %v1262
        %v1264 = vpop.f32.mrf.mxu0
        %v1265 = vadd.f32 %v599, %v1264
        %1266 = vmatmul.bf16.gmra.mxu0 %v734
        %v1267 = vpop.f32.mrf.mxu0
        %v1268 = vadd.f32 %v599, %v1267
        %v1269 = vpop.f32.mrf.mxu0
        %v1270 = vadd.f32 %v599, %v1269
        %1271 = vmatmul.bf16.gmra.mxu0 %v737
        %v1272 = vpop.f32.mrf.mxu0
        %v1273 = vadd.f32 %v599, %v1272
        %v1274 = vpop.f32.mrf.mxu0
        %v1275 = vadd.f32 %v599, %v1274
        %1276 = vmatmul.bf16.gmra.mxu0 %v740
        %v1277 = vpop.f32.mrf.mxu0
        %v1278 = vadd.f32 %v599, %v1277
        %v1279 = vpop.f32.mrf.mxu0
        %v1280 = vadd.f32 %v599, %v1279
        %1281 = vmatmul.bf16.gmra.mxu0 %v743
        %v1282 = vpop.f32.mrf.mxu0
        %v1283 = vadd.f32 %v599, %v1282
        %v1284 = vpop.f32.mrf.mxu0
        %v1285 = vadd.f32 %v599, %v1284
        %1286 = vmatmul.bf16.gmra.mxu0 %v746
        %v1287 = vpop.f32.mrf.mxu0
        %v1288 = vadd.f32 %v599, %v1287
        %v1289 = vpop.f32.mrf.mxu0
        %v1290 = vadd.f32 %v599, %v1289
        %1291 = vmatmul.bf16.gmra.mxu0 %v749
        %v1292 = vpop.f32.mrf.mxu0
        %v1293 = vadd.f32 %v599, %v1292
        %v1294 = vpop.f32.mrf.mxu0
        %v1295 = vadd.f32 %v599, %v1294
        %1296 = vmatmul.bf16.gmra.mxu0 %v752
        %v1297 = vpop.f32.mrf.mxu0
        %v1298 = vadd.f32 %v599, %v1297
        %v1299 = vpop.f32.mrf.mxu0
        %v1300 = vadd.f32 %v599, %v1299
        %1301 = vmatmul.bf16.gmra.mxu0 %v755
        %v1302 = vpop.f32.mrf.mxu0
        %v1303 = vadd.f32 %v599, %v1302
        %v1304 = vpop.f32.mrf.mxu0
        %v1305 = vadd.f32 %v599, %v1304
        %1306 = vmatmul.bf16.gmra.mxu0 %v758
        %v1307 = vpop.f32.mrf.mxu0
        %v1308 = vadd.f32 %v599, %v1307
        %v1309 = vpop.f32.mrf.mxu0
        %v1310 = vadd.f32 %v599, %v1309
        %1311 = vmatmul.bf16.gmra.mxu0 %v761
        %v1312 = vpop.f32.mrf.mxu0
        %v1313 = vadd.f32 %v599, %v1312
        %v1314 = vpop.f32.mrf.mxu0
        %v1315 = vadd.f32 %v599, %v1314
        %1316 = vmatmul.bf16.gmra.mxu0 %v764
        %v1317 = vpop.f32.mrf.mxu0
        %v1318 = vadd.f32 %v599, %v1317
        %v1319 = vpop.f32.mrf.mxu0
        %v1320 = vadd.f32 %v599, %v1319
        %1321 = vdwg.mxu0
        %1322 = vmatpush.bf16.msra.mxu0 0
        %1323 = vmatpush.bf16.msra.mxu0 0
        %1324 = vmatpush.bf16.msra.mxu0 0
        %1325 = vmatpush.bf16.msra.mxu0 0
        %1326 = vmatpush.bf16.msra.mxu0 0
        %1327 = vmatpush.bf16.msra.mxu0 0
        %1328 = vmatpush.bf16.msra.mxu0 0
        %1329 = vmatpush.bf16.msra.mxu0 %v777
        %1330 = vmatmul.bf16.gmra.mxu0 %v671
        %v1331 = vpop.f32.mrf.mxu0
        %v1332 = vadd.f32 %v600, %v1331
        %v1333 = vpop.f32.mrf.mxu0
        %v1334 = vadd.f32 %v600, %v1333
        %1335 = vmatmul.bf16.gmra.mxu0 %v674
        %v1336 = vpop.f32.mrf.mxu0
        %v1337 = vadd.f32 %v600, %v1336
        %v1338 = vpop.f32.mrf.mxu0
        %v1339 = vadd.f32 %v600, %v1338
        %1340 = vmatmul.bf16.gmra.mxu0 %v677
        %v1341 = vpop.f32.mrf.mxu0
        %v1342 = vadd.f32 %v600, %v1341
        %v1343 = vpop.f32.mrf.mxu0
        %v1344 = vadd.f32 %v600, %v1343
        %1345 = vmatmul.bf16.gmra.mxu0 %v680
        %v1346 = vpop.f32.mrf.mxu0
        %v1347 = vadd.f32 %v600, %v1346
        %v1348 = vpop.f32.mrf.mxu0
        %v1349 = vadd.f32 %v600, %v1348
        %1350 = vmatmul.bf16.gmra.mxu0 %v683
        %v1351 = vpop.f32.mrf.mxu0
        %v1352 = vadd.f32 %v600, %v1351
        %v1353 = vpop.f32.mrf.mxu0
        %v1354 = vadd.f32 %v600, %v1353
        %1355 = vmatmul.bf16.gmra.mxu0 %v686
        %v1356 = vpop.f32.mrf.mxu0
        %v1357 = vadd.f32 %v600, %v1356
        %v1358 = vpop.f32.mrf.mxu0
        %v1359 = vadd.f32 %v600, %v1358
        %1360 = vmatmul.bf16.gmra.mxu0 %v689
        %v1361 = vpop.f32.mrf.mxu0
        %v1362 = vadd.f32 %v600, %v1361
        %v1363 = vpop.f32.mrf.mxu0
        %v1364 = vadd.f32 %v600, %v1363
        %1365 = vmatmul.bf16.gmra.mxu0 %v692
        %v1366 = vpop.f32.mrf.mxu0
        %v1367 = vadd.f32 %v600, %v1366
        %v1368 = vpop.f32.mrf.mxu0
        %v1369 = vadd.f32 %v600, %v1368
        %1370 = vmatmul.bf16.gmra.mxu0 %v695
        %v1371 = vpop.f32.mrf.mxu0
        %v1372 = vadd.f32 %v600, %v1371
        %v1373 = vpop.f32.mrf.mxu0
        %v1374 = vadd.f32 %v600, %v1373
        %1375 = vmatmul.bf16.gmra.mxu0 %v698
        %v1376 = vpop.f32.mrf.mxu0
        %v1377 = vadd.f32 %v600, %v1376
        %v1378 = vpop.f32.mrf.mxu0
        %v1379 = vadd.f32 %v600, %v1378
        %1380 = vmatmul.bf16.gmra.mxu0 %v701
        %v1381 = vpop.f32.mrf.mxu0
        %v1382 = vadd.f32 %v600, %v1381
        %v1383 = vpop.f32.mrf.mxu0
        %v1384 = vadd.f32 %v600, %v1383
        %1385 = vmatmul.bf16.gmra.mxu0 %v704
        %v1386 = vpop.f32.mrf.mxu0
        %v1387 = vadd.f32 %v600, %v1386
        %v1388 = vpop.f32.mrf.mxu0
        %v1389 = vadd.f32 %v600, %v1388
        %1390 = vmatmul.bf16.gmra.mxu0 %v707
        %v1391 = vpop.f32.mrf.mxu0
        %v1392 = vadd.f32 %v600, %v1391
        %v1393 = vpop.f32.mrf.mxu0
        %v1394 = vadd.f32 %v600, %v1393
        %1395 = vmatmul.bf16.gmra.mxu0 %v710
        %v1396 = vpop.f32.mrf.mxu0
        %v1397 = vadd.f32 %v600, %v1396
        %v1398 = vpop.f32.mrf.mxu0
        %v1399 = vadd.f32 %v600, %v1398
        %1400 = vmatmul.bf16.gmra.mxu0 %v713
        %v1401 = vpop.f32.mrf.mxu0
        %v1402 = vadd.f32 %v600, %v1401
        %v1403 = vpop.f32.mrf.mxu0
        %v1404 = vadd.f32 %v600, %v1403
        %1405 = vmatmul.bf16.gmra.mxu0 %v716
        %v1406 = vpop.f32.mrf.mxu0
        %v1407 = vadd.f32 %v600, %v1406
        %v1408 = vpop.f32.mrf.mxu0
        %v1409 = vadd.f32 %v600, %v1408
        %1410 = vmatmul.bf16.gmra.mxu0 %v719
        %v1411 = vpop.f32.mrf.mxu0
        %v1412 = vadd.f32 %v600, %v1411
        %v1413 = vpop.f32.mrf.mxu0
        %v1414 = vadd.f32 %v600, %v1413
        %1415 = vmatmul.bf16.gmra.mxu0 %v722
        %v1416 = vpop.f32.mrf.mxu0
        %v1417 = vadd.f32 %v600, %v1416
        %v1418 = vpop.f32.mrf.mxu0
        %v1419 = vadd.f32 %v600, %v1418
        %1420 = vmatmul.bf16.gmra.mxu0 %v725
        %v1421 = vpop.f32.mrf.mxu0
        %v1422 = vadd.f32 %v600, %v1421
        %v1423 = vpop.f32.mrf.mxu0
        %v1424 = vadd.f32 %v600, %v1423
        %1425 = vmatmul.bf16.gmra.mxu0 %v728
        %v1426 = vpop.f32.mrf.mxu0
        %v1427 = vadd.f32 %v600, %v1426
        %v1428 = vpop.f32.mrf.mxu0
        %v1429 = vadd.f32 %v600, %v1428
        %1430 = vmatmul.bf16.gmra.mxu0 %v731
        %v1431 = vpop.f32.mrf.mxu0
        %v1432 = vadd.f32 %v600, %v1431
        %v1433 = vpop.f32.mrf.mxu0
        %v1434 = vadd.f32 %v600, %v1433
        %1435 = vmatmul.bf16.gmra.mxu0 %v734
        %v1436 = vpop.f32.mrf.mxu0
        %v1437 = vadd.f32 %v600, %v1436
        %v1438 = vpop.f32.mrf.mxu0
        %v1439 = vadd.f32 %v600, %v1438
        %1440 = vmatmul.bf16.gmra.mxu0 %v737
        %v1441 = vpop.f32.mrf.mxu0
        %v1442 = vadd.f32 %v600, %v1441
        %v1443 = vpop.f32.mrf.mxu0
        %v1444 = vadd.f32 %v600, %v1443
        %1445 = vmatmul.bf16.gmra.mxu0 %v740
        %v1446 = vpop.f32.mrf.mxu0
        %v1447 = vadd.f32 %v600, %v1446
        %v1448 = vpop.f32.mrf.mxu0
        %v1449 = vadd.f32 %v600, %v1448
        %1450 = vmatmul.bf16.gmra.mxu0 %v743
        %v1451 = vpop.f32.mrf.mxu0
        %v1452 = vadd.f32 %v600, %v1451
        %v1453 = vpop.f32.mrf.mxu0
        %v1454 = vadd.f32 %v600, %v1453
        %1455 = vmatmul.bf16.gmra.mxu0 %v746
        %v1456 = vpop.f32.mrf.mxu0
        %v1457 = vadd.f32 %v600, %v1456
        %v1458 = vpop.f32.mrf.mxu0
        %v1459 = vadd.f32 %v600, %v1458
        %1460 = vmatmul.bf16.gmra.mxu0 %v749
        %v1461 = vpop.f32.mrf.mxu0
        %v1462 = vadd.f32 %v600, %v1461
        %v1463 = vpop.f32.mrf.mxu0
        %v1464 = vadd.f32 %v600, %v1463
        %1465 = vmatmul.bf16.gmra.mxu0 %v752
        %v1466 = vpop.f32.mrf.mxu0
        %v1467 = vadd.f32 %v600, %v1466
        %v1468 = vpop.f32.mrf.mxu0
        %v1469 = vadd.f32 %v600, %v1468
        %1470 = vmatmul.bf16.gmra.mxu0 %v755
        %v1471 = vpop.f32.mrf.mxu0
        %v1472 = vadd.f32 %v600, %v1471
        %v1473 = vpop.f32.mrf.mxu0
        %v1474 = vadd.f32 %v600, %v1473
        %1475 = vmatmul.bf16.gmra.mxu0 %v758
        %v1476 = vpop.f32.mrf.mxu0
        %v1477 = vadd.f32 %v600, %v1476
        %v1478 = vpop.f32.mrf.mxu0
        %v1479 = vadd.f32 %v600, %v1478
        %1480 = vmatmul.bf16.gmra.mxu0 %v761
        %v1481 = vpop.f32.mrf.mxu0
        %v1482 = vadd.f32 %v600, %v1481
        %v1483 = vpop.f32.mrf.mxu0
        %v1484 = vadd.f32 %v600, %v1483
        %1485 = vmatmul.bf16.gmra.mxu0 %v764
        %v1486 = vpop.f32.mrf.mxu0
        %v1487 = vadd.f32 %v600, %v1486
        %v1488 = vpop.f32.mrf.mxu0
        %v1489 = vadd.f32 %v600, %v1488
        %1490 = vdwg.mxu0
        %1491 = vmatpush.bf16.msra.mxu0 0
        %1492 = vmatpush.bf16.msra.mxu0 0
        %1493 = vmatpush.bf16.msra.mxu0 0
        %1494 = vmatpush.bf16.msra.mxu0 0
        %1495 = vmatpush.bf16.msra.mxu0 0
        %1496 = vmatpush.bf16.msra.mxu0 0
        %1497 = vmatpush.bf16.msra.mxu0 0
        %1498 = vmatpush.bf16.msra.mxu0 %v780
        %1499 = vmatmul.bf16.gmra.mxu0 %v671
        %v1500 = vpop.f32.mrf.mxu0
        %v1501 = vadd.f32 %v601, %v1500
        %v1502 = vpop.f32.mrf.mxu0
        %v1503 = vadd.f32 %v601, %v1502
        %1504 = vmatmul.bf16.gmra.mxu0 %v674
        %v1505 = vpop.f32.mrf.mxu0
        %v1506 = vadd.f32 %v601, %v1505
        %v1507 = vpop.f32.mrf.mxu0
        %v1508 = vadd.f32 %v601, %v1507
        %1509 = vmatmul.bf16.gmra.mxu0 %v677
        %v1510 = vpop.f32.mrf.mxu0
        %v1511 = vadd.f32 %v601, %v1510
        %v1512 = vpop.f32.mrf.mxu0
        %v1513 = vadd.f32 %v601, %v1512
        %1514 = vmatmul.bf16.gmra.mxu0 %v680
        %v1515 = vpop.f32.mrf.mxu0
        %v1516 = vadd.f32 %v601, %v1515
        %v1517 = vpop.f32.mrf.mxu0
        %v1518 = vadd.f32 %v601, %v1517
        %1519 = vmatmul.bf16.gmra.mxu0 %v683
        %v1520 = vpop.f32.mrf.mxu0
        %v1521 = vadd.f32 %v601, %v1520
        %v1522 = vpop.f32.mrf.mxu0
        %v1523 = vadd.f32 %v601, %v1522
        %1524 = vmatmul.bf16.gmra.mxu0 %v686
        %v1525 = vpop.f32.mrf.mxu0
        %v1526 = vadd.f32 %v601, %v1525
        %v1527 = vpop.f32.mrf.mxu0
        %v1528 = vadd.f32 %v601, %v1527
        %1529 = vmatmul.bf16.gmra.mxu0 %v689
        %v1530 = vpop.f32.mrf.mxu0
        %v1531 = vadd.f32 %v601, %v1530
        %v1532 = vpop.f32.mrf.mxu0
        %v1533 = vadd.f32 %v601, %v1532
        %1534 = vmatmul.bf16.gmra.mxu0 %v692
        %v1535 = vpop.f32.mrf.mxu0
        %v1536 = vadd.f32 %v601, %v1535
        %v1537 = vpop.f32.mrf.mxu0
        %v1538 = vadd.f32 %v601, %v1537
        %1539 = vmatmul.bf16.gmra.mxu0 %v695
        %v1540 = vpop.f32.mrf.mxu0
        %v1541 = vadd.f32 %v601, %v1540
        %v1542 = vpop.f32.mrf.mxu0
        %v1543 = vadd.f32 %v601, %v1542
        %1544 = vmatmul.bf16.gmra.mxu0 %v698
        %v1545 = vpop.f32.mrf.mxu0
        %v1546 = vadd.f32 %v601, %v1545
        %v1547 = vpop.f32.mrf.mxu0
        %v1548 = vadd.f32 %v601, %v1547
        %1549 = vmatmul.bf16.gmra.mxu0 %v701
        %v1550 = vpop.f32.mrf.mxu0
        %v1551 = vadd.f32 %v601, %v1550
        %v1552 = vpop.f32.mrf.mxu0
        %v1553 = vadd.f32 %v601, %v1552
        %1554 = vmatmul.bf16.gmra.mxu0 %v704
        %v1555 = vpop.f32.mrf.mxu0
        %v1556 = vadd.f32 %v601, %v1555
        %v1557 = vpop.f32.mrf.mxu0
        %v1558 = vadd.f32 %v601, %v1557
        %1559 = vmatmul.bf16.gmra.mxu0 %v707
        %v1560 = vpop.f32.mrf.mxu0
        %v1561 = vadd.f32 %v601, %v1560
        %v1562 = vpop.f32.mrf.mxu0
        %v1563 = vadd.f32 %v601, %v1562
        %1564 = vmatmul.bf16.gmra.mxu0 %v710
        %v1565 = vpop.f32.mrf.mxu0
        %v1566 = vadd.f32 %v601, %v1565
        %v1567 = vpop.f32.mrf.mxu0
        %v1568 = vadd.f32 %v601, %v1567
        %1569 = vmatmul.bf16.gmra.mxu0 %v713
        %v1570 = vpop.f32.mrf.mxu0
        %v1571 = vadd.f32 %v601, %v1570
        %v1572 = vpop.f32.mrf.mxu0
        %v1573 = vadd.f32 %v601, %v1572
        %1574 = vmatmul.bf16.gmra.mxu0 %v716
        %v1575 = vpop.f32.mrf.mxu0
        %v1576 = vadd.f32 %v601, %v1575
        %v1577 = vpop.f32.mrf.mxu0
        %v1578 = vadd.f32 %v601, %v1577
        %1579 = vmatmul.bf16.gmra.mxu0 %v719
        %v1580 = vpop.f32.mrf.mxu0
        %v1581 = vadd.f32 %v601, %v1580
        %v1582 = vpop.f32.mrf.mxu0
        %v1583 = vadd.f32 %v601, %v1582
        %1584 = vmatmul.bf16.gmra.mxu0 %v722
        %v1585 = vpop.f32.mrf.mxu0
        %v1586 = vadd.f32 %v601, %v1585
        %v1587 = vpop.f32.mrf.mxu0
        %v1588 = vadd.f32 %v601, %v1587
        %1589 = vmatmul.bf16.gmra.mxu0 %v725
        %v1590 = vpop.f32.mrf.mxu0
        %v1591 = vadd.f32 %v601, %v1590
        %v1592 = vpop.f32.mrf.mxu0
        %v1593 = vadd.f32 %v601, %v1592
        %1594 = vmatmul.bf16.gmra.mxu0 %v728
        %v1595 = vpop.f32.mrf.mxu0
        %v1596 = vadd.f32 %v601, %v1595
        %v1597 = vpop.f32.mrf.mxu0
        %v1598 = vadd.f32 %v601, %v1597
        %1599 = vmatmul.bf16.gmra.mxu0 %v731
        %v1600 = vpop.f32.mrf.mxu0
        %v1601 = vadd.f32 %v601, %v1600
        %v1602 = vpop.f32.mrf.mxu0
        %v1603 = vadd.f32 %v601, %v1602
        %1604 = vmatmul.bf16.gmra.mxu0 %v734
        %v1605 = vpop.f32.mrf.mxu0
        %v1606 = vadd.f32 %v601, %v1605
        %v1607 = vpop.f32.mrf.mxu0
        %v1608 = vadd.f32 %v601, %v1607
        %1609 = vmatmul.bf16.gmra.mxu0 %v737
        %v1610 = vpop.f32.mrf.mxu0
        %v1611 = vadd.f32 %v601, %v1610
        %v1612 = vpop.f32.mrf.mxu0
        %v1613 = vadd.f32 %v601, %v1612
        %1614 = vmatmul.bf16.gmra.mxu0 %v740
        %v1615 = vpop.f32.mrf.mxu0
        %v1616 = vadd.f32 %v601, %v1615
        %v1617 = vpop.f32.mrf.mxu0
        %v1618 = vadd.f32 %v601, %v1617
        %1619 = vmatmul.bf16.gmra.mxu0 %v743
        %v1620 = vpop.f32.mrf.mxu0
        %v1621 = vadd.f32 %v601, %v1620
        %v1622 = vpop.f32.mrf.mxu0
        %v1623 = vadd.f32 %v601, %v1622
        %1624 = vmatmul.bf16.gmra.mxu0 %v746
        %v1625 = vpop.f32.mrf.mxu0
        %v1626 = vadd.f32 %v601, %v1625
        %v1627 = vpop.f32.mrf.mxu0
        %v1628 = vadd.f32 %v601, %v1627
        %1629 = vmatmul.bf16.gmra.mxu0 %v749
        %v1630 = vpop.f32.mrf.mxu0
        %v1631 = vadd.f32 %v601, %v1630
        %v1632 = vpop.f32.mrf.mxu0
        %v1633 = vadd.f32 %v601, %v1632
        %1634 = vmatmul.bf16.gmra.mxu0 %v752
        %v1635 = vpop.f32.mrf.mxu0
        %v1636 = vadd.f32 %v601, %v1635
        %v1637 = vpop.f32.mrf.mxu0
        %v1638 = vadd.f32 %v601, %v1637
        %1639 = vmatmul.bf16.gmra.mxu0 %v755
        %v1640 = vpop.f32.mrf.mxu0
        %v1641 = vadd.f32 %v601, %v1640
        %v1642 = vpop.f32.mrf.mxu0
        %v1643 = vadd.f32 %v601, %v1642
        %1644 = vmatmul.bf16.gmra.mxu0 %v758
        %v1645 = vpop.f32.mrf.mxu0
        %v1646 = vadd.f32 %v601, %v1645
        %v1647 = vpop.f32.mrf.mxu0
        %v1648 = vadd.f32 %v601, %v1647
        %1649 = vmatmul.bf16.gmra.mxu0 %v761
        %v1650 = vpop.f32.mrf.mxu0
        %v1651 = vadd.f32 %v601, %v1650
        %v1652 = vpop.f32.mrf.mxu0
        %v1653 = vadd.f32 %v601, %v1652
        %1654 = vmatmul.bf16.gmra.mxu0 %v764
        %v1655 = vpop.f32.mrf.mxu0
        %v1656 = vadd.f32 %v601, %v1655
        %v1657 = vpop.f32.mrf.mxu0
        %v1658 = vadd.f32 %v601, %v1657
        %1659 = vdwg.mxu0
        %1660 = vmatpush.bf16.msra.mxu0 0
        %1661 = vmatpush.bf16.msra.mxu0 0
        %1662 = vmatpush.bf16.msra.mxu0 0
        %1663 = vmatpush.bf16.msra.mxu0 0
        %1664 = vmatpush.bf16.msra.mxu0 0
        %1665 = vmatpush.bf16.msra.mxu0 0
        %1666 = vmatpush.bf16.msra.mxu0 0
        %1667 = vmatpush.bf16.msra.mxu0 %v783
        %1668 = vmatmul.bf16.gmra.mxu0 %v671
        %v1669 = vpop.f32.mrf.mxu0
        %v1670 = vadd.f32 %v602, %v1669
        %v1671 = vpop.f32.mrf.mxu0
        %v1672 = vadd.f32 %v602, %v1671
        %1673 = vmatmul.bf16.gmra.mxu0 %v674
        %v1674 = vpop.f32.mrf.mxu0
        %v1675 = vadd.f32 %v602, %v1674
        %v1676 = vpop.f32.mrf.mxu0
        %v1677 = vadd.f32 %v602, %v1676
        %1678 = vmatmul.bf16.gmra.mxu0 %v677
        %v1679 = vpop.f32.mrf.mxu0
        %v1680 = vadd.f32 %v602, %v1679
        %v1681 = vpop.f32.mrf.mxu0
        %v1682 = vadd.f32 %v602, %v1681
        %1683 = vmatmul.bf16.gmra.mxu0 %v680
        %v1684 = vpop.f32.mrf.mxu0
        %v1685 = vadd.f32 %v602, %v1684
        %v1686 = vpop.f32.mrf.mxu0
        %v1687 = vadd.f32 %v602, %v1686
        %1688 = vmatmul.bf16.gmra.mxu0 %v683
        %v1689 = vpop.f32.mrf.mxu0
        %v1690 = vadd.f32 %v602, %v1689
        %v1691 = vpop.f32.mrf.mxu0
        %v1692 = vadd.f32 %v602, %v1691
        %1693 = vmatmul.bf16.gmra.mxu0 %v686
        %v1694 = vpop.f32.mrf.mxu0
        %v1695 = vadd.f32 %v602, %v1694
        %v1696 = vpop.f32.mrf.mxu0
        %v1697 = vadd.f32 %v602, %v1696
        %1698 = vmatmul.bf16.gmra.mxu0 %v689
        %v1699 = vpop.f32.mrf.mxu0
        %v1700 = vadd.f32 %v602, %v1699
        %v1701 = vpop.f32.mrf.mxu0
        %v1702 = vadd.f32 %v602, %v1701
        %1703 = vmatmul.bf16.gmra.mxu0 %v692
        %v1704 = vpop.f32.mrf.mxu0
        %v1705 = vadd.f32 %v602, %v1704
        %v1706 = vpop.f32.mrf.mxu0
        %v1707 = vadd.f32 %v602, %v1706
        %1708 = vmatmul.bf16.gmra.mxu0 %v695
        %v1709 = vpop.f32.mrf.mxu0
        %v1710 = vadd.f32 %v602, %v1709
        %v1711 = vpop.f32.mrf.mxu0
        %v1712 = vadd.f32 %v602, %v1711
        %1713 = vmatmul.bf16.gmra.mxu0 %v698
        %v1714 = vpop.f32.mrf.mxu0
        %v1715 = vadd.f32 %v602, %v1714
        %v1716 = vpop.f32.mrf.mxu0
        %v1717 = vadd.f32 %v602, %v1716
        %1718 = vmatmul.bf16.gmra.mxu0 %v701
        %v1719 = vpop.f32.mrf.mxu0
        %v1720 = vadd.f32 %v602, %v1719
        %v1721 = vpop.f32.mrf.mxu0
        %v1722 = vadd.f32 %v602, %v1721
        %1723 = vmatmul.bf16.gmra.mxu0 %v704
        %v1724 = vpop.f32.mrf.mxu0
        %v1725 = vadd.f32 %v602, %v1724
        %v1726 = vpop.f32.mrf.mxu0
        %v1727 = vadd.f32 %v602, %v1726
        %1728 = vmatmul.bf16.gmra.mxu0 %v707
        %v1729 = vpop.f32.mrf.mxu0
        %v1730 = vadd.f32 %v602, %v1729
        %v1731 = vpop.f32.mrf.mxu0
        %v1732 = vadd.f32 %v602, %v1731
        %1733 = vmatmul.bf16.gmra.mxu0 %v710
        %v1734 = vpop.f32.mrf.mxu0
        %v1735 = vadd.f32 %v602, %v1734
        %v1736 = vpop.f32.mrf.mxu0
        %v1737 = vadd.f32 %v602, %v1736
        %1738 = vmatmul.bf16.gmra.mxu0 %v713
        %v1739 = vpop.f32.mrf.mxu0
        %v1740 = vadd.f32 %v602, %v1739
        %v1741 = vpop.f32.mrf.mxu0
        %v1742 = vadd.f32 %v602, %v1741
        %1743 = vmatmul.bf16.gmra.mxu0 %v716
        %v1744 = vpop.f32.mrf.mxu0
        %v1745 = vadd.f32 %v602, %v1744
        %v1746 = vpop.f32.mrf.mxu0
        %v1747 = vadd.f32 %v602, %v1746
        %1748 = vmatmul.bf16.gmra.mxu0 %v719
        %v1749 = vpop.f32.mrf.mxu0
        %v1750 = vadd.f32 %v602, %v1749
        %v1751 = vpop.f32.mrf.mxu0
        %v1752 = vadd.f32 %v602, %v1751
        %1753 = vmatmul.bf16.gmra.mxu0 %v722
        %v1754 = vpop.f32.mrf.mxu0
        %v1755 = vadd.f32 %v602, %v1754
        %v1756 = vpop.f32.mrf.mxu0
        %v1757 = vadd.f32 %v602, %v1756
        %1758 = vmatmul.bf16.gmra.mxu0 %v725
        %v1759 = vpop.f32.mrf.mxu0
        %v1760 = vadd.f32 %v602, %v1759
        %v1761 = vpop.f32.mrf.mxu0
        %v1762 = vadd.f32 %v602, %v1761
        %1763 = vmatmul.bf16.gmra.mxu0 %v728
        %v1764 = vpop.f32.mrf.mxu0
        %v1765 = vadd.f32 %v602, %v1764
        %v1766 = vpop.f32.mrf.mxu0
        %v1767 = vadd.f32 %v602, %v1766
        %1768 = vmatmul.bf16.gmra.mxu0 %v731
        %v1769 = vpop.f32.mrf.mxu0
        %v1770 = vadd.f32 %v602, %v1769
        %v1771 = vpop.f32.mrf.mxu0
        %v1772 = vadd.f32 %v602, %v1771
        %1773 = vmatmul.bf16.gmra.mxu0 %v734
        %v1774 = vpop.f32.mrf.mxu0
        %v1775 = vadd.f32 %v602, %v1774
        %v1776 = vpop.f32.mrf.mxu0
        %v1777 = vadd.f32 %v602, %v1776
        %1778 = vmatmul.bf16.gmra.mxu0 %v737
        %v1779 = vpop.f32.mrf.mxu0
        %v1780 = vadd.f32 %v602, %v1779
        %v1781 = vpop.f32.mrf.mxu0
        %v1782 = vadd.f32 %v602, %v1781
        %1783 = vmatmul.bf16.gmra.mxu0 %v740
        %v1784 = vpop.f32.mrf.mxu0
        %v1785 = vadd.f32 %v602, %v1784
        %v1786 = vpop.f32.mrf.mxu0
        %v1787 = vadd.f32 %v602, %v1786
        %1788 = vmatmul.bf16.gmra.mxu0 %v743
        %v1789 = vpop.f32.mrf.mxu0
        %v1790 = vadd.f32 %v602, %v1789
        %v1791 = vpop.f32.mrf.mxu0
        %v1792 = vadd.f32 %v602, %v1791
        %1793 = vmatmul.bf16.gmra.mxu0 %v746
        %v1794 = vpop.f32.mrf.mxu0
        %v1795 = vadd.f32 %v602, %v1794
        %v1796 = vpop.f32.mrf.mxu0
        %v1797 = vadd.f32 %v602, %v1796
        %1798 = vmatmul.bf16.gmra.mxu0 %v749
        %v1799 = vpop.f32.mrf.mxu0
        %v1800 = vadd.f32 %v602, %v1799
        %v1801 = vpop.f32.mrf.mxu0
        %v1802 = vadd.f32 %v602, %v1801
        %1803 = vmatmul.bf16.gmra.mxu0 %v752
        %v1804 = vpop.f32.mrf.mxu0
        %v1805 = vadd.f32 %v602, %v1804
        %v1806 = vpop.f32.mrf.mxu0
        %v1807 = vadd.f32 %v602, %v1806
        %1808 = vmatmul.bf16.gmra.mxu0 %v755
        %v1809 = vpop.f32.mrf.mxu0
        %v1810 = vadd.f32 %v602, %v1809
        %v1811 = vpop.f32.mrf.mxu0
        %v1812 = vadd.f32 %v602, %v1811
        %1813 = vmatmul.bf16.gmra.mxu0 %v758
        %v1814 = vpop.f32.mrf.mxu0
        %v1815 = vadd.f32 %v602, %v1814
        %v1816 = vpop.f32.mrf.mxu0
        %v1817 = vadd.f32 %v602, %v1816
        %1818 = vmatmul.bf16.gmra.mxu0 %v761
        %v1819 = vpop.f32.mrf.mxu0
        %v1820 = vadd.f32 %v602, %v1819
        %v1821 = vpop.f32.mrf.mxu0
        %v1822 = vadd.f32 %v602, %v1821
        %1823 = vmatmul.bf16.gmra.mxu0 %v764
        %v1824 = vpop.f32.mrf.mxu0
        %v1825 = vadd.f32 %v602, %v1824
        %v1826 = vpop.f32.mrf.mxu0
        %v1827 = vadd.f32 %v602, %v1826
        %1828 = vdwg.mxu0
        %1829 = vmatpush.bf16.msra.mxu0 0
        %1830 = vmatpush.bf16.msra.mxu0 0
        %1831 = vmatpush.bf16.msra.mxu0 0
        %1832 = vmatpush.bf16.msra.mxu0 0
        %1833 = vmatpush.bf16.msra.mxu0 0
        %1834 = vmatpush.bf16.msra.mxu0 0
        %1835 = vmatpush.bf16.msra.mxu0 0
        %1836 = vmatpush.bf16.msra.mxu0 %v786
        %1837 = vmatmul.bf16.gmra.mxu0 %v671
        %v1838 = vpop.f32.mrf.mxu0
        %v1839 = vadd.f32 %v603, %v1838
        %v1840 = vpop.f32.mrf.mxu0
        %v1841 = vadd.f32 %v603, %v1840
        %1842 = vmatmul.bf16.gmra.mxu0 %v674
        %v1843 = vpop.f32.mrf.mxu0
        %v1844 = vadd.f32 %v603, %v1843
        %v1845 = vpop.f32.mrf.mxu0
        %v1846 = vadd.f32 %v603, %v1845
        %1847 = vmatmul.bf16.gmra.mxu0 %v677
        %v1848 = vpop.f32.mrf.mxu0
        %v1849 = vadd.f32 %v603, %v1848
        %v1850 = vpop.f32.mrf.mxu0
        %v1851 = vadd.f32 %v603, %v1850
        %1852 = vmatmul.bf16.gmra.mxu0 %v680
        %v1853 = vpop.f32.mrf.mxu0
        %v1854 = vadd.f32 %v603, %v1853
        %v1855 = vpop.f32.mrf.mxu0
        %v1856 = vadd.f32 %v603, %v1855
        %1857 = vmatmul.bf16.gmra.mxu0 %v683
        %v1858 = vpop.f32.mrf.mxu0
        %v1859 = vadd.f32 %v603, %v1858
        %v1860 = vpop.f32.mrf.mxu0
        %v1861 = vadd.f32 %v603, %v1860
        %1862 = vmatmul.bf16.gmra.mxu0 %v686
        %v1863 = vpop.f32.mrf.mxu0
        %v1864 = vadd.f32 %v603, %v1863
        %v1865 = vpop.f32.mrf.mxu0
        %v1866 = vadd.f32 %v603, %v1865
        %1867 = vmatmul.bf16.gmra.mxu0 %v689
        %v1868 = vpop.f32.mrf.mxu0
        %v1869 = vadd.f32 %v603, %v1868
        %v1870 = vpop.f32.mrf.mxu0
        %v1871 = vadd.f32 %v603, %v1870
        %1872 = vmatmul.bf16.gmra.mxu0 %v692
        %v1873 = vpop.f32.mrf.mxu0
        %v1874 = vadd.f32 %v603, %v1873
        %v1875 = vpop.f32.mrf.mxu0
        %v1876 = vadd.f32 %v603, %v1875
        %1877 = vmatmul.bf16.gmra.mxu0 %v695
        %v1878 = vpop.f32.mrf.mxu0
        %v1879 = vadd.f32 %v603, %v1878
        %v1880 = vpop.f32.mrf.mxu0
        %v1881 = vadd.f32 %v603, %v1880
        %1882 = vmatmul.bf16.gmra.mxu0 %v698
        %v1883 = vpop.f32.mrf.mxu0
        %v1884 = vadd.f32 %v603, %v1883
        %v1885 = vpop.f32.mrf.mxu0
        %v1886 = vadd.f32 %v603, %v1885
        %1887 = vmatmul.bf16.gmra.mxu0 %v701
        %v1888 = vpop.f32.mrf.mxu0
        %v1889 = vadd.f32 %v603, %v1888
        %v1890 = vpop.f32.mrf.mxu0
        %v1891 = vadd.f32 %v603, %v1890
        %1892 = vmatmul.bf16.gmra.mxu0 %v704
        %v1893 = vpop.f32.mrf.mxu0
        %v1894 = vadd.f32 %v603, %v1893
        %v1895 = vpop.f32.mrf.mxu0
        %v1896 = vadd.f32 %v603, %v1895
        %1897 = vmatmul.bf16.gmra.mxu0 %v707
        %v1898 = vpop.f32.mrf.mxu0
        %v1899 = vadd.f32 %v603, %v1898
        %v1900 = vpop.f32.mrf.mxu0
        %v1901 = vadd.f32 %v603, %v1900
        %1902 = vmatmul.bf16.gmra.mxu0 %v710
        %v1903 = vpop.f32.mrf.mxu0
        %v1904 = vadd.f32 %v603, %v1903
        %v1905 = vpop.f32.mrf.mxu0
        %v1906 = vadd.f32 %v603, %v1905
        %1907 = vmatmul.bf16.gmra.mxu0 %v713
        %v1908 = vpop.f32.mrf.mxu0
        %v1909 = vadd.f32 %v603, %v1908
        %v1910 = vpop.f32.mrf.mxu0
        %v1911 = vadd.f32 %v603, %v1910
        %1912 = vmatmul.bf16.gmra.mxu0 %v716
        %v1913 = vpop.f32.mrf.mxu0
        %v1914 = vadd.f32 %v603, %v1913
        %v1915 = vpop.f32.mrf.mxu0
        %v1916 = vadd.f32 %v603, %v1915
        %1917 = vmatmul.bf16.gmra.mxu0 %v719
        %v1918 = vpop.f32.mrf.mxu0
        %v1919 = vadd.f32 %v603, %v1918
        %v1920 = vpop.f32.mrf.mxu0
        %v1921 = vadd.f32 %v603, %v1920
        %1922 = vmatmul.bf16.gmra.mxu0 %v722
        %v1923 = vpop.f32.mrf.mxu0
        %v1924 = vadd.f32 %v603, %v1923
        %v1925 = vpop.f32.mrf.mxu0
        %v1926 = vadd.f32 %v603, %v1925
        %1927 = vmatmul.bf16.gmra.mxu0 %v725
        %v1928 = vpop.f32.mrf.mxu0
        %v1929 = vadd.f32 %v603, %v1928
        %v1930 = vpop.f32.mrf.mxu0
        %v1931 = vadd.f32 %v603, %v1930
        %1932 = vmatmul.bf16.gmra.mxu0 %v728
        %v1933 = vpop.f32.mrf.mxu0
        %v1934 = vadd.f32 %v603, %v1933
        %v1935 = vpop.f32.mrf.mxu0
        %v1936 = vadd.f32 %v603, %v1935
        %1937 = vmatmul.bf16.gmra.mxu0 %v731
        %v1938 = vpop.f32.mrf.mxu0
        %v1939 = vadd.f32 %v603, %v1938
        %v1940 = vpop.f32.mrf.mxu0
        %v1941 = vadd.f32 %v603, %v1940
        %1942 = vmatmul.bf16.gmra.mxu0 %v734
        %v1943 = vpop.f32.mrf.mxu0
        %v1944 = vadd.f32 %v603, %v1943
        %v1945 = vpop.f32.mrf.mxu0
        %v1946 = vadd.f32 %v603, %v1945
        %1947 = vmatmul.bf16.gmra.mxu0 %v737
        %v1948 = vpop.f32.mrf.mxu0
        %v1949 = vadd.f32 %v603, %v1948
        %v1950 = vpop.f32.mrf.mxu0
        %v1951 = vadd.f32 %v603, %v1950
        %1952 = vmatmul.bf16.gmra.mxu0 %v740
        %v1953 = vpop.f32.mrf.mxu0
        %v1954 = vadd.f32 %v603, %v1953
        %v1955 = vpop.f32.mrf.mxu0
        %v1956 = vadd.f32 %v603, %v1955
        %1957 = vmatmul.bf16.gmra.mxu0 %v743
        %v1958 = vpop.f32.mrf.mxu0
        %v1959 = vadd.f32 %v603, %v1958
        %v1960 = vpop.f32.mrf.mxu0
        %v1961 = vadd.f32 %v603, %v1960
        %1962 = vmatmul.bf16.gmra.mxu0 %v746
        %v1963 = vpop.f32.mrf.mxu0
        %v1964 = vadd.f32 %v603, %v1963
        %v1965 = vpop.f32.mrf.mxu0
        %v1966 = vadd.f32 %v603, %v1965
        %1967 = vmatmul.bf16.gmra.mxu0 %v749
        %v1968 = vpop.f32.mrf.mxu0
        %v1969 = vadd.f32 %v603, %v1968
        %v1970 = vpop.f32.mrf.mxu0
        %v1971 = vadd.f32 %v603, %v1970
        %1972 = vmatmul.bf16.gmra.mxu0 %v752
        %v1973 = vpop.f32.mrf.mxu0
        %v1974 = vadd.f32 %v603, %v1973
        %v1975 = vpop.f32.mrf.mxu0
        %v1976 = vadd.f32 %v603, %v1975
        %1977 = vmatmul.bf16.gmra.mxu0 %v755
        %v1978 = vpop.f32.mrf.mxu0
        %v1979 = vadd.f32 %v603, %v1978
        %v1980 = vpop.f32.mrf.mxu0
        %v1981 = vadd.f32 %v603, %v1980
        %1982 = vmatmul.bf16.gmra.mxu0 %v758
        %v1983 = vpop.f32.mrf.mxu0
        %v1984 = vadd.f32 %v603, %v1983
        %v1985 = vpop.f32.mrf.mxu0
        %v1986 = vadd.f32 %v603, %v1985
        %1987 = vmatmul.bf16.gmra.mxu0 %v761
        %v1988 = vpop.f32.mrf.mxu0
        %v1989 = vadd.f32 %v603, %v1988
        %v1990 = vpop.f32.mrf.mxu0
        %v1991 = vadd.f32 %v603, %v1990
        %1992 = vmatmul.bf16.gmra.mxu0 %v764
        %v1993 = vpop.f32.mrf.mxu0
        %v1994 = vadd.f32 %v603, %v1993
        %v1995 = vpop.f32.mrf.mxu0
        %v1996 = vadd.f32 %v603, %v1995
        %1997 = vdwg.mxu0
        %1998 = vmatpush.bf16.msra.mxu0 0
        %1999 = vmatpush.bf16.msra.mxu0 0
        %2000 = vmatpush.bf16.msra.mxu0 0
        %2001 = vmatpush.bf16.msra.mxu0 0
        %2002 = vmatpush.bf16.msra.mxu0 0
        %2003 = vmatpush.bf16.msra.mxu0 0
        %2004 = vmatpush.bf16.msra.mxu0 0
        %2005 = vmatpush.bf16.msra.mxu0 %v789
        %2006 = vmatmul.bf16.gmra.mxu0 %v671
        %v2007 = vpop.f32.mrf.mxu0
        %v2008 = vadd.f32 %v604, %v2007
        %v2009 = vpop.f32.mrf.mxu0
        %v2010 = vadd.f32 %v604, %v2009
        %2011 = vmatmul.bf16.gmra.mxu0 %v674
        %v2012 = vpop.f32.mrf.mxu0
        %v2013 = vadd.f32 %v604, %v2012
        %v2014 = vpop.f32.mrf.mxu0
        %v2015 = vadd.f32 %v604, %v2014
        %2016 = vmatmul.bf16.gmra.mxu0 %v677
        %v2017 = vpop.f32.mrf.mxu0
        %v2018 = vadd.f32 %v604, %v2017
        %v2019 = vpop.f32.mrf.mxu0
        %v2020 = vadd.f32 %v604, %v2019
        %2021 = vmatmul.bf16.gmra.mxu0 %v680
        %v2022 = vpop.f32.mrf.mxu0
        %v2023 = vadd.f32 %v604, %v2022
        %v2024 = vpop.f32.mrf.mxu0
        %v2025 = vadd.f32 %v604, %v2024
        %2026 = vmatmul.bf16.gmra.mxu0 %v683
        %v2027 = vpop.f32.mrf.mxu0
        %v2028 = vadd.f32 %v604, %v2027
        %v2029 = vpop.f32.mrf.mxu0
        %v2030 = vadd.f32 %v604, %v2029
        %2031 = vmatmul.bf16.gmra.mxu0 %v686
        %v2032 = vpop.f32.mrf.mxu0
        %v2033 = vadd.f32 %v604, %v2032
        %v2034 = vpop.f32.mrf.mxu0
        %v2035 = vadd.f32 %v604, %v2034
        %2036 = vmatmul.bf16.gmra.mxu0 %v689
        %v2037 = vpop.f32.mrf.mxu0
        %v2038 = vadd.f32 %v604, %v2037
        %v2039 = vpop.f32.mrf.mxu0
        %v2040 = vadd.f32 %v604, %v2039
        %2041 = vmatmul.bf16.gmra.mxu0 %v692
        %v2042 = vpop.f32.mrf.mxu0
        %v2043 = vadd.f32 %v604, %v2042
        %v2044 = vpop.f32.mrf.mxu0
        %v2045 = vadd.f32 %v604, %v2044
        %2046 = vmatmul.bf16.gmra.mxu0 %v695
        %v2047 = vpop.f32.mrf.mxu0
        %v2048 = vadd.f32 %v604, %v2047
        %v2049 = vpop.f32.mrf.mxu0
        %v2050 = vadd.f32 %v604, %v2049
        %2051 = vmatmul.bf16.gmra.mxu0 %v698
        %v2052 = vpop.f32.mrf.mxu0
        %v2053 = vadd.f32 %v604, %v2052
        %v2054 = vpop.f32.mrf.mxu0
        %v2055 = vadd.f32 %v604, %v2054
        %2056 = vmatmul.bf16.gmra.mxu0 %v701
        %v2057 = vpop.f32.mrf.mxu0
        %v2058 = vadd.f32 %v604, %v2057
        %v2059 = vpop.f32.mrf.mxu0
        %v2060 = vadd.f32 %v604, %v2059
        %2061 = vmatmul.bf16.gmra.mxu0 %v704
        %v2062 = vpop.f32.mrf.mxu0
        %v2063 = vadd.f32 %v604, %v2062
        %v2064 = vpop.f32.mrf.mxu0
        %v2065 = vadd.f32 %v604, %v2064
        %2066 = vmatmul.bf16.gmra.mxu0 %v707
        %v2067 = vpop.f32.mrf.mxu0
        %v2068 = vadd.f32 %v604, %v2067
        %v2069 = vpop.f32.mrf.mxu0
        %v2070 = vadd.f32 %v604, %v2069
        %2071 = vmatmul.bf16.gmra.mxu0 %v710
        %v2072 = vpop.f32.mrf.mxu0
        %v2073 = vadd.f32 %v604, %v2072
        %v2074 = vpop.f32.mrf.mxu0
        %v2075 = vadd.f32 %v604, %v2074
        %2076 = vmatmul.bf16.gmra.mxu0 %v713
        %v2077 = vpop.f32.mrf.mxu0
        %v2078 = vadd.f32 %v604, %v2077
        %v2079 = vpop.f32.mrf.mxu0
        %v2080 = vadd.f32 %v604, %v2079
        %2081 = vmatmul.bf16.gmra.mxu0 %v716
        %v2082 = vpop.f32.mrf.mxu0
        %v2083 = vadd.f32 %v604, %v2082
        %v2084 = vpop.f32.mrf.mxu0
        %v2085 = vadd.f32 %v604, %v2084
        %2086 = vmatmul.bf16.gmra.mxu0 %v719
        %v2087 = vpop.f32.mrf.mxu0
        %v2088 = vadd.f32 %v604, %v2087
        %v2089 = vpop.f32.mrf.mxu0
        %v2090 = vadd.f32 %v604, %v2089
        %2091 = vmatmul.bf16.gmra.mxu0 %v722
        %v2092 = vpop.f32.mrf.mxu0
        %v2093 = vadd.f32 %v604, %v2092
        %v2094 = vpop.f32.mrf.mxu0
        %v2095 = vadd.f32 %v604, %v2094
        %2096 = vmatmul.bf16.gmra.mxu0 %v725
        %v2097 = vpop.f32.mrf.mxu0
        %v2098 = vadd.f32 %v604, %v2097
        %v2099 = vpop.f32.mrf.mxu0
        %v2100 = vadd.f32 %v604, %v2099
        %2101 = vmatmul.bf16.gmra.mxu0 %v728
        %v2102 = vpop.f32.mrf.mxu0
        %v2103 = vadd.f32 %v604, %v2102
        %v2104 = vpop.f32.mrf.mxu0
        %v2105 = vadd.f32 %v604, %v2104
        %2106 = vmatmul.bf16.gmra.mxu0 %v731
        %v2107 = vpop.f32.mrf.mxu0
        %v2108 = vadd.f32 %v604, %v2107
        %v2109 = vpop.f32.mrf.mxu0
        %v2110 = vadd.f32 %v604, %v2109
        %2111 = vmatmul.bf16.gmra.mxu0 %v734
        %v2112 = vpop.f32.mrf.mxu0
        %v2113 = vadd.f32 %v604, %v2112
        %v2114 = vpop.f32.mrf.mxu0
        %v2115 = vadd.f32 %v604, %v2114
        %2116 = vmatmul.bf16.gmra.mxu0 %v737
        %v2117 = vpop.f32.mrf.mxu0
        %v2118 = vadd.f32 %v604, %v2117
        %v2119 = vpop.f32.mrf.mxu0
        %v2120 = vadd.f32 %v604, %v2119
        %2121 = vmatmul.bf16.gmra.mxu0 %v740
        %v2122 = vpop.f32.mrf.mxu0
        %v2123 = vadd.f32 %v604, %v2122
        %v2124 = vpop.f32.mrf.mxu0
        %v2125 = vadd.f32 %v604, %v2124
        %2126 = vmatmul.bf16.gmra.mxu0 %v743
        %v2127 = vpop.f32.mrf.mxu0
        %v2128 = vadd.f32 %v604, %v2127
        %v2129 = vpop.f32.mrf.mxu0
        %v2130 = vadd.f32 %v604, %v2129
        %2131 = vmatmul.bf16.gmra.mxu0 %v746
        %v2132 = vpop.f32.mrf.mxu0
        %v2133 = vadd.f32 %v604, %v2132
        %v2134 = vpop.f32.mrf.mxu0
        %v2135 = vadd.f32 %v604, %v2134
        %2136 = vmatmul.bf16.gmra.mxu0 %v749
        %v2137 = vpop.f32.mrf.mxu0
        %v2138 = vadd.f32 %v604, %v2137
        %v2139 = vpop.f32.mrf.mxu0
        %v2140 = vadd.f32 %v604, %v2139
        %2141 = vmatmul.bf16.gmra.mxu0 %v752
        %v2142 = vpop.f32.mrf.mxu0
        %v2143 = vadd.f32 %v604, %v2142
        %v2144 = vpop.f32.mrf.mxu0
        %v2145 = vadd.f32 %v604, %v2144
        %2146 = vmatmul.bf16.gmra.mxu0 %v755
        %v2147 = vpop.f32.mrf.mxu0
        %v2148 = vadd.f32 %v604, %v2147
        %v2149 = vpop.f32.mrf.mxu0
        %v2150 = vadd.f32 %v604, %v2149
        %2151 = vmatmul.bf16.gmra.mxu0 %v758
        %v2152 = vpop.f32.mrf.mxu0
        %v2153 = vadd.f32 %v604, %v2152
        %v2154 = vpop.f32.mrf.mxu0
        %v2155 = vadd.f32 %v604, %v2154
        %2156 = vmatmul.bf16.gmra.mxu0 %v761
        %v2157 = vpop.f32.mrf.mxu0
        %v2158 = vadd.f32 %v604, %v2157
        %v2159 = vpop.f32.mrf.mxu0
        %v2160 = vadd.f32 %v604, %v2159
        %2161 = vmatmul.bf16.gmra.mxu0 %v764
        %v2162 = vpop.f32.mrf.mxu0
        %v2163 = vadd.f32 %v604, %v2162
        %v2164 = vpop.f32.mrf.mxu0
        %v2165 = vadd.f32 %v604, %v2164
        %2166 = vdwg.mxu0
        %2167 = vmatpush.bf16.msra.mxu0 0
        %2168 = vmatpush.bf16.msra.mxu0 0
        %2169 = vmatpush.bf16.msra.mxu0 0
        %2170 = vmatpush.bf16.msra.mxu0 0
        %2171 = vmatpush.bf16.msra.mxu0 0
        %2172 = vmatpush.bf16.msra.mxu0 0
        %2173 = vmatpush.bf16.msra.mxu0 0
        %2174 = vmatpush.bf16.msra.mxu0 %v792
        %2175 = vmatmul.bf16.gmra.mxu0 %v671
        %v2176 = vpop.f32.mrf.mxu0
        %v2177 = vadd.f32 %v605, %v2176
        %v2178 = vpop.f32.mrf.mxu0
        %v2179 = vadd.f32 %v605, %v2178
        %2180 = vmatmul.bf16.gmra.mxu0 %v674
        %v2181 = vpop.f32.mrf.mxu0
        %v2182 = vadd.f32 %v605, %v2181
        %v2183 = vpop.f32.mrf.mxu0
        %v2184 = vadd.f32 %v605, %v2183
        %2185 = vmatmul.bf16.gmra.mxu0 %v677
        %v2186 = vpop.f32.mrf.mxu0
        %v2187 = vadd.f32 %v605, %v2186
        %v2188 = vpop.f32.mrf.mxu0
        %v2189 = vadd.f32 %v605, %v2188
        %2190 = vmatmul.bf16.gmra.mxu0 %v680
        %v2191 = vpop.f32.mrf.mxu0
        %v2192 = vadd.f32 %v605, %v2191
        %v2193 = vpop.f32.mrf.mxu0
        %v2194 = vadd.f32 %v605, %v2193
        %2195 = vmatmul.bf16.gmra.mxu0 %v683
        %v2196 = vpop.f32.mrf.mxu0
        %v2197 = vadd.f32 %v605, %v2196
        %v2198 = vpop.f32.mrf.mxu0
        %v2199 = vadd.f32 %v605, %v2198
        %2200 = vmatmul.bf16.gmra.mxu0 %v686
        %v2201 = vpop.f32.mrf.mxu0
        %v2202 = vadd.f32 %v605, %v2201
        %v2203 = vpop.f32.mrf.mxu0
        %v2204 = vadd.f32 %v605, %v2203
        %2205 = vmatmul.bf16.gmra.mxu0 %v689
        %v2206 = vpop.f32.mrf.mxu0
        %v2207 = vadd.f32 %v605, %v2206
        %v2208 = vpop.f32.mrf.mxu0
        %v2209 = vadd.f32 %v605, %v2208
        %2210 = vmatmul.bf16.gmra.mxu0 %v692
        %v2211 = vpop.f32.mrf.mxu0
        %v2212 = vadd.f32 %v605, %v2211
        %v2213 = vpop.f32.mrf.mxu0
        %v2214 = vadd.f32 %v605, %v2213
        %2215 = vmatmul.bf16.gmra.mxu0 %v695
        %v2216 = vpop.f32.mrf.mxu0
        %v2217 = vadd.f32 %v605, %v2216
        %v2218 = vpop.f32.mrf.mxu0
        %v2219 = vadd.f32 %v605, %v2218
        %2220 = vmatmul.bf16.gmra.mxu0 %v698
        %v2221 = vpop.f32.mrf.mxu0
        %v2222 = vadd.f32 %v605, %v2221
        %v2223 = vpop.f32.mrf.mxu0
        %v2224 = vadd.f32 %v605, %v2223
        %2225 = vmatmul.bf16.gmra.mxu0 %v701
        %v2226 = vpop.f32.mrf.mxu0
        %v2227 = vadd.f32 %v605, %v2226
        %v2228 = vpop.f32.mrf.mxu0
        %v2229 = vadd.f32 %v605, %v2228
        %2230 = vmatmul.bf16.gmra.mxu0 %v704
        %v2231 = vpop.f32.mrf.mxu0
        %v2232 = vadd.f32 %v605, %v2231
        %v2233 = vpop.f32.mrf.mxu0
        %v2234 = vadd.f32 %v605, %v2233
        %2235 = vmatmul.bf16.gmra.mxu0 %v707
        %v2236 = vpop.f32.mrf.mxu0
        %v2237 = vadd.f32 %v605, %v2236
        %v2238 = vpop.f32.mrf.mxu0
        %v2239 = vadd.f32 %v605, %v2238
        %2240 = vmatmul.bf16.gmra.mxu0 %v710
        %v2241 = vpop.f32.mrf.mxu0
        %v2242 = vadd.f32 %v605, %v2241
        %v2243 = vpop.f32.mrf.mxu0
        %v2244 = vadd.f32 %v605, %v2243
        %2245 = vmatmul.bf16.gmra.mxu0 %v713
        %v2246 = vpop.f32.mrf.mxu0
        %v2247 = vadd.f32 %v605, %v2246
        %v2248 = vpop.f32.mrf.mxu0
        %v2249 = vadd.f32 %v605, %v2248
        %2250 = vmatmul.bf16.gmra.mxu0 %v716
        %v2251 = vpop.f32.mrf.mxu0
        %v2252 = vadd.f32 %v605, %v2251
        %v2253 = vpop.f32.mrf.mxu0
        %v2254 = vadd.f32 %v605, %v2253
        %2255 = vmatmul.bf16.gmra.mxu0 %v719
        %v2256 = vpop.f32.mrf.mxu0
        %v2257 = vadd.f32 %v605, %v2256
        %v2258 = vpop.f32.mrf.mxu0
        %v2259 = vadd.f32 %v605, %v2258
        %2260 = vmatmul.bf16.gmra.mxu0 %v722
        %v2261 = vpop.f32.mrf.mxu0
        %v2262 = vadd.f32 %v605, %v2261
        %v2263 = vpop.f32.mrf.mxu0
        %v2264 = vadd.f32 %v605, %v2263
        %2265 = vmatmul.bf16.gmra.mxu0 %v725
        %v2266 = vpop.f32.mrf.mxu0
        %v2267 = vadd.f32 %v605, %v2266
        %v2268 = vpop.f32.mrf.mxu0
        %v2269 = vadd.f32 %v605, %v2268
        %2270 = vmatmul.bf16.gmra.mxu0 %v728
        %v2271 = vpop.f32.mrf.mxu0
        %v2272 = vadd.f32 %v605, %v2271
        %v2273 = vpop.f32.mrf.mxu0
        %v2274 = vadd.f32 %v605, %v2273
        %2275 = vmatmul.bf16.gmra.mxu0 %v731
        %v2276 = vpop.f32.mrf.mxu0
        %v2277 = vadd.f32 %v605, %v2276
        %v2278 = vpop.f32.mrf.mxu0
        %v2279 = vadd.f32 %v605, %v2278
        %2280 = vmatmul.bf16.gmra.mxu0 %v734
        %v2281 = vpop.f32.mrf.mxu0
        %v2282 = vadd.f32 %v605, %v2281
        %v2283 = vpop.f32.mrf.mxu0
        %v2284 = vadd.f32 %v605, %v2283
        %2285 = vmatmul.bf16.gmra.mxu0 %v737
        %v2286 = vpop.f32.mrf.mxu0
        %v2287 = vadd.f32 %v605, %v2286
        %v2288 = vpop.f32.mrf.mxu0
        %v2289 = vadd.f32 %v605, %v2288
        %2290 = vmatmul.bf16.gmra.mxu0 %v740
        %v2291 = vpop.f32.mrf.mxu0
        %v2292 = vadd.f32 %v605, %v2291
        %v2293 = vpop.f32.mrf.mxu0
        %v2294 = vadd.f32 %v605, %v2293
        %2295 = vmatmul.bf16.gmra.mxu0 %v743
        %v2296 = vpop.f32.mrf.mxu0
        %v2297 = vadd.f32 %v605, %v2296
        %v2298 = vpop.f32.mrf.mxu0
        %v2299 = vadd.f32 %v605, %v2298
        %2300 = vmatmul.bf16.gmra.mxu0 %v746
        %v2301 = vpop.f32.mrf.mxu0
        %v2302 = vadd.f32 %v605, %v2301
        %v2303 = vpop.f32.mrf.mxu0
        %v2304 = vadd.f32 %v605, %v2303
        %2305 = vmatmul.bf16.gmra.mxu0 %v749
        %v2306 = vpop.f32.mrf.mxu0
        %v2307 = vadd.f32 %v605, %v2306
        %v2308 = vpop.f32.mrf.mxu0
        %v2309 = vadd.f32 %v605, %v2308
        %2310 = vmatmul.bf16.gmra.mxu0 %v752
        %v2311 = vpop.f32.mrf.mxu0
        %v2312 = vadd.f32 %v605, %v2311
        %v2313 = vpop.f32.mrf.mxu0
        %v2314 = vadd.f32 %v605, %v2313
        %2315 = vmatmul.bf16.gmra.mxu0 %v755
        %v2316 = vpop.f32.mrf.mxu0
        %v2317 = vadd.f32 %v605, %v2316
        %v2318 = vpop.f32.mrf.mxu0
        %v2319 = vadd.f32 %v605, %v2318
        %2320 = vmatmul.bf16.gmra.mxu0 %v758
        %v2321 = vpop.f32.mrf.mxu0
        %v2322 = vadd.f32 %v605, %v2321
        %v2323 = vpop.f32.mrf.mxu0
        %v2324 = vadd.f32 %v605, %v2323
        %2325 = vmatmul.bf16.gmra.mxu0 %v761
        %v2326 = vpop.f32.mrf.mxu0
        %v2327 = vadd.f32 %v605, %v2326
        %v2328 = vpop.f32.mrf.mxu0
        %v2329 = vadd.f32 %v605, %v2328
        %2330 = vmatmul.bf16.gmra.mxu0 %v764
        %v2331 = vpop.f32.mrf.mxu0
        %v2332 = vadd.f32 %v605, %v2331
        %v2333 = vpop.f32.mrf.mxu0
        %v2334 = vadd.f32 %v605, %v2333
        %2335 = vdwg.mxu0
        %2336 = vmatpush.bf16.msra.mxu0 0
        %2337 = vmatpush.bf16.msra.mxu0 0
        %2338 = vmatpush.bf16.msra.mxu0 0
        %2339 = vmatpush.bf16.msra.mxu0 0
        %2340 = vmatpush.bf16.msra.mxu0 0
        %2341 = vmatpush.bf16.msra.mxu0 0
        %2342 = vmatpush.bf16.msra.mxu0 0
        %2343 = vmatpush.bf16.msra.mxu0 %v795
        %2344 = vmatmul.bf16.gmra.mxu0 %v671
        %v2345 = vpop.f32.mrf.mxu0
        %v2346 = vadd.f32 %v606, %v2345
        %v2347 = vpop.f32.mrf.mxu0
        %v2348 = vadd.f32 %v606, %v2347
        %2349 = vmatmul.bf16.gmra.mxu0 %v674
        %v2350 = vpop.f32.mrf.mxu0
        %v2351 = vadd.f32 %v606, %v2350
        %v2352 = vpop.f32.mrf.mxu0
        %v2353 = vadd.f32 %v606, %v2352
        %2354 = vmatmul.bf16.gmra.mxu0 %v677
        %v2355 = vpop.f32.mrf.mxu0
        %v2356 = vadd.f32 %v606, %v2355
        %v2357 = vpop.f32.mrf.mxu0
        %v2358 = vadd.f32 %v606, %v2357
        %2359 = vmatmul.bf16.gmra.mxu0 %v680
        %v2360 = vpop.f32.mrf.mxu0
        %v2361 = vadd.f32 %v606, %v2360
        %v2362 = vpop.f32.mrf.mxu0
        %v2363 = vadd.f32 %v606, %v2362
        %2364 = vmatmul.bf16.gmra.mxu0 %v683
        %v2365 = vpop.f32.mrf.mxu0
        %v2366 = vadd.f32 %v606, %v2365
        %v2367 = vpop.f32.mrf.mxu0
        %v2368 = vadd.f32 %v606, %v2367
        %2369 = vmatmul.bf16.gmra.mxu0 %v686
        %v2370 = vpop.f32.mrf.mxu0
        %v2371 = vadd.f32 %v606, %v2370
        %v2372 = vpop.f32.mrf.mxu0
        %v2373 = vadd.f32 %v606, %v2372
        %2374 = vmatmul.bf16.gmra.mxu0 %v689
        %v2375 = vpop.f32.mrf.mxu0
        %v2376 = vadd.f32 %v606, %v2375
        %v2377 = vpop.f32.mrf.mxu0
        %v2378 = vadd.f32 %v606, %v2377
        %2379 = vmatmul.bf16.gmra.mxu0 %v692
        %v2380 = vpop.f32.mrf.mxu0
        %v2381 = vadd.f32 %v606, %v2380
        %v2382 = vpop.f32.mrf.mxu0
        %v2383 = vadd.f32 %v606, %v2382
        %2384 = vmatmul.bf16.gmra.mxu0 %v695
        %v2385 = vpop.f32.mrf.mxu0
        %v2386 = vadd.f32 %v606, %v2385
        %v2387 = vpop.f32.mrf.mxu0
        %v2388 = vadd.f32 %v606, %v2387
        %2389 = vmatmul.bf16.gmra.mxu0 %v698
        %v2390 = vpop.f32.mrf.mxu0
        %v2391 = vadd.f32 %v606, %v2390
        %v2392 = vpop.f32.mrf.mxu0
        %v2393 = vadd.f32 %v606, %v2392
        %2394 = vmatmul.bf16.gmra.mxu0 %v701
        %v2395 = vpop.f32.mrf.mxu0
        %v2396 = vadd.f32 %v606, %v2395
        %v2397 = vpop.f32.mrf.mxu0
        %v2398 = vadd.f32 %v606, %v2397
        %2399 = vmatmul.bf16.gmra.mxu0 %v704
        %v2400 = vpop.f32.mrf.mxu0
        %v2401 = vadd.f32 %v606, %v2400
        %v2402 = vpop.f32.mrf.mxu0
        %v2403 = vadd.f32 %v606, %v2402
        %2404 = vmatmul.bf16.gmra.mxu0 %v707
        %v2405 = vpop.f32.mrf.mxu0
        %v2406 = vadd.f32 %v606, %v2405
        %v2407 = vpop.f32.mrf.mxu0
        %v2408 = vadd.f32 %v606, %v2407
        %2409 = vmatmul.bf16.gmra.mxu0 %v710
        %v2410 = vpop.f32.mrf.mxu0
        %v2411 = vadd.f32 %v606, %v2410
        %v2412 = vpop.f32.mrf.mxu0
        %v2413 = vadd.f32 %v606, %v2412
        %2414 = vmatmul.bf16.gmra.mxu0 %v713
        %v2415 = vpop.f32.mrf.mxu0
        %v2416 = vadd.f32 %v606, %v2415
        %v2417 = vpop.f32.mrf.mxu0
        %v2418 = vadd.f32 %v606, %v2417
        %2419 = vmatmul.bf16.gmra.mxu0 %v716
        %v2420 = vpop.f32.mrf.mxu0
        %v2421 = vadd.f32 %v606, %v2420
        %v2422 = vpop.f32.mrf.mxu0
        %v2423 = vadd.f32 %v606, %v2422
        %2424 = vmatmul.bf16.gmra.mxu0 %v719
        %v2425 = vpop.f32.mrf.mxu0
        %v2426 = vadd.f32 %v606, %v2425
        %v2427 = vpop.f32.mrf.mxu0
        %v2428 = vadd.f32 %v606, %v2427
        %2429 = vmatmul.bf16.gmra.mxu0 %v722
        %v2430 = vpop.f32.mrf.mxu0
        %v2431 = vadd.f32 %v606, %v2430
        %v2432 = vpop.f32.mrf.mxu0
        %v2433 = vadd.f32 %v606, %v2432
        %2434 = vmatmul.bf16.gmra.mxu0 %v725
        %v2435 = vpop.f32.mrf.mxu0
        %v2436 = vadd.f32 %v606, %v2435
        %v2437 = vpop.f32.mrf.mxu0
        %v2438 = vadd.f32 %v606, %v2437
        %2439 = vmatmul.bf16.gmra.mxu0 %v728
        %v2440 = vpop.f32.mrf.mxu0
        %v2441 = vadd.f32 %v606, %v2440
        %v2442 = vpop.f32.mrf.mxu0
        %v2443 = vadd.f32 %v606, %v2442
        %2444 = vmatmul.bf16.gmra.mxu0 %v731
        %v2445 = vpop.f32.mrf.mxu0
        %v2446 = vadd.f32 %v606, %v2445
        %v2447 = vpop.f32.mrf.mxu0
        %v2448 = vadd.f32 %v606, %v2447
        %2449 = vmatmul.bf16.gmra.mxu0 %v734
        %v2450 = vpop.f32.mrf.mxu0
        %v2451 = vadd.f32 %v606, %v2450
        %v2452 = vpop.f32.mrf.mxu0
        %v2453 = vadd.f32 %v606, %v2452
        %2454 = vmatmul.bf16.gmra.mxu0 %v737
        %v2455 = vpop.f32.mrf.mxu0
        %v2456 = vadd.f32 %v606, %v2455
        %v2457 = vpop.f32.mrf.mxu0
        %v2458 = vadd.f32 %v606, %v2457
        %2459 = vmatmul.bf16.gmra.mxu0 %v740
        %v2460 = vpop.f32.mrf.mxu0
        %v2461 = vadd.f32 %v606, %v2460
        %v2462 = vpop.f32.mrf.mxu0
        %v2463 = vadd.f32 %v606, %v2462
        %2464 = vmatmul.bf16.gmra.mxu0 %v743
        %v2465 = vpop.f32.mrf.mxu0
        %v2466 = vadd.f32 %v606, %v2465
        %v2467 = vpop.f32.mrf.mxu0
        %v2468 = vadd.f32 %v606, %v2467
        %2469 = vmatmul.bf16.gmra.mxu0 %v746
        %v2470 = vpop.f32.mrf.mxu0
        %v2471 = vadd.f32 %v606, %v2470
        %v2472 = vpop.f32.mrf.mxu0
        %v2473 = vadd.f32 %v606, %v2472
        %2474 = vmatmul.bf16.gmra.mxu0 %v749
        %v2475 = vpop.f32.mrf.mxu0
        %v2476 = vadd.f32 %v606, %v2475
        %v2477 = vpop.f32.mrf.mxu0
        %v2478 = vadd.f32 %v606, %v2477
        %2479 = vmatmul.bf16.gmra.mxu0 %v752
        %v2480 = vpop.f32.mrf.mxu0
        %v2481 = vadd.f32 %v606, %v2480
        %v2482 = vpop.f32.mrf.mxu0
        %v2483 = vadd.f32 %v606, %v2482
        %2484 = vmatmul.bf16.gmra.mxu0 %v755
        %v2485 = vpop.f32.mrf.mxu0
        %v2486 = vadd.f32 %v606, %v2485
        %v2487 = vpop.f32.mrf.mxu0
        %v2488 = vadd.f32 %v606, %v2487
        %2489 = vmatmul.bf16.gmra.mxu0 %v758
        %v2490 = vpop.f32.mrf.mxu0
        %v2491 = vadd.f32 %v606, %v2490
        %v2492 = vpop.f32.mrf.mxu0
        %v2493 = vadd.f32 %v606, %v2492
        %2494 = vmatmul.bf16.gmra.mxu0 %v761
        %v2495 = vpop.f32.mrf.mxu0
        %v2496 = vadd.f32 %v606, %v2495
        %v2497 = vpop.f32.mrf.mxu0
        %v2498 = vadd.f32 %v606, %v2497
        %2499 = vmatmul.bf16.gmra.mxu0 %v764
        %v2500 = vpop.f32.mrf.mxu0
        %v2501 = vadd.f32 %v606, %v2500
        %v2502 = vpop.f32.mrf.mxu0
        %v2503 = vadd.f32 %v606, %v2502
        %2504 = vdwg.mxu0
        %2505 = vmatpush.bf16.msra.mxu0 0
        %2506 = vmatpush.bf16.msra.mxu0 0
        %2507 = vmatpush.bf16.msra.mxu0 0
        %2508 = vmatpush.bf16.msra.mxu0 0
        %2509 = vmatpush.bf16.msra.mxu0 0
        %2510 = vmatpush.bf16.msra.mxu0 0
        %2511 = vmatpush.bf16.msra.mxu0 0
        %2512 = vmatpush.bf16.msra.mxu0 %v798
        %2513 = vmatmul.bf16.gmra.mxu0 %v671
        %v2514 = vpop.f32.mrf.mxu0
        %v2515 = vadd.f32 %v607, %v2514
        %v2516 = vpop.f32.mrf.mxu0
        %v2517 = vadd.f32 %v607, %v2516
        %2518 = vmatmul.bf16.gmra.mxu0 %v674
        %v2519 = vpop.f32.mrf.mxu0
        %v2520 = vadd.f32 %v607, %v2519
        %v2521 = vpop.f32.mrf.mxu0
        %v2522 = vadd.f32 %v607, %v2521
        %2523 = vmatmul.bf16.gmra.mxu0 %v677
        %v2524 = vpop.f32.mrf.mxu0
        %v2525 = vadd.f32 %v607, %v2524
        %v2526 = vpop.f32.mrf.mxu0
        %v2527 = vadd.f32 %v607, %v2526
        %2528 = vmatmul.bf16.gmra.mxu0 %v680
        %v2529 = vpop.f32.mrf.mxu0
        %v2530 = vadd.f32 %v607, %v2529
        %v2531 = vpop.f32.mrf.mxu0
        %v2532 = vadd.f32 %v607, %v2531
        %2533 = vmatmul.bf16.gmra.mxu0 %v683
        %v2534 = vpop.f32.mrf.mxu0
        %v2535 = vadd.f32 %v607, %v2534
        %v2536 = vpop.f32.mrf.mxu0
        %v2537 = vadd.f32 %v607, %v2536
        %2538 = vmatmul.bf16.gmra.mxu0 %v686
        %v2539 = vpop.f32.mrf.mxu0
        %v2540 = vadd.f32 %v607, %v2539
        %v2541 = vpop.f32.mrf.mxu0
        %v2542 = vadd.f32 %v607, %v2541
        %2543 = vmatmul.bf16.gmra.mxu0 %v689
        %v2544 = vpop.f32.mrf.mxu0
        %v2545 = vadd.f32 %v607, %v2544
        %v2546 = vpop.f32.mrf.mxu0
        %v2547 = vadd.f32 %v607, %v2546
        %2548 = vmatmul.bf16.gmra.mxu0 %v692
        %v2549 = vpop.f32.mrf.mxu0
        %v2550 = vadd.f32 %v607, %v2549
        %v2551 = vpop.f32.mrf.mxu0
        %v2552 = vadd.f32 %v607, %v2551
        %2553 = vmatmul.bf16.gmra.mxu0 %v695
        %v2554 = vpop.f32.mrf.mxu0
        %v2555 = vadd.f32 %v607, %v2554
        %v2556 = vpop.f32.mrf.mxu0
        %v2557 = vadd.f32 %v607, %v2556
        %2558 = vmatmul.bf16.gmra.mxu0 %v698
        %v2559 = vpop.f32.mrf.mxu0
        %v2560 = vadd.f32 %v607, %v2559
        %v2561 = vpop.f32.mrf.mxu0
        %v2562 = vadd.f32 %v607, %v2561
        %2563 = vmatmul.bf16.gmra.mxu0 %v701
        %v2564 = vpop.f32.mrf.mxu0
        %v2565 = vadd.f32 %v607, %v2564
        %v2566 = vpop.f32.mrf.mxu0
        %v2567 = vadd.f32 %v607, %v2566
        %2568 = vmatmul.bf16.gmra.mxu0 %v704
        %v2569 = vpop.f32.mrf.mxu0
        %v2570 = vadd.f32 %v607, %v2569
        %v2571 = vpop.f32.mrf.mxu0
        %v2572 = vadd.f32 %v607, %v2571
        %2573 = vmatmul.bf16.gmra.mxu0 %v707
        %v2574 = vpop.f32.mrf.mxu0
        %v2575 = vadd.f32 %v607, %v2574
        %v2576 = vpop.f32.mrf.mxu0
        %v2577 = vadd.f32 %v607, %v2576
        %2578 = vmatmul.bf16.gmra.mxu0 %v710
        %v2579 = vpop.f32.mrf.mxu0
        %v2580 = vadd.f32 %v607, %v2579
        %v2581 = vpop.f32.mrf.mxu0
        %v2582 = vadd.f32 %v607, %v2581
        %2583 = vmatmul.bf16.gmra.mxu0 %v713
        %v2584 = vpop.f32.mrf.mxu0
        %v2585 = vadd.f32 %v607, %v2584
        %v2586 = vpop.f32.mrf.mxu0
        %v2587 = vadd.f32 %v607, %v2586
        %2588 = vmatmul.bf16.gmra.mxu0 %v716
        %v2589 = vpop.f32.mrf.mxu0
        %v2590 = vadd.f32 %v607, %v2589
        %v2591 = vpop.f32.mrf.mxu0
        %v2592 = vadd.f32 %v607, %v2591
        %2593 = vmatmul.bf16.gmra.mxu0 %v719
        %v2594 = vpop.f32.mrf.mxu0
        %v2595 = vadd.f32 %v607, %v2594
        %v2596 = vpop.f32.mrf.mxu0
        %v2597 = vadd.f32 %v607, %v2596
        %2598 = vmatmul.bf16.gmra.mxu0 %v722
        %v2599 = vpop.f32.mrf.mxu0
        %v2600 = vadd.f32 %v607, %v2599
        %v2601 = vpop.f32.mrf.mxu0
        %v2602 = vadd.f32 %v607, %v2601
        %2603 = vmatmul.bf16.gmra.mxu0 %v725
        %v2604 = vpop.f32.mrf.mxu0
        %v2605 = vadd.f32 %v607, %v2604
        %v2606 = vpop.f32.mrf.mxu0
        %v2607 = vadd.f32 %v607, %v2606
        %2608 = vmatmul.bf16.gmra.mxu0 %v728
        %v2609 = vpop.f32.mrf.mxu0
        %v2610 = vadd.f32 %v607, %v2609
        %v2611 = vpop.f32.mrf.mxu0
        %v2612 = vadd.f32 %v607, %v2611
        %2613 = vmatmul.bf16.gmra.mxu0 %v731
        %v2614 = vpop.f32.mrf.mxu0
        %v2615 = vadd.f32 %v607, %v2614
        %v2616 = vpop.f32.mrf.mxu0
        %v2617 = vadd.f32 %v607, %v2616
        %2618 = vmatmul.bf16.gmra.mxu0 %v734
        %v2619 = vpop.f32.mrf.mxu0
        %v2620 = vadd.f32 %v607, %v2619
        %v2621 = vpop.f32.mrf.mxu0
        %v2622 = vadd.f32 %v607, %v2621
        %2623 = vmatmul.bf16.gmra.mxu0 %v737
        %v2624 = vpop.f32.mrf.mxu0
        %v2625 = vadd.f32 %v607, %v2624
        %v2626 = vpop.f32.mrf.mxu0
        %v2627 = vadd.f32 %v607, %v2626
        %2628 = vmatmul.bf16.gmra.mxu0 %v740
        %v2629 = vpop.f32.mrf.mxu0
        %v2630 = vadd.f32 %v607, %v2629
        %v2631 = vpop.f32.mrf.mxu0
        %v2632 = vadd.f32 %v607, %v2631
        %2633 = vmatmul.bf16.gmra.mxu0 %v743
        %v2634 = vpop.f32.mrf.mxu0
        %v2635 = vadd.f32 %v607, %v2634
        %v2636 = vpop.f32.mrf.mxu0
        %v2637 = vadd.f32 %v607, %v2636
        %2638 = vmatmul.bf16.gmra.mxu0 %v746
        %v2639 = vpop.f32.mrf.mxu0
        %v2640 = vadd.f32 %v607, %v2639
        %v2641 = vpop.f32.mrf.mxu0
        %v2642 = vadd.f32 %v607, %v2641
        %2643 = vmatmul.bf16.gmra.mxu0 %v749
        %v2644 = vpop.f32.mrf.mxu0
        %v2645 = vadd.f32 %v607, %v2644
        %v2646 = vpop.f32.mrf.mxu0
        %v2647 = vadd.f32 %v607, %v2646
        %2648 = vmatmul.bf16.gmra.mxu0 %v752
        %v2649 = vpop.f32.mrf.mxu0
        %v2650 = vadd.f32 %v607, %v2649
        %v2651 = vpop.f32.mrf.mxu0
        %v2652 = vadd.f32 %v607, %v2651
        %2653 = vmatmul.bf16.gmra.mxu0 %v755
        %v2654 = vpop.f32.mrf.mxu0
        %v2655 = vadd.f32 %v607, %v2654
        %v2656 = vpop.f32.mrf.mxu0
        %v2657 = vadd.f32 %v607, %v2656
        %2658 = vmatmul.bf16.gmra.mxu0 %v758
        %v2659 = vpop.f32.mrf.mxu0
        %v2660 = vadd.f32 %v607, %v2659
        %v2661 = vpop.f32.mrf.mxu0
        %v2662 = vadd.f32 %v607, %v2661
        %2663 = vmatmul.bf16.gmra.mxu0 %v761
        %v2664 = vpop.f32.mrf.mxu0
        %v2665 = vadd.f32 %v607, %v2664
        %v2666 = vpop.f32.mrf.mxu0
        %v2667 = vadd.f32 %v607, %v2666
        %2668 = vmatmul.bf16.gmra.mxu0 %v764
        %v2669 = vpop.f32.mrf.mxu0
        %v2670 = vadd.f32 %v607, %v2669
        %v2671 = vpop.f32.mrf.mxu0
        %v2672 = vadd.f32 %v607, %v2671
        %2673 = vdwg.mxu0
        %2674 = vmatpush.bf16.msra.mxu0 0
        %2675 = vmatpush.bf16.msra.mxu0 0
        %2676 = vmatpush.bf16.msra.mxu0 0
        %2677 = vmatpush.bf16.msra.mxu0 0
        %2678 = vmatpush.bf16.msra.mxu0 0
        %2679 = vmatpush.bf16.msra.mxu0 0
        %2680 = vmatpush.bf16.msra.mxu0 0
        %2681 = vmatpush.bf16.msra.mxu0 %v801
        %2682 = vmatmul.bf16.gmra.mxu0 %v671
        %v2683 = vpop.f32.mrf.mxu0
        %v2684 = vadd.f32 %v608, %v2683
        %v2685 = vpop.f32.mrf.mxu0
        %v2686 = vadd.f32 %v608, %v2685
        %2687 = vmatmul.bf16.gmra.mxu0 %v674
        %v2688 = vpop.f32.mrf.mxu0
        %v2689 = vadd.f32 %v608, %v2688
        %v2690 = vpop.f32.mrf.mxu0
        %v2691 = vadd.f32 %v608, %v2690
        %2692 = vmatmul.bf16.gmra.mxu0 %v677
        %v2693 = vpop.f32.mrf.mxu0
        %v2694 = vadd.f32 %v608, %v2693
        %v2695 = vpop.f32.mrf.mxu0
        %v2696 = vadd.f32 %v608, %v2695
        %2697 = vmatmul.bf16.gmra.mxu0 %v680
        %v2698 = vpop.f32.mrf.mxu0
        %v2699 = vadd.f32 %v608, %v2698
        %v2700 = vpop.f32.mrf.mxu0
        %v2701 = vadd.f32 %v608, %v2700
        %2702 = vmatmul.bf16.gmra.mxu0 %v683
        %v2703 = vpop.f32.mrf.mxu0
        %v2704 = vadd.f32 %v608, %v2703
        %v2705 = vpop.f32.mrf.mxu0
        %v2706 = vadd.f32 %v608, %v2705
        %2707 = vmatmul.bf16.gmra.mxu0 %v686
        %v2708 = vpop.f32.mrf.mxu0
        %v2709 = vadd.f32 %v608, %v2708
        %v2710 = vpop.f32.mrf.mxu0
        %v2711 = vadd.f32 %v608, %v2710
        %2712 = vmatmul.bf16.gmra.mxu0 %v689
        %v2713 = vpop.f32.mrf.mxu0
        %v2714 = vadd.f32 %v608, %v2713
        %v2715 = vpop.f32.mrf.mxu0
        %v2716 = vadd.f32 %v608, %v2715
        %2717 = vmatmul.bf16.gmra.mxu0 %v692
        %v2718 = vpop.f32.mrf.mxu0
        %v2719 = vadd.f32 %v608, %v2718
        %v2720 = vpop.f32.mrf.mxu0
        %v2721 = vadd.f32 %v608, %v2720
        %2722 = vmatmul.bf16.gmra.mxu0 %v695
        %v2723 = vpop.f32.mrf.mxu0
        %v2724 = vadd.f32 %v608, %v2723
        %v2725 = vpop.f32.mrf.mxu0
        %v2726 = vadd.f32 %v608, %v2725
        %2727 = vmatmul.bf16.gmra.mxu0 %v698
        %v2728 = vpop.f32.mrf.mxu0
        %v2729 = vadd.f32 %v608, %v2728
        %v2730 = vpop.f32.mrf.mxu0
        %v2731 = vadd.f32 %v608, %v2730
        %2732 = vmatmul.bf16.gmra.mxu0 %v701
        %v2733 = vpop.f32.mrf.mxu0
        %v2734 = vadd.f32 %v608, %v2733
        %v2735 = vpop.f32.mrf.mxu0
        %v2736 = vadd.f32 %v608, %v2735
        %2737 = vmatmul.bf16.gmra.mxu0 %v704
        %v2738 = vpop.f32.mrf.mxu0
        %v2739 = vadd.f32 %v608, %v2738
        %v2740 = vpop.f32.mrf.mxu0
        %v2741 = vadd.f32 %v608, %v2740
        %2742 = vmatmul.bf16.gmra.mxu0 %v707
        %v2743 = vpop.f32.mrf.mxu0
        %v2744 = vadd.f32 %v608, %v2743
        %v2745 = vpop.f32.mrf.mxu0
        %v2746 = vadd.f32 %v608, %v2745
        %2747 = vmatmul.bf16.gmra.mxu0 %v710
        %v2748 = vpop.f32.mrf.mxu0
        %v2749 = vadd.f32 %v608, %v2748
        %v2750 = vpop.f32.mrf.mxu0
        %v2751 = vadd.f32 %v608, %v2750
        %2752 = vmatmul.bf16.gmra.mxu0 %v713
        %v2753 = vpop.f32.mrf.mxu0
        %v2754 = vadd.f32 %v608, %v2753
        %v2755 = vpop.f32.mrf.mxu0
        %v2756 = vadd.f32 %v608, %v2755
        %2757 = vmatmul.bf16.gmra.mxu0 %v716
        %v2758 = vpop.f32.mrf.mxu0
        %v2759 = vadd.f32 %v608, %v2758
        %v2760 = vpop.f32.mrf.mxu0
        %v2761 = vadd.f32 %v608, %v2760
        %2762 = vmatmul.bf16.gmra.mxu0 %v719
        %v2763 = vpop.f32.mrf.mxu0
        %v2764 = vadd.f32 %v608, %v2763
        %v2765 = vpop.f32.mrf.mxu0
        %v2766 = vadd.f32 %v608, %v2765
        %2767 = vmatmul.bf16.gmra.mxu0 %v722
        %v2768 = vpop.f32.mrf.mxu0
        %v2769 = vadd.f32 %v608, %v2768
        %v2770 = vpop.f32.mrf.mxu0
        %v2771 = vadd.f32 %v608, %v2770
        %2772 = vmatmul.bf16.gmra.mxu0 %v725
        %v2773 = vpop.f32.mrf.mxu0
        %v2774 = vadd.f32 %v608, %v2773
        %v2775 = vpop.f32.mrf.mxu0
        %v2776 = vadd.f32 %v608, %v2775
        %2777 = vmatmul.bf16.gmra.mxu0 %v728
        %v2778 = vpop.f32.mrf.mxu0
        %v2779 = vadd.f32 %v608, %v2778
        %v2780 = vpop.f32.mrf.mxu0
        %v2781 = vadd.f32 %v608, %v2780
        %2782 = vmatmul.bf16.gmra.mxu0 %v731
        %v2783 = vpop.f32.mrf.mxu0
        %v2784 = vadd.f32 %v608, %v2783
        %v2785 = vpop.f32.mrf.mxu0
        %v2786 = vadd.f32 %v608, %v2785
        %2787 = vmatmul.bf16.gmra.mxu0 %v734
        %v2788 = vpop.f32.mrf.mxu0
        %v2789 = vadd.f32 %v608, %v2788
        %v2790 = vpop.f32.mrf.mxu0
        %v2791 = vadd.f32 %v608, %v2790
        %2792 = vmatmul.bf16.gmra.mxu0 %v737
        %v2793 = vpop.f32.mrf.mxu0
        %v2794 = vadd.f32 %v608, %v2793
        %v2795 = vpop.f32.mrf.mxu0
        %v2796 = vadd.f32 %v608, %v2795
        %2797 = vmatmul.bf16.gmra.mxu0 %v740
        %v2798 = vpop.f32.mrf.mxu0
        %v2799 = vadd.f32 %v608, %v2798
        %v2800 = vpop.f32.mrf.mxu0
        %v2801 = vadd.f32 %v608, %v2800
        %2802 = vmatmul.bf16.gmra.mxu0 %v743
        %v2803 = vpop.f32.mrf.mxu0
        %v2804 = vadd.f32 %v608, %v2803
        %v2805 = vpop.f32.mrf.mxu0
        %v2806 = vadd.f32 %v608, %v2805
        %2807 = vmatmul.bf16.gmra.mxu0 %v746
        %v2808 = vpop.f32.mrf.mxu0
        %v2809 = vadd.f32 %v608, %v2808
        %v2810 = vpop.f32.mrf.mxu0
        %v2811 = vadd.f32 %v608, %v2810
        %2812 = vmatmul.bf16.gmra.mxu0 %v749
        %v2813 = vpop.f32.mrf.mxu0
        %v2814 = vadd.f32 %v608, %v2813
        %v2815 = vpop.f32.mrf.mxu0
        %v2816 = vadd.f32 %v608, %v2815
        %2817 = vmatmul.bf16.gmra.mxu0 %v752
        %v2818 = vpop.f32.mrf.mxu0
        %v2819 = vadd.f32 %v608, %v2818
        %v2820 = vpop.f32.mrf.mxu0
        %v2821 = vadd.f32 %v608, %v2820
        %2822 = vmatmul.bf16.gmra.mxu0 %v755
        %v2823 = vpop.f32.mrf.mxu0
        %v2824 = vadd.f32 %v608, %v2823
        %v2825 = vpop.f32.mrf.mxu0
        %v2826 = vadd.f32 %v608, %v2825
        %2827 = vmatmul.bf16.gmra.mxu0 %v758
        %v2828 = vpop.f32.mrf.mxu0
        %v2829 = vadd.f32 %v608, %v2828
        %v2830 = vpop.f32.mrf.mxu0
        %v2831 = vadd.f32 %v608, %v2830
        %2832 = vmatmul.bf16.gmra.mxu0 %v761
        %v2833 = vpop.f32.mrf.mxu0
        %v2834 = vadd.f32 %v608, %v2833
        %v2835 = vpop.f32.mrf.mxu0
        %v2836 = vadd.f32 %v608, %v2835
        %2837 = vmatmul.bf16.gmra.mxu0 %v764
        %v2838 = vpop.f32.mrf.mxu0
        %v2839 = vadd.f32 %v608, %v2838
        %v2840 = vpop.f32.mrf.mxu0
        %v2841 = vadd.f32 %v608, %v2840
        %2842 = vdwg.mxu0
        %2843 = vmatpush.bf16.msra.mxu0 0
        %2844 = vmatpush.bf16.msra.mxu0 0
        %2845 = vmatpush.bf16.msra.mxu0 0
        %2846 = vmatpush.bf16.msra.mxu0 0
        %2847 = vmatpush.bf16.msra.mxu0 0
        %2848 = vmatpush.bf16.msra.mxu0 0
        %2849 = vmatpush.bf16.msra.mxu0 0
        %2850 = vmatpush.bf16.msra.mxu0 %v804
        %2851 = vmatmul.bf16.gmra.mxu0 %v671
        %v2852 = vpop.f32.mrf.mxu0
        %v2853 = vadd.f32 %v609, %v2852
        %v2854 = vpop.f32.mrf.mxu0
        %v2855 = vadd.f32 %v609, %v2854
        %2856 = vmatmul.bf16.gmra.mxu0 %v674
        %v2857 = vpop.f32.mrf.mxu0
        %v2858 = vadd.f32 %v609, %v2857
        %v2859 = vpop.f32.mrf.mxu0
        %v2860 = vadd.f32 %v609, %v2859
        %2861 = vmatmul.bf16.gmra.mxu0 %v677
        %v2862 = vpop.f32.mrf.mxu0
        %v2863 = vadd.f32 %v609, %v2862
        %v2864 = vpop.f32.mrf.mxu0
        %v2865 = vadd.f32 %v609, %v2864
        %2866 = vmatmul.bf16.gmra.mxu0 %v680
        %v2867 = vpop.f32.mrf.mxu0
        %v2868 = vadd.f32 %v609, %v2867
        %v2869 = vpop.f32.mrf.mxu0
        %v2870 = vadd.f32 %v609, %v2869
        %2871 = vmatmul.bf16.gmra.mxu0 %v683
        %v2872 = vpop.f32.mrf.mxu0
        %v2873 = vadd.f32 %v609, %v2872
        %v2874 = vpop.f32.mrf.mxu0
        %v2875 = vadd.f32 %v609, %v2874
        %2876 = vmatmul.bf16.gmra.mxu0 %v686
        %v2877 = vpop.f32.mrf.mxu0
        %v2878 = vadd.f32 %v609, %v2877
        %v2879 = vpop.f32.mrf.mxu0
        %v2880 = vadd.f32 %v609, %v2879
        %2881 = vmatmul.bf16.gmra.mxu0 %v689
        %v2882 = vpop.f32.mrf.mxu0
        %v2883 = vadd.f32 %v609, %v2882
        %v2884 = vpop.f32.mrf.mxu0
        %v2885 = vadd.f32 %v609, %v2884
        %2886 = vmatmul.bf16.gmra.mxu0 %v692
        %v2887 = vpop.f32.mrf.mxu0
        %v2888 = vadd.f32 %v609, %v2887
        %v2889 = vpop.f32.mrf.mxu0
        %v2890 = vadd.f32 %v609, %v2889
        %2891 = vmatmul.bf16.gmra.mxu0 %v695
        %v2892 = vpop.f32.mrf.mxu0
        %v2893 = vadd.f32 %v609, %v2892
        %v2894 = vpop.f32.mrf.mxu0
        %v2895 = vadd.f32 %v609, %v2894
        %2896 = vmatmul.bf16.gmra.mxu0 %v698
        %v2897 = vpop.f32.mrf.mxu0
        %v2898 = vadd.f32 %v609, %v2897
        %v2899 = vpop.f32.mrf.mxu0
        %v2900 = vadd.f32 %v609, %v2899
        %2901 = vmatmul.bf16.gmra.mxu0 %v701
        %v2902 = vpop.f32.mrf.mxu0
        %v2903 = vadd.f32 %v609, %v2902
        %v2904 = vpop.f32.mrf.mxu0
        %v2905 = vadd.f32 %v609, %v2904
        %2906 = vmatmul.bf16.gmra.mxu0 %v704
        %v2907 = vpop.f32.mrf.mxu0
        %v2908 = vadd.f32 %v609, %v2907
        %v2909 = vpop.f32.mrf.mxu0
        %v2910 = vadd.f32 %v609, %v2909
        %2911 = vmatmul.bf16.gmra.mxu0 %v707
        %v2912 = vpop.f32.mrf.mxu0
        %v2913 = vadd.f32 %v609, %v2912
        %v2914 = vpop.f32.mrf.mxu0
        %v2915 = vadd.f32 %v609, %v2914
        %2916 = vmatmul.bf16.gmra.mxu0 %v710
        %v2917 = vpop.f32.mrf.mxu0
        %v2918 = vadd.f32 %v609, %v2917
        %v2919 = vpop.f32.mrf.mxu0
        %v2920 = vadd.f32 %v609, %v2919
        %2921 = vmatmul.bf16.gmra.mxu0 %v713
        %v2922 = vpop.f32.mrf.mxu0
        %v2923 = vadd.f32 %v609, %v2922
        %v2924 = vpop.f32.mrf.mxu0
        %v2925 = vadd.f32 %v609, %v2924
        %2926 = vmatmul.bf16.gmra.mxu0 %v716
        %v2927 = vpop.f32.mrf.mxu0
        %v2928 = vadd.f32 %v609, %v2927
        %v2929 = vpop.f32.mrf.mxu0
        %v2930 = vadd.f32 %v609, %v2929
        %2931 = vmatmul.bf16.gmra.mxu0 %v719
        %v2932 = vpop.f32.mrf.mxu0
        %v2933 = vadd.f32 %v609, %v2932
        %v2934 = vpop.f32.mrf.mxu0
        %v2935 = vadd.f32 %v609, %v2934
        %2936 = vmatmul.bf16.gmra.mxu0 %v722
        %v2937 = vpop.f32.mrf.mxu0
        %v2938 = vadd.f32 %v609, %v2937
        %v2939 = vpop.f32.mrf.mxu0
        %v2940 = vadd.f32 %v609, %v2939
        %2941 = vmatmul.bf16.gmra.mxu0 %v725
        %v2942 = vpop.f32.mrf.mxu0
        %v2943 = vadd.f32 %v609, %v2942
        %v2944 = vpop.f32.mrf.mxu0
        %v2945 = vadd.f32 %v609, %v2944
        %2946 = vmatmul.bf16.gmra.mxu0 %v728
        %v2947 = vpop.f32.mrf.mxu0
        %v2948 = vadd.f32 %v609, %v2947
        %v2949 = vpop.f32.mrf.mxu0
        %v2950 = vadd.f32 %v609, %v2949
        %2951 = vmatmul.bf16.gmra.mxu0 %v731
        %v2952 = vpop.f32.mrf.mxu0
        %v2953 = vadd.f32 %v609, %v2952
        %v2954 = vpop.f32.mrf.mxu0
        %v2955 = vadd.f32 %v609, %v2954
        %2956 = vmatmul.bf16.gmra.mxu0 %v734
        %v2957 = vpop.f32.mrf.mxu0
        %v2958 = vadd.f32 %v609, %v2957
        %v2959 = vpop.f32.mrf.mxu0
        %v2960 = vadd.f32 %v609, %v2959
        %2961 = vmatmul.bf16.gmra.mxu0 %v737
        %v2962 = vpop.f32.mrf.mxu0
        %v2963 = vadd.f32 %v609, %v2962
        %v2964 = vpop.f32.mrf.mxu0
        %v2965 = vadd.f32 %v609, %v2964
        %2966 = vmatmul.bf16.gmra.mxu0 %v740
        %v2967 = vpop.f32.mrf.mxu0
        %v2968 = vadd.f32 %v609, %v2967
        %v2969 = vpop.f32.mrf.mxu0
        %v2970 = vadd.f32 %v609, %v2969
        %2971 = vmatmul.bf16.gmra.mxu0 %v743
        %v2972 = vpop.f32.mrf.mxu0
        %v2973 = vadd.f32 %v609, %v2972
        %v2974 = vpop.f32.mrf.mxu0
        %v2975 = vadd.f32 %v609, %v2974
        %2976 = vmatmul.bf16.gmra.mxu0 %v746
        %v2977 = vpop.f32.mrf.mxu0
        %v2978 = vadd.f32 %v609, %v2977
        %v2979 = vpop.f32.mrf.mxu0
        %v2980 = vadd.f32 %v609, %v2979
        %2981 = vmatmul.bf16.gmra.mxu0 %v749
        %v2982 = vpop.f32.mrf.mxu0
        %v2983 = vadd.f32 %v609, %v2982
        %v2984 = vpop.f32.mrf.mxu0
        %v2985 = vadd.f32 %v609, %v2984
        %2986 = vmatmul.bf16.gmra.mxu0 %v752
        %v2987 = vpop.f32.mrf.mxu0
        %v2988 = vadd.f32 %v609, %v2987
        %v2989 = vpop.f32.mrf.mxu0
        %v2990 = vadd.f32 %v609, %v2989
        %2991 = vmatmul.bf16.gmra.mxu0 %v755
        %v2992 = vpop.f32.mrf.mxu0
        %v2993 = vadd.f32 %v609, %v2992
        %v2994 = vpop.f32.mrf.mxu0
        %v2995 = vadd.f32 %v609, %v2994
        %2996 = vmatmul.bf16.gmra.mxu0 %v758
        %v2997 = vpop.f32.mrf.mxu0
        %v2998 = vadd.f32 %v609, %v2997
        %v2999 = vpop.f32.mrf.mxu0
        %v3000 = vadd.f32 %v609, %v2999
        %3001 = vmatmul.bf16.gmra.mxu0 %v761
        %v3002 = vpop.f32.mrf.mxu0
        %v3003 = vadd.f32 %v609, %v3002
        %v3004 = vpop.f32.mrf.mxu0
        %v3005 = vadd.f32 %v609, %v3004
        %3006 = vmatmul.bf16.gmra.mxu0 %v764
        %v3007 = vpop.f32.mrf.mxu0
        %v3008 = vadd.f32 %v609, %v3007
        %v3009 = vpop.f32.mrf.mxu0
        %v3010 = vadd.f32 %v609, %v3009
        %3011 = vdwg.mxu0
        %3012 = vmatpush.bf16.msra.mxu0 0
        %3013 = vmatpush.bf16.msra.mxu0 0
        %3014 = vmatpush.bf16.msra.mxu0 0
        %3015 = vmatpush.bf16.msra.mxu0 0
        %3016 = vmatpush.bf16.msra.mxu0 0
        %3017 = vmatpush.bf16.msra.mxu0 0
        %3018 = vmatpush.bf16.msra.mxu0 0
        %3019 = vmatpush.bf16.msra.mxu0 %v807
        %3020 = vmatmul.bf16.gmra.mxu0 %v671
        %v3021 = vpop.f32.mrf.mxu0
        %v3022 = vadd.f32 %v610, %v3021
        %v3023 = vpop.f32.mrf.mxu0
        %v3024 = vadd.f32 %v610, %v3023
        %3025 = vmatmul.bf16.gmra.mxu0 %v674
        %v3026 = vpop.f32.mrf.mxu0
        %v3027 = vadd.f32 %v610, %v3026
        %v3028 = vpop.f32.mrf.mxu0
        %v3029 = vadd.f32 %v610, %v3028
        %3030 = vmatmul.bf16.gmra.mxu0 %v677
        %v3031 = vpop.f32.mrf.mxu0
        %v3032 = vadd.f32 %v610, %v3031
        %v3033 = vpop.f32.mrf.mxu0
        %v3034 = vadd.f32 %v610, %v3033
        %3035 = vmatmul.bf16.gmra.mxu0 %v680
        %v3036 = vpop.f32.mrf.mxu0
        %v3037 = vadd.f32 %v610, %v3036
        %v3038 = vpop.f32.mrf.mxu0
        %v3039 = vadd.f32 %v610, %v3038
        %3040 = vmatmul.bf16.gmra.mxu0 %v683
        %v3041 = vpop.f32.mrf.mxu0
        %v3042 = vadd.f32 %v610, %v3041
        %v3043 = vpop.f32.mrf.mxu0
        %v3044 = vadd.f32 %v610, %v3043
        %3045 = vmatmul.bf16.gmra.mxu0 %v686
        %v3046 = vpop.f32.mrf.mxu0
        %v3047 = vadd.f32 %v610, %v3046
        %v3048 = vpop.f32.mrf.mxu0
        %v3049 = vadd.f32 %v610, %v3048
        %3050 = vmatmul.bf16.gmra.mxu0 %v689
        %v3051 = vpop.f32.mrf.mxu0
        %v3052 = vadd.f32 %v610, %v3051
        %v3053 = vpop.f32.mrf.mxu0
        %v3054 = vadd.f32 %v610, %v3053
        %3055 = vmatmul.bf16.gmra.mxu0 %v692
        %v3056 = vpop.f32.mrf.mxu0
        %v3057 = vadd.f32 %v610, %v3056
        %v3058 = vpop.f32.mrf.mxu0
        %v3059 = vadd.f32 %v610, %v3058
        %3060 = vmatmul.bf16.gmra.mxu0 %v695
        %v3061 = vpop.f32.mrf.mxu0
        %v3062 = vadd.f32 %v610, %v3061
        %v3063 = vpop.f32.mrf.mxu0
        %v3064 = vadd.f32 %v610, %v3063
        %3065 = vmatmul.bf16.gmra.mxu0 %v698
        %v3066 = vpop.f32.mrf.mxu0
        %v3067 = vadd.f32 %v610, %v3066
        %v3068 = vpop.f32.mrf.mxu0
        %v3069 = vadd.f32 %v610, %v3068
        %3070 = vmatmul.bf16.gmra.mxu0 %v701
        %v3071 = vpop.f32.mrf.mxu0
        %v3072 = vadd.f32 %v610, %v3071
        %v3073 = vpop.f32.mrf.mxu0
        %v3074 = vadd.f32 %v610, %v3073
        %3075 = vmatmul.bf16.gmra.mxu0 %v704
        %v3076 = vpop.f32.mrf.mxu0
        %v3077 = vadd.f32 %v610, %v3076
        %v3078 = vpop.f32.mrf.mxu0
        %v3079 = vadd.f32 %v610, %v3078
        %3080 = vmatmul.bf16.gmra.mxu0 %v707
        %v3081 = vpop.f32.mrf.mxu0
        %v3082 = vadd.f32 %v610, %v3081
        %v3083 = vpop.f32.mrf.mxu0
        %v3084 = vadd.f32 %v610, %v3083
        %3085 = vmatmul.bf16.gmra.mxu0 %v710
        %v3086 = vpop.f32.mrf.mxu0
        %v3087 = vadd.f32 %v610, %v3086
        %v3088 = vpop.f32.mrf.mxu0
        %v3089 = vadd.f32 %v610, %v3088
        %3090 = vmatmul.bf16.gmra.mxu0 %v713
        %v3091 = vpop.f32.mrf.mxu0
        %v3092 = vadd.f32 %v610, %v3091
        %v3093 = vpop.f32.mrf.mxu0
        %v3094 = vadd.f32 %v610, %v3093
        %3095 = vmatmul.bf16.gmra.mxu0 %v716
        %v3096 = vpop.f32.mrf.mxu0
        %v3097 = vadd.f32 %v610, %v3096
        %v3098 = vpop.f32.mrf.mxu0
        %v3099 = vadd.f32 %v610, %v3098
        %3100 = vmatmul.bf16.gmra.mxu0 %v719
        %v3101 = vpop.f32.mrf.mxu0
        %v3102 = vadd.f32 %v610, %v3101
        %v3103 = vpop.f32.mrf.mxu0
        %v3104 = vadd.f32 %v610, %v3103
        %3105 = vmatmul.bf16.gmra.mxu0 %v722
        %v3106 = vpop.f32.mrf.mxu0
        %v3107 = vadd.f32 %v610, %v3106
        %v3108 = vpop.f32.mrf.mxu0
        %v3109 = vadd.f32 %v610, %v3108
        %3110 = vmatmul.bf16.gmra.mxu0 %v725
        %v3111 = vpop.f32.mrf.mxu0
        %v3112 = vadd.f32 %v610, %v3111
        %v3113 = vpop.f32.mrf.mxu0
        %v3114 = vadd.f32 %v610, %v3113
        %3115 = vmatmul.bf16.gmra.mxu0 %v728
        %v3116 = vpop.f32.mrf.mxu0
        %v3117 = vadd.f32 %v610, %v3116
        %v3118 = vpop.f32.mrf.mxu0
        %v3119 = vadd.f32 %v610, %v3118
        %3120 = vmatmul.bf16.gmra.mxu0 %v731
        %v3121 = vpop.f32.mrf.mxu0
        %v3122 = vadd.f32 %v610, %v3121
        %v3123 = vpop.f32.mrf.mxu0
        %v3124 = vadd.f32 %v610, %v3123
        %3125 = vmatmul.bf16.gmra.mxu0 %v734
        %v3126 = vpop.f32.mrf.mxu0
        %v3127 = vadd.f32 %v610, %v3126
        %v3128 = vpop.f32.mrf.mxu0
        %v3129 = vadd.f32 %v610, %v3128
        %3130 = vmatmul.bf16.gmra.mxu0 %v737
        %v3131 = vpop.f32.mrf.mxu0
        %v3132 = vadd.f32 %v610, %v3131
        %v3133 = vpop.f32.mrf.mxu0
        %v3134 = vadd.f32 %v610, %v3133
        %3135 = vmatmul.bf16.gmra.mxu0 %v740
        %v3136 = vpop.f32.mrf.mxu0
        %v3137 = vadd.f32 %v610, %v3136
        %v3138 = vpop.f32.mrf.mxu0
        %v3139 = vadd.f32 %v610, %v3138
        %3140 = vmatmul.bf16.gmra.mxu0 %v743
        %v3141 = vpop.f32.mrf.mxu0
        %v3142 = vadd.f32 %v610, %v3141
        %v3143 = vpop.f32.mrf.mxu0
        %v3144 = vadd.f32 %v610, %v3143
        %3145 = vmatmul.bf16.gmra.mxu0 %v746
        %v3146 = vpop.f32.mrf.mxu0
        %v3147 = vadd.f32 %v610, %v3146
        %v3148 = vpop.f32.mrf.mxu0
        %v3149 = vadd.f32 %v610, %v3148
        %3150 = vmatmul.bf16.gmra.mxu0 %v749
        %v3151 = vpop.f32.mrf.mxu0
        %v3152 = vadd.f32 %v610, %v3151
        %v3153 = vpop.f32.mrf.mxu0
        %v3154 = vadd.f32 %v610, %v3153
        %3155 = vmatmul.bf16.gmra.mxu0 %v752
        %v3156 = vpop.f32.mrf.mxu0
        %v3157 = vadd.f32 %v610, %v3156
        %v3158 = vpop.f32.mrf.mxu0
        %v3159 = vadd.f32 %v610, %v3158
        %3160 = vmatmul.bf16.gmra.mxu0 %v755
        %v3161 = vpop.f32.mrf.mxu0
        %v3162 = vadd.f32 %v610, %v3161
        %v3163 = vpop.f32.mrf.mxu0
        %v3164 = vadd.f32 %v610, %v3163
        %3165 = vmatmul.bf16.gmra.mxu0 %v758
        %v3166 = vpop.f32.mrf.mxu0
        %v3167 = vadd.f32 %v610, %v3166
        %v3168 = vpop.f32.mrf.mxu0
        %v3169 = vadd.f32 %v610, %v3168
        %3170 = vmatmul.bf16.gmra.mxu0 %v761
        %v3171 = vpop.f32.mrf.mxu0
        %v3172 = vadd.f32 %v610, %v3171
        %v3173 = vpop.f32.mrf.mxu0
        %v3174 = vadd.f32 %v610, %v3173
        %3175 = vmatmul.bf16.gmra.mxu0 %v764
        %v3176 = vpop.f32.mrf.mxu0
        %v3177 = vadd.f32 %v610, %v3176
        %v3178 = vpop.f32.mrf.mxu0
        %v3179 = vadd.f32 %v610, %v3178
        %3180 = vdwg.mxu0
        %3181 = vmatpush.bf16.msra.mxu0 0
        %3182 = vmatpush.bf16.msra.mxu0 0
        %3183 = vmatpush.bf16.msra.mxu0 0
        %3184 = vmatpush.bf16.msra.mxu0 0
        %3185 = vmatpush.bf16.msra.mxu0 0
        %3186 = vmatpush.bf16.msra.mxu0 0
        %3187 = vmatpush.bf16.msra.mxu0 0
        %3188 = vmatpush.bf16.msra.mxu0 %v810
        %3189 = vmatmul.bf16.gmra.mxu0 %v671
        %v3190 = vpop.f32.mrf.mxu0
        %v3191 = vadd.f32 %v611, %v3190
        %v3192 = vpop.f32.mrf.mxu0
        %v3193 = vadd.f32 %v611, %v3192
        %3194 = vmatmul.bf16.gmra.mxu0 %v674
        %v3195 = vpop.f32.mrf.mxu0
        %v3196 = vadd.f32 %v611, %v3195
        %v3197 = vpop.f32.mrf.mxu0
        %v3198 = vadd.f32 %v611, %v3197
        %3199 = vmatmul.bf16.gmra.mxu0 %v677
        %v3200 = vpop.f32.mrf.mxu0
        %v3201 = vadd.f32 %v611, %v3200
        %v3202 = vpop.f32.mrf.mxu0
        %v3203 = vadd.f32 %v611, %v3202
        %3204 = vmatmul.bf16.gmra.mxu0 %v680
        %v3205 = vpop.f32.mrf.mxu0
        %v3206 = vadd.f32 %v611, %v3205
        %v3207 = vpop.f32.mrf.mxu0
        %v3208 = vadd.f32 %v611, %v3207
        %3209 = vmatmul.bf16.gmra.mxu0 %v683
        %v3210 = vpop.f32.mrf.mxu0
        %v3211 = vadd.f32 %v611, %v3210
        %v3212 = vpop.f32.mrf.mxu0
        %v3213 = vadd.f32 %v611, %v3212
        %3214 = vmatmul.bf16.gmra.mxu0 %v686
        %v3215 = vpop.f32.mrf.mxu0
        %v3216 = vadd.f32 %v611, %v3215
        %v3217 = vpop.f32.mrf.mxu0
        %v3218 = vadd.f32 %v611, %v3217
        %3219 = vmatmul.bf16.gmra.mxu0 %v689
        %v3220 = vpop.f32.mrf.mxu0
        %v3221 = vadd.f32 %v611, %v3220
        %v3222 = vpop.f32.mrf.mxu0
        %v3223 = vadd.f32 %v611, %v3222
        %3224 = vmatmul.bf16.gmra.mxu0 %v692
        %v3225 = vpop.f32.mrf.mxu0
        %v3226 = vadd.f32 %v611, %v3225
        %v3227 = vpop.f32.mrf.mxu0
        %v3228 = vadd.f32 %v611, %v3227
        %3229 = vmatmul.bf16.gmra.mxu0 %v695
        %v3230 = vpop.f32.mrf.mxu0
        %v3231 = vadd.f32 %v611, %v3230
        %v3232 = vpop.f32.mrf.mxu0
        %v3233 = vadd.f32 %v611, %v3232
        %3234 = vmatmul.bf16.gmra.mxu0 %v698
        %v3235 = vpop.f32.mrf.mxu0
        %v3236 = vadd.f32 %v611, %v3235
        %v3237 = vpop.f32.mrf.mxu0
        %v3238 = vadd.f32 %v611, %v3237
        %3239 = vmatmul.bf16.gmra.mxu0 %v701
        %v3240 = vpop.f32.mrf.mxu0
        %v3241 = vadd.f32 %v611, %v3240
        %v3242 = vpop.f32.mrf.mxu0
        %v3243 = vadd.f32 %v611, %v3242
        %3244 = vmatmul.bf16.gmra.mxu0 %v704
        %v3245 = vpop.f32.mrf.mxu0
        %v3246 = vadd.f32 %v611, %v3245
        %v3247 = vpop.f32.mrf.mxu0
        %v3248 = vadd.f32 %v611, %v3247
        %3249 = vmatmul.bf16.gmra.mxu0 %v707
        %v3250 = vpop.f32.mrf.mxu0
        %v3251 = vadd.f32 %v611, %v3250
        %v3252 = vpop.f32.mrf.mxu0
        %v3253 = vadd.f32 %v611, %v3252
        %3254 = vmatmul.bf16.gmra.mxu0 %v710
        %v3255 = vpop.f32.mrf.mxu0
        %v3256 = vadd.f32 %v611, %v3255
        %v3257 = vpop.f32.mrf.mxu0
        %v3258 = vadd.f32 %v611, %v3257
        %3259 = vmatmul.bf16.gmra.mxu0 %v713
        %v3260 = vpop.f32.mrf.mxu0
        %v3261 = vadd.f32 %v611, %v3260
        %v3262 = vpop.f32.mrf.mxu0
        %v3263 = vadd.f32 %v611, %v3262
        %3264 = vmatmul.bf16.gmra.mxu0 %v716
        %v3265 = vpop.f32.mrf.mxu0
        %v3266 = vadd.f32 %v611, %v3265
        %v3267 = vpop.f32.mrf.mxu0
        %v3268 = vadd.f32 %v611, %v3267
        %3269 = vmatmul.bf16.gmra.mxu0 %v719
        %v3270 = vpop.f32.mrf.mxu0
        %v3271 = vadd.f32 %v611, %v3270
        %v3272 = vpop.f32.mrf.mxu0
        %v3273 = vadd.f32 %v611, %v3272
        %3274 = vmatmul.bf16.gmra.mxu0 %v722
        %v3275 = vpop.f32.mrf.mxu0
        %v3276 = vadd.f32 %v611, %v3275
        %v3277 = vpop.f32.mrf.mxu0
        %v3278 = vadd.f32 %v611, %v3277
        %3279 = vmatmul.bf16.gmra.mxu0 %v725
        %v3280 = vpop.f32.mrf.mxu0
        %v3281 = vadd.f32 %v611, %v3280
        %v3282 = vpop.f32.mrf.mxu0
        %v3283 = vadd.f32 %v611, %v3282
        %3284 = vmatmul.bf16.gmra.mxu0 %v728
        %v3285 = vpop.f32.mrf.mxu0
        %v3286 = vadd.f32 %v611, %v3285
        %v3287 = vpop.f32.mrf.mxu0
        %v3288 = vadd.f32 %v611, %v3287
        %3289 = vmatmul.bf16.gmra.mxu0 %v731
        %v3290 = vpop.f32.mrf.mxu0
        %v3291 = vadd.f32 %v611, %v3290
        %v3292 = vpop.f32.mrf.mxu0
        %v3293 = vadd.f32 %v611, %v3292
        %3294 = vmatmul.bf16.gmra.mxu0 %v734
        %v3295 = vpop.f32.mrf.mxu0
        %v3296 = vadd.f32 %v611, %v3295
        %v3297 = vpop.f32.mrf.mxu0
        %v3298 = vadd.f32 %v611, %v3297
        %3299 = vmatmul.bf16.gmra.mxu0 %v737
        %v3300 = vpop.f32.mrf.mxu0
        %v3301 = vadd.f32 %v611, %v3300
        %v3302 = vpop.f32.mrf.mxu0
        %v3303 = vadd.f32 %v611, %v3302
        %3304 = vmatmul.bf16.gmra.mxu0 %v740
        %v3305 = vpop.f32.mrf.mxu0
        %v3306 = vadd.f32 %v611, %v3305
        %v3307 = vpop.f32.mrf.mxu0
        %v3308 = vadd.f32 %v611, %v3307
        %3309 = vmatmul.bf16.gmra.mxu0 %v743
        %v3310 = vpop.f32.mrf.mxu0
        %v3311 = vadd.f32 %v611, %v3310
        %v3312 = vpop.f32.mrf.mxu0
        %v3313 = vadd.f32 %v611, %v3312
        %3314 = vmatmul.bf16.gmra.mxu0 %v746
        %v3315 = vpop.f32.mrf.mxu0
        %v3316 = vadd.f32 %v611, %v3315
        %v3317 = vpop.f32.mrf.mxu0
        %v3318 = vadd.f32 %v611, %v3317
        %3319 = vmatmul.bf16.gmra.mxu0 %v749
        %v3320 = vpop.f32.mrf.mxu0
        %v3321 = vadd.f32 %v611, %v3320
        %v3322 = vpop.f32.mrf.mxu0
        %v3323 = vadd.f32 %v611, %v3322
        %3324 = vmatmul.bf16.gmra.mxu0 %v752
        %v3325 = vpop.f32.mrf.mxu0
        %v3326 = vadd.f32 %v611, %v3325
        %v3327 = vpop.f32.mrf.mxu0
        %v3328 = vadd.f32 %v611, %v3327
        %3329 = vmatmul.bf16.gmra.mxu0 %v755
        %v3330 = vpop.f32.mrf.mxu0
        %v3331 = vadd.f32 %v611, %v3330
        %v3332 = vpop.f32.mrf.mxu0
        %v3333 = vadd.f32 %v611, %v3332
        %3334 = vmatmul.bf16.gmra.mxu0 %v758
        %v3335 = vpop.f32.mrf.mxu0
        %v3336 = vadd.f32 %v611, %v3335
        %v3337 = vpop.f32.mrf.mxu0
        %v3338 = vadd.f32 %v611, %v3337
        %3339 = vmatmul.bf16.gmra.mxu0 %v761
        %v3340 = vpop.f32.mrf.mxu0
        %v3341 = vadd.f32 %v611, %v3340
        %v3342 = vpop.f32.mrf.mxu0
        %v3343 = vadd.f32 %v611, %v3342
        %3344 = vmatmul.bf16.gmra.mxu0 %v764
        %v3345 = vpop.f32.mrf.mxu0
        %v3346 = vadd.f32 %v611, %v3345
        %v3347 = vpop.f32.mrf.mxu0
        %v3348 = vadd.f32 %v611, %v3347
        %3349 = vdwg.mxu0
        %3350 = vmatpush.bf16.msra.mxu0 0
        %3351 = vmatpush.bf16.msra.mxu0 0
        %3352 = vmatpush.bf16.msra.mxu0 0
        %3353 = vmatpush.bf16.msra.mxu0 0
        %3354 = vmatpush.bf16.msra.mxu0 0
        %3355 = vmatpush.bf16.msra.mxu0 0
        %3356 = vmatpush.bf16.msra.mxu0 0
        %3357 = vmatpush.bf16.msra.mxu0 %v813
        %3358 = vmatmul.bf16.gmra.mxu0 %v671
        %v3359 = vpop.f32.mrf.mxu0
        %v3360 = vadd.f32 %v612, %v3359
        %v3361 = vpop.f32.mrf.mxu0
        %v3362 = vadd.f32 %v612, %v3361
        %3363 = vmatmul.bf16.gmra.mxu0 %v674
        %v3364 = vpop.f32.mrf.mxu0
        %v3365 = vadd.f32 %v612, %v3364
        %v3366 = vpop.f32.mrf.mxu0
        %v3367 = vadd.f32 %v612, %v3366
        %3368 = vmatmul.bf16.gmra.mxu0 %v677
        %v3369 = vpop.f32.mrf.mxu0
        %v3370 = vadd.f32 %v612, %v3369
        %v3371 = vpop.f32.mrf.mxu0
        %v3372 = vadd.f32 %v612, %v3371
        %3373 = vmatmul.bf16.gmra.mxu0 %v680
        %v3374 = vpop.f32.mrf.mxu0
        %v3375 = vadd.f32 %v612, %v3374
        %v3376 = vpop.f32.mrf.mxu0
        %v3377 = vadd.f32 %v612, %v3376
        %3378 = vmatmul.bf16.gmra.mxu0 %v683
        %v3379 = vpop.f32.mrf.mxu0
        %v3380 = vadd.f32 %v612, %v3379
        %v3381 = vpop.f32.mrf.mxu0
        %v3382 = vadd.f32 %v612, %v3381
        %3383 = vmatmul.bf16.gmra.mxu0 %v686
        %v3384 = vpop.f32.mrf.mxu0
        %v3385 = vadd.f32 %v612, %v3384
        %v3386 = vpop.f32.mrf.mxu0
        %v3387 = vadd.f32 %v612, %v3386
        %3388 = vmatmul.bf16.gmra.mxu0 %v689
        %v3389 = vpop.f32.mrf.mxu0
        %v3390 = vadd.f32 %v612, %v3389
        %v3391 = vpop.f32.mrf.mxu0
        %v3392 = vadd.f32 %v612, %v3391
        %3393 = vmatmul.bf16.gmra.mxu0 %v692
        %v3394 = vpop.f32.mrf.mxu0
        %v3395 = vadd.f32 %v612, %v3394
        %v3396 = vpop.f32.mrf.mxu0
        %v3397 = vadd.f32 %v612, %v3396
        %3398 = vmatmul.bf16.gmra.mxu0 %v695
        %v3399 = vpop.f32.mrf.mxu0
        %v3400 = vadd.f32 %v612, %v3399
        %v3401 = vpop.f32.mrf.mxu0
        %v3402 = vadd.f32 %v612, %v3401
        %3403 = vmatmul.bf16.gmra.mxu0 %v698
        %v3404 = vpop.f32.mrf.mxu0
        %v3405 = vadd.f32 %v612, %v3404
        %v3406 = vpop.f32.mrf.mxu0
        %v3407 = vadd.f32 %v612, %v3406
        %3408 = vmatmul.bf16.gmra.mxu0 %v701
        %v3409 = vpop.f32.mrf.mxu0
        %v3410 = vadd.f32 %v612, %v3409
        %v3411 = vpop.f32.mrf.mxu0
        %v3412 = vadd.f32 %v612, %v3411
        %3413 = vmatmul.bf16.gmra.mxu0 %v704
        %v3414 = vpop.f32.mrf.mxu0
        %v3415 = vadd.f32 %v612, %v3414
        %v3416 = vpop.f32.mrf.mxu0
        %v3417 = vadd.f32 %v612, %v3416
        %3418 = vmatmul.bf16.gmra.mxu0 %v707
        %v3419 = vpop.f32.mrf.mxu0
        %v3420 = vadd.f32 %v612, %v3419
        %v3421 = vpop.f32.mrf.mxu0
        %v3422 = vadd.f32 %v612, %v3421
        %3423 = vmatmul.bf16.gmra.mxu0 %v710
        %v3424 = vpop.f32.mrf.mxu0
        %v3425 = vadd.f32 %v612, %v3424
        %v3426 = vpop.f32.mrf.mxu0
        %v3427 = vadd.f32 %v612, %v3426
        %3428 = vmatmul.bf16.gmra.mxu0 %v713
        %v3429 = vpop.f32.mrf.mxu0
        %v3430 = vadd.f32 %v612, %v3429
        %v3431 = vpop.f32.mrf.mxu0
        %v3432 = vadd.f32 %v612, %v3431
        %3433 = vmatmul.bf16.gmra.mxu0 %v716
        %v3434 = vpop.f32.mrf.mxu0
        %v3435 = vadd.f32 %v612, %v3434
        %v3436 = vpop.f32.mrf.mxu0
        %v3437 = vadd.f32 %v612, %v3436
        %3438 = vmatmul.bf16.gmra.mxu0 %v719
        %v3439 = vpop.f32.mrf.mxu0
        %v3440 = vadd.f32 %v612, %v3439
        %v3441 = vpop.f32.mrf.mxu0
        %v3442 = vadd.f32 %v612, %v3441
        %3443 = vmatmul.bf16.gmra.mxu0 %v722
        %v3444 = vpop.f32.mrf.mxu0
        %v3445 = vadd.f32 %v612, %v3444
        %v3446 = vpop.f32.mrf.mxu0
        %v3447 = vadd.f32 %v612, %v3446
        %3448 = vmatmul.bf16.gmra.mxu0 %v725
        %v3449 = vpop.f32.mrf.mxu0
        %v3450 = vadd.f32 %v612, %v3449
        %v3451 = vpop.f32.mrf.mxu0
        %v3452 = vadd.f32 %v612, %v3451
        %3453 = vmatmul.bf16.gmra.mxu0 %v728
        %v3454 = vpop.f32.mrf.mxu0
        %v3455 = vadd.f32 %v612, %v3454
        %v3456 = vpop.f32.mrf.mxu0
        %v3457 = vadd.f32 %v612, %v3456
        %3458 = vmatmul.bf16.gmra.mxu0 %v731
        %v3459 = vpop.f32.mrf.mxu0
        %v3460 = vadd.f32 %v612, %v3459
        %v3461 = vpop.f32.mrf.mxu0
        %v3462 = vadd.f32 %v612, %v3461
        %3463 = vmatmul.bf16.gmra.mxu0 %v734
        %v3464 = vpop.f32.mrf.mxu0
        %v3465 = vadd.f32 %v612, %v3464
        %v3466 = vpop.f32.mrf.mxu0
        %v3467 = vadd.f32 %v612, %v3466
        %3468 = vmatmul.bf16.gmra.mxu0 %v737
        %v3469 = vpop.f32.mrf.mxu0
        %v3470 = vadd.f32 %v612, %v3469
        %v3471 = vpop.f32.mrf.mxu0
        %v3472 = vadd.f32 %v612, %v3471
        %3473 = vmatmul.bf16.gmra.mxu0 %v740
        %v3474 = vpop.f32.mrf.mxu0
        %v3475 = vadd.f32 %v612, %v3474
        %v3476 = vpop.f32.mrf.mxu0
        %v3477 = vadd.f32 %v612, %v3476
        %3478 = vmatmul.bf16.gmra.mxu0 %v743
        %v3479 = vpop.f32.mrf.mxu0
        %v3480 = vadd.f32 %v612, %v3479
        %v3481 = vpop.f32.mrf.mxu0
        %v3482 = vadd.f32 %v612, %v3481
        %3483 = vmatmul.bf16.gmra.mxu0 %v746
        %v3484 = vpop.f32.mrf.mxu0
        %v3485 = vadd.f32 %v612, %v3484
        %v3486 = vpop.f32.mrf.mxu0
        %v3487 = vadd.f32 %v612, %v3486
        %3488 = vmatmul.bf16.gmra.mxu0 %v749
        %v3489 = vpop.f32.mrf.mxu0
        %v3490 = vadd.f32 %v612, %v3489
        %v3491 = vpop.f32.mrf.mxu0
        %v3492 = vadd.f32 %v612, %v3491
        %3493 = vmatmul.bf16.gmra.mxu0 %v752
        %v3494 = vpop.f32.mrf.mxu0
        %v3495 = vadd.f32 %v612, %v3494
        %v3496 = vpop.f32.mrf.mxu0
        %v3497 = vadd.f32 %v612, %v3496
        %3498 = vmatmul.bf16.gmra.mxu0 %v755
        %v3499 = vpop.f32.mrf.mxu0
        %v3500 = vadd.f32 %v612, %v3499
        %v3501 = vpop.f32.mrf.mxu0
        %v3502 = vadd.f32 %v612, %v3501
        %3503 = vmatmul.bf16.gmra.mxu0 %v758
        %v3504 = vpop.f32.mrf.mxu0
        %v3505 = vadd.f32 %v612, %v3504
        %v3506 = vpop.f32.mrf.mxu0
        %v3507 = vadd.f32 %v612, %v3506
        %3508 = vmatmul.bf16.gmra.mxu0 %v761
        %v3509 = vpop.f32.mrf.mxu0
        %v3510 = vadd.f32 %v612, %v3509
        %v3511 = vpop.f32.mrf.mxu0
        %v3512 = vadd.f32 %v612, %v3511
        %3513 = vmatmul.bf16.gmra.mxu0 %v764
        %v3514 = vpop.f32.mrf.mxu0
        %v3515 = vadd.f32 %v612, %v3514
        %v3516 = vpop.f32.mrf.mxu0
        %v3517 = vadd.f32 %v612, %v3516
        %3518 = vdwg.mxu0
        %v3519 = vmax.f32 %v825, 0.0
        %v3520 = vmax.f32 %v994, 0.0
        %v3521 = vmax.f32 %v1163, 0.0
        %v3522 = vmax.f32 %v1332, 0.0
        %v3523 = vmax.f32 %v1501, 0.0
        %v3524 = vmax.f32 %v1670, 0.0
        %v3525 = vmax.f32 %v1839, 0.0
        %v3526 = vmax.f32 %v2008, 0.0
        %v3527 = vmax.f32 %v2177, 0.0
        %v3528 = vmax.f32 %v2346, 0.0
        %v3529 = vmax.f32 %v2515, 0.0
        %v3530 = vmax.f32 %v2684, 0.0
        %v3531 = vmax.f32 %v2853, 0.0
        %v3532 = vmax.f32 %v3022, 0.0
        %v3533 = vmax.f32 %v3191, 0.0
        %v3534 = vmax.f32 %v3360, 0.0
        %v3535 = vmax.f32 %v827, 0.0
        %v3536 = vmax.f32 %v996, 0.0
        %v3537 = vmax.f32 %v1165, 0.0
        %v3538 = vmax.f32 %v1334, 0.0
        %v3539 = vmax.f32 %v1503, 0.0
        %v3540 = vmax.f32 %v1672, 0.0
        %v3541 = vmax.f32 %v1841, 0.0
        %v3542 = vmax.f32 %v2010, 0.0
        %v3543 = vmax.f32 %v2179, 0.0
        %v3544 = vmax.f32 %v2348, 0.0
        %v3545 = vmax.f32 %v2517, 0.0
        %v3546 = vmax.f32 %v2686, 0.0
        %v3547 = vmax.f32 %v2855, 0.0
        %v3548 = vmax.f32 %v3024, 0.0
        %v3549 = vmax.f32 %v3193, 0.0
        %v3550 = vmax.f32 %v3362, 0.0
        %v3551 = vmax.f32 %v830, 0.0
        %v3552 = vmax.f32 %v999, 0.0
        %v3553 = vmax.f32 %v1168, 0.0
        %v3554 = vmax.f32 %v1337, 0.0
        %v3555 = vmax.f32 %v1506, 0.0
        %v3556 = vmax.f32 %v1675, 0.0
        %v3557 = vmax.f32 %v1844, 0.0
        %v3558 = vmax.f32 %v2013, 0.0
        %v3559 = vmax.f32 %v2182, 0.0
        %v3560 = vmax.f32 %v2351, 0.0
        %v3561 = vmax.f32 %v2520, 0.0
        %v3562 = vmax.f32 %v2689, 0.0
        %v3563 = vmax.f32 %v2858, 0.0
        %v3564 = vmax.f32 %v3027, 0.0
        %v3565 = vmax.f32 %v3196, 0.0
        %v3566 = vmax.f32 %v3365, 0.0
        %v3567 = vmax.f32 %v832, 0.0
        %v3568 = vmax.f32 %v1001, 0.0
        %v3569 = vmax.f32 %v1170, 0.0
        %v3570 = vmax.f32 %v1339, 0.0
        %v3571 = vmax.f32 %v1508, 0.0
        %v3572 = vmax.f32 %v1677, 0.0
        %v3573 = vmax.f32 %v1846, 0.0
        %v3574 = vmax.f32 %v2015, 0.0
        %v3575 = vmax.f32 %v2184, 0.0
        %v3576 = vmax.f32 %v2353, 0.0
        %v3577 = vmax.f32 %v2522, 0.0
        %v3578 = vmax.f32 %v2691, 0.0
        %v3579 = vmax.f32 %v2860, 0.0
        %v3580 = vmax.f32 %v3029, 0.0
        %v3581 = vmax.f32 %v3198, 0.0
        %v3582 = vmax.f32 %v3367, 0.0
        %v3583 = vmax.f32 %v835, 0.0
        %v3584 = vmax.f32 %v1004, 0.0
        %v3585 = vmax.f32 %v1173, 0.0
        %v3586 = vmax.f32 %v1342, 0.0
        %v3587 = vmax.f32 %v1511, 0.0
        %v3588 = vmax.f32 %v1680, 0.0
        %v3589 = vmax.f32 %v1849, 0.0
        %v3590 = vmax.f32 %v2018, 0.0
        %v3591 = vmax.f32 %v2187, 0.0
        %v3592 = vmax.f32 %v2356, 0.0
        %v3593 = vmax.f32 %v2525, 0.0
        %v3594 = vmax.f32 %v2694, 0.0
        %v3595 = vmax.f32 %v2863, 0.0
        %v3596 = vmax.f32 %v3032, 0.0
        %v3597 = vmax.f32 %v3201, 0.0
        %v3598 = vmax.f32 %v3370, 0.0
        %v3599 = vmax.f32 %v837, 0.0
        %v3600 = vmax.f32 %v1006, 0.0
        %v3601 = vmax.f32 %v1175, 0.0
        %v3602 = vmax.f32 %v1344, 0.0
        %v3603 = vmax.f32 %v1513, 0.0
        %v3604 = vmax.f32 %v1682, 0.0
        %v3605 = vmax.f32 %v1851, 0.0
        %v3606 = vmax.f32 %v2020, 0.0
        %v3607 = vmax.f32 %v2189, 0.0
        %v3608 = vmax.f32 %v2358, 0.0
        %v3609 = vmax.f32 %v2527, 0.0
        %v3610 = vmax.f32 %v2696, 0.0
        %v3611 = vmax.f32 %v2865, 0.0
        %v3612 = vmax.f32 %v3034, 0.0
        %v3613 = vmax.f32 %v3203, 0.0
        %v3614 = vmax.f32 %v3372, 0.0
        %v3615 = vmax.f32 %v840, 0.0
        %v3616 = vmax.f32 %v1009, 0.0
        %v3617 = vmax.f32 %v1178, 0.0
        %v3618 = vmax.f32 %v1347, 0.0
        %v3619 = vmax.f32 %v1516, 0.0
        %v3620 = vmax.f32 %v1685, 0.0
        %v3621 = vmax.f32 %v1854, 0.0
        %v3622 = vmax.f32 %v2023, 0.0
        %v3623 = vmax.f32 %v2192, 0.0
        %v3624 = vmax.f32 %v2361, 0.0
        %v3625 = vmax.f32 %v2530, 0.0
        %v3626 = vmax.f32 %v2699, 0.0
        %v3627 = vmax.f32 %v2868, 0.0
        %v3628 = vmax.f32 %v3037, 0.0
        %v3629 = vmax.f32 %v3206, 0.0
        %v3630 = vmax.f32 %v3375, 0.0
        %v3631 = vmax.f32 %v842, 0.0
        %v3632 = vmax.f32 %v1011, 0.0
        %v3633 = vmax.f32 %v1180, 0.0
        %v3634 = vmax.f32 %v1349, 0.0
        %v3635 = vmax.f32 %v1518, 0.0
        %v3636 = vmax.f32 %v1687, 0.0
        %v3637 = vmax.f32 %v1856, 0.0
        %v3638 = vmax.f32 %v2025, 0.0
        %v3639 = vmax.f32 %v2194, 0.0
        %v3640 = vmax.f32 %v2363, 0.0
        %v3641 = vmax.f32 %v2532, 0.0
        %v3642 = vmax.f32 %v2701, 0.0
        %v3643 = vmax.f32 %v2870, 0.0
        %v3644 = vmax.f32 %v3039, 0.0
        %v3645 = vmax.f32 %v3208, 0.0
        %v3646 = vmax.f32 %v3377, 0.0
        %v3647 = vmax.f32 %v845, 0.0
        %v3648 = vmax.f32 %v1014, 0.0
        %v3649 = vmax.f32 %v1183, 0.0
        %v3650 = vmax.f32 %v1352, 0.0
        %v3651 = vmax.f32 %v1521, 0.0
        %v3652 = vmax.f32 %v1690, 0.0
        %v3653 = vmax.f32 %v1859, 0.0
        %v3654 = vmax.f32 %v2028, 0.0
        %v3655 = vmax.f32 %v2197, 0.0
        %v3656 = vmax.f32 %v2366, 0.0
        %v3657 = vmax.f32 %v2535, 0.0
        %v3658 = vmax.f32 %v2704, 0.0
        %v3659 = vmax.f32 %v2873, 0.0
        %v3660 = vmax.f32 %v3042, 0.0
        %v3661 = vmax.f32 %v3211, 0.0
        %v3662 = vmax.f32 %v3380, 0.0
        %v3663 = vmax.f32 %v847, 0.0
        %v3664 = vmax.f32 %v1016, 0.0
        %v3665 = vmax.f32 %v1185, 0.0
        %v3666 = vmax.f32 %v1354, 0.0
        %v3667 = vmax.f32 %v1523, 0.0
        %v3668 = vmax.f32 %v1692, 0.0
        %v3669 = vmax.f32 %v1861, 0.0
        %v3670 = vmax.f32 %v2030, 0.0
        %v3671 = vmax.f32 %v2199, 0.0
        %v3672 = vmax.f32 %v2368, 0.0
        %v3673 = vmax.f32 %v2537, 0.0
        %v3674 = vmax.f32 %v2706, 0.0
        %v3675 = vmax.f32 %v2875, 0.0
        %v3676 = vmax.f32 %v3044, 0.0
        %v3677 = vmax.f32 %v3213, 0.0
        %v3678 = vmax.f32 %v3382, 0.0
        %v3679 = vmax.f32 %v850, 0.0
        %v3680 = vmax.f32 %v1019, 0.0
        %v3681 = vmax.f32 %v1188, 0.0
        %v3682 = vmax.f32 %v1357, 0.0
        %v3683 = vmax.f32 %v1526, 0.0
        %v3684 = vmax.f32 %v1695, 0.0
        %v3685 = vmax.f32 %v1864, 0.0
        %v3686 = vmax.f32 %v2033, 0.0
        %v3687 = vmax.f32 %v2202, 0.0
        %v3688 = vmax.f32 %v2371, 0.0
        %v3689 = vmax.f32 %v2540, 0.0
        %v3690 = vmax.f32 %v2709, 0.0
        %v3691 = vmax.f32 %v2878, 0.0
        %v3692 = vmax.f32 %v3047, 0.0
        %v3693 = vmax.f32 %v3216, 0.0
        %v3694 = vmax.f32 %v3385, 0.0
        %v3695 = vmax.f32 %v852, 0.0
        %v3696 = vmax.f32 %v1021, 0.0
        %v3697 = vmax.f32 %v1190, 0.0
        %v3698 = vmax.f32 %v1359, 0.0
        %v3699 = vmax.f32 %v1528, 0.0
        %v3700 = vmax.f32 %v1697, 0.0
        %v3701 = vmax.f32 %v1866, 0.0
        %v3702 = vmax.f32 %v2035, 0.0
        %v3703 = vmax.f32 %v2204, 0.0
        %v3704 = vmax.f32 %v2373, 0.0
        %v3705 = vmax.f32 %v2542, 0.0
        %v3706 = vmax.f32 %v2711, 0.0
        %v3707 = vmax.f32 %v2880, 0.0
        %v3708 = vmax.f32 %v3049, 0.0
        %v3709 = vmax.f32 %v3218, 0.0
        %v3710 = vmax.f32 %v3387, 0.0
        %v3711 = vmax.f32 %v855, 0.0
        %v3712 = vmax.f32 %v1024, 0.0
        %v3713 = vmax.f32 %v1193, 0.0
        %v3714 = vmax.f32 %v1362, 0.0
        %v3715 = vmax.f32 %v1531, 0.0
        %v3716 = vmax.f32 %v1700, 0.0
        %v3717 = vmax.f32 %v1869, 0.0
        %v3718 = vmax.f32 %v2038, 0.0
        %v3719 = vmax.f32 %v2207, 0.0
        %v3720 = vmax.f32 %v2376, 0.0
        %v3721 = vmax.f32 %v2545, 0.0
        %v3722 = vmax.f32 %v2714, 0.0
        %v3723 = vmax.f32 %v2883, 0.0
        %v3724 = vmax.f32 %v3052, 0.0
        %v3725 = vmax.f32 %v3221, 0.0
        %v3726 = vmax.f32 %v3390, 0.0
        %v3727 = vmax.f32 %v857, 0.0
        %v3728 = vmax.f32 %v1026, 0.0
        %v3729 = vmax.f32 %v1195, 0.0
        %v3730 = vmax.f32 %v1364, 0.0
        %v3731 = vmax.f32 %v1533, 0.0
        %v3732 = vmax.f32 %v1702, 0.0
        %v3733 = vmax.f32 %v1871, 0.0
        %v3734 = vmax.f32 %v2040, 0.0
        %v3735 = vmax.f32 %v2209, 0.0
        %v3736 = vmax.f32 %v2378, 0.0
        %v3737 = vmax.f32 %v2547, 0.0
        %v3738 = vmax.f32 %v2716, 0.0
        %v3739 = vmax.f32 %v2885, 0.0
        %v3740 = vmax.f32 %v3054, 0.0
        %v3741 = vmax.f32 %v3223, 0.0
        %v3742 = vmax.f32 %v3392, 0.0
        %v3743 = vmax.f32 %v860, 0.0
        %v3744 = vmax.f32 %v1029, 0.0
        %v3745 = vmax.f32 %v1198, 0.0
        %v3746 = vmax.f32 %v1367, 0.0
        %v3747 = vmax.f32 %v1536, 0.0
        %v3748 = vmax.f32 %v1705, 0.0
        %v3749 = vmax.f32 %v1874, 0.0
        %v3750 = vmax.f32 %v2043, 0.0
        %v3751 = vmax.f32 %v2212, 0.0
        %v3752 = vmax.f32 %v2381, 0.0
        %v3753 = vmax.f32 %v2550, 0.0
        %v3754 = vmax.f32 %v2719, 0.0
        %v3755 = vmax.f32 %v2888, 0.0
        %v3756 = vmax.f32 %v3057, 0.0
        %v3757 = vmax.f32 %v3226, 0.0
        %v3758 = vmax.f32 %v3395, 0.0
        %v3759 = vmax.f32 %v862, 0.0
        %v3760 = vmax.f32 %v1031, 0.0
        %v3761 = vmax.f32 %v1200, 0.0
        %v3762 = vmax.f32 %v1369, 0.0
        %v3763 = vmax.f32 %v1538, 0.0
        %v3764 = vmax.f32 %v1707, 0.0
        %v3765 = vmax.f32 %v1876, 0.0
        %v3766 = vmax.f32 %v2045, 0.0
        %v3767 = vmax.f32 %v2214, 0.0
        %v3768 = vmax.f32 %v2383, 0.0
        %v3769 = vmax.f32 %v2552, 0.0
        %v3770 = vmax.f32 %v2721, 0.0
        %v3771 = vmax.f32 %v2890, 0.0
        %v3772 = vmax.f32 %v3059, 0.0
        %v3773 = vmax.f32 %v3228, 0.0
        %v3774 = vmax.f32 %v3397, 0.0
        %v3775 = vmax.f32 %v865, 0.0
        %v3776 = vmax.f32 %v1034, 0.0
        %v3777 = vmax.f32 %v1203, 0.0
        %v3778 = vmax.f32 %v1372, 0.0
        %v3779 = vmax.f32 %v1541, 0.0
        %v3780 = vmax.f32 %v1710, 0.0
        %v3781 = vmax.f32 %v1879, 0.0
        %v3782 = vmax.f32 %v2048, 0.0
        %v3783 = vmax.f32 %v2217, 0.0
        %v3784 = vmax.f32 %v2386, 0.0
        %v3785 = vmax.f32 %v2555, 0.0
        %v3786 = vmax.f32 %v2724, 0.0
        %v3787 = vmax.f32 %v2893, 0.0
        %v3788 = vmax.f32 %v3062, 0.0
        %v3789 = vmax.f32 %v3231, 0.0
        %v3790 = vmax.f32 %v3400, 0.0
        %v3791 = vmax.f32 %v867, 0.0
        %v3792 = vmax.f32 %v1036, 0.0
        %v3793 = vmax.f32 %v1205, 0.0
        %v3794 = vmax.f32 %v1374, 0.0
        %v3795 = vmax.f32 %v1543, 0.0
        %v3796 = vmax.f32 %v1712, 0.0
        %v3797 = vmax.f32 %v1881, 0.0
        %v3798 = vmax.f32 %v2050, 0.0
        %v3799 = vmax.f32 %v2219, 0.0
        %v3800 = vmax.f32 %v2388, 0.0
        %v3801 = vmax.f32 %v2557, 0.0
        %v3802 = vmax.f32 %v2726, 0.0
        %v3803 = vmax.f32 %v2895, 0.0
        %v3804 = vmax.f32 %v3064, 0.0
        %v3805 = vmax.f32 %v3233, 0.0
        %v3806 = vmax.f32 %v3402, 0.0
        %v3807 = vmax.f32 %v870, 0.0
        %v3808 = vmax.f32 %v1039, 0.0
        %v3809 = vmax.f32 %v1208, 0.0
        %v3810 = vmax.f32 %v1377, 0.0
        %v3811 = vmax.f32 %v1546, 0.0
        %v3812 = vmax.f32 %v1715, 0.0
        %v3813 = vmax.f32 %v1884, 0.0
        %v3814 = vmax.f32 %v2053, 0.0
        %v3815 = vmax.f32 %v2222, 0.0
        %v3816 = vmax.f32 %v2391, 0.0
        %v3817 = vmax.f32 %v2560, 0.0
        %v3818 = vmax.f32 %v2729, 0.0
        %v3819 = vmax.f32 %v2898, 0.0
        %v3820 = vmax.f32 %v3067, 0.0
        %v3821 = vmax.f32 %v3236, 0.0
        %v3822 = vmax.f32 %v3405, 0.0
        %v3823 = vmax.f32 %v872, 0.0
        %v3824 = vmax.f32 %v1041, 0.0
        %v3825 = vmax.f32 %v1210, 0.0
        %v3826 = vmax.f32 %v1379, 0.0
        %v3827 = vmax.f32 %v1548, 0.0
        %v3828 = vmax.f32 %v1717, 0.0
        %v3829 = vmax.f32 %v1886, 0.0
        %v3830 = vmax.f32 %v2055, 0.0
        %v3831 = vmax.f32 %v2224, 0.0
        %v3832 = vmax.f32 %v2393, 0.0
        %v3833 = vmax.f32 %v2562, 0.0
        %v3834 = vmax.f32 %v2731, 0.0
        %v3835 = vmax.f32 %v2900, 0.0
        %v3836 = vmax.f32 %v3069, 0.0
        %v3837 = vmax.f32 %v3238, 0.0
        %v3838 = vmax.f32 %v3407, 0.0
        %v3839 = vmax.f32 %v875, 0.0
        %v3840 = vmax.f32 %v1044, 0.0
        %v3841 = vmax.f32 %v1213, 0.0
        %v3842 = vmax.f32 %v1382, 0.0
        %v3843 = vmax.f32 %v1551, 0.0
        %v3844 = vmax.f32 %v1720, 0.0
        %v3845 = vmax.f32 %v1889, 0.0
        %v3846 = vmax.f32 %v2058, 0.0
        %v3847 = vmax.f32 %v2227, 0.0
        %v3848 = vmax.f32 %v2396, 0.0
        %v3849 = vmax.f32 %v2565, 0.0
        %v3850 = vmax.f32 %v2734, 0.0
        %v3851 = vmax.f32 %v2903, 0.0
        %v3852 = vmax.f32 %v3072, 0.0
        %v3853 = vmax.f32 %v3241, 0.0
        %v3854 = vmax.f32 %v3410, 0.0
        %v3855 = vmax.f32 %v877, 0.0
        %v3856 = vmax.f32 %v1046, 0.0
        %v3857 = vmax.f32 %v1215, 0.0
        %v3858 = vmax.f32 %v1384, 0.0
        %v3859 = vmax.f32 %v1553, 0.0
        %v3860 = vmax.f32 %v1722, 0.0
        %v3861 = vmax.f32 %v1891, 0.0
        %v3862 = vmax.f32 %v2060, 0.0
        %v3863 = vmax.f32 %v2229, 0.0
        %v3864 = vmax.f32 %v2398, 0.0
        %v3865 = vmax.f32 %v2567, 0.0
        %v3866 = vmax.f32 %v2736, 0.0
        %v3867 = vmax.f32 %v2905, 0.0
        %v3868 = vmax.f32 %v3074, 0.0
        %v3869 = vmax.f32 %v3243, 0.0
        %v3870 = vmax.f32 %v3412, 0.0
        %v3871 = vmax.f32 %v880, 0.0
        %v3872 = vmax.f32 %v1049, 0.0
        %v3873 = vmax.f32 %v1218, 0.0
        %v3874 = vmax.f32 %v1387, 0.0
        %v3875 = vmax.f32 %v1556, 0.0
        %v3876 = vmax.f32 %v1725, 0.0
        %v3877 = vmax.f32 %v1894, 0.0
        %v3878 = vmax.f32 %v2063, 0.0
        %v3879 = vmax.f32 %v2232, 0.0
        %v3880 = vmax.f32 %v2401, 0.0
        %v3881 = vmax.f32 %v2570, 0.0
        %v3882 = vmax.f32 %v2739, 0.0
        %v3883 = vmax.f32 %v2908, 0.0
        %v3884 = vmax.f32 %v3077, 0.0
        %v3885 = vmax.f32 %v3246, 0.0
        %v3886 = vmax.f32 %v3415, 0.0
        %v3887 = vmax.f32 %v882, 0.0
        %v3888 = vmax.f32 %v1051, 0.0
        %v3889 = vmax.f32 %v1220, 0.0
        %v3890 = vmax.f32 %v1389, 0.0
        %v3891 = vmax.f32 %v1558, 0.0
        %v3892 = vmax.f32 %v1727, 0.0
        %v3893 = vmax.f32 %v1896, 0.0
        %v3894 = vmax.f32 %v2065, 0.0
        %v3895 = vmax.f32 %v2234, 0.0
        %v3896 = vmax.f32 %v2403, 0.0
        %v3897 = vmax.f32 %v2572, 0.0
        %v3898 = vmax.f32 %v2741, 0.0
        %v3899 = vmax.f32 %v2910, 0.0
        %v3900 = vmax.f32 %v3079, 0.0
        %v3901 = vmax.f32 %v3248, 0.0
        %v3902 = vmax.f32 %v3417, 0.0
        %v3903 = vmax.f32 %v885, 0.0
        %v3904 = vmax.f32 %v1054, 0.0
        %v3905 = vmax.f32 %v1223, 0.0
        %v3906 = vmax.f32 %v1392, 0.0
        %v3907 = vmax.f32 %v1561, 0.0
        %v3908 = vmax.f32 %v1730, 0.0
        %v3909 = vmax.f32 %v1899, 0.0
        %v3910 = vmax.f32 %v2068, 0.0
        %v3911 = vmax.f32 %v2237, 0.0
        %v3912 = vmax.f32 %v2406, 0.0
        %v3913 = vmax.f32 %v2575, 0.0
        %v3914 = vmax.f32 %v2744, 0.0
        %v3915 = vmax.f32 %v2913, 0.0
        %v3916 = vmax.f32 %v3082, 0.0
        %v3917 = vmax.f32 %v3251, 0.0
        %v3918 = vmax.f32 %v3420, 0.0
        %v3919 = vmax.f32 %v887, 0.0
        %v3920 = vmax.f32 %v1056, 0.0
        %v3921 = vmax.f32 %v1225, 0.0
        %v3922 = vmax.f32 %v1394, 0.0
        %v3923 = vmax.f32 %v1563, 0.0
        %v3924 = vmax.f32 %v1732, 0.0
        %v3925 = vmax.f32 %v1901, 0.0
        %v3926 = vmax.f32 %v2070, 0.0
        %v3927 = vmax.f32 %v2239, 0.0
        %v3928 = vmax.f32 %v2408, 0.0
        %v3929 = vmax.f32 %v2577, 0.0
        %v3930 = vmax.f32 %v2746, 0.0
        %v3931 = vmax.f32 %v2915, 0.0
        %v3932 = vmax.f32 %v3084, 0.0
        %v3933 = vmax.f32 %v3253, 0.0
        %v3934 = vmax.f32 %v3422, 0.0
        %v3935 = vmax.f32 %v890, 0.0
        %v3936 = vmax.f32 %v1059, 0.0
        %v3937 = vmax.f32 %v1228, 0.0
        %v3938 = vmax.f32 %v1397, 0.0
        %v3939 = vmax.f32 %v1566, 0.0
        %v3940 = vmax.f32 %v1735, 0.0
        %v3941 = vmax.f32 %v1904, 0.0
        %v3942 = vmax.f32 %v2073, 0.0
        %v3943 = vmax.f32 %v2242, 0.0
        %v3944 = vmax.f32 %v2411, 0.0
        %v3945 = vmax.f32 %v2580, 0.0
        %v3946 = vmax.f32 %v2749, 0.0
        %v3947 = vmax.f32 %v2918, 0.0
        %v3948 = vmax.f32 %v3087, 0.0
        %v3949 = vmax.f32 %v3256, 0.0
        %v3950 = vmax.f32 %v3425, 0.0
        %v3951 = vmax.f32 %v892, 0.0
        %v3952 = vmax.f32 %v1061, 0.0
        %v3953 = vmax.f32 %v1230, 0.0
        %v3954 = vmax.f32 %v1399, 0.0
        %v3955 = vmax.f32 %v1568, 0.0
        %v3956 = vmax.f32 %v1737, 0.0
        %v3957 = vmax.f32 %v1906, 0.0
        %v3958 = vmax.f32 %v2075, 0.0
        %v3959 = vmax.f32 %v2244, 0.0
        %v3960 = vmax.f32 %v2413, 0.0
        %v3961 = vmax.f32 %v2582, 0.0
        %v3962 = vmax.f32 %v2751, 0.0
        %v3963 = vmax.f32 %v2920, 0.0
        %v3964 = vmax.f32 %v3089, 0.0
        %v3965 = vmax.f32 %v3258, 0.0
        %v3966 = vmax.f32 %v3427, 0.0
        %v3967 = vmax.f32 %v895, 0.0
        %v3968 = vmax.f32 %v1064, 0.0
        %v3969 = vmax.f32 %v1233, 0.0
        %v3970 = vmax.f32 %v1402, 0.0
        %v3971 = vmax.f32 %v1571, 0.0
        %v3972 = vmax.f32 %v1740, 0.0
        %v3973 = vmax.f32 %v1909, 0.0
        %v3974 = vmax.f32 %v2078, 0.0
        %v3975 = vmax.f32 %v2247, 0.0
        %v3976 = vmax.f32 %v2416, 0.0
        %v3977 = vmax.f32 %v2585, 0.0
        %v3978 = vmax.f32 %v2754, 0.0
        %v3979 = vmax.f32 %v2923, 0.0
        %v3980 = vmax.f32 %v3092, 0.0
        %v3981 = vmax.f32 %v3261, 0.0
        %v3982 = vmax.f32 %v3430, 0.0
        %v3983 = vmax.f32 %v897, 0.0
        %v3984 = vmax.f32 %v1066, 0.0
        %v3985 = vmax.f32 %v1235, 0.0
        %v3986 = vmax.f32 %v1404, 0.0
        %v3987 = vmax.f32 %v1573, 0.0
        %v3988 = vmax.f32 %v1742, 0.0
        %v3989 = vmax.f32 %v1911, 0.0
        %v3990 = vmax.f32 %v2080, 0.0
        %v3991 = vmax.f32 %v2249, 0.0
        %v3992 = vmax.f32 %v2418, 0.0
        %v3993 = vmax.f32 %v2587, 0.0
        %v3994 = vmax.f32 %v2756, 0.0
        %v3995 = vmax.f32 %v2925, 0.0
        %v3996 = vmax.f32 %v3094, 0.0
        %v3997 = vmax.f32 %v3263, 0.0
        %v3998 = vmax.f32 %v3432, 0.0
        %v3999 = vmax.f32 %v900, 0.0
        %v4000 = vmax.f32 %v1069, 0.0
        %v4001 = vmax.f32 %v1238, 0.0
        %v4002 = vmax.f32 %v1407, 0.0
        %v4003 = vmax.f32 %v1576, 0.0
        %v4004 = vmax.f32 %v1745, 0.0
        %v4005 = vmax.f32 %v1914, 0.0
        %v4006 = vmax.f32 %v2083, 0.0
        %v4007 = vmax.f32 %v2252, 0.0
        %v4008 = vmax.f32 %v2421, 0.0
        %v4009 = vmax.f32 %v2590, 0.0
        %v4010 = vmax.f32 %v2759, 0.0
        %v4011 = vmax.f32 %v2928, 0.0
        %v4012 = vmax.f32 %v3097, 0.0
        %v4013 = vmax.f32 %v3266, 0.0
        %v4014 = vmax.f32 %v3435, 0.0
        %v4015 = vmax.f32 %v902, 0.0
        %v4016 = vmax.f32 %v1071, 0.0
        %v4017 = vmax.f32 %v1240, 0.0
        %v4018 = vmax.f32 %v1409, 0.0
        %v4019 = vmax.f32 %v1578, 0.0
        %v4020 = vmax.f32 %v1747, 0.0
        %v4021 = vmax.f32 %v1916, 0.0
        %v4022 = vmax.f32 %v2085, 0.0
        %v4023 = vmax.f32 %v2254, 0.0
        %v4024 = vmax.f32 %v2423, 0.0
        %v4025 = vmax.f32 %v2592, 0.0
        %v4026 = vmax.f32 %v2761, 0.0
        %v4027 = vmax.f32 %v2930, 0.0
        %v4028 = vmax.f32 %v3099, 0.0
        %v4029 = vmax.f32 %v3268, 0.0
        %v4030 = vmax.f32 %v3437, 0.0
        %v4031 = vmax.f32 %v905, 0.0
        %v4032 = vmax.f32 %v1074, 0.0
        %v4033 = vmax.f32 %v1243, 0.0
        %v4034 = vmax.f32 %v1412, 0.0
        %v4035 = vmax.f32 %v1581, 0.0
        %v4036 = vmax.f32 %v1750, 0.0
        %v4037 = vmax.f32 %v1919, 0.0
        %v4038 = vmax.f32 %v2088, 0.0
        %v4039 = vmax.f32 %v2257, 0.0
        %v4040 = vmax.f32 %v2426, 0.0
        %v4041 = vmax.f32 %v2595, 0.0
        %v4042 = vmax.f32 %v2764, 0.0
        %v4043 = vmax.f32 %v2933, 0.0
        %v4044 = vmax.f32 %v3102, 0.0
        %v4045 = vmax.f32 %v3271, 0.0
        %v4046 = vmax.f32 %v3440, 0.0
        %v4047 = vmax.f32 %v907, 0.0
        %v4048 = vmax.f32 %v1076, 0.0
        %v4049 = vmax.f32 %v1245, 0.0
        %v4050 = vmax.f32 %v1414, 0.0
        %v4051 = vmax.f32 %v1583, 0.0
        %v4052 = vmax.f32 %v1752, 0.0
        %v4053 = vmax.f32 %v1921, 0.0
        %v4054 = vmax.f32 %v2090, 0.0
        %v4055 = vmax.f32 %v2259, 0.0
        %v4056 = vmax.f32 %v2428, 0.0
        %v4057 = vmax.f32 %v2597, 0.0
        %v4058 = vmax.f32 %v2766, 0.0
        %v4059 = vmax.f32 %v2935, 0.0
        %v4060 = vmax.f32 %v3104, 0.0
        %v4061 = vmax.f32 %v3273, 0.0
        %v4062 = vmax.f32 %v3442, 0.0
        %v4063 = vmax.f32 %v910, 0.0
        %v4064 = vmax.f32 %v1079, 0.0
        %v4065 = vmax.f32 %v1248, 0.0
        %v4066 = vmax.f32 %v1417, 0.0
        %v4067 = vmax.f32 %v1586, 0.0
        %v4068 = vmax.f32 %v1755, 0.0
        %v4069 = vmax.f32 %v1924, 0.0
        %v4070 = vmax.f32 %v2093, 0.0
        %v4071 = vmax.f32 %v2262, 0.0
        %v4072 = vmax.f32 %v2431, 0.0
        %v4073 = vmax.f32 %v2600, 0.0
        %v4074 = vmax.f32 %v2769, 0.0
        %v4075 = vmax.f32 %v2938, 0.0
        %v4076 = vmax.f32 %v3107, 0.0
        %v4077 = vmax.f32 %v3276, 0.0
        %v4078 = vmax.f32 %v3445, 0.0
        %v4079 = vmax.f32 %v912, 0.0
        %v4080 = vmax.f32 %v1081, 0.0
        %v4081 = vmax.f32 %v1250, 0.0
        %v4082 = vmax.f32 %v1419, 0.0
        %v4083 = vmax.f32 %v1588, 0.0
        %v4084 = vmax.f32 %v1757, 0.0
        %v4085 = vmax.f32 %v1926, 0.0
        %v4086 = vmax.f32 %v2095, 0.0
        %v4087 = vmax.f32 %v2264, 0.0
        %v4088 = vmax.f32 %v2433, 0.0
        %v4089 = vmax.f32 %v2602, 0.0
        %v4090 = vmax.f32 %v2771, 0.0
        %v4091 = vmax.f32 %v2940, 0.0
        %v4092 = vmax.f32 %v3109, 0.0
        %v4093 = vmax.f32 %v3278, 0.0
        %v4094 = vmax.f32 %v3447, 0.0
        %v4095 = vmax.f32 %v915, 0.0
        %v4096 = vmax.f32 %v1084, 0.0
        %v4097 = vmax.f32 %v1253, 0.0
        %v4098 = vmax.f32 %v1422, 0.0
        %v4099 = vmax.f32 %v1591, 0.0
        %v4100 = vmax.f32 %v1760, 0.0
        %v4101 = vmax.f32 %v1929, 0.0
        %v4102 = vmax.f32 %v2098, 0.0
        %v4103 = vmax.f32 %v2267, 0.0
        %v4104 = vmax.f32 %v2436, 0.0
        %v4105 = vmax.f32 %v2605, 0.0
        %v4106 = vmax.f32 %v2774, 0.0
        %v4107 = vmax.f32 %v2943, 0.0
        %v4108 = vmax.f32 %v3112, 0.0
        %v4109 = vmax.f32 %v3281, 0.0
        %v4110 = vmax.f32 %v3450, 0.0
        %v4111 = vmax.f32 %v917, 0.0
        %v4112 = vmax.f32 %v1086, 0.0
        %v4113 = vmax.f32 %v1255, 0.0
        %v4114 = vmax.f32 %v1424, 0.0
        %v4115 = vmax.f32 %v1593, 0.0
        %v4116 = vmax.f32 %v1762, 0.0
        %v4117 = vmax.f32 %v1931, 0.0
        %v4118 = vmax.f32 %v2100, 0.0
        %v4119 = vmax.f32 %v2269, 0.0
        %v4120 = vmax.f32 %v2438, 0.0
        %v4121 = vmax.f32 %v2607, 0.0
        %v4122 = vmax.f32 %v2776, 0.0
        %v4123 = vmax.f32 %v2945, 0.0
        %v4124 = vmax.f32 %v3114, 0.0
        %v4125 = vmax.f32 %v3283, 0.0
        %v4126 = vmax.f32 %v3452, 0.0
        %v4127 = vmax.f32 %v920, 0.0
        %v4128 = vmax.f32 %v1089, 0.0
        %v4129 = vmax.f32 %v1258, 0.0
        %v4130 = vmax.f32 %v1427, 0.0
        %v4131 = vmax.f32 %v1596, 0.0
        %v4132 = vmax.f32 %v1765, 0.0
        %v4133 = vmax.f32 %v1934, 0.0
        %v4134 = vmax.f32 %v2103, 0.0
        %v4135 = vmax.f32 %v2272, 0.0
        %v4136 = vmax.f32 %v2441, 0.0
        %v4137 = vmax.f32 %v2610, 0.0
        %v4138 = vmax.f32 %v2779, 0.0
        %v4139 = vmax.f32 %v2948, 0.0
        %v4140 = vmax.f32 %v3117, 0.0
        %v4141 = vmax.f32 %v3286, 0.0
        %v4142 = vmax.f32 %v3455, 0.0
        %v4143 = vmax.f32 %v922, 0.0
        %v4144 = vmax.f32 %v1091, 0.0
        %v4145 = vmax.f32 %v1260, 0.0
        %v4146 = vmax.f32 %v1429, 0.0
        %v4147 = vmax.f32 %v1598, 0.0
        %v4148 = vmax.f32 %v1767, 0.0
        %v4149 = vmax.f32 %v1936, 0.0
        %v4150 = vmax.f32 %v2105, 0.0
        %v4151 = vmax.f32 %v2274, 0.0
        %v4152 = vmax.f32 %v2443, 0.0
        %v4153 = vmax.f32 %v2612, 0.0
        %v4154 = vmax.f32 %v2781, 0.0
        %v4155 = vmax.f32 %v2950, 0.0
        %v4156 = vmax.f32 %v3119, 0.0
        %v4157 = vmax.f32 %v3288, 0.0
        %v4158 = vmax.f32 %v3457, 0.0
        %v4159 = vmax.f32 %v925, 0.0
        %v4160 = vmax.f32 %v1094, 0.0
        %v4161 = vmax.f32 %v1263, 0.0
        %v4162 = vmax.f32 %v1432, 0.0
        %v4163 = vmax.f32 %v1601, 0.0
        %v4164 = vmax.f32 %v1770, 0.0
        %v4165 = vmax.f32 %v1939, 0.0
        %v4166 = vmax.f32 %v2108, 0.0
        %v4167 = vmax.f32 %v2277, 0.0
        %v4168 = vmax.f32 %v2446, 0.0
        %v4169 = vmax.f32 %v2615, 0.0
        %v4170 = vmax.f32 %v2784, 0.0
        %v4171 = vmax.f32 %v2953, 0.0
        %v4172 = vmax.f32 %v3122, 0.0
        %v4173 = vmax.f32 %v3291, 0.0
        %v4174 = vmax.f32 %v3460, 0.0
        %v4175 = vmax.f32 %v927, 0.0
        %v4176 = vmax.f32 %v1096, 0.0
        %v4177 = vmax.f32 %v1265, 0.0
        %v4178 = vmax.f32 %v1434, 0.0
        %v4179 = vmax.f32 %v1603, 0.0
        %v4180 = vmax.f32 %v1772, 0.0
        %v4181 = vmax.f32 %v1941, 0.0
        %v4182 = vmax.f32 %v2110, 0.0
        %v4183 = vmax.f32 %v2279, 0.0
        %v4184 = vmax.f32 %v2448, 0.0
        %v4185 = vmax.f32 %v2617, 0.0
        %v4186 = vmax.f32 %v2786, 0.0
        %v4187 = vmax.f32 %v2955, 0.0
        %v4188 = vmax.f32 %v3124, 0.0
        %v4189 = vmax.f32 %v3293, 0.0
        %v4190 = vmax.f32 %v3462, 0.0
        %v4191 = vmax.f32 %v930, 0.0
        %v4192 = vmax.f32 %v1099, 0.0
        %v4193 = vmax.f32 %v1268, 0.0
        %v4194 = vmax.f32 %v1437, 0.0
        %v4195 = vmax.f32 %v1606, 0.0
        %v4196 = vmax.f32 %v1775, 0.0
        %v4197 = vmax.f32 %v1944, 0.0
        %v4198 = vmax.f32 %v2113, 0.0
        %v4199 = vmax.f32 %v2282, 0.0
        %v4200 = vmax.f32 %v2451, 0.0
        %v4201 = vmax.f32 %v2620, 0.0
        %v4202 = vmax.f32 %v2789, 0.0
        %v4203 = vmax.f32 %v2958, 0.0
        %v4204 = vmax.f32 %v3127, 0.0
        %v4205 = vmax.f32 %v3296, 0.0
        %v4206 = vmax.f32 %v3465, 0.0
        %v4207 = vmax.f32 %v932, 0.0
        %v4208 = vmax.f32 %v1101, 0.0
        %v4209 = vmax.f32 %v1270, 0.0
        %v4210 = vmax.f32 %v1439, 0.0
        %v4211 = vmax.f32 %v1608, 0.0
        %v4212 = vmax.f32 %v1777, 0.0
        %v4213 = vmax.f32 %v1946, 0.0
        %v4214 = vmax.f32 %v2115, 0.0
        %v4215 = vmax.f32 %v2284, 0.0
        %v4216 = vmax.f32 %v2453, 0.0
        %v4217 = vmax.f32 %v2622, 0.0
        %v4218 = vmax.f32 %v2791, 0.0
        %v4219 = vmax.f32 %v2960, 0.0
        %v4220 = vmax.f32 %v3129, 0.0
        %v4221 = vmax.f32 %v3298, 0.0
        %v4222 = vmax.f32 %v3467, 0.0
        %v4223 = vmax.f32 %v935, 0.0
        %v4224 = vmax.f32 %v1104, 0.0
        %v4225 = vmax.f32 %v1273, 0.0
        %v4226 = vmax.f32 %v1442, 0.0
        %v4227 = vmax.f32 %v1611, 0.0
        %v4228 = vmax.f32 %v1780, 0.0
        %v4229 = vmax.f32 %v1949, 0.0
        %v4230 = vmax.f32 %v2118, 0.0
        %v4231 = vmax.f32 %v2287, 0.0
        %v4232 = vmax.f32 %v2456, 0.0
        %v4233 = vmax.f32 %v2625, 0.0
        %v4234 = vmax.f32 %v2794, 0.0
        %v4235 = vmax.f32 %v2963, 0.0
        %v4236 = vmax.f32 %v3132, 0.0
        %v4237 = vmax.f32 %v3301, 0.0
        %v4238 = vmax.f32 %v3470, 0.0
        %v4239 = vmax.f32 %v937, 0.0
        %v4240 = vmax.f32 %v1106, 0.0
        %v4241 = vmax.f32 %v1275, 0.0
        %v4242 = vmax.f32 %v1444, 0.0
        %v4243 = vmax.f32 %v1613, 0.0
        %v4244 = vmax.f32 %v1782, 0.0
        %v4245 = vmax.f32 %v1951, 0.0
        %v4246 = vmax.f32 %v2120, 0.0
        %v4247 = vmax.f32 %v2289, 0.0
        %v4248 = vmax.f32 %v2458, 0.0
        %v4249 = vmax.f32 %v2627, 0.0
        %v4250 = vmax.f32 %v2796, 0.0
        %v4251 = vmax.f32 %v2965, 0.0
        %v4252 = vmax.f32 %v3134, 0.0
        %v4253 = vmax.f32 %v3303, 0.0
        %v4254 = vmax.f32 %v3472, 0.0
        %v4255 = vmax.f32 %v940, 0.0
        %v4256 = vmax.f32 %v1109, 0.0
        %v4257 = vmax.f32 %v1278, 0.0
        %v4258 = vmax.f32 %v1447, 0.0
        %v4259 = vmax.f32 %v1616, 0.0
        %v4260 = vmax.f32 %v1785, 0.0
        %v4261 = vmax.f32 %v1954, 0.0
        %v4262 = vmax.f32 %v2123, 0.0
        %v4263 = vmax.f32 %v2292, 0.0
        %v4264 = vmax.f32 %v2461, 0.0
        %v4265 = vmax.f32 %v2630, 0.0
        %v4266 = vmax.f32 %v2799, 0.0
        %v4267 = vmax.f32 %v2968, 0.0
        %v4268 = vmax.f32 %v3137, 0.0
        %v4269 = vmax.f32 %v3306, 0.0
        %v4270 = vmax.f32 %v3475, 0.0
        %v4271 = vmax.f32 %v942, 0.0
        %v4272 = vmax.f32 %v1111, 0.0
        %v4273 = vmax.f32 %v1280, 0.0
        %v4274 = vmax.f32 %v1449, 0.0
        %v4275 = vmax.f32 %v1618, 0.0
        %v4276 = vmax.f32 %v1787, 0.0
        %v4277 = vmax.f32 %v1956, 0.0
        %v4278 = vmax.f32 %v2125, 0.0
        %v4279 = vmax.f32 %v2294, 0.0
        %v4280 = vmax.f32 %v2463, 0.0
        %v4281 = vmax.f32 %v2632, 0.0
        %v4282 = vmax.f32 %v2801, 0.0
        %v4283 = vmax.f32 %v2970, 0.0
        %v4284 = vmax.f32 %v3139, 0.0
        %v4285 = vmax.f32 %v3308, 0.0
        %v4286 = vmax.f32 %v3477, 0.0
        %v4287 = vmax.f32 %v945, 0.0
        %v4288 = vmax.f32 %v1114, 0.0
        %v4289 = vmax.f32 %v1283, 0.0
        %v4290 = vmax.f32 %v1452, 0.0
        %v4291 = vmax.f32 %v1621, 0.0
        %v4292 = vmax.f32 %v1790, 0.0
        %v4293 = vmax.f32 %v1959, 0.0
        %v4294 = vmax.f32 %v2128, 0.0
        %v4295 = vmax.f32 %v2297, 0.0
        %v4296 = vmax.f32 %v2466, 0.0
        %v4297 = vmax.f32 %v2635, 0.0
        %v4298 = vmax.f32 %v2804, 0.0
        %v4299 = vmax.f32 %v2973, 0.0
        %v4300 = vmax.f32 %v3142, 0.0
        %v4301 = vmax.f32 %v3311, 0.0
        %v4302 = vmax.f32 %v3480, 0.0
        %v4303 = vmax.f32 %v947, 0.0
        %v4304 = vmax.f32 %v1116, 0.0
        %v4305 = vmax.f32 %v1285, 0.0
        %v4306 = vmax.f32 %v1454, 0.0
        %v4307 = vmax.f32 %v1623, 0.0
        %v4308 = vmax.f32 %v1792, 0.0
        %v4309 = vmax.f32 %v1961, 0.0
        %v4310 = vmax.f32 %v2130, 0.0
        %v4311 = vmax.f32 %v2299, 0.0
        %v4312 = vmax.f32 %v2468, 0.0
        %v4313 = vmax.f32 %v2637, 0.0
        %v4314 = vmax.f32 %v2806, 0.0
        %v4315 = vmax.f32 %v2975, 0.0
        %v4316 = vmax.f32 %v3144, 0.0
        %v4317 = vmax.f32 %v3313, 0.0
        %v4318 = vmax.f32 %v3482, 0.0
        %v4319 = vmax.f32 %v950, 0.0
        %v4320 = vmax.f32 %v1119, 0.0
        %v4321 = vmax.f32 %v1288, 0.0
        %v4322 = vmax.f32 %v1457, 0.0
        %v4323 = vmax.f32 %v1626, 0.0
        %v4324 = vmax.f32 %v1795, 0.0
        %v4325 = vmax.f32 %v1964, 0.0
        %v4326 = vmax.f32 %v2133, 0.0
        %v4327 = vmax.f32 %v2302, 0.0
        %v4328 = vmax.f32 %v2471, 0.0
        %v4329 = vmax.f32 %v2640, 0.0
        %v4330 = vmax.f32 %v2809, 0.0
        %v4331 = vmax.f32 %v2978, 0.0
        %v4332 = vmax.f32 %v3147, 0.0
        %v4333 = vmax.f32 %v3316, 0.0
        %v4334 = vmax.f32 %v3485, 0.0
        %v4335 = vmax.f32 %v952, 0.0
        %v4336 = vmax.f32 %v1121, 0.0
        %v4337 = vmax.f32 %v1290, 0.0
        %v4338 = vmax.f32 %v1459, 0.0
        %v4339 = vmax.f32 %v1628, 0.0
        %v4340 = vmax.f32 %v1797, 0.0
        %v4341 = vmax.f32 %v1966, 0.0
        %v4342 = vmax.f32 %v2135, 0.0
        %v4343 = vmax.f32 %v2304, 0.0
        %v4344 = vmax.f32 %v2473, 0.0
        %v4345 = vmax.f32 %v2642, 0.0
        %v4346 = vmax.f32 %v2811, 0.0
        %v4347 = vmax.f32 %v2980, 0.0
        %v4348 = vmax.f32 %v3149, 0.0
        %v4349 = vmax.f32 %v3318, 0.0
        %v4350 = vmax.f32 %v3487, 0.0
        %v4351 = vmax.f32 %v955, 0.0
        %v4352 = vmax.f32 %v1124, 0.0
        %v4353 = vmax.f32 %v1293, 0.0
        %v4354 = vmax.f32 %v1462, 0.0
        %v4355 = vmax.f32 %v1631, 0.0
        %v4356 = vmax.f32 %v1800, 0.0
        %v4357 = vmax.f32 %v1969, 0.0
        %v4358 = vmax.f32 %v2138, 0.0
        %v4359 = vmax.f32 %v2307, 0.0
        %v4360 = vmax.f32 %v2476, 0.0
        %v4361 = vmax.f32 %v2645, 0.0
        %v4362 = vmax.f32 %v2814, 0.0
        %v4363 = vmax.f32 %v2983, 0.0
        %v4364 = vmax.f32 %v3152, 0.0
        %v4365 = vmax.f32 %v3321, 0.0
        %v4366 = vmax.f32 %v3490, 0.0
        %v4367 = vmax.f32 %v957, 0.0
        %v4368 = vmax.f32 %v1126, 0.0
        %v4369 = vmax.f32 %v1295, 0.0
        %v4370 = vmax.f32 %v1464, 0.0
        %v4371 = vmax.f32 %v1633, 0.0
        %v4372 = vmax.f32 %v1802, 0.0
        %v4373 = vmax.f32 %v1971, 0.0
        %v4374 = vmax.f32 %v2140, 0.0
        %v4375 = vmax.f32 %v2309, 0.0
        %v4376 = vmax.f32 %v2478, 0.0
        %v4377 = vmax.f32 %v2647, 0.0
        %v4378 = vmax.f32 %v2816, 0.0
        %v4379 = vmax.f32 %v2985, 0.0
        %v4380 = vmax.f32 %v3154, 0.0
        %v4381 = vmax.f32 %v3323, 0.0
        %v4382 = vmax.f32 %v3492, 0.0
        %v4383 = vmax.f32 %v960, 0.0
        %v4384 = vmax.f32 %v1129, 0.0
        %v4385 = vmax.f32 %v1298, 0.0
        %v4386 = vmax.f32 %v1467, 0.0
        %v4387 = vmax.f32 %v1636, 0.0
        %v4388 = vmax.f32 %v1805, 0.0
        %v4389 = vmax.f32 %v1974, 0.0
        %v4390 = vmax.f32 %v2143, 0.0
        %v4391 = vmax.f32 %v2312, 0.0
        %v4392 = vmax.f32 %v2481, 0.0
        %v4393 = vmax.f32 %v2650, 0.0
        %v4394 = vmax.f32 %v2819, 0.0
        %v4395 = vmax.f32 %v2988, 0.0
        %v4396 = vmax.f32 %v3157, 0.0
        %v4397 = vmax.f32 %v3326, 0.0
        %v4398 = vmax.f32 %v3495, 0.0
        %v4399 = vmax.f32 %v962, 0.0
        %v4400 = vmax.f32 %v1131, 0.0
        %v4401 = vmax.f32 %v1300, 0.0
        %v4402 = vmax.f32 %v1469, 0.0
        %v4403 = vmax.f32 %v1638, 0.0
        %v4404 = vmax.f32 %v1807, 0.0
        %v4405 = vmax.f32 %v1976, 0.0
        %v4406 = vmax.f32 %v2145, 0.0
        %v4407 = vmax.f32 %v2314, 0.0
        %v4408 = vmax.f32 %v2483, 0.0
        %v4409 = vmax.f32 %v2652, 0.0
        %v4410 = vmax.f32 %v2821, 0.0
        %v4411 = vmax.f32 %v2990, 0.0
        %v4412 = vmax.f32 %v3159, 0.0
        %v4413 = vmax.f32 %v3328, 0.0
        %v4414 = vmax.f32 %v3497, 0.0
        %v4415 = vmax.f32 %v965, 0.0
        %v4416 = vmax.f32 %v1134, 0.0
        %v4417 = vmax.f32 %v1303, 0.0
        %v4418 = vmax.f32 %v1472, 0.0
        %v4419 = vmax.f32 %v1641, 0.0
        %v4420 = vmax.f32 %v1810, 0.0
        %v4421 = vmax.f32 %v1979, 0.0
        %v4422 = vmax.f32 %v2148, 0.0
        %v4423 = vmax.f32 %v2317, 0.0
        %v4424 = vmax.f32 %v2486, 0.0
        %v4425 = vmax.f32 %v2655, 0.0
        %v4426 = vmax.f32 %v2824, 0.0
        %v4427 = vmax.f32 %v2993, 0.0
        %v4428 = vmax.f32 %v3162, 0.0
        %v4429 = vmax.f32 %v3331, 0.0
        %v4430 = vmax.f32 %v3500, 0.0
        %v4431 = vmax.f32 %v967, 0.0
        %v4432 = vmax.f32 %v1136, 0.0
        %v4433 = vmax.f32 %v1305, 0.0
        %v4434 = vmax.f32 %v1474, 0.0
        %v4435 = vmax.f32 %v1643, 0.0
        %v4436 = vmax.f32 %v1812, 0.0
        %v4437 = vmax.f32 %v1981, 0.0
        %v4438 = vmax.f32 %v2150, 0.0
        %v4439 = vmax.f32 %v2319, 0.0
        %v4440 = vmax.f32 %v2488, 0.0
        %v4441 = vmax.f32 %v2657, 0.0
        %v4442 = vmax.f32 %v2826, 0.0
        %v4443 = vmax.f32 %v2995, 0.0
        %v4444 = vmax.f32 %v3164, 0.0
        %v4445 = vmax.f32 %v3333, 0.0
        %v4446 = vmax.f32 %v3502, 0.0
        %v4447 = vmax.f32 %v970, 0.0
        %v4448 = vmax.f32 %v1139, 0.0
        %v4449 = vmax.f32 %v1308, 0.0
        %v4450 = vmax.f32 %v1477, 0.0
        %v4451 = vmax.f32 %v1646, 0.0
        %v4452 = vmax.f32 %v1815, 0.0
        %v4453 = vmax.f32 %v1984, 0.0
        %v4454 = vmax.f32 %v2153, 0.0
        %v4455 = vmax.f32 %v2322, 0.0
        %v4456 = vmax.f32 %v2491, 0.0
        %v4457 = vmax.f32 %v2660, 0.0
        %v4458 = vmax.f32 %v2829, 0.0
        %v4459 = vmax.f32 %v2998, 0.0
        %v4460 = vmax.f32 %v3167, 0.0
        %v4461 = vmax.f32 %v3336, 0.0
        %v4462 = vmax.f32 %v3505, 0.0
        %v4463 = vmax.f32 %v972, 0.0
        %v4464 = vmax.f32 %v1141, 0.0
        %v4465 = vmax.f32 %v1310, 0.0
        %v4466 = vmax.f32 %v1479, 0.0
        %v4467 = vmax.f32 %v1648, 0.0
        %v4468 = vmax.f32 %v1817, 0.0
        %v4469 = vmax.f32 %v1986, 0.0
        %v4470 = vmax.f32 %v2155, 0.0
        %v4471 = vmax.f32 %v2324, 0.0
        %v4472 = vmax.f32 %v2493, 0.0
        %v4473 = vmax.f32 %v2662, 0.0
        %v4474 = vmax.f32 %v2831, 0.0
        %v4475 = vmax.f32 %v3000, 0.0
        %v4476 = vmax.f32 %v3169, 0.0
        %v4477 = vmax.f32 %v3338, 0.0
        %v4478 = vmax.f32 %v3507, 0.0
        %v4479 = vmax.f32 %v975, 0.0
        %v4480 = vmax.f32 %v1144, 0.0
        %v4481 = vmax.f32 %v1313, 0.0
        %v4482 = vmax.f32 %v1482, 0.0
        %v4483 = vmax.f32 %v1651, 0.0
        %v4484 = vmax.f32 %v1820, 0.0
        %v4485 = vmax.f32 %v1989, 0.0
        %v4486 = vmax.f32 %v2158, 0.0
        %v4487 = vmax.f32 %v2327, 0.0
        %v4488 = vmax.f32 %v2496, 0.0
        %v4489 = vmax.f32 %v2665, 0.0
        %v4490 = vmax.f32 %v2834, 0.0
        %v4491 = vmax.f32 %v3003, 0.0
        %v4492 = vmax.f32 %v3172, 0.0
        %v4493 = vmax.f32 %v3341, 0.0
        %v4494 = vmax.f32 %v3510, 0.0
        %v4495 = vmax.f32 %v977, 0.0
        %v4496 = vmax.f32 %v1146, 0.0
        %v4497 = vmax.f32 %v1315, 0.0
        %v4498 = vmax.f32 %v1484, 0.0
        %v4499 = vmax.f32 %v1653, 0.0
        %v4500 = vmax.f32 %v1822, 0.0
        %v4501 = vmax.f32 %v1991, 0.0
        %v4502 = vmax.f32 %v2160, 0.0
        %v4503 = vmax.f32 %v2329, 0.0
        %v4504 = vmax.f32 %v2498, 0.0
        %v4505 = vmax.f32 %v2667, 0.0
        %v4506 = vmax.f32 %v2836, 0.0
        %v4507 = vmax.f32 %v3005, 0.0
        %v4508 = vmax.f32 %v3174, 0.0
        %v4509 = vmax.f32 %v3343, 0.0
        %v4510 = vmax.f32 %v3512, 0.0
        %v4511 = vmax.f32 %v980, 0.0
        %v4512 = vmax.f32 %v1149, 0.0
        %v4513 = vmax.f32 %v1318, 0.0
        %v4514 = vmax.f32 %v1487, 0.0
        %v4515 = vmax.f32 %v1656, 0.0
        %v4516 = vmax.f32 %v1825, 0.0
        %v4517 = vmax.f32 %v1994, 0.0
        %v4518 = vmax.f32 %v2163, 0.0
        %v4519 = vmax.f32 %v2332, 0.0
        %v4520 = vmax.f32 %v2501, 0.0
        %v4521 = vmax.f32 %v2670, 0.0
        %v4522 = vmax.f32 %v2839, 0.0
        %v4523 = vmax.f32 %v3008, 0.0
        %v4524 = vmax.f32 %v3177, 0.0
        %v4525 = vmax.f32 %v3346, 0.0
        %v4526 = vmax.f32 %v3515, 0.0
        %v4527 = vmax.f32 %v982, 0.0
        %v4528 = vmax.f32 %v1151, 0.0
        %v4529 = vmax.f32 %v1320, 0.0
        %v4530 = vmax.f32 %v1489, 0.0
        %v4531 = vmax.f32 %v1658, 0.0
        %v4532 = vmax.f32 %v1827, 0.0
        %v4533 = vmax.f32 %v1996, 0.0
        %v4534 = vmax.f32 %v2165, 0.0
        %v4535 = vmax.f32 %v2334, 0.0
        %v4536 = vmax.f32 %v2503, 0.0
        %v4537 = vmax.f32 %v2672, 0.0
        %v4538 = vmax.f32 %v2841, 0.0
        %v4539 = vmax.f32 %v3010, 0.0
        %v4540 = vmax.f32 %v3179, 0.0
        %v4541 = vmax.f32 %v3348, 0.0
        %v4542 = vmax.f32 %v3517, 0.0
        %v4543 = vld [vmem:[#allocation2] sm:$0xff]
        %v4544 = vld [vmem:[#allocation2 + $0x8] sm:$0xff]
        %v4545 = vld [vmem:[#allocation2 + $0x10] sm:$0xff]
        %v4546 = vld [vmem:[#allocation2 + $0x18] sm:$0xff]
        %v4547 = vld [vmem:[#allocation2 + $0x20] sm:$0xff]
        %v4548 = vld [vmem:[#allocation2 + $0x28] sm:$0xff]
        %v4549 = vld [vmem:[#allocation2 + $0x30] sm:$0xff]
        %v4550 = vld [vmem:[#allocation2 + $0x38] sm:$0xff]
        %v4551 = vld [vmem:[#allocation2 + $0x40] sm:$0xff]
        %v4552 = vld [vmem:[#allocation2 + $0x48] sm:$0xff]
        %v4553 = vld [vmem:[#allocation2 + $0x50] sm:$0xff]
        %v4554 = vld [vmem:[#allocation2 + $0x58] sm:$0xff]
        %v4555 = vld [vmem:[#allocation2 + $0x60] sm:$0xff]
        %v4556 = vld [vmem:[#allocation2 + $0x68] sm:$0xff]
        %v4557 = vld [vmem:[#allocation2 + $0x70] sm:$0xff]
        %v4558 = vld [vmem:[#allocation2 + $0x78] sm:$0xff]
        %v4559 = vld [vmem:[%s3] sm:$0xff]
        %v4560 = vld [vmem:[%s3 + $0x8] sm:$0xff]
        %v4561 = vld [vmem:[%s3 + $0x10] sm:$0xff]
        %v4562 = vld [vmem:[%s3 + $0x18] sm:$0xff]
        %4563 = vmatpush.msra.mxu0 %v3759
        %4564 = vmatpush.msra.mxu0 %v3743
        %4565 = vmatpush.msra.mxu0 %v3727
        %4566 = vmatpush.msra.mxu0 %v3711
        %4567 = vmatpush.msra.mxu0 %v3695
        %4568 = vmatpush.msra.mxu0 %v3679
        %4569 = vmatpush.msra.mxu0 %v3663
        %4570 = vmatpush.msra.mxu0 %v3647
        %4571 = vmatpush.msra.mxu0 %v3631
        %4572 = vmatpush.msra.mxu0 %v3615
        %4573 = vmatpush.msra.mxu0 %v3599
        %4574 = vmatpush.msra.mxu0 %v3583
        %4575 = vmatpush.msra.mxu0 %v3567
        %4576 = vmatpush.msra.mxu0 %v3551
        %4577 = vmatpush.msra.mxu0 %v3535
        %4578 = vmatpush.msra.mxu0 %v3519
        %4579 = vmatmul.f32.gmra.mxu0 %v4559
        %v4580 = vpop.f32.mrf.mxu0
        %v4581 = vadd.f32 0.0, %v4580
        %4582 = vdwg.mxu0
        %4583 = vmatpush.msra.mxu0 %v4015
        %4584 = vmatpush.msra.mxu0 %v3999
        %4585 = vmatpush.msra.mxu0 %v3983
        %4586 = vmatpush.msra.mxu0 %v3967
        %4587 = vmatpush.msra.mxu0 %v3951
        %4588 = vmatpush.msra.mxu0 %v3935
        %4589 = vmatpush.msra.mxu0 %v3919
        %4590 = vmatpush.msra.mxu0 %v3903
        %4591 = vmatpush.msra.mxu0 %v3887
        %4592 = vmatpush.msra.mxu0 %v3871
        %4593 = vmatpush.msra.mxu0 %v3855
        %4594 = vmatpush.msra.mxu0 %v3839
        %4595 = vmatpush.msra.mxu0 %v3823
        %4596 = vmatpush.msra.mxu0 %v3807
        %4597 = vmatpush.msra.mxu0 %v3791
        %4598 = vmatpush.msra.mxu0 %v3775
        %4599 = vmatmul.f32.gmra.mxu0 %v4560
        %v4600 = vpop.f32.mrf.mxu0
        %v4601 = vadd.f32 %v4581, %v4600
        %4602 = vdwg.mxu0
        %4603 = vmatpush.msra.mxu0 %v4271
        %4604 = vmatpush.msra.mxu0 %v4255
        %4605 = vmatpush.msra.mxu0 %v4239
        %4606 = vmatpush.msra.mxu0 %v4223
        %4607 = vmatpush.msra.mxu0 %v4207
        %4608 = vmatpush.msra.mxu0 %v4191
        %4609 = vmatpush.msra.mxu0 %v4175
        %4610 = vmatpush.msra.mxu0 %v4159
        %4611 = vmatpush.msra.mxu0 %v4143
        %4612 = vmatpush.msra.mxu0 %v4127
        %4613 = vmatpush.msra.mxu0 %v4111
        %4614 = vmatpush.msra.mxu0 %v4095
        %4615 = vmatpush.msra.mxu0 %v4079
        %4616 = vmatpush.msra.mxu0 %v4063
        %4617 = vmatpush.msra.mxu0 %v4047
        %4618 = vmatpush.msra.mxu0 %v4031
        %4619 = vmatmul.f32.gmra.mxu0 %v4561
        %v4620 = vpop.f32.mrf.mxu0
        %v4621 = vadd.f32 %v4601, %v4620
        %4622 = vdwg.mxu0
        %4623 = vmatpush.msra.mxu0 %v4527
        %4624 = vmatpush.msra.mxu0 %v4511
        %4625 = vmatpush.msra.mxu0 %v4495
        %4626 = vmatpush.msra.mxu0 %v4479
        %4627 = vmatpush.msra.mxu0 %v4463
        %4628 = vmatpush.msra.mxu0 %v4447
        %4629 = vmatpush.msra.mxu0 %v4431
        %4630 = vmatpush.msra.mxu0 %v4415
        %4631 = vmatpush.msra.mxu0 %v4399
        %4632 = vmatpush.msra.mxu0 %v4383
        %4633 = vmatpush.msra.mxu0 %v4367
        %4634 = vmatpush.msra.mxu0 %v4351
        %4635 = vmatpush.msra.mxu0 %v4335
        %4636 = vmatpush.msra.mxu0 %v4319
        %4637 = vmatpush.msra.mxu0 %v4303
        %4638 = vmatpush.msra.mxu0 %v4287
        %4639 = vmatmul.f32.gmra.mxu0 %v4562
        %v4640 = vpop.f32.mrf.mxu0
        %v4641 = vadd.f32 %v4621, %v4640
        %4642 = vdwg.mxu0
        %4643 = vmatpush.msra.mxu0 %v3760
        %4644 = vmatpush.msra.mxu0 %v3744
        %4645 = vmatpush.msra.mxu0 %v3728
        %4646 = vmatpush.msra.mxu0 %v3712
        %4647 = vmatpush.msra.mxu0 %v3696
        %4648 = vmatpush.msra.mxu0 %v3680
        %4649 = vmatpush.msra.mxu0 %v3664
        %4650 = vmatpush.msra.mxu0 %v3648
        %4651 = vmatpush.msra.mxu0 %v3632
        %4652 = vmatpush.msra.mxu0 %v3616
        %4653 = vmatpush.msra.mxu0 %v3600
        %4654 = vmatpush.msra.mxu0 %v3584
        %4655 = vmatpush.msra.mxu0 %v3568
        %4656 = vmatpush.msra.mxu0 %v3552
        %4657 = vmatpush.msra.mxu0 %v3536
        %4658 = vmatpush.msra.mxu0 %v3520
        %4659 = vmatmul.f32.gmra.mxu0 %v4559
        %v4660 = vpop.f32.mrf.mxu0
        %v4661 = vadd.f32 0.0, %v4660
        %4662 = vdwg.mxu0
        %4663 = vmatpush.msra.mxu0 %v4016
        %4664 = vmatpush.msra.mxu0 %v4000
        %4665 = vmatpush.msra.mxu0 %v3984
        %4666 = vmatpush.msra.mxu0 %v3968
        %4667 = vmatpush.msra.mxu0 %v3952
        %4668 = vmatpush.msra.mxu0 %v3936
        %4669 = vmatpush.msra.mxu0 %v3920
        %4670 = vmatpush.msra.mxu0 %v3904
        %4671 = vmatpush.msra.mxu0 %v3888
        %4672 = vmatpush.msra.mxu0 %v3872
        %4673 = vmatpush.msra.mxu0 %v3856
        %4674 = vmatpush.msra.mxu0 %v3840
        %4675 = vmatpush.msra.mxu0 %v3824
        %4676 = vmatpush.msra.mxu0 %v3808
        %4677 = vmatpush.msra.mxu0 %v3792
        %4678 = vmatpush.msra.mxu0 %v3776
        %4679 = vmatmul.f32.gmra.mxu0 %v4560
        %v4680 = vpop.f32.mrf.mxu0
        %v4681 = vadd.f32 %v4661, %v4680
        %4682 = vdwg.mxu0
        %4683 = vmatpush.msra.mxu0 %v4272
        %4684 = vmatpush.msra.mxu0 %v4256
        %4685 = vmatpush.msra.mxu0 %v4240
        %4686 = vmatpush.msra.mxu0 %v4224
        %4687 = vmatpush.msra.mxu0 %v4208
        %4688 = vmatpush.msra.mxu0 %v4192
        %4689 = vmatpush.msra.mxu0 %v4176
        %4690 = vmatpush.msra.mxu0 %v4160
        %4691 = vmatpush.msra.mxu0 %v4144
        %4692 = vmatpush.msra.mxu0 %v4128
        %4693 = vmatpush.msra.mxu0 %v4112
        %4694 = vmatpush.msra.mxu0 %v4096
        %4695 = vmatpush.msra.mxu0 %v4080
        %4696 = vmatpush.msra.mxu0 %v4064
        %4697 = vmatpush.msra.mxu0 %v4048
        %4698 = vmatpush.msra.mxu0 %v4032
        %4699 = vmatmul.f32.gmra.mxu0 %v4561
        %v4700 = vpop.f32.mrf.mxu0
        %v4701 = vadd.f32 %v4681, %v4700
        %4702 = vdwg.mxu0
        %4703 = vmatpush.msra.mxu0 %v4528
        %4704 = vmatpush.msra.mxu0 %v4512
        %4705 = vmatpush.msra.mxu0 %v4496
        %4706 = vmatpush.msra.mxu0 %v4480
        %4707 = vmatpush.msra.mxu0 %v4464
        %4708 = vmatpush.msra.mxu0 %v4448
        %4709 = vmatpush.msra.mxu0 %v4432
        %4710 = vmatpush.msra.mxu0 %v4416
        %4711 = vmatpush.msra.mxu0 %v4400
        %4712 = vmatpush.msra.mxu0 %v4384
        %4713 = vmatpush.msra.mxu0 %v4368
        %4714 = vmatpush.msra.mxu0 %v4352
        %4715 = vmatpush.msra.mxu0 %v4336
        %4716 = vmatpush.msra.mxu0 %v4320
        %4717 = vmatpush.msra.mxu0 %v4304
        %4718 = vmatpush.msra.mxu0 %v4288
        %4719 = vmatmul.f32.gmra.mxu0 %v4562
        %v4720 = vpop.f32.mrf.mxu0
        %v4721 = vadd.f32 %v4701, %v4720
        %4722 = vdwg.mxu0
        %4723 = vmatpush.msra.mxu0 %v3761
        %4724 = vmatpush.msra.mxu0 %v3745
        %4725 = vmatpush.msra.mxu0 %v3729
        %4726 = vmatpush.msra.mxu0 %v3713
        %4727 = vmatpush.msra.mxu0 %v3697
        %4728 = vmatpush.msra.mxu0 %v3681
        %4729 = vmatpush.msra.mxu0 %v3665
        %4730 = vmatpush.msra.mxu0 %v3649
        %4731 = vmatpush.msra.mxu0 %v3633
        %4732 = vmatpush.msra.mxu0 %v3617
        %4733 = vmatpush.msra.mxu0 %v3601
        %4734 = vmatpush.msra.mxu0 %v3585
        %4735 = vmatpush.msra.mxu0 %v3569
        %4736 = vmatpush.msra.mxu0 %v3553
        %4737 = vmatpush.msra.mxu0 %v3537
        %4738 = vmatpush.msra.mxu0 %v3521
        %4739 = vmatmul.f32.gmra.mxu0 %v4559
        %v4740 = vpop.f32.mrf.mxu0
        %v4741 = vadd.f32 0.0, %v4740
        %4742 = vdwg.mxu0
        %4743 = vmatpush.msra.mxu0 %v4017
        %4744 = vmatpush.msra.mxu0 %v4001
        %4745 = vmatpush.msra.mxu0 %v3985
        %4746 = vmatpush.msra.mxu0 %v3969
        %4747 = vmatpush.msra.mxu0 %v3953
        %4748 = vmatpush.msra.mxu0 %v3937
        %4749 = vmatpush.msra.mxu0 %v3921
        %4750 = vmatpush.msra.mxu0 %v3905
        %4751 = vmatpush.msra.mxu0 %v3889
        %4752 = vmatpush.msra.mxu0 %v3873
        %4753 = vmatpush.msra.mxu0 %v3857
        %4754 = vmatpush.msra.mxu0 %v3841
        %4755 = vmatpush.msra.mxu0 %v3825
        %4756 = vmatpush.msra.mxu0 %v3809
        %4757 = vmatpush.msra.mxu0 %v3793
        %4758 = vmatpush.msra.mxu0 %v3777
        %4759 = vmatmul.f32.gmra.mxu0 %v4560
        %v4760 = vpop.f32.mrf.mxu0
        %v4761 = vadd.f32 %v4741, %v4760
        %4762 = vdwg.mxu0
        %4763 = vmatpush.msra.mxu0 %v4273
        %4764 = vmatpush.msra.mxu0 %v4257
        %4765 = vmatpush.msra.mxu0 %v4241
        %4766 = vmatpush.msra.mxu0 %v4225
        %4767 = vmatpush.msra.mxu0 %v4209
        %4768 = vmatpush.msra.mxu0 %v4193
        %4769 = vmatpush.msra.mxu0 %v4177
        %4770 = vmatpush.msra.mxu0 %v4161
        %4771 = vmatpush.msra.mxu0 %v4145
        %4772 = vmatpush.msra.mxu0 %v4129
        %4773 = vmatpush.msra.mxu0 %v4113
        %4774 = vmatpush.msra.mxu0 %v4097
        %4775 = vmatpush.msra.mxu0 %v4081
        %4776 = vmatpush.msra.mxu0 %v4065
        %4777 = vmatpush.msra.mxu0 %v4049
        %4778 = vmatpush.msra.mxu0 %v4033
        %4779 = vmatmul.f32.gmra.mxu0 %v4561
        %v4780 = vpop.f32.mrf.mxu0
        %v4781 = vadd.f32 %v4761, %v4780
        %4782 = vdwg.mxu0
        %4783 = vmatpush.msra.mxu0 %v4529
        %4784 = vmatpush.msra.mxu0 %v4513
        %4785 = vmatpush.msra.mxu0 %v4497
        %4786 = vmatpush.msra.mxu0 %v4481
        %4787 = vmatpush.msra.mxu0 %v4465
        %4788 = vmatpush.msra.mxu0 %v4449
        %4789 = vmatpush.msra.mxu0 %v4433
        %4790 = vmatpush.msra.mxu0 %v4417
        %4791 = vmatpush.msra.mxu0 %v4401
        %4792 = vmatpush.msra.mxu0 %v4385
        %4793 = vmatpush.msra.mxu0 %v4369
        %4794 = vmatpush.msra.mxu0 %v4353
        %4795 = vmatpush.msra.mxu0 %v4337
        %4796 = vmatpush.msra.mxu0 %v4321
        %4797 = vmatpush.msra.mxu0 %v4305
        %4798 = vmatpush.msra.mxu0 %v4289
        %4799 = vmatmul.f32.gmra.mxu0 %v4562
        %v4800 = vpop.f32.mrf.mxu0
        %v4801 = vadd.f32 %v4781, %v4800
        %4802 = vdwg.mxu0
        %4803 = vmatpush.msra.mxu0 %v3762
        %4804 = vmatpush.msra.mxu0 %v3746
        %4805 = vmatpush.msra.mxu0 %v3730
        %4806 = vmatpush.msra.mxu0 %v3714
        %4807 = vmatpush.msra.mxu0 %v3698
        %4808 = vmatpush.msra.mxu0 %v3682
        %4809 = vmatpush.msra.mxu0 %v3666
        %4810 = vmatpush.msra.mxu0 %v3650
        %4811 = vmatpush.msra.mxu0 %v3634
        %4812 = vmatpush.msra.mxu0 %v3618
        %4813 = vmatpush.msra.mxu0 %v3602
        %4814 = vmatpush.msra.mxu0 %v3586
        %4815 = vmatpush.msra.mxu0 %v3570
        %4816 = vmatpush.msra.mxu0 %v3554
        %4817 = vmatpush.msra.mxu0 %v3538
        %4818 = vmatpush.msra.mxu0 %v3522
        %4819 = vmatmul.f32.gmra.mxu0 %v4559
        %v4820 = vpop.f32.mrf.mxu0
        %v4821 = vadd.f32 0.0, %v4820
        %4822 = vdwg.mxu0
        %4823 = vmatpush.msra.mxu0 %v4018
        %4824 = vmatpush.msra.mxu0 %v4002
        %4825 = vmatpush.msra.mxu0 %v3986
        %4826 = vmatpush.msra.mxu0 %v3970
        %4827 = vmatpush.msra.mxu0 %v3954
        %4828 = vmatpush.msra.mxu0 %v3938
        %4829 = vmatpush.msra.mxu0 %v3922
        %4830 = vmatpush.msra.mxu0 %v3906
        %4831 = vmatpush.msra.mxu0 %v3890
        %4832 = vmatpush.msra.mxu0 %v3874
        %4833 = vmatpush.msra.mxu0 %v3858
        %4834 = vmatpush.msra.mxu0 %v3842
        %4835 = vmatpush.msra.mxu0 %v3826
        %4836 = vmatpush.msra.mxu0 %v3810
        %4837 = vmatpush.msra.mxu0 %v3794
        %4838 = vmatpush.msra.mxu0 %v3778
        %4839 = vmatmul.f32.gmra.mxu0 %v4560
        %v4840 = vpop.f32.mrf.mxu0
        %v4841 = vadd.f32 %v4821, %v4840
        %4842 = vdwg.mxu0
        %4843 = vmatpush.msra.mxu0 %v4274
        %4844 = vmatpush.msra.mxu0 %v4258
        %4845 = vmatpush.msra.mxu0 %v4242
        %4846 = vmatpush.msra.mxu0 %v4226
        %4847 = vmatpush.msra.mxu0 %v4210
        %4848 = vmatpush.msra.mxu0 %v4194
        %4849 = vmatpush.msra.mxu0 %v4178
        %4850 = vmatpush.msra.mxu0 %v4162
        %4851 = vmatpush.msra.mxu0 %v4146
        %4852 = vmatpush.msra.mxu0 %v4130
        %4853 = vmatpush.msra.mxu0 %v4114
        %4854 = vmatpush.msra.mxu0 %v4098
        %4855 = vmatpush.msra.mxu0 %v4082
        %4856 = vmatpush.msra.mxu0 %v4066
        %4857 = vmatpush.msra.mxu0 %v4050
        %4858 = vmatpush.msra.mxu0 %v4034
        %4859 = vmatmul.f32.gmra.mxu0 %v4561
        %v4860 = vpop.f32.mrf.mxu0
        %v4861 = vadd.f32 %v4841, %v4860
        %4862 = vdwg.mxu0
        %4863 = vmatpush.msra.mxu0 %v4530
        %4864 = vmatpush.msra.mxu0 %v4514
        %4865 = vmatpush.msra.mxu0 %v4498
        %4866 = vmatpush.msra.mxu0 %v4482
        %4867 = vmatpush.msra.mxu0 %v4466
        %4868 = vmatpush.msra.mxu0 %v4450
        %4869 = vmatpush.msra.mxu0 %v4434
        %4870 = vmatpush.msra.mxu0 %v4418
        %4871 = vmatpush.msra.mxu0 %v4402
        %4872 = vmatpush.msra.mxu0 %v4386
        %4873 = vmatpush.msra.mxu0 %v4370
        %4874 = vmatpush.msra.mxu0 %v4354
        %4875 = vmatpush.msra.mxu0 %v4338
        %4876 = vmatpush.msra.mxu0 %v4322
        %4877 = vmatpush.msra.mxu0 %v4306
        %4878 = vmatpush.msra.mxu0 %v4290
        %4879 = vmatmul.f32.gmra.mxu0 %v4562
        %v4880 = vpop.f32.mrf.mxu0
        %v4881 = vadd.f32 %v4861, %v4880
        %4882 = vdwg.mxu0
        %4883 = vmatpush.msra.mxu0 %v3763
        %4884 = vmatpush.msra.mxu0 %v3747
        %4885 = vmatpush.msra.mxu0 %v3731
        %4886 = vmatpush.msra.mxu0 %v3715
        %4887 = vmatpush.msra.mxu0 %v3699
        %4888 = vmatpush.msra.mxu0 %v3683
        %4889 = vmatpush.msra.mxu0 %v3667
        %4890 = vmatpush.msra.mxu0 %v3651
        %4891 = vmatpush.msra.mxu0 %v3635
        %4892 = vmatpush.msra.mxu0 %v3619
        %4893 = vmatpush.msra.mxu0 %v3603
        %4894 = vmatpush.msra.mxu0 %v3587
        %4895 = vmatpush.msra.mxu0 %v3571
        %4896 = vmatpush.msra.mxu0 %v3555
        %4897 = vmatpush.msra.mxu0 %v3539
        %4898 = vmatpush.msra.mxu0 %v3523
        %4899 = vmatmul.f32.gmra.mxu0 %v4559
        %v4900 = vpop.f32.mrf.mxu0
        %v4901 = vadd.f32 0.0, %v4900
        %4902 = vdwg.mxu0
        %4903 = vmatpush.msra.mxu0 %v4019
        %4904 = vmatpush.msra.mxu0 %v4003
        %4905 = vmatpush.msra.mxu0 %v3987
        %4906 = vmatpush.msra.mxu0 %v3971
        %4907 = vmatpush.msra.mxu0 %v3955
        %4908 = vmatpush.msra.mxu0 %v3939
        %4909 = vmatpush.msra.mxu0 %v3923
        %4910 = vmatpush.msra.mxu0 %v3907
        %4911 = vmatpush.msra.mxu0 %v3891
        %4912 = vmatpush.msra.mxu0 %v3875
        %4913 = vmatpush.msra.mxu0 %v3859
        %4914 = vmatpush.msra.mxu0 %v3843
        %4915 = vmatpush.msra.mxu0 %v3827
        %4916 = vmatpush.msra.mxu0 %v3811
        %4917 = vmatpush.msra.mxu0 %v3795
        %4918 = vmatpush.msra.mxu0 %v3779
        %4919 = vmatmul.f32.gmra.mxu0 %v4560
        %v4920 = vpop.f32.mrf.mxu0
        %v4921 = vadd.f32 %v4901, %v4920
        %4922 = vdwg.mxu0
        %4923 = vmatpush.msra.mxu0 %v4275
        %4924 = vmatpush.msra.mxu0 %v4259
        %4925 = vmatpush.msra.mxu0 %v4243
        %4926 = vmatpush.msra.mxu0 %v4227
        %4927 = vmatpush.msra.mxu0 %v4211
        %4928 = vmatpush.msra.mxu0 %v4195
        %4929 = vmatpush.msra.mxu0 %v4179
        %4930 = vmatpush.msra.mxu0 %v4163
        %4931 = vmatpush.msra.mxu0 %v4147
        %4932 = vmatpush.msra.mxu0 %v4131
        %4933 = vmatpush.msra.mxu0 %v4115
        %4934 = vmatpush.msra.mxu0 %v4099
        %4935 = vmatpush.msra.mxu0 %v4083
        %4936 = vmatpush.msra.mxu0 %v4067
        %4937 = vmatpush.msra.mxu0 %v4051
        %4938 = vmatpush.msra.mxu0 %v4035
        %4939 = vmatmul.f32.gmra.mxu0 %v4561
        %v4940 = vpop.f32.mrf.mxu0
        %v4941 = vadd.f32 %v4921, %v4940
        %4942 = vdwg.mxu0
        %4943 = vmatpush.msra.mxu0 %v4531
        %4944 = vmatpush.msra.mxu0 %v4515
        %4945 = vmatpush.msra.mxu0 %v4499
        %4946 = vmatpush.msra.mxu0 %v4483
        %4947 = vmatpush.msra.mxu0 %v4467
        %4948 = vmatpush.msra.mxu0 %v4451
        %4949 = vmatpush.msra.mxu0 %v4435
        %4950 = vmatpush.msra.mxu0 %v4419
        %4951 = vmatpush.msra.mxu0 %v4403
        %4952 = vmatpush.msra.mxu0 %v4387
        %4953 = vmatpush.msra.mxu0 %v4371
        %4954 = vmatpush.msra.mxu0 %v4355
        %4955 = vmatpush.msra.mxu0 %v4339
        %4956 = vmatpush.msra.mxu0 %v4323
        %4957 = vmatpush.msra.mxu0 %v4307
        %4958 = vmatpush.msra.mxu0 %v4291
        %4959 = vmatmul.f32.gmra.mxu0 %v4562
        %v4960 = vpop.f32.mrf.mxu0
        %v4961 = vadd.f32 %v4941, %v4960
        %4962 = vdwg.mxu0
        %4963 = vmatpush.msra.mxu0 %v3764
        %4964 = vmatpush.msra.mxu0 %v3748
        %4965 = vmatpush.msra.mxu0 %v3732
        %4966 = vmatpush.msra.mxu0 %v3716
        %4967 = vmatpush.msra.mxu0 %v3700
        %4968 = vmatpush.msra.mxu0 %v3684
        %4969 = vmatpush.msra.mxu0 %v3668
        %4970 = vmatpush.msra.mxu0 %v3652
        %4971 = vmatpush.msra.mxu0 %v3636
        %4972 = vmatpush.msra.mxu0 %v3620
        %4973 = vmatpush.msra.mxu0 %v3604
        %4974 = vmatpush.msra.mxu0 %v3588
        %4975 = vmatpush.msra.mxu0 %v3572
        %4976 = vmatpush.msra.mxu0 %v3556
        %4977 = vmatpush.msra.mxu0 %v3540
        %4978 = vmatpush.msra.mxu0 %v3524
        %4979 = vmatmul.f32.gmra.mxu0 %v4559
        %v4980 = vpop.f32.mrf.mxu0
        %v4981 = vadd.f32 0.0, %v4980
        %4982 = vdwg.mxu0
        %4983 = vmatpush.msra.mxu0 %v4020
        %4984 = vmatpush.msra.mxu0 %v4004
        %4985 = vmatpush.msra.mxu0 %v3988
        %4986 = vmatpush.msra.mxu0 %v3972
        %4987 = vmatpush.msra.mxu0 %v3956
        %4988 = vmatpush.msra.mxu0 %v3940
        %4989 = vmatpush.msra.mxu0 %v3924
        %4990 = vmatpush.msra.mxu0 %v3908
        %4991 = vmatpush.msra.mxu0 %v3892
        %4992 = vmatpush.msra.mxu0 %v3876
        %4993 = vmatpush.msra.mxu0 %v3860
        %4994 = vmatpush.msra.mxu0 %v3844
        %4995 = vmatpush.msra.mxu0 %v3828
        %4996 = vmatpush.msra.mxu0 %v3812
        %4997 = vmatpush.msra.mxu0 %v3796
        %4998 = vmatpush.msra.mxu0 %v3780
        %4999 = vmatmul.f32.gmra.mxu0 %v4560
        %v5000 = vpop.f32.mrf.mxu0
        %v5001 = vadd.f32 %v4981, %v5000
        %5002 = vdwg.mxu0
        %5003 = vmatpush.msra.mxu0 %v4276
        %5004 = vmatpush.msra.mxu0 %v4260
        %5005 = vmatpush.msra.mxu0 %v4244
        %5006 = vmatpush.msra.mxu0 %v4228
        %5007 = vmatpush.msra.mxu0 %v4212
        %5008 = vmatpush.msra.mxu0 %v4196
        %5009 = vmatpush.msra.mxu0 %v4180
        %5010 = vmatpush.msra.mxu0 %v4164
        %5011 = vmatpush.msra.mxu0 %v4148
        %5012 = vmatpush.msra.mxu0 %v4132
        %5013 = vmatpush.msra.mxu0 %v4116
        %5014 = vmatpush.msra.mxu0 %v4100
        %5015 = vmatpush.msra.mxu0 %v4084
        %5016 = vmatpush.msra.mxu0 %v4068
        %5017 = vmatpush.msra.mxu0 %v4052
        %5018 = vmatpush.msra.mxu0 %v4036
        %5019 = vmatmul.f32.gmra.mxu0 %v4561
        %v5020 = vpop.f32.mrf.mxu0
        %v5021 = vadd.f32 %v5001, %v5020
        %5022 = vdwg.mxu0
        %5023 = vmatpush.msra.mxu0 %v4532
        %5024 = vmatpush.msra.mxu0 %v4516
        %5025 = vmatpush.msra.mxu0 %v4500
        %5026 = vmatpush.msra.mxu0 %v4484
        %5027 = vmatpush.msra.mxu0 %v4468
        %5028 = vmatpush.msra.mxu0 %v4452
        %5029 = vmatpush.msra.mxu0 %v4436
        %5030 = vmatpush.msra.mxu0 %v4420
        %5031 = vmatpush.msra.mxu0 %v4404
        %5032 = vmatpush.msra.mxu0 %v4388
        %5033 = vmatpush.msra.mxu0 %v4372
        %5034 = vmatpush.msra.mxu0 %v4356
        %5035 = vmatpush.msra.mxu0 %v4340
        %5036 = vmatpush.msra.mxu0 %v4324
        %5037 = vmatpush.msra.mxu0 %v4308
        %5038 = vmatpush.msra.mxu0 %v4292
        %5039 = vmatmul.f32.gmra.mxu0 %v4562
        %v5040 = vpop.f32.mrf.mxu0
        %v5041 = vadd.f32 %v5021, %v5040
        %5042 = vdwg.mxu0
        %5043 = vmatpush.msra.mxu0 %v3765
        %5044 = vmatpush.msra.mxu0 %v3749
        %5045 = vmatpush.msra.mxu0 %v3733
        %5046 = vmatpush.msra.mxu0 %v3717
        %5047 = vmatpush.msra.mxu0 %v3701
        %5048 = vmatpush.msra.mxu0 %v3685
        %5049 = vmatpush.msra.mxu0 %v3669
        %5050 = vmatpush.msra.mxu0 %v3653
        %5051 = vmatpush.msra.mxu0 %v3637
        %5052 = vmatpush.msra.mxu0 %v3621
        %5053 = vmatpush.msra.mxu0 %v3605
        %5054 = vmatpush.msra.mxu0 %v3589
        %5055 = vmatpush.msra.mxu0 %v3573
        %5056 = vmatpush.msra.mxu0 %v3557
        %5057 = vmatpush.msra.mxu0 %v3541
        %5058 = vmatpush.msra.mxu0 %v3525
        %5059 = vmatmul.f32.gmra.mxu0 %v4559
        %v5060 = vpop.f32.mrf.mxu0
        %v5061 = vadd.f32 0.0, %v5060
        %5062 = vdwg.mxu0
        %5063 = vmatpush.msra.mxu0 %v4021
        %5064 = vmatpush.msra.mxu0 %v4005
        %5065 = vmatpush.msra.mxu0 %v3989
        %5066 = vmatpush.msra.mxu0 %v3973
        %5067 = vmatpush.msra.mxu0 %v3957
        %5068 = vmatpush.msra.mxu0 %v3941
        %5069 = vmatpush.msra.mxu0 %v3925
        %5070 = vmatpush.msra.mxu0 %v3909
        %5071 = vmatpush.msra.mxu0 %v3893
        %5072 = vmatpush.msra.mxu0 %v3877
        %5073 = vmatpush.msra.mxu0 %v3861
        %5074 = vmatpush.msra.mxu0 %v3845
        %5075 = vmatpush.msra.mxu0 %v3829
        %5076 = vmatpush.msra.mxu0 %v3813
        %5077 = vmatpush.msra.mxu0 %v3797
        %5078 = vmatpush.msra.mxu0 %v3781
        %5079 = vmatmul.f32.gmra.mxu0 %v4560
        %v5080 = vpop.f32.mrf.mxu0
        %v5081 = vadd.f32 %v5061, %v5080
        %5082 = vdwg.mxu0
        %5083 = vmatpush.msra.mxu0 %v4277
        %5084 = vmatpush.msra.mxu0 %v4261
        %5085 = vmatpush.msra.mxu0 %v4245
        %5086 = vmatpush.msra.mxu0 %v4229
        %5087 = vmatpush.msra.mxu0 %v4213
        %5088 = vmatpush.msra.mxu0 %v4197
        %5089 = vmatpush.msra.mxu0 %v4181
        %5090 = vmatpush.msra.mxu0 %v4165
        %5091 = vmatpush.msra.mxu0 %v4149
        %5092 = vmatpush.msra.mxu0 %v4133
        %5093 = vmatpush.msra.mxu0 %v4117
        %5094 = vmatpush.msra.mxu0 %v4101
        %5095 = vmatpush.msra.mxu0 %v4085
        %5096 = vmatpush.msra.mxu0 %v4069
        %5097 = vmatpush.msra.mxu0 %v4053
        %5098 = vmatpush.msra.mxu0 %v4037
        %5099 = vmatmul.f32.gmra.mxu0 %v4561
        %v5100 = vpop.f32.mrf.mxu0
        %v5101 = vadd.f32 %v5081, %v5100
        %5102 = vdwg.mxu0
        %5103 = vmatpush.msra.mxu0 %v4533
        %5104 = vmatpush.msra.mxu0 %v4517
        %5105 = vmatpush.msra.mxu0 %v4501
        %5106 = vmatpush.msra.mxu0 %v4485
        %5107 = vmatpush.msra.mxu0 %v4469
        %5108 = vmatpush.msra.mxu0 %v4453
        %5109 = vmatpush.msra.mxu0 %v4437
        %5110 = vmatpush.msra.mxu0 %v4421
        %5111 = vmatpush.msra.mxu0 %v4405
        %5112 = vmatpush.msra.mxu0 %v4389
        %5113 = vmatpush.msra.mxu0 %v4373
        %5114 = vmatpush.msra.mxu0 %v4357
        %5115 = vmatpush.msra.mxu0 %v4341
        %5116 = vmatpush.msra.mxu0 %v4325
        %5117 = vmatpush.msra.mxu0 %v4309
        %5118 = vmatpush.msra.mxu0 %v4293
        %5119 = vmatmul.f32.gmra.mxu0 %v4562
        %v5120 = vpop.f32.mrf.mxu0
        %v5121 = vadd.f32 %v5101, %v5120
        %5122 = vdwg.mxu0
        %5123 = vmatpush.msra.mxu0 %v3766
        %5124 = vmatpush.msra.mxu0 %v3750
        %5125 = vmatpush.msra.mxu0 %v3734
        %5126 = vmatpush.msra.mxu0 %v3718
        %5127 = vmatpush.msra.mxu0 %v3702
        %5128 = vmatpush.msra.mxu0 %v3686
        %5129 = vmatpush.msra.mxu0 %v3670
        %5130 = vmatpush.msra.mxu0 %v3654
        %5131 = vmatpush.msra.mxu0 %v3638
        %5132 = vmatpush.msra.mxu0 %v3622
        %5133 = vmatpush.msra.mxu0 %v3606
        %5134 = vmatpush.msra.mxu0 %v3590
        %5135 = vmatpush.msra.mxu0 %v3574
        %5136 = vmatpush.msra.mxu0 %v3558
        %5137 = vmatpush.msra.mxu0 %v3542
        %5138 = vmatpush.msra.mxu0 %v3526
        %5139 = vmatmul.f32.gmra.mxu0 %v4559
        %v5140 = vpop.f32.mrf.mxu0
        %v5141 = vadd.f32 0.0, %v5140
        %5142 = vdwg.mxu0
        %5143 = vmatpush.msra.mxu0 %v4022
        %5144 = vmatpush.msra.mxu0 %v4006
        %5145 = vmatpush.msra.mxu0 %v3990
        %5146 = vmatpush.msra.mxu0 %v3974
        %5147 = vmatpush.msra.mxu0 %v3958
        %5148 = vmatpush.msra.mxu0 %v3942
        %5149 = vmatpush.msra.mxu0 %v3926
        %5150 = vmatpush.msra.mxu0 %v3910
        %5151 = vmatpush.msra.mxu0 %v3894
        %5152 = vmatpush.msra.mxu0 %v3878
        %5153 = vmatpush.msra.mxu0 %v3862
        %5154 = vmatpush.msra.mxu0 %v3846
        %5155 = vmatpush.msra.mxu0 %v3830
        %5156 = vmatpush.msra.mxu0 %v3814
        %5157 = vmatpush.msra.mxu0 %v3798
        %5158 = vmatpush.msra.mxu0 %v3782
        %5159 = vmatmul.f32.gmra.mxu0 %v4560
        %v5160 = vpop.f32.mrf.mxu0
        %v5161 = vadd.f32 %v5141, %v5160
        %5162 = vdwg.mxu0
        %5163 = vmatpush.msra.mxu0 %v4278
        %5164 = vmatpush.msra.mxu0 %v4262
        %5165 = vmatpush.msra.mxu0 %v4246
        %5166 = vmatpush.msra.mxu0 %v4230
        %5167 = vmatpush.msra.mxu0 %v4214
        %5168 = vmatpush.msra.mxu0 %v4198
        %5169 = vmatpush.msra.mxu0 %v4182
        %5170 = vmatpush.msra.mxu0 %v4166
        %5171 = vmatpush.msra.mxu0 %v4150
        %5172 = vmatpush.msra.mxu0 %v4134
        %5173 = vmatpush.msra.mxu0 %v4118
        %5174 = vmatpush.msra.mxu0 %v4102
        %5175 = vmatpush.msra.mxu0 %v4086
        %5176 = vmatpush.msra.mxu0 %v4070
        %5177 = vmatpush.msra.mxu0 %v4054
        %5178 = vmatpush.msra.mxu0 %v4038
        %5179 = vmatmul.f32.gmra.mxu0 %v4561
        %v5180 = vpop.f32.mrf.mxu0
        %v5181 = vadd.f32 %v5161, %v5180
        %5182 = vdwg.mxu0
        %5183 = vmatpush.msra.mxu0 %v4534
        %5184 = vmatpush.msra.mxu0 %v4518
        %5185 = vmatpush.msra.mxu0 %v4502
        %5186 = vmatpush.msra.mxu0 %v4486
        %5187 = vmatpush.msra.mxu0 %v4470
        %5188 = vmatpush.msra.mxu0 %v4454
        %5189 = vmatpush.msra.mxu0 %v4438
        %5190 = vmatpush.msra.mxu0 %v4422
        %5191 = vmatpush.msra.mxu0 %v4406
        %5192 = vmatpush.msra.mxu0 %v4390
        %5193 = vmatpush.msra.mxu0 %v4374
        %5194 = vmatpush.msra.mxu0 %v4358
        %5195 = vmatpush.msra.mxu0 %v4342
        %5196 = vmatpush.msra.mxu0 %v4326
        %5197 = vmatpush.msra.mxu0 %v4310
        %5198 = vmatpush.msra.mxu0 %v4294
        %5199 = vmatmul.f32.gmra.mxu0 %v4562
        %v5200 = vpop.f32.mrf.mxu0
        %v5201 = vadd.f32 %v5181, %v5200
        %5202 = vdwg.mxu0
        %5203 = vmatpush.msra.mxu0 %v3767
        %5204 = vmatpush.msra.mxu0 %v3751
        %5205 = vmatpush.msra.mxu0 %v3735
        %5206 = vmatpush.msra.mxu0 %v3719
        %5207 = vmatpush.msra.mxu0 %v3703
        %5208 = vmatpush.msra.mxu0 %v3687
        %5209 = vmatpush.msra.mxu0 %v3671
        %5210 = vmatpush.msra.mxu0 %v3655
        %5211 = vmatpush.msra.mxu0 %v3639
        %5212 = vmatpush.msra.mxu0 %v3623
        %5213 = vmatpush.msra.mxu0 %v3607
        %5214 = vmatpush.msra.mxu0 %v3591
        %5215 = vmatpush.msra.mxu0 %v3575
        %5216 = vmatpush.msra.mxu0 %v3559
        %5217 = vmatpush.msra.mxu0 %v3543
        %5218 = vmatpush.msra.mxu0 %v3527
        %5219 = vmatmul.f32.gmra.mxu0 %v4559
        %v5220 = vpop.f32.mrf.mxu0
        %v5221 = vadd.f32 0.0, %v5220
        %5222 = vdwg.mxu0
        %5223 = vmatpush.msra.mxu0 %v4023
        %5224 = vmatpush.msra.mxu0 %v4007
        %5225 = vmatpush.msra.mxu0 %v3991
        %5226 = vmatpush.msra.mxu0 %v3975
        %5227 = vmatpush.msra.mxu0 %v3959
        %5228 = vmatpush.msra.mxu0 %v3943
        %5229 = vmatpush.msra.mxu0 %v3927
        %5230 = vmatpush.msra.mxu0 %v3911
        %5231 = vmatpush.msra.mxu0 %v3895
        %5232 = vmatpush.msra.mxu0 %v3879
        %5233 = vmatpush.msra.mxu0 %v3863
        %5234 = vmatpush.msra.mxu0 %v3847
        %5235 = vmatpush.msra.mxu0 %v3831
        %5236 = vmatpush.msra.mxu0 %v3815
        %5237 = vmatpush.msra.mxu0 %v3799
        %5238 = vmatpush.msra.mxu0 %v3783
        %5239 = vmatmul.f32.gmra.mxu0 %v4560
        %v5240 = vpop.f32.mrf.mxu0
        %v5241 = vadd.f32 %v5221, %v5240
        %5242 = vdwg.mxu0
        %5243 = vmatpush.msra.mxu0 %v4279
        %5244 = vmatpush.msra.mxu0 %v4263
        %5245 = vmatpush.msra.mxu0 %v4247
        %5246 = vmatpush.msra.mxu0 %v4231
        %5247 = vmatpush.msra.mxu0 %v4215
        %5248 = vmatpush.msra.mxu0 %v4199
        %5249 = vmatpush.msra.mxu0 %v4183
        %5250 = vmatpush.msra.mxu0 %v4167
        %5251 = vmatpush.msra.mxu0 %v4151
        %5252 = vmatpush.msra.mxu0 %v4135
        %5253 = vmatpush.msra.mxu0 %v4119
        %5254 = vmatpush.msra.mxu0 %v4103
        %5255 = vmatpush.msra.mxu0 %v4087
        %5256 = vmatpush.msra.mxu0 %v4071
        %5257 = vmatpush.msra.mxu0 %v4055
        %5258 = vmatpush.msra.mxu0 %v4039
        %5259 = vmatmul.f32.gmra.mxu0 %v4561
        %v5260 = vpop.f32.mrf.mxu0
        %v5261 = vadd.f32 %v5241, %v5260
        %5262 = vdwg.mxu0
        %5263 = vmatpush.msra.mxu0 %v4535
        %5264 = vmatpush.msra.mxu0 %v4519
        %5265 = vmatpush.msra.mxu0 %v4503
        %5266 = vmatpush.msra.mxu0 %v4487
        %5267 = vmatpush.msra.mxu0 %v4471
        %5268 = vmatpush.msra.mxu0 %v4455
        %5269 = vmatpush.msra.mxu0 %v4439
        %5270 = vmatpush.msra.mxu0 %v4423
        %5271 = vmatpush.msra.mxu0 %v4407
        %5272 = vmatpush.msra.mxu0 %v4391
        %5273 = vmatpush.msra.mxu0 %v4375
        %5274 = vmatpush.msra.mxu0 %v4359
        %5275 = vmatpush.msra.mxu0 %v4343
        %5276 = vmatpush.msra.mxu0 %v4327
        %5277 = vmatpush.msra.mxu0 %v4311
        %5278 = vmatpush.msra.mxu0 %v4295
        %5279 = vmatmul.f32.gmra.mxu0 %v4562
        %v5280 = vpop.f32.mrf.mxu0
        %v5281 = vadd.f32 %v5261, %v5280
        %5282 = vdwg.mxu0
        %5283 = vmatpush.msra.mxu0 %v3768
        %5284 = vmatpush.msra.mxu0 %v3752
        %5285 = vmatpush.msra.mxu0 %v3736
        %5286 = vmatpush.msra.mxu0 %v3720
        %5287 = vmatpush.msra.mxu0 %v3704
        %5288 = vmatpush.msra.mxu0 %v3688
        %5289 = vmatpush.msra.mxu0 %v3672
        %5290 = vmatpush.msra.mxu0 %v3656
        %5291 = vmatpush.msra.mxu0 %v3640
        %5292 = vmatpush.msra.mxu0 %v3624
        %5293 = vmatpush.msra.mxu0 %v3608
        %5294 = vmatpush.msra.mxu0 %v3592
        %5295 = vmatpush.msra.mxu0 %v3576
        %5296 = vmatpush.msra.mxu0 %v3560
        %5297 = vmatpush.msra.mxu0 %v3544
        %5298 = vmatpush.msra.mxu0 %v3528
        %5299 = vmatmul.f32.gmra.mxu0 %v4559
        %v5300 = vpop.f32.mrf.mxu0
        %v5301 = vadd.f32 0.0, %v5300
        %5302 = vdwg.mxu0
        %5303 = vmatpush.msra.mxu0 %v4024
        %5304 = vmatpush.msra.mxu0 %v4008
        %5305 = vmatpush.msra.mxu0 %v3992
        %5306 = vmatpush.msra.mxu0 %v3976
        %5307 = vmatpush.msra.mxu0 %v3960
        %5308 = vmatpush.msra.mxu0 %v3944
        %5309 = vmatpush.msra.mxu0 %v3928
        %5310 = vmatpush.msra.mxu0 %v3912
        %5311 = vmatpush.msra.mxu0 %v3896
        %5312 = vmatpush.msra.mxu0 %v3880
        %5313 = vmatpush.msra.mxu0 %v3864
        %5314 = vmatpush.msra.mxu0 %v3848
        %5315 = vmatpush.msra.mxu0 %v3832
        %5316 = vmatpush.msra.mxu0 %v3816
        %5317 = vmatpush.msra.mxu0 %v3800
        %5318 = vmatpush.msra.mxu0 %v3784
        %5319 = vmatmul.f32.gmra.mxu0 %v4560
        %v5320 = vpop.f32.mrf.mxu0
        %v5321 = vadd.f32 %v5301, %v5320
        %5322 = vdwg.mxu0
        %5323 = vmatpush.msra.mxu0 %v4280
        %5324 = vmatpush.msra.mxu0 %v4264
        %5325 = vmatpush.msra.mxu0 %v4248
        %5326 = vmatpush.msra.mxu0 %v4232
        %5327 = vmatpush.msra.mxu0 %v4216
        %5328 = vmatpush.msra.mxu0 %v4200
        %5329 = vmatpush.msra.mxu0 %v4184
        %5330 = vmatpush.msra.mxu0 %v4168
        %5331 = vmatpush.msra.mxu0 %v4152
        %5332 = vmatpush.msra.mxu0 %v4136
        %5333 = vmatpush.msra.mxu0 %v4120
        %5334 = vmatpush.msra.mxu0 %v4104
        %5335 = vmatpush.msra.mxu0 %v4088
        %5336 = vmatpush.msra.mxu0 %v4072
        %5337 = vmatpush.msra.mxu0 %v4056
        %5338 = vmatpush.msra.mxu0 %v4040
        %5339 = vmatmul.f32.gmra.mxu0 %v4561
        %v5340 = vpop.f32.mrf.mxu0
        %v5341 = vadd.f32 %v5321, %v5340
        %5342 = vdwg.mxu0
        %5343 = vmatpush.msra.mxu0 %v4536
        %5344 = vmatpush.msra.mxu0 %v4520
        %5345 = vmatpush.msra.mxu0 %v4504
        %5346 = vmatpush.msra.mxu0 %v4488
        %5347 = vmatpush.msra.mxu0 %v4472
        %5348 = vmatpush.msra.mxu0 %v4456
        %5349 = vmatpush.msra.mxu0 %v4440
        %5350 = vmatpush.msra.mxu0 %v4424
        %5351 = vmatpush.msra.mxu0 %v4408
        %5352 = vmatpush.msra.mxu0 %v4392
        %5353 = vmatpush.msra.mxu0 %v4376
        %5354 = vmatpush.msra.mxu0 %v4360
        %5355 = vmatpush.msra.mxu0 %v4344
        %5356 = vmatpush.msra.mxu0 %v4328
        %5357 = vmatpush.msra.mxu0 %v4312
        %5358 = vmatpush.msra.mxu0 %v4296
        %5359 = vmatmul.f32.gmra.mxu0 %v4562
        %v5360 = vpop.f32.mrf.mxu0
        %v5361 = vadd.f32 %v5341, %v5360
        %5362 = vdwg.mxu0
        %5363 = vmatpush.msra.mxu0 %v3769
        %5364 = vmatpush.msra.mxu0 %v3753
        %5365 = vmatpush.msra.mxu0 %v3737
        %5366 = vmatpush.msra.mxu0 %v3721
        %5367 = vmatpush.msra.mxu0 %v3705
        %5368 = vmatpush.msra.mxu0 %v3689
        %5369 = vmatpush.msra.mxu0 %v3673
        %5370 = vmatpush.msra.mxu0 %v3657
        %5371 = vmatpush.msra.mxu0 %v3641
        %5372 = vmatpush.msra.mxu0 %v3625
        %5373 = vmatpush.msra.mxu0 %v3609
        %5374 = vmatpush.msra.mxu0 %v3593
        %5375 = vmatpush.msra.mxu0 %v3577
        %5376 = vmatpush.msra.mxu0 %v3561
        %5377 = vmatpush.msra.mxu0 %v3545
        %5378 = vmatpush.msra.mxu0 %v3529
        %5379 = vmatmul.f32.gmra.mxu0 %v4559
        %v5380 = vpop.f32.mrf.mxu0
        %v5381 = vadd.f32 0.0, %v5380
        %5382 = vdwg.mxu0
        %5383 = vmatpush.msra.mxu0 %v4025
        %5384 = vmatpush.msra.mxu0 %v4009
        %5385 = vmatpush.msra.mxu0 %v3993
        %5386 = vmatpush.msra.mxu0 %v3977
        %5387 = vmatpush.msra.mxu0 %v3961
        %5388 = vmatpush.msra.mxu0 %v3945
        %5389 = vmatpush.msra.mxu0 %v3929
        %5390 = vmatpush.msra.mxu0 %v3913
        %5391 = vmatpush.msra.mxu0 %v3897
        %5392 = vmatpush.msra.mxu0 %v3881
        %5393 = vmatpush.msra.mxu0 %v3865
        %5394 = vmatpush.msra.mxu0 %v3849
        %5395 = vmatpush.msra.mxu0 %v3833
        %5396 = vmatpush.msra.mxu0 %v3817
        %5397 = vmatpush.msra.mxu0 %v3801
        %5398 = vmatpush.msra.mxu0 %v3785
        %5399 = vmatmul.f32.gmra.mxu0 %v4560
        %v5400 = vpop.f32.mrf.mxu0
        %v5401 = vadd.f32 %v5381, %v5400
        %5402 = vdwg.mxu0
        %5403 = vmatpush.msra.mxu0 %v4281
        %5404 = vmatpush.msra.mxu0 %v4265
        %5405 = vmatpush.msra.mxu0 %v4249
        %5406 = vmatpush.msra.mxu0 %v4233
        %5407 = vmatpush.msra.mxu0 %v4217
        %5408 = vmatpush.msra.mxu0 %v4201
        %5409 = vmatpush.msra.mxu0 %v4185
        %5410 = vmatpush.msra.mxu0 %v4169
        %5411 = vmatpush.msra.mxu0 %v4153
        %5412 = vmatpush.msra.mxu0 %v4137
        %5413 = vmatpush.msra.mxu0 %v4121
        %5414 = vmatpush.msra.mxu0 %v4105
        %5415 = vmatpush.msra.mxu0 %v4089
        %5416 = vmatpush.msra.mxu0 %v4073
        %5417 = vmatpush.msra.mxu0 %v4057
        %5418 = vmatpush.msra.mxu0 %v4041
        %5419 = vmatmul.f32.gmra.mxu0 %v4561
        %v5420 = vpop.f32.mrf.mxu0
        %v5421 = vadd.f32 %v5401, %v5420
        %5422 = vdwg.mxu0
        %5423 = vmatpush.msra.mxu0 %v4537
        %5424 = vmatpush.msra.mxu0 %v4521
        %5425 = vmatpush.msra.mxu0 %v4505
        %5426 = vmatpush.msra.mxu0 %v4489
        %5427 = vmatpush.msra.mxu0 %v4473
        %5428 = vmatpush.msra.mxu0 %v4457
        %5429 = vmatpush.msra.mxu0 %v4441
        %5430 = vmatpush.msra.mxu0 %v4425
        %5431 = vmatpush.msra.mxu0 %v4409
        %5432 = vmatpush.msra.mxu0 %v4393
        %5433 = vmatpush.msra.mxu0 %v4377
        %5434 = vmatpush.msra.mxu0 %v4361
        %5435 = vmatpush.msra.mxu0 %v4345
        %5436 = vmatpush.msra.mxu0 %v4329
        %5437 = vmatpush.msra.mxu0 %v4313
        %5438 = vmatpush.msra.mxu0 %v4297
        %5439 = vmatmul.f32.gmra.mxu0 %v4562
        %v5440 = vpop.f32.mrf.mxu0
        %v5441 = vadd.f32 %v5421, %v5440
        %5442 = vdwg.mxu0
        %5443 = vmatpush.msra.mxu0 %v3770
        %5444 = vmatpush.msra.mxu0 %v3754
        %5445 = vmatpush.msra.mxu0 %v3738
        %5446 = vmatpush.msra.mxu0 %v3722
        %5447 = vmatpush.msra.mxu0 %v3706
        %5448 = vmatpush.msra.mxu0 %v3690
        %5449 = vmatpush.msra.mxu0 %v3674
        %5450 = vmatpush.msra.mxu0 %v3658
        %5451 = vmatpush.msra.mxu0 %v3642
        %5452 = vmatpush.msra.mxu0 %v3626
        %5453 = vmatpush.msra.mxu0 %v3610
        %5454 = vmatpush.msra.mxu0 %v3594
        %5455 = vmatpush.msra.mxu0 %v3578
        %5456 = vmatpush.msra.mxu0 %v3562
        %5457 = vmatpush.msra.mxu0 %v3546
        %5458 = vmatpush.msra.mxu0 %v3530
        %5459 = vmatmul.f32.gmra.mxu0 %v4559
        %v5460 = vpop.f32.mrf.mxu0
        %v5461 = vadd.f32 0.0, %v5460
        %5462 = vdwg.mxu0
        %5463 = vmatpush.msra.mxu0 %v4026
        %5464 = vmatpush.msra.mxu0 %v4010
        %5465 = vmatpush.msra.mxu0 %v3994
        %5466 = vmatpush.msra.mxu0 %v3978
        %5467 = vmatpush.msra.mxu0 %v3962
        %5468 = vmatpush.msra.mxu0 %v3946
        %5469 = vmatpush.msra.mxu0 %v3930
        %5470 = vmatpush.msra.mxu0 %v3914
        %5471 = vmatpush.msra.mxu0 %v3898
        %5472 = vmatpush.msra.mxu0 %v3882
        %5473 = vmatpush.msra.mxu0 %v3866
        %5474 = vmatpush.msra.mxu0 %v3850
        %5475 = vmatpush.msra.mxu0 %v3834
        %5476 = vmatpush.msra.mxu0 %v3818
        %5477 = vmatpush.msra.mxu0 %v3802
        %5478 = vmatpush.msra.mxu0 %v3786
        %5479 = vmatmul.f32.gmra.mxu0 %v4560
        %v5480 = vpop.f32.mrf.mxu0
        %v5481 = vadd.f32 %v5461, %v5480
        %5482 = vdwg.mxu0
        %5483 = vmatpush.msra.mxu0 %v4282
        %5484 = vmatpush.msra.mxu0 %v4266
        %5485 = vmatpush.msra.mxu0 %v4250
        %5486 = vmatpush.msra.mxu0 %v4234
        %5487 = vmatpush.msra.mxu0 %v4218
        %5488 = vmatpush.msra.mxu0 %v4202
        %5489 = vmatpush.msra.mxu0 %v4186
        %5490 = vmatpush.msra.mxu0 %v4170
        %5491 = vmatpush.msra.mxu0 %v4154
        %5492 = vmatpush.msra.mxu0 %v4138
        %5493 = vmatpush.msra.mxu0 %v4122
        %5494 = vmatpush.msra.mxu0 %v4106
        %5495 = vmatpush.msra.mxu0 %v4090
        %5496 = vmatpush.msra.mxu0 %v4074
        %5497 = vmatpush.msra.mxu0 %v4058
        %5498 = vmatpush.msra.mxu0 %v4042
        %5499 = vmatmul.f32.gmra.mxu0 %v4561
        %v5500 = vpop.f32.mrf.mxu0
        %v5501 = vadd.f32 %v5481, %v5500
        %5502 = vdwg.mxu0
        %5503 = vmatpush.msra.mxu0 %v4538
        %5504 = vmatpush.msra.mxu0 %v4522
        %5505 = vmatpush.msra.mxu0 %v4506
        %5506 = vmatpush.msra.mxu0 %v4490
        %5507 = vmatpush.msra.mxu0 %v4474
        %5508 = vmatpush.msra.mxu0 %v4458
        %5509 = vmatpush.msra.mxu0 %v4442
        %5510 = vmatpush.msra.mxu0 %v4426
        %5511 = vmatpush.msra.mxu0 %v4410
        %5512 = vmatpush.msra.mxu0 %v4394
        %5513 = vmatpush.msra.mxu0 %v4378
        %5514 = vmatpush.msra.mxu0 %v4362
        %5515 = vmatpush.msra.mxu0 %v4346
        %5516 = vmatpush.msra.mxu0 %v4330
        %5517 = vmatpush.msra.mxu0 %v4314
        %5518 = vmatpush.msra.mxu0 %v4298
        %5519 = vmatmul.f32.gmra.mxu0 %v4562
        %v5520 = vpop.f32.mrf.mxu0
        %v5521 = vadd.f32 %v5501, %v5520
        %5522 = vdwg.mxu0
        %5523 = vmatpush.msra.mxu0 %v3771
        %5524 = vmatpush.msra.mxu0 %v3755
        %5525 = vmatpush.msra.mxu0 %v3739
        %5526 = vmatpush.msra.mxu0 %v3723
        %5527 = vmatpush.msra.mxu0 %v3707
        %5528 = vmatpush.msra.mxu0 %v3691
        %5529 = vmatpush.msra.mxu0 %v3675
        %5530 = vmatpush.msra.mxu0 %v3659
        %5531 = vmatpush.msra.mxu0 %v3643
        %5532 = vmatpush.msra.mxu0 %v3627
        %5533 = vmatpush.msra.mxu0 %v3611
        %5534 = vmatpush.msra.mxu0 %v3595
        %5535 = vmatpush.msra.mxu0 %v3579
        %5536 = vmatpush.msra.mxu0 %v3563
        %5537 = vmatpush.msra.mxu0 %v3547
        %5538 = vmatpush.msra.mxu0 %v3531
        %5539 = vmatmul.f32.gmra.mxu0 %v4559
        %v5540 = vpop.f32.mrf.mxu0
        %v5541 = vadd.f32 0.0, %v5540
        %5542 = vdwg.mxu0
        %5543 = vmatpush.msra.mxu0 %v4027
        %5544 = vmatpush.msra.mxu0 %v4011
        %5545 = vmatpush.msra.mxu0 %v3995
        %5546 = vmatpush.msra.mxu0 %v3979
        %5547 = vmatpush.msra.mxu0 %v3963
        %5548 = vmatpush.msra.mxu0 %v3947
        %5549 = vmatpush.msra.mxu0 %v3931
        %5550 = vmatpush.msra.mxu0 %v3915
        %5551 = vmatpush.msra.mxu0 %v3899
        %5552 = vmatpush.msra.mxu0 %v3883
        %5553 = vmatpush.msra.mxu0 %v3867
        %5554 = vmatpush.msra.mxu0 %v3851
        %5555 = vmatpush.msra.mxu0 %v3835
        %5556 = vmatpush.msra.mxu0 %v3819
        %5557 = vmatpush.msra.mxu0 %v3803
        %5558 = vmatpush.msra.mxu0 %v3787
        %5559 = vmatmul.f32.gmra.mxu0 %v4560
        %v5560 = vpop.f32.mrf.mxu0
        %v5561 = vadd.f32 %v5541, %v5560
        %5562 = vdwg.mxu0
        %5563 = vmatpush.msra.mxu0 %v4283
        %5564 = vmatpush.msra.mxu0 %v4267
        %5565 = vmatpush.msra.mxu0 %v4251
        %5566 = vmatpush.msra.mxu0 %v4235
        %5567 = vmatpush.msra.mxu0 %v4219
        %5568 = vmatpush.msra.mxu0 %v4203
        %5569 = vmatpush.msra.mxu0 %v4187
        %5570 = vmatpush.msra.mxu0 %v4171
        %5571 = vmatpush.msra.mxu0 %v4155
        %5572 = vmatpush.msra.mxu0 %v4139
        %5573 = vmatpush.msra.mxu0 %v4123
        %5574 = vmatpush.msra.mxu0 %v4107
        %5575 = vmatpush.msra.mxu0 %v4091
        %5576 = vmatpush.msra.mxu0 %v4075
        %5577 = vmatpush.msra.mxu0 %v4059
        %5578 = vmatpush.msra.mxu0 %v4043
        %5579 = vmatmul.f32.gmra.mxu0 %v4561
        %v5580 = vpop.f32.mrf.mxu0
        %v5581 = vadd.f32 %v5561, %v5580
        %5582 = vdwg.mxu0
        %5583 = vmatpush.msra.mxu0 %v4539
        %5584 = vmatpush.msra.mxu0 %v4523
        %5585 = vmatpush.msra.mxu0 %v4507
        %5586 = vmatpush.msra.mxu0 %v4491
        %5587 = vmatpush.msra.mxu0 %v4475
        %5588 = vmatpush.msra.mxu0 %v4459
        %5589 = vmatpush.msra.mxu0 %v4443
        %5590 = vmatpush.msra.mxu0 %v4427
        %5591 = vmatpush.msra.mxu0 %v4411
        %5592 = vmatpush.msra.mxu0 %v4395
        %5593 = vmatpush.msra.mxu0 %v4379
        %5594 = vmatpush.msra.mxu0 %v4363
        %5595 = vmatpush.msra.mxu0 %v4347
        %5596 = vmatpush.msra.mxu0 %v4331
        %5597 = vmatpush.msra.mxu0 %v4315
        %5598 = vmatpush.msra.mxu0 %v4299
        %5599 = vmatmul.f32.gmra.mxu0 %v4562
        %v5600 = vpop.f32.mrf.mxu0
        %v5601 = vadd.f32 %v5581, %v5600
        %5602 = vdwg.mxu0
        %5603 = vmatpush.msra.mxu0 %v3772
        %5604 = vmatpush.msra.mxu0 %v3756
        %5605 = vmatpush.msra.mxu0 %v3740
        %5606 = vmatpush.msra.mxu0 %v3724
        %5607 = vmatpush.msra.mxu0 %v3708
        %5608 = vmatpush.msra.mxu0 %v3692
        %5609 = vmatpush.msra.mxu0 %v3676
        %5610 = vmatpush.msra.mxu0 %v3660
        %5611 = vmatpush.msra.mxu0 %v3644
        %5612 = vmatpush.msra.mxu0 %v3628
        %5613 = vmatpush.msra.mxu0 %v3612
        %5614 = vmatpush.msra.mxu0 %v3596
        %5615 = vmatpush.msra.mxu0 %v3580
        %5616 = vmatpush.msra.mxu0 %v3564
        %5617 = vmatpush.msra.mxu0 %v3548
        %5618 = vmatpush.msra.mxu0 %v3532
        %5619 = vmatmul.f32.gmra.mxu0 %v4559
        %v5620 = vpop.f32.mrf.mxu0
        %v5621 = vadd.f32 0.0, %v5620
        %5622 = vdwg.mxu0
        %5623 = vmatpush.msra.mxu0 %v4028
        %5624 = vmatpush.msra.mxu0 %v4012
        %5625 = vmatpush.msra.mxu0 %v3996
        %5626 = vmatpush.msra.mxu0 %v3980
        %5627 = vmatpush.msra.mxu0 %v3964
        %5628 = vmatpush.msra.mxu0 %v3948
        %5629 = vmatpush.msra.mxu0 %v3932
        %5630 = vmatpush.msra.mxu0 %v3916
        %5631 = vmatpush.msra.mxu0 %v3900
        %5632 = vmatpush.msra.mxu0 %v3884
        %5633 = vmatpush.msra.mxu0 %v3868
        %5634 = vmatpush.msra.mxu0 %v3852
        %5635 = vmatpush.msra.mxu0 %v3836
        %5636 = vmatpush.msra.mxu0 %v3820
        %5637 = vmatpush.msra.mxu0 %v3804
        %5638 = vmatpush.msra.mxu0 %v3788
        %5639 = vmatmul.f32.gmra.mxu0 %v4560
        %v5640 = vpop.f32.mrf.mxu0
        %v5641 = vadd.f32 %v5621, %v5640
        %5642 = vdwg.mxu0
        %5643 = vmatpush.msra.mxu0 %v4284
        %5644 = vmatpush.msra.mxu0 %v4268
        %5645 = vmatpush.msra.mxu0 %v4252
        %5646 = vmatpush.msra.mxu0 %v4236
        %5647 = vmatpush.msra.mxu0 %v4220
        %5648 = vmatpush.msra.mxu0 %v4204
        %5649 = vmatpush.msra.mxu0 %v4188
        %5650 = vmatpush.msra.mxu0 %v4172
        %5651 = vmatpush.msra.mxu0 %v4156
        %5652 = vmatpush.msra.mxu0 %v4140
        %5653 = vmatpush.msra.mxu0 %v4124
        %5654 = vmatpush.msra.mxu0 %v4108
        %5655 = vmatpush.msra.mxu0 %v4092
        %5656 = vmatpush.msra.mxu0 %v4076
        %5657 = vmatpush.msra.mxu0 %v4060
        %5658 = vmatpush.msra.mxu0 %v4044
        %5659 = vmatmul.f32.gmra.mxu0 %v4561
        %v5660 = vpop.f32.mrf.mxu0
        %v5661 = vadd.f32 %v5641, %v5660
        %5662 = vdwg.mxu0
        %5663 = vmatpush.msra.mxu0 %v4540
        %5664 = vmatpush.msra.mxu0 %v4524
        %5665 = vmatpush.msra.mxu0 %v4508
        %5666 = vmatpush.msra.mxu0 %v4492
        %5667 = vmatpush.msra.mxu0 %v4476
        %5668 = vmatpush.msra.mxu0 %v4460
        %5669 = vmatpush.msra.mxu0 %v4444
        %5670 = vmatpush.msra.mxu0 %v4428
        %5671 = vmatpush.msra.mxu0 %v4412
        %5672 = vmatpush.msra.mxu0 %v4396
        %5673 = vmatpush.msra.mxu0 %v4380
        %5674 = vmatpush.msra.mxu0 %v4364
        %5675 = vmatpush.msra.mxu0 %v4348
        %5676 = vmatpush.msra.mxu0 %v4332
        %5677 = vmatpush.msra.mxu0 %v4316
        %5678 = vmatpush.msra.mxu0 %v4300
        %5679 = vmatmul.f32.gmra.mxu0 %v4562
        %v5680 = vpop.f32.mrf.mxu0
        %v5681 = vadd.f32 %v5661, %v5680
        %5682 = vdwg.mxu0
        %5683 = vmatpush.msra.mxu0 %v3773
        %5684 = vmatpush.msra.mxu0 %v3757
        %5685 = vmatpush.msra.mxu0 %v3741
        %5686 = vmatpush.msra.mxu0 %v3725
        %5687 = vmatpush.msra.mxu0 %v3709
        %5688 = vmatpush.msra.mxu0 %v3693
        %5689 = vmatpush.msra.mxu0 %v3677
        %5690 = vmatpush.msra.mxu0 %v3661
        %5691 = vmatpush.msra.mxu0 %v3645
        %5692 = vmatpush.msra.mxu0 %v3629
        %5693 = vmatpush.msra.mxu0 %v3613
        %5694 = vmatpush.msra.mxu0 %v3597
        %5695 = vmatpush.msra.mxu0 %v3581
        %5696 = vmatpush.msra.mxu0 %v3565
        %5697 = vmatpush.msra.mxu0 %v3549
        %5698 = vmatpush.msra.mxu0 %v3533
        %5699 = vmatmul.f32.gmra.mxu0 %v4559
        %v5700 = vpop.f32.mrf.mxu0
        %v5701 = vadd.f32 0.0, %v5700
        %5702 = vdwg.mxu0
        %5703 = vmatpush.msra.mxu0 %v4029
        %5704 = vmatpush.msra.mxu0 %v4013
        %5705 = vmatpush.msra.mxu0 %v3997
        %5706 = vmatpush.msra.mxu0 %v3981
        %5707 = vmatpush.msra.mxu0 %v3965
        %5708 = vmatpush.msra.mxu0 %v3949
        %5709 = vmatpush.msra.mxu0 %v3933
        %5710 = vmatpush.msra.mxu0 %v3917
        %5711 = vmatpush.msra.mxu0 %v3901
        %5712 = vmatpush.msra.mxu0 %v3885
        %5713 = vmatpush.msra.mxu0 %v3869
        %5714 = vmatpush.msra.mxu0 %v3853
        %5715 = vmatpush.msra.mxu0 %v3837
        %5716 = vmatpush.msra.mxu0 %v3821
        %5717 = vmatpush.msra.mxu0 %v3805
        %5718 = vmatpush.msra.mxu0 %v3789
        %5719 = vmatmul.f32.gmra.mxu0 %v4560
        %v5720 = vpop.f32.mrf.mxu0
        %v5721 = vadd.f32 %v5701, %v5720
        %5722 = vdwg.mxu0
        %5723 = vmatpush.msra.mxu0 %v4285
        %5724 = vmatpush.msra.mxu0 %v4269
        %5725 = vmatpush.msra.mxu0 %v4253
        %5726 = vmatpush.msra.mxu0 %v4237
        %5727 = vmatpush.msra.mxu0 %v4221
        %5728 = vmatpush.msra.mxu0 %v4205
        %5729 = vmatpush.msra.mxu0 %v4189
        %5730 = vmatpush.msra.mxu0 %v4173
        %5731 = vmatpush.msra.mxu0 %v4157
        %5732 = vmatpush.msra.mxu0 %v4141
        %5733 = vmatpush.msra.mxu0 %v4125
        %5734 = vmatpush.msra.mxu0 %v4109
        %5735 = vmatpush.msra.mxu0 %v4093
        %5736 = vmatpush.msra.mxu0 %v4077
        %5737 = vmatpush.msra.mxu0 %v4061
        %5738 = vmatpush.msra.mxu0 %v4045
        %5739 = vmatmul.f32.gmra.mxu0 %v4561
        %v5740 = vpop.f32.mrf.mxu0
        %v5741 = vadd.f32 %v5721, %v5740
        %5742 = vdwg.mxu0
        %5743 = vmatpush.msra.mxu0 %v4541
        %5744 = vmatpush.msra.mxu0 %v4525
        %5745 = vmatpush.msra.mxu0 %v4509
        %5746 = vmatpush.msra.mxu0 %v4493
        %5747 = vmatpush.msra.mxu0 %v4477
        %5748 = vmatpush.msra.mxu0 %v4461
        %5749 = vmatpush.msra.mxu0 %v4445
        %5750 = vmatpush.msra.mxu0 %v4429
        %5751 = vmatpush.msra.mxu0 %v4413
        %5752 = vmatpush.msra.mxu0 %v4397
        %5753 = vmatpush.msra.mxu0 %v4381
        %5754 = vmatpush.msra.mxu0 %v4365
        %5755 = vmatpush.msra.mxu0 %v4349
        %5756 = vmatpush.msra.mxu0 %v4333
        %5757 = vmatpush.msra.mxu0 %v4317
        %5758 = vmatpush.msra.mxu0 %v4301
        %5759 = vmatmul.f32.gmra.mxu0 %v4562
        %v5760 = vpop.f32.mrf.mxu0
        %v5761 = vadd.f32 %v5741, %v5760
        %5762 = vdwg.mxu0
        %5763 = vmatpush.msra.mxu0 %v3774
        %5764 = vmatpush.msra.mxu0 %v3758
        %5765 = vmatpush.msra.mxu0 %v3742
        %5766 = vmatpush.msra.mxu0 %v3726
        %5767 = vmatpush.msra.mxu0 %v3710
        %5768 = vmatpush.msra.mxu0 %v3694
        %5769 = vmatpush.msra.mxu0 %v3678
        %5770 = vmatpush.msra.mxu0 %v3662
        %5771 = vmatpush.msra.mxu0 %v3646
        %5772 = vmatpush.msra.mxu0 %v3630
        %5773 = vmatpush.msra.mxu0 %v3614
        %5774 = vmatpush.msra.mxu0 %v3598
        %5775 = vmatpush.msra.mxu0 %v3582
        %5776 = vmatpush.msra.mxu0 %v3566
        %5777 = vmatpush.msra.mxu0 %v3550
        %5778 = vmatpush.msra.mxu0 %v3534
        %5779 = vmatmul.f32.gmra.mxu0 %v4559
        %v5780 = vpop.f32.mrf.mxu0
        %v5781 = vadd.f32 0.0, %v5780
        %5782 = vdwg.mxu0
        %5783 = vmatpush.msra.mxu0 %v4030
        %5784 = vmatpush.msra.mxu0 %v4014
        %5785 = vmatpush.msra.mxu0 %v3998
        %5786 = vmatpush.msra.mxu0 %v3982
        %5787 = vmatpush.msra.mxu0 %v3966
        %5788 = vmatpush.msra.mxu0 %v3950
        %5789 = vmatpush.msra.mxu0 %v3934
        %5790 = vmatpush.msra.mxu0 %v3918
        %5791 = vmatpush.msra.mxu0 %v3902
        %5792 = vmatpush.msra.mxu0 %v3886
        %5793 = vmatpush.msra.mxu0 %v3870
        %5794 = vmatpush.msra.mxu0 %v3854
        %5795 = vmatpush.msra.mxu0 %v3838
        %5796 = vmatpush.msra.mxu0 %v3822
        %5797 = vmatpush.msra.mxu0 %v3806
        %5798 = vmatpush.msra.mxu0 %v3790
        %5799 = vmatmul.f32.gmra.mxu0 %v4560
        %v5800 = vpop.f32.mrf.mxu0
        %v5801 = vadd.f32 %v5781, %v5800
        %5802 = vdwg.mxu0
        %5803 = vmatpush.msra.mxu0 %v4286
        %5804 = vmatpush.msra.mxu0 %v4270
        %5805 = vmatpush.msra.mxu0 %v4254
        %5806 = vmatpush.msra.mxu0 %v4238
        %5807 = vmatpush.msra.mxu0 %v4222
        %5808 = vmatpush.msra.mxu0 %v4206
        %5809 = vmatpush.msra.mxu0 %v4190
        %5810 = vmatpush.msra.mxu0 %v4174
        %5811 = vmatpush.msra.mxu0 %v4158
        %5812 = vmatpush.msra.mxu0 %v4142
        %5813 = vmatpush.msra.mxu0 %v4126
        %5814 = vmatpush.msra.mxu0 %v4110
        %5815 = vmatpush.msra.mxu0 %v4094
        %5816 = vmatpush.msra.mxu0 %v4078
        %5817 = vmatpush.msra.mxu0 %v4062
        %5818 = vmatpush.msra.mxu0 %v4046
        %5819 = vmatmul.f32.gmra.mxu0 %v4561
        %v5820 = vpop.f32.mrf.mxu0
        %v5821 = vadd.f32 %v5801, %v5820
        %5822 = vdwg.mxu0
        %5823 = vmatpush.msra.mxu0 %v4542
        %5824 = vmatpush.msra.mxu0 %v4526
        %5825 = vmatpush.msra.mxu0 %v4510
        %5826 = vmatpush.msra.mxu0 %v4494
        %5827 = vmatpush.msra.mxu0 %v4478
        %5828 = vmatpush.msra.mxu0 %v4462
        %5829 = vmatpush.msra.mxu0 %v4446
        %5830 = vmatpush.msra.mxu0 %v4430
        %5831 = vmatpush.msra.mxu0 %v4414
        %5832 = vmatpush.msra.mxu0 %v4398
        %5833 = vmatpush.msra.mxu0 %v4382
        %5834 = vmatpush.msra.mxu0 %v4366
        %5835 = vmatpush.msra.mxu0 %v4350
        %5836 = vmatpush.msra.mxu0 %v4334
        %5837 = vmatpush.msra.mxu0 %v4318
        %5838 = vmatpush.msra.mxu0 %v4302
        %5839 = vmatmul.f32.gmra.mxu0 %v4562
        %v5840 = vpop.f32.mrf.mxu0
        %v5841 = vadd.f32 %v5821, %v5840
        %5842 = vdwg.mxu0
        %v5843 = vadd.f32 %v4543, %v4641
        %v5844 = vadd.f32 %v4544, %v4721
        %v5845 = vadd.f32 %v4545, %v4801
        %v5846 = vadd.f32 %v4546, %v4881
        %v5847 = vadd.f32 %v4547, %v4961
        %v5848 = vadd.f32 %v4548, %v5041
        %v5849 = vadd.f32 %v4549, %v5121
        %v5850 = vadd.f32 %v4550, %v5201
        %v5851 = vadd.f32 %v4551, %v5281
        %v5852 = vadd.f32 %v4552, %v5361
        %v5853 = vadd.f32 %v4553, %v5441
        %v5854 = vadd.f32 %v4554, %v5521
        %v5855 = vadd.f32 %v4555, %v5601
        %v5856 = vadd.f32 %v4556, %v5681
        %v5857 = vadd.f32 %v4557, %v5761
        %v5858 = vadd.f32 %v4558, %v5841
        %5859 = vst [vmem:[#allocation2] sm:$0xff] %v5843
        %5860 = vst [vmem:[#allocation2 + $0x8] sm:$0xff] %v5844
        %5861 = vst [vmem:[#allocation2 + $0x10] sm:$0xff] %v5845
        %5862 = vst [vmem:[#allocation2 + $0x18] sm:$0xff] %v5846
        %5863 = vst [vmem:[#allocation2 + $0x20] sm:$0xff] %v5847
        %5864 = vst [vmem:[#allocation2 + $0x28] sm:$0xff] %v5848
        %5865 = vst [vmem:[#allocation2 + $0x30] sm:$0xff] %v5849
        %5866 = vst [vmem:[#allocation2 + $0x38] sm:$0xff] %v5850
        %5867 = vst [vmem:[#allocation2 + $0x40] sm:$0xff] %v5851
        %5868 = vst [vmem:[#allocation2 + $0x48] sm:$0xff] %v5852
        %5869 = vst [vmem:[#allocation2 + $0x50] sm:$0xff] %v5853
        %5870 = vst [vmem:[#allocation2 + $0x58] sm:$0xff] %v5854
        %5871 = vst [vmem:[#allocation2 + $0x60] sm:$0xff] %v5855
        %5872 = vst [vmem:[#allocation2 + $0x68] sm:$0xff] %v5856
        %5873 = vst [vmem:[#allocation2 + $0x70] sm:$0xff] %v5857
        %5874 = vst [vmem:[#allocation2 + $0x78] sm:$0xff] %v5858
        %p5875 = scmp.eq.s32.totalorder %s26, 3
        // Predicated region
        $region97: #{image_text_matching_forward.2} parent=59 // pred_check
          %p5876 = pneg %p5875
        $region98: #{image_text_matching_forward.2} parent=59 // pred_check_branch
          %5878 = sbr.rel (%p5876) target = $region100
        $region99: #{image_text_matching_forward.2} parent=59 // pred_region
          %v5879 = vld [vmem:[#allocation2] sm:$0xff]
          %v5880 = vld [vmem:[#allocation2 + $0x8] sm:$0xff]
          %v5881 = vld [vmem:[#allocation2 + $0x10] sm:$0xff]
          %v5882 = vld [vmem:[#allocation2 + $0x18] sm:$0xff]
          %v5883 = vld [vmem:[#allocation2 + $0x20] sm:$0xff]
          %v5884 = vld [vmem:[#allocation2 + $0x28] sm:$0xff]
          %v5885 = vld [vmem:[#allocation2 + $0x30] sm:$0xff]
          %v5886 = vld [vmem:[#allocation2 + $0x38] sm:$0xff]
          %v5887 = vld [vmem:[#allocation2 + $0x40] sm:$0xff]
          %v5888 = vld [vmem:[#allocation2 + $0x48] sm:$0xff]
          %v5889 = vld [vmem:[#allocation2 + $0x50] sm:$0xff]
          %v5890 = vld [vmem:[#allocation2 + $0x58] sm:$0xff]
          %v5891 = vld [vmem:[#allocation2 + $0x60] sm:$0xff]
          %v5892 = vld [vmem:[#allocation2 + $0x68] sm:$0xff]
          %v5893 = vld [vmem:[#allocation2 + $0x70] sm:$0xff]
          %v5894 = vld [vmem:[#allocation2 + $0x78] sm:$0xff]
          %v5895 = vmul.f32 %v5879, 0.00390625
          %v5896 = vmul.f32 %v5880, 0.00390625
          %v5897 = vmul.f32 %v5881, 0.00390625
          %v5898 = vmul.f32 %v5882, 0.00390625
          %v5899 = vmul.f32 %v5883, 0.00390625
          %v5900 = vmul.f32 %v5884, 0.00390625
          %v5901 = vmul.f32 %v5885, 0.00390625
          %v5902 = vmul.f32 %v5886, 0.00390625
          %v5903 = vmul.f32 %v5887, 0.00390625
          %v5904 = vmul.f32 %v5888, 0.00390625
          %v5905 = vmul.f32 %v5889, 0.00390625
          %v5906 = vmul.f32 %v5890, 0.00390625
          %v5907 = vmul.f32 %v5891, 0.00390625
          %v5908 = vmul.f32 %v5892, 0.00390625
          %v5909 = vmul.f32 %v5893, 0.00390625
          %v5910 = vmul.f32 %v5894, 0.00390625
          %v5911 = vld [vmem:[#allocation7] sm:$0xf]
          %v5912 = vld [vmem:[#allocation7 + $0x4] sm:$0xf]
          %v5913 = vld [vmem:[#allocation7 + $0x8] sm:$0xf]
          %v5914 = vld [vmem:[#allocation7 + $0xc] sm:$0xf]
          %v5915 = vld [vmem:[#allocation7 + $0x10] sm:$0xf]
          %v5916 = vld [vmem:[#allocation7 + $0x14] sm:$0xf]
          %v5917 = vld [vmem:[#allocation7 + $0x18] sm:$0xf]
          %v5918 = vld [vmem:[#allocation7 + $0x1c] sm:$0xf]
          %v5919 = vld [vmem:[#allocation7 + $0x20] sm:$0xf]
          %v5920 = vld [vmem:[#allocation7 + $0x24] sm:$0xf]
          %v5921 = vld [vmem:[#allocation7 + $0x28] sm:$0xf]
          %v5922 = vld [vmem:[#allocation7 + $0x2c] sm:$0xf]
          %v5923 = vld [vmem:[#allocation7 + $0x30] sm:$0xf]
          %v5924 = vld [vmem:[#allocation7 + $0x34] sm:$0xf]
          %v5925 = vld [vmem:[#allocation7 + $0x38] sm:$0xf]
          %v5926 = vld [vmem:[#allocation7 + $0x3c] sm:$0xf]
          %v5927 = vld [vmem:[#allocation7 + $0x40] sm:$0xf]
          %v5928 = vld [vmem:[#allocation7 + $0x44] sm:$0xf]
          %v5929 = vld [vmem:[#allocation7 + $0x48] sm:$0xf]
          %v5930 = vld [vmem:[#allocation7 + $0x4c] sm:$0xf]
          %v5931 = vld [vmem:[#allocation7 + $0x50] sm:$0xf]
          %v5932 = vld [vmem:[#allocation7 + $0x54] sm:$0xf]
          %v5933 = vld [vmem:[#allocation7 + $0x58] sm:$0xf]
          %v5934 = vld [vmem:[#allocation7 + $0x5c] sm:$0xf]
          %v5935 = vld [vmem:[#allocation7 + $0x60] sm:$0xf]
          %v5936 = vld [vmem:[#allocation7 + $0x64] sm:$0xf]
          %v5937 = vld [vmem:[#allocation7 + $0x68] sm:$0xf]
          %v5938 = vld [vmem:[#allocation7 + $0x6c] sm:$0xf]
          %v5939 = vld [vmem:[#allocation7 + $0x70] sm:$0xf]
          %v5940 = vld [vmem:[#allocation7 + $0x74] sm:$0xf]
          %v5941 = vld [vmem:[#allocation7 + $0x78] sm:$0xf]
          %v5942 = vld [vmem:[#allocation7 + $0x7c] sm:$0xf]
          %v5943 = vld [vmem:[#allocation7 + $0x80] sm:$0xf]
          %v5944 = vld [vmem:[#allocation7 + $0x84] sm:$0xf]
          %v5945 = vld [vmem:[#allocation7 + $0x88] sm:$0xf]
          %v5946 = vld [vmem:[#allocation7 + $0x8c] sm:$0xf]
          %v5947 = vld [vmem:[#allocation7 + $0x90] sm:$0xf]
          %v5948 = vld [vmem:[#allocation7 + $0x94] sm:$0xf]
          %v5949 = vld [vmem:[#allocation7 + $0x98] sm:$0xf]
          %v5950 = vld [vmem:[#allocation7 + $0x9c] sm:$0xf]
          %v5951 = vld [vmem:[#allocation7 + $0xa0] sm:$0xf]
          %v5952 = vld [vmem:[#allocation7 + $0xa4] sm:$0xf]
          %v5953 = vld [vmem:[#allocation7 + $0xa8] sm:$0xf]
          %v5954 = vld [vmem:[#allocation7 + $0xac] sm:$0xf]
          %v5955 = vld [vmem:[#allocation7 + $0xb0] sm:$0xf]
          %v5956 = vld [vmem:[#allocation7 + $0xb4] sm:$0xf]
          %v5957 = vld [vmem:[#allocation7 + $0xb8] sm:$0xf]
          %v5958 = vld [vmem:[#allocation7 + $0xbc] sm:$0xf]
          %v5959 = vld [vmem:[#allocation7 + $0xc0] sm:$0xf]
          %v5960 = vld [vmem:[#allocation7 + $0xc4] sm:$0xf]
          %v5961 = vld [vmem:[#allocation7 + $0xc8] sm:$0xf]
          %v5962 = vld [vmem:[#allocation7 + $0xcc] sm:$0xf]
          %v5963 = vld [vmem:[#allocation7 + $0xd0] sm:$0xf]
          %v5964 = vld [vmem:[#allocation7 + $0xd4] sm:$0xf]
          %v5965 = vld [vmem:[#allocation7 + $0xd8] sm:$0xf]
          %v5966 = vld [vmem:[#allocation7 + $0xdc] sm:$0xf]
          %v5967 = vld [vmem:[#allocation7 + $0xe0] sm:$0xf]
          %v5968 = vld [vmem:[#allocation7 + $0xe4] sm:$0xf]
          %v5969 = vld [vmem:[#allocation7 + $0xe8] sm:$0xf]
          %v5970 = vld [vmem:[#allocation7 + $0xec] sm:$0xf]
          %v5971 = vld [vmem:[#allocation7 + $0xf0] sm:$0xf]
          %v5972 = vld [vmem:[#allocation7 + $0xf4] sm:$0xf]
          %v5973 = vld [vmem:[#allocation7 + $0xf8] sm:$0xf]
          %v5974 = vld [vmem:[#allocation7 + $0xfc] sm:$0xf]
          %v5975 = vld [vmem:[#allocation7 + $0x100] sm:$0xf]
          %v5976 = vld [vmem:[#allocation7 + $0x104] sm:$0xf]
          %v5977 = vld [vmem:[#allocation7 + $0x108] sm:$0xf]
          %v5978 = vld [vmem:[#allocation7 + $0x10c] sm:$0xf]
          %v5979 = vld [vmem:[#allocation7 + $0x110] sm:$0xf]
          %v5980 = vld [vmem:[#allocation7 + $0x114] sm:$0xf]
          %v5981 = vld [vmem:[#allocation7 + $0x118] sm:$0xf]
          %v5982 = vld [vmem:[#allocation7 + $0x11c] sm:$0xf]
          %v5983 = vld [vmem:[#allocation7 + $0x120] sm:$0xf]
          %v5984 = vld [vmem:[#allocation7 + $0x124] sm:$0xf]
          %v5985 = vld [vmem:[#allocation7 + $0x128] sm:$0xf]
          %v5986 = vld [vmem:[#allocation7 + $0x12c] sm:$0xf]
          %v5987 = vld [vmem:[#allocation7 + $0x130] sm:$0xf]
          %v5988 = vld [vmem:[#allocation7 + $0x134] sm:$0xf]
          %v5989 = vld [vmem:[#allocation7 + $0x138] sm:$0xf]
          %v5990 = vld [vmem:[#allocation7 + $0x13c] sm:$0xf]
          %v5991 = vld [vmem:[#allocation7 + $0x140] sm:$0xf]
          %v5992 = vld [vmem:[#allocation7 + $0x144] sm:$0xf]
          %v5993 = vld [vmem:[#allocation7 + $0x148] sm:$0xf]
          %v5994 = vld [vmem:[#allocation7 + $0x14c] sm:$0xf]
          %v5995 = vld [vmem:[#allocation7 + $0x150] sm:$0xf]
          %v5996 = vld [vmem:[#allocation7 + $0x154] sm:$0xf]
          %v5997 = vld [vmem:[#allocation7 + $0x158] sm:$0xf]
          %v5998 = vld [vmem:[#allocation7 + $0x15c] sm:$0xf]
          %v5999 = vld [vmem:[#allocation7 + $0x160] sm:$0xf]
          %v6000 = vld [vmem:[#allocation7 + $0x164] sm:$0xf]
          %v6001 = vld [vmem:[#allocation7 + $0x168] sm:$0xf]
          %v6002 = vld [vmem:[#allocation7 + $0x16c] sm:$0xf]
          %v6003 = vld [vmem:[#allocation7 + $0x170] sm:$0xf]
          %v6004 = vld [vmem:[#allocation7 + $0x174] sm:$0xf]
          %v6005 = vld [vmem:[#allocation7 + $0x178] sm:$0xf]
          %v6006 = vld [vmem:[#allocation7 + $0x17c] sm:$0xf]
          %v6007 = vld [vmem:[#allocation7 + $0x180] sm:$0xf]
          %v6008 = vld [vmem:[#allocation7 + $0x184] sm:$0xf]
          %v6009 = vld [vmem:[#allocation7 + $0x188] sm:$0xf]
          %v6010 = vld [vmem:[#allocation7 + $0x18c] sm:$0xf]
          %v6011 = vld [vmem:[#allocation7 + $0x190] sm:$0xf]
          %v6012 = vld [vmem:[#allocation7 + $0x194] sm:$0xf]
          %v6013 = vld [vmem:[#allocation7 + $0x198] sm:$0xf]
          %v6014 = vld [vmem:[#allocation7 + $0x19c] sm:$0xf]
          %v6015 = vld [vmem:[#allocation7 + $0x1a0] sm:$0xf]
          %v6016 = vld [vmem:[#allocation7 + $0x1a4] sm:$0xf]
          %v6017 = vld [vmem:[#allocation7 + $0x1a8] sm:$0xf]
          %v6018 = vld [vmem:[#allocation7 + $0x1ac] sm:$0xf]
          %v6019 = vld [vmem:[#allocation7 + $0x1b0] sm:$0xf]
          %v6020 = vld [vmem:[#allocation7 + $0x1b4] sm:$0xf]
          %v6021 = vld [vmem:[#allocation7 + $0x1b8] sm:$0xf]
          %v6022 = vld [vmem:[#allocation7 + $0x1bc] sm:$0xf]
          %v6023 = vld [vmem:[#allocation7 + $0x1c0] sm:$0xf]
          %v6024 = vld [vmem:[#allocation7 + $0x1c4] sm:$0xf]
          %v6025 = vld [vmem:[#allocation7 + $0x1c8] sm:$0xf]
          %v6026 = vld [vmem:[#allocation7 + $0x1cc] sm:$0xf]
          %v6027 = vld [vmem:[#allocation7 + $0x1d0] sm:$0xf]
          %v6028 = vld [vmem:[#allocation7 + $0x1d4] sm:$0xf]
          %v6029 = vld [vmem:[#allocation7 + $0x1d8] sm:$0xf]
          %v6030 = vld [vmem:[#allocation7 + $0x1dc] sm:$0xf]
          %v6031 = vld [vmem:[#allocation7 + $0x1e0] sm:$0xf]
          %v6032 = vld [vmem:[#allocation7 + $0x1e4] sm:$0xf]
          %v6033 = vld [vmem:[#allocation7 + $0x1e8] sm:$0xf]
          %v6034 = vld [vmem:[#allocation7 + $0x1ec] sm:$0xf]
          %v6035 = vld [vmem:[#allocation7 + $0x1f0] sm:$0xf]
          %v6036 = vld [vmem:[#allocation7 + $0x1f4] sm:$0xf]
          %v6037 = vld [vmem:[#allocation7 + $0x1f8] sm:$0xf]
          %v6038 = vld [vmem:[#allocation7 + $0x1fc] sm:$0xf]
          %v6039 = vld [vmem:[#allocation7 + $0x200] sm:$0xf]
          %v6040 = vld [vmem:[#allocation7 + $0x204] sm:$0xf]
          %v6041 = vld [vmem:[#allocation7 + $0x208] sm:$0xf]
          %v6042 = vld [vmem:[#allocation7 + $0x20c] sm:$0xf]
          %v6043 = vld [vmem:[#allocation7 + $0x210] sm:$0xf]
          %v6044 = vld [vmem:[#allocation7 + $0x214] sm:$0xf]
          %v6045 = vld [vmem:[#allocation7 + $0x218] sm:$0xf]
          %v6046 = vld [vmem:[#allocation7 + $0x21c] sm:$0xf]
          %v6047 = vld [vmem:[#allocation7 + $0x220] sm:$0xf]
          %v6048 = vld [vmem:[#allocation7 + $0x224] sm:$0xf]
          %v6049 = vld [vmem:[#allocation7 + $0x228] sm:$0xf]
          %v6050 = vld [vmem:[#allocation7 + $0x22c] sm:$0xf]
          %v6051 = vld [vmem:[#allocation7 + $0x230] sm:$0xf]
          %v6052 = vld [vmem:[#allocation7 + $0x234] sm:$0xf]
          %v6053 = vld [vmem:[#allocation7 + $0x238] sm:$0xf]
          %v6054 = vld [vmem:[#allocation7 + $0x23c] sm:$0xf]
          %v6055 = vld [vmem:[#allocation7 + $0x240] sm:$0xf]
          %v6056 = vld [vmem:[#allocation7 + $0x244] sm:$0xf]
          %v6057 = vld [vmem:[#allocation7 + $0x248] sm:$0xf]
          %v6058 = vld [vmem:[#allocation7 + $0x24c] sm:$0xf]
          %v6059 = vld [vmem:[#allocation7 + $0x250] sm:$0xf]
          %v6060 = vld [vmem:[#allocation7 + $0x254] sm:$0xf]
          %v6061 = vld [vmem:[#allocation7 + $0x258] sm:$0xf]
          %v6062 = vld [vmem:[#allocation7 + $0x25c] sm:$0xf]
          %v6063 = vld [vmem:[#allocation7 + $0x260] sm:$0xf]
          %v6064 = vld [vmem:[#allocation7 + $0x264] sm:$0xf]
          %v6065 = vld [vmem:[#allocation7 + $0x268] sm:$0xf]
          %v6066 = vld [vmem:[#allocation7 + $0x26c] sm:$0xf]
          %v6067 = vld [vmem:[#allocation7 + $0x270] sm:$0xf]
          %v6068 = vld [vmem:[#allocation7 + $0x274] sm:$0xf]
          %v6069 = vld [vmem:[#allocation7 + $0x278] sm:$0xf]
          %v6070 = vld [vmem:[#allocation7 + $0x27c] sm:$0xf]
          %v6071 = vld [vmem:[#allocation7 + $0x280] sm:$0xf]
          %v6072 = vld [vmem:[#allocation7 + $0x284] sm:$0xf]
          %v6073 = vld [vmem:[#allocation7 + $0x288] sm:$0xf]
          %v6074 = vld [vmem:[#allocation7 + $0x28c] sm:$0xf]
          %v6075 = vld [vmem:[#allocation7 + $0x290] sm:$0xf]
          %v6076 = vld [vmem:[#allocation7 + $0x294] sm:$0xf]
          %v6077 = vld [vmem:[#allocation7 + $0x298] sm:$0xf]
          %v6078 = vld [vmem:[#allocation7 + $0x29c] sm:$0xf]
          %v6079 = vld [vmem:[#allocation7 + $0x2a0] sm:$0xf]
          %v6080 = vld [vmem:[#allocation7 + $0x2a4] sm:$0xf]
          %v6081 = vld [vmem:[#allocation7 + $0x2a8] sm:$0xf]
          %v6082 = vld [vmem:[#allocation7 + $0x2ac] sm:$0xf]
          %v6083 = vld [vmem:[#allocation7 + $0x2b0] sm:$0xf]
          %v6084 = vld [vmem:[#allocation7 + $0x2b4] sm:$0xf]
          %v6085 = vld [vmem:[#allocation7 + $0x2b8] sm:$0xf]
          %v6086 = vld [vmem:[#allocation7 + $0x2bc] sm:$0xf]
          %v6087 = vld [vmem:[#allocation7 + $0x2c0] sm:$0xf]
          %v6088 = vld [vmem:[#allocation7 + $0x2c4] sm:$0xf]
          %v6089 = vld [vmem:[#allocation7 + $0x2c8] sm:$0xf]
          %v6090 = vld [vmem:[#allocation7 + $0x2cc] sm:$0xf]
          %v6091 = vld [vmem:[#allocation7 + $0x2d0] sm:$0xf]
          %v6092 = vld [vmem:[#allocation7 + $0x2d4] sm:$0xf]
          %v6093 = vld [vmem:[#allocation7 + $0x2d8] sm:$0xf]
          %v6094 = vld [vmem:[#allocation7 + $0x2dc] sm:$0xf]
          %v6095 = vld [vmem:[#allocation7 + $0x2e0] sm:$0xf]
          %v6096 = vld [vmem:[#allocation7 + $0x2e4] sm:$0xf]
          %v6097 = vld [vmem:[#allocation7 + $0x2e8] sm:$0xf]
          %v6098 = vld [vmem:[#allocation7 + $0x2ec] sm:$0xf]
          %v6099 = vld [vmem:[#allocation7 + $0x2f0] sm:$0xf]
          %v6100 = vld [vmem:[#allocation7 + $0x2f4] sm:$0xf]
          %v6101 = vld [vmem:[#allocation7 + $0x2f8] sm:$0xf]
          %v6102 = vld [vmem:[#allocation7 + $0x2fc] sm:$0xf]
          %v6103 = vld [vmem:[#allocation7 + $0x300] sm:$0xf]
          %v6104 = vld [vmem:[#allocation7 + $0x304] sm:$0xf]
          %v6105 = vld [vmem:[#allocation7 + $0x308] sm:$0xf]
          %v6106 = vld [vmem:[#allocation7 + $0x30c] sm:$0xf]
          %v6107 = vld [vmem:[#allocation7 + $0x310] sm:$0xf]
          %v6108 = vld [vmem:[#allocation7 + $0x314] sm:$0xf]
          %v6109 = vld [vmem:[#allocation7 + $0x318] sm:$0xf]
          %v6110 = vld [vmem:[#allocation7 + $0x31c] sm:$0xf]
          %v6111 = vld [vmem:[#allocation7 + $0x320] sm:$0xf]
          %v6112 = vld [vmem:[#allocation7 + $0x324] sm:$0xf]
          %v6113 = vld [vmem:[#allocation7 + $0x328] sm:$0xf]
          %v6114 = vld [vmem:[#allocation7 + $0x32c] sm:$0xf]
          %v6115 = vld [vmem:[#allocation7 + $0x330] sm:$0xf]
          %v6116 = vld [vmem:[#allocation7 + $0x334] sm:$0xf]
          %v6117 = vld [vmem:[#allocation7 + $0x338] sm:$0xf]
          %v6118 = vld [vmem:[#allocation7 + $0x33c] sm:$0xf]
          %v6119 = vld [vmem:[#allocation7 + $0x340] sm:$0xf]
          %v6120 = vld [vmem:[#allocation7 + $0x344] sm:$0xf]
          %v6121 = vld [vmem:[#allocation7 + $0x348] sm:$0xf]
          %v6122 = vld [vmem:[#allocation7 + $0x34c] sm:$0xf]
          %v6123 = vld [vmem:[#allocation7 + $0x350] sm:$0xf]
          %v6124 = vld [vmem:[#allocation7 + $0x354] sm:$0xf]
          %v6125 = vld [vmem:[#allocation7 + $0x358] sm:$0xf]
          %v6126 = vld [vmem:[#allocation7 + $0x35c] sm:$0xf]
          %v6127 = vld [vmem:[#allocation7 + $0x360] sm:$0xf]
          %v6128 = vld [vmem:[#allocation7 + $0x364] sm:$0xf]
          %v6129 = vld [vmem:[#allocation7 + $0x368] sm:$0xf]
          %v6130 = vld [vmem:[#allocation7 + $0x36c] sm:$0xf]
          %v6131 = vld [vmem:[#allocation7 + $0x370] sm:$0xf]
          %v6132 = vld [vmem:[#allocation7 + $0x374] sm:$0xf]
          %v6133 = vld [vmem:[#allocation7 + $0x378] sm:$0xf]
          %v6134 = vld [vmem:[#allocation7 + $0x37c] sm:$0xf]
          %v6135 = vld [vmem:[#allocation7 + $0x380] sm:$0xf]
          %v6136 = vld [vmem:[#allocation7 + $0x384] sm:$0xf]
          %v6137 = vld [vmem:[#allocation7 + $0x388] sm:$0xf]
          %v6138 = vld [vmem:[#allocation7 + $0x38c] sm:$0xf]
          %v6139 = vld [vmem:[#allocation7 + $0x390] sm:$0xf]
          %v6140 = vld [vmem:[#allocation7 + $0x394] sm:$0xf]
          %v6141 = vld [vmem:[#allocation7 + $0x398] sm:$0xf]
          %v6142 = vld [vmem:[#allocation7 + $0x39c] sm:$0xf]
          %v6143 = vld [vmem:[#allocation7 + $0x3a0] sm:$0xf]
          %v6144 = vld [vmem:[#allocation7 + $0x3a4] sm:$0xf]
          %v6145 = vld [vmem:[#allocation7 + $0x3a8] sm:$0xf]
          %v6146 = vld [vmem:[#allocation7 + $0x3ac] sm:$0xf]
          %v6147 = vld [vmem:[#allocation7 + $0x3b0] sm:$0xf]
          %v6148 = vld [vmem:[#allocation7 + $0x3b4] sm:$0xf]
          %v6149 = vld [vmem:[#allocation7 + $0x3b8] sm:$0xf]
          %v6150 = vld [vmem:[#allocation7 + $0x3bc] sm:$0xf]
          %v6151 = vld [vmem:[#allocation7 + $0x3c0] sm:$0xf]
          %v6152 = vld [vmem:[#allocation7 + $0x3c4] sm:$0xf]
          %v6153 = vld [vmem:[#allocation7 + $0x3c8] sm:$0xf]
          %v6154 = vld [vmem:[#allocation7 + $0x3cc] sm:$0xf]
          %v6155 = vld [vmem:[#allocation7 + $0x3d0] sm:$0xf]
          %v6156 = vld [vmem:[#allocation7 + $0x3d4] sm:$0xf]
          %v6157 = vld [vmem:[#allocation7 + $0x3d8] sm:$0xf]
          %v6158 = vld [vmem:[#allocation7 + $0x3dc] sm:$0xf]
          %v6159 = vld [vmem:[#allocation7 + $0x3e0] sm:$0xf]
          %v6160 = vld [vmem:[#allocation7 + $0x3e4] sm:$0xf]
          %v6161 = vld [vmem:[#allocation7 + $0x3e8] sm:$0xf]
          %v6162 = vld [vmem:[#allocation7 + $0x3ec] sm:$0xf]
          %v6163 = vld [vmem:[#allocation7 + $0x3f0] sm:$0xf]
          %v6164 = vld [vmem:[#allocation7 + $0x3f4] sm:$0xf]
          %v6165 = vld [vmem:[#allocation7 + $0x3f8] sm:$0xf]
          %v6166 = vld [vmem:[#allocation7 + $0x3fc] sm:$0xf]
          %v6167 = vld [vmem:[#allocation8] sm:$0x1]
          %v6168 = vld [vmem:[#allocation10] sm:$0x1]
          %v6169 = vld [vmem:[#allocation11] sm:$0x1]
          %v6170 = vld [vmem:[#allocation13] sm:$0xff]
          %v6171 = vld [vmem:[#allocation13 + $0x8] sm:$0xff]
          %v6172 = vld [vmem:[#allocation13 + $0x10] sm:$0xff]
          %v6173 = vld [vmem:[#allocation13 + $0x18] sm:$0xff]
          %v6174 = vld [vmem:[#allocation13 + $0x20] sm:$0xff]
          %v6175 = vld [vmem:[#allocation13 + $0x28] sm:$0xff]
          %v6176 = vld [vmem:[#allocation13 + $0x30] sm:$0xff]
          %v6177 = vld [vmem:[#allocation13 + $0x38] sm:$0xff]
          %v6178 = vld [vmem:[#allocation13 + $0x40] sm:$0xff]
          %v6179 = vld [vmem:[#allocation13 + $0x48] sm:$0xff]
          %v6180 = vld [vmem:[#allocation13 + $0x50] sm:$0xff]
          %v6181 = vld [vmem:[#allocation13 + $0x58] sm:$0xff]
          %v6182 = vld [vmem:[#allocation13 + $0x60] sm:$0xff]
          %v6183 = vld [vmem:[#allocation13 + $0x68] sm:$0xff]
          %v6184 = vld [vmem:[#allocation13 + $0x70] sm:$0xff]
          %v6185 = vld [vmem:[#allocation13 + $0x78] sm:$0xff]
          %v6186 = vld [vmem:[#allocation14] sm:$0x1]
          %v6187 = vpack.c.bf16 %v5895, %v5895
          %v6188 = vpack.c.bf16 %v5896, %v5896
          %v6189 = vpack.c.bf16 %v5897, %v5897
          %v6190 = vpack.c.bf16 %v5898, %v5898
          %v6191 = vpack.c.bf16 %v5899, %v5899
          %v6192 = vpack.c.bf16 %v5900, %v5900
          %v6193 = vpack.c.bf16 %v5901, %v5901
          %v6194 = vpack.c.bf16 %v5902, %v5902
          %v6195 = vpack.c.bf16 %v5903, %v5903
          %v6196 = vpack.c.bf16 %v5904, %v5904
          %v6197 = vpack.c.bf16 %v5905, %v5905
          %v6198 = vpack.c.bf16 %v5906, %v5906
          %v6199 = vpack.c.bf16 %v5907, %v5907
          %v6200 = vpack.c.bf16 %v5908, %v5908
          %v6201 = vpack.c.bf16 %v5909, %v5909
          %v6202 = vpack.c.bf16 %v5910, %v5910
          %v6204 = vperm.slane %v6167, 0
          %v6462 = vunpack.c.l.b16 %v5911
          %v6463 = vunpack.c.l.b16 %v5912
          %v6464 = vunpack.c.l.b16 %v5913
          %v6465 = vunpack.c.l.b16 %v5914
          %v6466 = vunpack.c.l.b16 %v5915
          %v6467 = vunpack.c.l.b16 %v5916
          %v6468 = vunpack.c.l.b16 %v5917
          %v6469 = vunpack.c.l.b16 %v5918
          %v6470 = vunpack.c.l.b16 %v5919
          %v6471 = vunpack.c.l.b16 %v5920
          %v6472 = vunpack.c.l.b16 %v5921
          %v6473 = vunpack.c.l.b16 %v5922
          %v6474 = vunpack.c.l.b16 %v5923
          %v6475 = vunpack.c.l.b16 %v5924
          %v6476 = vunpack.c.l.b16 %v5925
          %v6477 = vunpack.c.l.b16 %v5926
          %v6478 = vunpack.c.l.b16 %v5927
          %v6479 = vunpack.c.l.b16 %v5928
          %v6480 = vunpack.c.l.b16 %v5929
          %v6481 = vunpack.c.l.b16 %v5930
          %v6482 = vunpack.c.l.b16 %v5931
          %v6483 = vunpack.c.l.b16 %v5932
          %v6484 = vunpack.c.l.b16 %v5933
          %v6485 = vunpack.c.l.b16 %v5934
          %v6486 = vunpack.c.l.b16 %v5935
          %v6487 = vunpack.c.l.b16 %v5936
          %v6488 = vunpack.c.l.b16 %v5937
          %v6489 = vunpack.c.l.b16 %v5938
          %v6490 = vunpack.c.l.b16 %v5939
          %v6491 = vunpack.c.l.b16 %v5940
          %v6492 = vunpack.c.l.b16 %v5941
          %v6493 = vunpack.c.l.b16 %v5942
          %v6494 = vunpack.c.l.b16 %v5943
          %v6495 = vunpack.c.l.b16 %v5944
          %v6496 = vunpack.c.l.b16 %v5945
          %v6497 = vunpack.c.l.b16 %v5946
          %v6498 = vunpack.c.l.b16 %v5947
          %v6499 = vunpack.c.l.b16 %v5948
          %v6500 = vunpack.c.l.b16 %v5949
          %v6501 = vunpack.c.l.b16 %v5950
          %v6502 = vunpack.c.l.b16 %v5951
          %v6503 = vunpack.c.l.b16 %v5952
          %v6504 = vunpack.c.l.b16 %v5953
          %v6505 = vunpack.c.l.b16 %v5954
          %v6506 = vunpack.c.l.b16 %v5955
          %v6507 = vunpack.c.l.b16 %v5956
          %v6508 = vunpack.c.l.b16 %v5957
          %v6509 = vunpack.c.l.b16 %v5958
          %v6510 = vunpack.c.l.b16 %v5959
          %v6511 = vunpack.c.l.b16 %v5960
          %v6512 = vunpack.c.l.b16 %v5961
          %v6513 = vunpack.c.l.b16 %v5962
          %v6514 = vunpack.c.l.b16 %v5963
          %v6515 = vunpack.c.l.b16 %v5964
          %v6516 = vunpack.c.l.b16 %v5965
          %v6517 = vunpack.c.l.b16 %v5966
          %v6518 = vunpack.c.l.b16 %v5967
          %v6519 = vunpack.c.l.b16 %v5968
          %v6520 = vunpack.c.l.b16 %v5969
          %v6521 = vunpack.c.l.b16 %v5970
          %v6522 = vunpack.c.l.b16 %v5971
          %v6523 = vunpack.c.l.b16 %v5972
          %v6524 = vunpack.c.l.b16 %v5973
          %v6525 = vunpack.c.l.b16 %v5974
          %v6526 = vunpack.c.l.b16 %v5975
          %v6527 = vunpack.c.l.b16 %v5976
          %v6528 = vunpack.c.l.b16 %v5977
          %v6529 = vunpack.c.l.b16 %v5978
          %v6530 = vunpack.c.l.b16 %v5979
          %v6531 = vunpack.c.l.b16 %v5980
          %v6532 = vunpack.c.l.b16 %v5981
          %v6533 = vunpack.c.l.b16 %v5982
          %v6534 = vunpack.c.l.b16 %v5983
          %v6535 = vunpack.c.l.b16 %v5984
          %v6536 = vunpack.c.l.b16 %v5985
          %v6537 = vunpack.c.l.b16 %v5986
          %v6538 = vunpack.c.l.b16 %v5987
          %v6539 = vunpack.c.l.b16 %v5988
          %v6540 = vunpack.c.l.b16 %v5989
          %v6541 = vunpack.c.l.b16 %v5990
          %v6542 = vunpack.c.l.b16 %v5991
          %v6543 = vunpack.c.l.b16 %v5992
          %v6544 = vunpack.c.l.b16 %v5993
          %v6545 = vunpack.c.l.b16 %v5994
          %v6546 = vunpack.c.l.b16 %v5995
          %v6547 = vunpack.c.l.b16 %v5996
          %v6548 = vunpack.c.l.b16 %v5997
          %v6549 = vunpack.c.l.b16 %v5998
          %v6550 = vunpack.c.l.b16 %v5999
          %v6551 = vunpack.c.l.b16 %v6000
          %v6552 = vunpack.c.l.b16 %v6001
          %v6553 = vunpack.c.l.b16 %v6002
          %v6554 = vunpack.c.l.b16 %v6003
          %v6555 = vunpack.c.l.b16 %v6004
          %v6556 = vunpack.c.l.b16 %v6005
          %v6557 = vunpack.c.l.b16 %v6006
          %v6558 = vunpack.c.l.b16 %v6007
          %v6559 = vunpack.c.l.b16 %v6008
          %v6560 = vunpack.c.l.b16 %v6009
          %v6561 = vunpack.c.l.b16 %v6010
          %v6562 = vunpack.c.l.b16 %v6011
          %v6563 = vunpack.c.l.b16 %v6012
          %v6564 = vunpack.c.l.b16 %v6013
          %v6565 = vunpack.c.l.b16 %v6014
          %v6566 = vunpack.c.l.b16 %v6015
          %v6567 = vunpack.c.l.b16 %v6016
          %v6568 = vunpack.c.l.b16 %v6017
          %v6569 = vunpack.c.l.b16 %v6018
          %v6570 = vunpack.c.l.b16 %v6019
          %v6571 = vunpack.c.l.b16 %v6020
          %v6572 = vunpack.c.l.b16 %v6021
          %v6573 = vunpack.c.l.b16 %v6022
          %v6574 = vunpack.c.l.b16 %v6023
          %v6575 = vunpack.c.l.b16 %v6024
          %v6576 = vunpack.c.l.b16 %v6025
          %v6577 = vunpack.c.l.b16 %v6026
          %v6578 = vunpack.c.l.b16 %v6027
          %v6579 = vunpack.c.l.b16 %v6028
          %v6580 = vunpack.c.l.b16 %v6029
          %v6581 = vunpack.c.l.b16 %v6030
          %v6582 = vunpack.c.l.b16 %v6031
          %v6583 = vunpack.c.l.b16 %v6032
          %v6584 = vunpack.c.l.b16 %v6033
          %v6585 = vunpack.c.l.b16 %v6034
          %v6586 = vunpack.c.l.b16 %v6035
          %v6587 = vunpack.c.l.b16 %v6036
          %v6588 = vunpack.c.l.b16 %v6037
          %v6589 = vunpack.c.l.b16 %v6038
          %v6590 = vunpack.c.l.b16 %v6039
          %v6591 = vunpack.c.l.b16 %v6040
          %v6592 = vunpack.c.l.b16 %v6041
          %v6593 = vunpack.c.l.b16 %v6042
          %v6594 = vunpack.c.l.b16 %v6043
          %v6595 = vunpack.c.l.b16 %v6044
          %v6596 = vunpack.c.l.b16 %v6045
          %v6597 = vunpack.c.l.b16 %v6046
          %v6598 = vunpack.c.l.b16 %v6047
          %v6599 = vunpack.c.l.b16 %v6048
          %v6600 = vunpack.c.l.b16 %v6049
          %v6601 = vunpack.c.l.b16 %v6050
          %v6602 = vunpack.c.l.b16 %v6051
          %v6603 = vunpack.c.l.b16 %v6052
          %v6604 = vunpack.c.l.b16 %v6053
          %v6605 = vunpack.c.l.b16 %v6054
          %v6606 = vunpack.c.l.b16 %v6055
          %v6607 = vunpack.c.l.b16 %v6056
          %v6608 = vunpack.c.l.b16 %v6057
          %v6609 = vunpack.c.l.b16 %v6058
          %v6610 = vunpack.c.l.b16 %v6059
          %v6611 = vunpack.c.l.b16 %v6060
          %v6612 = vunpack.c.l.b16 %v6061
          %v6613 = vunpack.c.l.b16 %v6062
          %v6614 = vunpack.c.l.b16 %v6063
          %v6615 = vunpack.c.l.b16 %v6064
          %v6616 = vunpack.c.l.b16 %v6065
          %v6617 = vunpack.c.l.b16 %v6066
          %v6618 = vunpack.c.l.b16 %v6067
          %v6619 = vunpack.c.l.b16 %v6068
          %v6620 = vunpack.c.l.b16 %v6069
          %v6621 = vunpack.c.l.b16 %v6070
          %v6622 = vunpack.c.l.b16 %v6071
          %v6623 = vunpack.c.l.b16 %v6072
          %v6624 = vunpack.c.l.b16 %v6073
          %v6625 = vunpack.c.l.b16 %v6074
          %v6626 = vunpack.c.l.b16 %v6075
          %v6627 = vunpack.c.l.b16 %v6076
          %v6628 = vunpack.c.l.b16 %v6077
          %v6629 = vunpack.c.l.b16 %v6078
          %v6630 = vunpack.c.l.b16 %v6079
          %v6631 = vunpack.c.l.b16 %v6080
          %v6632 = vunpack.c.l.b16 %v6081
          %v6633 = vunpack.c.l.b16 %v6082
          %v6634 = vunpack.c.l.b16 %v6083
          %v6635 = vunpack.c.l.b16 %v6084
          %v6636 = vunpack.c.l.b16 %v6085
          %v6637 = vunpack.c.l.b16 %v6086
          %v6638 = vunpack.c.l.b16 %v6087
          %v6639 = vunpack.c.l.b16 %v6088
          %v6640 = vunpack.c.l.b16 %v6089
          %v6641 = vunpack.c.l.b16 %v6090
          %v6642 = vunpack.c.l.b16 %v6091
          %v6643 = vunpack.c.l.b16 %v6092
          %v6644 = vunpack.c.l.b16 %v6093
          %v6645 = vunpack.c.l.b16 %v6094
          %v6646 = vunpack.c.l.b16 %v6095
          %v6647 = vunpack.c.l.b16 %v6096
          %v6648 = vunpack.c.l.b16 %v6097
          %v6649 = vunpack.c.l.b16 %v6098
          %v6650 = vunpack.c.l.b16 %v6099
          %v6651 = vunpack.c.l.b16 %v6100
          %v6652 = vunpack.c.l.b16 %v6101
          %v6653 = vunpack.c.l.b16 %v6102
          %v6654 = vunpack.c.l.b16 %v6103
          %v6655 = vunpack.c.l.b16 %v6104
          %v6656 = vunpack.c.l.b16 %v6105
          %v6657 = vunpack.c.l.b16 %v6106
          %v6658 = vunpack.c.l.b16 %v6107
          %v6659 = vunpack.c.l.b16 %v6108
          %v6660 = vunpack.c.l.b16 %v6109
          %v6661 = vunpack.c.l.b16 %v6110
          %v6662 = vunpack.c.l.b16 %v6111
          %v6663 = vunpack.c.l.b16 %v6112
          %v6664 = vunpack.c.l.b16 %v6113
          %v6665 = vunpack.c.l.b16 %v6114
          %v6666 = vunpack.c.l.b16 %v6115
          %v6667 = vunpack.c.l.b16 %v6116
          %v6668 = vunpack.c.l.b16 %v6117
          %v6669 = vunpack.c.l.b16 %v6118
          %v6670 = vunpack.c.l.b16 %v6119
          %v6671 = vunpack.c.l.b16 %v6120
          %v6672 = vunpack.c.l.b16 %v6121
          %v6673 = vunpack.c.l.b16 %v6122
          %v6674 = vunpack.c.l.b16 %v6123
          %v6675 = vunpack.c.l.b16 %v6124
          %v6676 = vunpack.c.l.b16 %v6125
          %v6677 = vunpack.c.l.b16 %v6126
          %v6678 = vunpack.c.l.b16 %v6127
          %v6679 = vunpack.c.l.b16 %v6128
          %v6680 = vunpack.c.l.b16 %v6129
          %v6681 = vunpack.c.l.b16 %v6130
          %v6682 = vunpack.c.l.b16 %v6131
          %v6683 = vunpack.c.l.b16 %v6132
          %v6684 = vunpack.c.l.b16 %v6133
          %v6685 = vunpack.c.l.b16 %v6134
          %v6686 = vunpack.c.l.b16 %v6135
          %v6687 = vunpack.c.l.b16 %v6136
          %v6688 = vunpack.c.l.b16 %v6137
          %v6689 = vunpack.c.l.b16 %v6138
          %v6690 = vunpack.c.l.b16 %v6139
          %v6691 = vunpack.c.l.b16 %v6140
          %v6692 = vunpack.c.l.b16 %v6141
          %v6693 = vunpack.c.l.b16 %v6142
          %v6694 = vunpack.c.l.b16 %v6143
          %v6695 = vunpack.c.l.b16 %v6144
          %v6696 = vunpack.c.l.b16 %v6145
          %v6697 = vunpack.c.l.b16 %v6146
          %v6698 = vunpack.c.l.b16 %v6147
          %v6699 = vunpack.c.l.b16 %v6148
          %v6700 = vunpack.c.l.b16 %v6149
          %v6701 = vunpack.c.l.b16 %v6150
          %v6702 = vunpack.c.l.b16 %v6151
          %v6703 = vunpack.c.l.b16 %v6152
          %v6704 = vunpack.c.l.b16 %v6153
          %v6705 = vunpack.c.l.b16 %v6154
          %v6706 = vunpack.c.l.b16 %v6155
          %v6707 = vunpack.c.l.b16 %v6156
          %v6708 = vunpack.c.l.b16 %v6157
          %v6709 = vunpack.c.l.b16 %v6158
          %v6710 = vunpack.c.l.b16 %v6159
          %v6711 = vunpack.c.l.b16 %v6160
          %v6712 = vunpack.c.l.b16 %v6161
          %v6713 = vunpack.c.l.b16 %v6162
          %v6714 = vunpack.c.l.b16 %v6163
          %v6715 = vunpack.c.l.b16 %v6164
          %v6716 = vunpack.c.l.b16 %v6165
          %v6717 = vunpack.c.l.b16 %v6166
          %v6718 = vpack.c.b16 %v6463, %v6462
          %v6719 = vpack.c.b16 %v6465, %v6464
          %v6720 = vpack.c.b16 %v6467, %v6466
          %v6721 = vpack.c.b16 %v6469, %v6468
          %v6722 = vpack.c.b16 %v6471, %v6470
          %v6723 = vpack.c.b16 %v6473, %v6472
          %v6724 = vpack.c.b16 %v6475, %v6474
          %v6725 = vpack.c.b16 %v6477, %v6476
          %v6726 = vpack.c.b16 %v6479, %v6478
          %v6727 = vpack.c.b16 %v6481, %v6480
          %v6728 = vpack.c.b16 %v6483, %v6482
          %v6729 = vpack.c.b16 %v6485, %v6484
          %v6730 = vpack.c.b16 %v6487, %v6486
          %v6731 = vpack.c.b16 %v6489, %v6488
          %v6732 = vpack.c.b16 %v6491, %v6490
          %v6733 = vpack.c.b16 %v6493, %v6492
          %v6734 = vpack.c.b16 %v6495, %v6494
          %v6735 = vpack.c.b16 %v6497, %v6496
          %v6736 = vpack.c.b16 %v6499, %v6498
          %v6737 = vpack.c.b16 %v6501, %v6500
          %v6738 = vpack.c.b16 %v6503, %v6502
          %v6739 = vpack.c.b16 %v6505, %v6504
          %v6740 = vpack.c.b16 %v6507, %v6506
          %v6741 = vpack.c.b16 %v6509, %v6508
          %v6742 = vpack.c.b16 %v6511, %v6510
          %v6743 = vpack.c.b16 %v6513, %v6512
          %v6744 = vpack.c.b16 %v6515, %v6514
          %v6745 = vpack.c.b16 %v6517, %v6516
          %v6746 = vpack.c.b16 %v6519, %v6518
          %v6747 = vpack.c.b16 %v6521, %v6520
          %v6748 = vpack.c.b16 %v6523, %v6522
          %v6749 = vpack.c.b16 %v6525, %v6524
          %v6750 = vpack.c.b16 %v6527, %v6526
          %v6751 = vpack.c.b16 %v6529, %v6528
          %v6752 = vpack.c.b16 %v6531, %v6530
          %v6753 = vpack.c.b16 %v6533, %v6532
          %v6754 = vpack.c.b16 %v6535, %v6534
          %v6755 = vpack.c.b16 %v6537, %v6536
          %v6756 = vpack.c.b16 %v6539, %v6538
          %v6757 = vpack.c.b16 %v6541, %v6540
          %v6758 = vpack.c.b16 %v6543, %v6542
          %v6759 = vpack.c.b16 %v6545, %v6544
          %v6760 = vpack.c.b16 %v6547, %v6546
          %v6761 = vpack.c.b16 %v6549, %v6548
          %v6762 = vpack.c.b16 %v6551, %v6550
          %v6763 = vpack.c.b16 %v6553, %v6552
          %v6764 = vpack.c.b16 %v6555, %v6554
          %v6765 = vpack.c.b16 %v6557, %v6556
          %v6766 = vpack.c.b16 %v6559, %v6558
          %v6767 = vpack.c.b16 %v6561, %v6560
          %v6768 = vpack.c.b16 %v6563, %v6562
          %v6769 = vpack.c.b16 %v6565, %v6564
          %v6770 = vpack.c.b16 %v6567, %v6566
          %v6771 = vpack.c.b16 %v6569, %v6568
          %v6772 = vpack.c.b16 %v6571, %v6570
          %v6773 = vpack.c.b16 %v6573, %v6572
          %v6774 = vpack.c.b16 %v6575, %v6574
          %v6775 = vpack.c.b16 %v6577, %v6576
          %v6776 = vpack.c.b16 %v6579, %v6578
          %v6777 = vpack.c.b16 %v6581, %v6580
          %v6778 = vpack.c.b16 %v6583, %v6582
          %v6779 = vpack.c.b16 %v6585, %v6584
          %v6780 = vpack.c.b16 %v6587, %v6586
          %v6781 = vpack.c.b16 %v6589, %v6588
          %v6782 = vpack.c.b16 %v6591, %v6590
          %v6783 = vpack.c.b16 %v6593, %v6592
          %v6784 = vpack.c.b16 %v6595, %v6594
          %v6785 = vpack.c.b16 %v6597, %v6596
          %v6786 = vpack.c.b16 %v6599, %v6598
          %v6787 = vpack.c.b16 %v6601, %v6600
          %v6788 = vpack.c.b16 %v6603, %v6602
          %v6789 = vpack.c.b16 %v6605, %v6604
          %v6790 = vpack.c.b16 %v6607, %v6606
          %v6791 = vpack.c.b16 %v6609, %v6608
          %v6792 = vpack.c.b16 %v6611, %v6610
          %v6793 = vpack.c.b16 %v6613, %v6612
          %v6794 = vpack.c.b16 %v6615, %v6614
          %v6795 = vpack.c.b16 %v6617, %v6616
          %v6796 = vpack.c.b16 %v6619, %v6618
          %v6797 = vpack.c.b16 %v6621, %v6620
          %v6798 = vpack.c.b16 %v6623, %v6622
          %v6799 = vpack.c.b16 %v6625, %v6624
          %v6800 = vpack.c.b16 %v6627, %v6626
          %v6801 = vpack.c.b16 %v6629, %v6628
          %v6802 = vpack.c.b16 %v6631, %v6630
          %v6803 = vpack.c.b16 %v6633, %v6632
          %v6804 = vpack.c.b16 %v6635, %v6634
          %v6805 = vpack.c.b16 %v6637, %v6636
          %v6806 = vpack.c.b16 %v6639, %v6638
          %v6807 = vpack.c.b16 %v6641, %v6640
          %v6808 = vpack.c.b16 %v6643, %v6642
          %v6809 = vpack.c.b16 %v6645, %v6644
          %v6810 = vpack.c.b16 %v6647, %v6646
          %v6811 = vpack.c.b16 %v6649, %v6648
          %v6812 = vpack.c.b16 %v6651, %v6650
          %v6813 = vpack.c.b16 %v6653, %v6652
          %v6814 = vpack.c.b16 %v6655, %v6654
          %v6815 = vpack.c.b16 %v6657, %v6656
          %v6816 = vpack.c.b16 %v6659, %v6658
          %v6817 = vpack.c.b16 %v6661, %v6660
          %v6818 = vpack.c.b16 %v6663, %v6662
          %v6819 = vpack.c.b16 %v6665, %v6664
          %v6820 = vpack.c.b16 %v6667, %v6666
          %v6821 = vpack.c.b16 %v6669, %v6668
          %v6822 = vpack.c.b16 %v6671, %v6670
          %v6823 = vpack.c.b16 %v6673, %v6672
          %v6824 = vpack.c.b16 %v6675, %v6674
          %v6825 = vpack.c.b16 %v6677, %v6676
          %v6826 = vpack.c.b16 %v6679, %v6678
          %v6827 = vpack.c.b16 %v6681, %v6680
          %v6828 = vpack.c.b16 %v6683, %v6682
          %v6829 = vpack.c.b16 %v6685, %v6684
          %v6830 = vpack.c.b16 %v6687, %v6686
          %v6831 = vpack.c.b16 %v6689, %v6688
          %v6832 = vpack.c.b16 %v6691, %v6690
          %v6833 = vpack.c.b16 %v6693, %v6692
          %v6834 = vpack.c.b16 %v6695, %v6694
          %v6835 = vpack.c.b16 %v6697, %v6696
          %v6836 = vpack.c.b16 %v6699, %v6698
          %v6837 = vpack.c.b16 %v6701, %v6700
          %v6838 = vpack.c.b16 %v6703, %v6702
          %v6839 = vpack.c.b16 %v6705, %v6704
          %v6840 = vpack.c.b16 %v6707, %v6706
          %v6841 = vpack.c.b16 %v6709, %v6708
          %v6842 = vpack.c.b16 %v6711, %v6710
          %v6843 = vpack.c.b16 %v6713, %v6712
          %v6844 = vpack.c.b16 %v6715, %v6714
          %v6845 = vpack.c.b16 %v6717, %v6716
          %6974 = vmatpush.bf16.msra.mxu0 %v6725
          %6975 = vmatpush.bf16.msra.mxu0 %v6724
          %6976 = vmatpush.bf16.msra.mxu0 %v6723
          %6977 = vmatpush.bf16.msra.mxu0 %v6722
          %6978 = vmatpush.bf16.msra.mxu0 %v6721
          %6979 = vmatpush.bf16.msra.mxu0 %v6720
          %6980 = vmatpush.bf16.msra.mxu0 %v6719
          %6981 = vmatpush.bf16.msra.mxu0 %v6718
          %6982 = vmatmul.bf16.gmra.mxu0 %v6187
          %v6983 = vpop.f32.mrf.mxu0
          %v6984 = vadd.f32 %v6204, %v6983
          %v6985 = vpop.f32.mrf.mxu0
          %6986 = vdwg.mxu0
          %6987 = vmatpush.bf16.msra.mxu0 %v6733
          %6988 = vmatpush.bf16.msra.mxu0 %v6732
          %6989 = vmatpush.bf16.msra.mxu0 %v6731
          %6990 = vmatpush.bf16.msra.mxu0 %v6730
          %6991 = vmatpush.bf16.msra.mxu0 %v6729
          %6992 = vmatpush.bf16.msra.mxu0 %v6728
          %6993 = vmatpush.bf16.msra.mxu0 %v6727
          %6994 = vmatpush.bf16.msra.mxu0 %v6726
          %6995 = vmatmul.bf16.gmra.mxu0 %v6188
          %v6996 = vpop.f32.mrf.mxu0
          %v6997 = vadd.f32 %v6984, %v6996
          %v6998 = vpop.f32.mrf.mxu0
          %6999 = vdwg.mxu0
          %7000 = vmatpush.bf16.msra.mxu0 %v6741
          %7001 = vmatpush.bf16.msra.mxu0 %v6740
          %7002 = vmatpush.bf16.msra.mxu0 %v6739
          %7003 = vmatpush.bf16.msra.mxu0 %v6738
          %7004 = vmatpush.bf16.msra.mxu0 %v6737
          %7005 = vmatpush.bf16.msra.mxu0 %v6736
          %7006 = vmatpush.bf16.msra.mxu0 %v6735
          %7007 = vmatpush.bf16.msra.mxu0 %v6734
          %7008 = vmatmul.bf16.gmra.mxu0 %v6189
          %v7009 = vpop.f32.mrf.mxu0
          %v7010 = vadd.f32 %v6997, %v7009
          %v7011 = vpop.f32.mrf.mxu0
          %7012 = vdwg.mxu0
          %7013 = vmatpush.bf16.msra.mxu0 %v6749
          %7014 = vmatpush.bf16.msra.mxu0 %v6748
          %7015 = vmatpush.bf16.msra.mxu0 %v6747
          %7016 = vmatpush.bf16.msra.mxu0 %v6746
          %7017 = vmatpush.bf16.msra.mxu0 %v6745
          %7018 = vmatpush.bf16.msra.mxu0 %v6744
          %7019 = vmatpush.bf16.msra.mxu0 %v6743
          %7020 = vmatpush.bf16.msra.mxu0 %v6742
          %7021 = vmatmul.bf16.gmra.mxu0 %v6190
          %v7022 = vpop.f32.mrf.mxu0
          %v7023 = vadd.f32 %v7010, %v7022
          %v7024 = vpop.f32.mrf.mxu0
          %7025 = vdwg.mxu0
          %7026 = vmatpush.bf16.msra.mxu0 %v6757
          %7027 = vmatpush.bf16.msra.mxu0 %v6756
          %7028 = vmatpush.bf16.msra.mxu0 %v6755
          %7029 = vmatpush.bf16.msra.mxu0 %v6754
          %7030 = vmatpush.bf16.msra.mxu0 %v6753
          %7031 = vmatpush.bf16.msra.mxu0 %v6752
          %7032 = vmatpush.bf16.msra.mxu0 %v6751
          %7033 = vmatpush.bf16.msra.mxu0 %v6750
          %7034 = vmatmul.bf16.gmra.mxu0 %v6191
          %v7035 = vpop.f32.mrf.mxu0
          %v7036 = vadd.f32 %v7023, %v7035
          %v7037 = vpop.f32.mrf.mxu0
          %7038 = vdwg.mxu0
          %7039 = vmatpush.bf16.msra.mxu0 %v6765
          %7040 = vmatpush.bf16.msra.mxu0 %v6764
          %7041 = vmatpush.bf16.msra.mxu0 %v6763
          %7042 = vmatpush.bf16.msra.mxu0 %v6762
          %7043 = vmatpush.bf16.msra.mxu0 %v6761
          %7044 = vmatpush.bf16.msra.mxu0 %v6760
          %7045 = vmatpush.bf16.msra.mxu0 %v6759
          %7046 = vmatpush.bf16.msra.mxu0 %v6758
          %7047 = vmatmul.bf16.gmra.mxu0 %v6192
          %v7048 = vpop.f32.mrf.mxu0
          %v7049 = vadd.f32 %v7036, %v7048
          %v7050 = vpop.f32.mrf.mxu0
          %7051 = vdwg.mxu0
          %7052 = vmatpush.bf16.msra.mxu0 %v6773
          %7053 = vmatpush.bf16.msra.mxu0 %v6772
          %7054 = vmatpush.bf16.msra.mxu0 %v6771
          %7055 = vmatpush.bf16.msra.mxu0 %v6770
          %7056 = vmatpush.bf16.msra.mxu0 %v6769
          %7057 = vmatpush.bf16.msra.mxu0 %v6768
          %7058 = vmatpush.bf16.msra.mxu0 %v6767
          %7059 = vmatpush.bf16.msra.mxu0 %v6766
          %7060 = vmatmul.bf16.gmra.mxu0 %v6193
          %v7061 = vpop.f32.mrf.mxu0
          %v7062 = vadd.f32 %v7049, %v7061
          %v7063 = vpop.f32.mrf.mxu0
          %7064 = vdwg.mxu0
          %7065 = vmatpush.bf16.msra.mxu0 %v6781
          %7066 = vmatpush.bf16.msra.mxu0 %v6780
          %7067 = vmatpush.bf16.msra.mxu0 %v6779
          %7068 = vmatpush.bf16.msra.mxu0 %v6778
          %7069 = vmatpush.bf16.msra.mxu0 %v6777
          %7070 = vmatpush.bf16.msra.mxu0 %v6776
          %7071 = vmatpush.bf16.msra.mxu0 %v6775
          %7072 = vmatpush.bf16.msra.mxu0 %v6774
          %7073 = vmatmul.bf16.gmra.mxu0 %v6194
          %v7074 = vpop.f32.mrf.mxu0
          %v7075 = vadd.f32 %v7062, %v7074
          %v7076 = vpop.f32.mrf.mxu0
          %7077 = vdwg.mxu0
          %7078 = vmatpush.bf16.msra.mxu0 %v6789
          %7079 = vmatpush.bf16.msra.mxu0 %v6788
          %7080 = vmatpush.bf16.msra.mxu0 %v6787
          %7081 = vmatpush.bf16.msra.mxu0 %v6786
          %7082 = vmatpush.bf16.msra.mxu0 %v6785
          %7083 = vmatpush.bf16.msra.mxu0 %v6784
          %7084 = vmatpush.bf16.msra.mxu0 %v6783
          %7085 = vmatpush.bf16.msra.mxu0 %v6782
          %7086 = vmatmul.bf16.gmra.mxu0 %v6195
          %v7087 = vpop.f32.mrf.mxu0
          %v7088 = vadd.f32 %v7075, %v7087
          %v7089 = vpop.f32.mrf.mxu0
          %7090 = vdwg.mxu0
          %7091 = vmatpush.bf16.msra.mxu0 %v6797
          %7092 = vmatpush.bf16.msra.mxu0 %v6796
          %7093 = vmatpush.bf16.msra.mxu0 %v6795
          %7094 = vmatpush.bf16.msra.mxu0 %v6794
          %7095 = vmatpush.bf16.msra.mxu0 %v6793
          %7096 = vmatpush.bf16.msra.mxu0 %v6792
          %7097 = vmatpush.bf16.msra.mxu0 %v6791
          %7098 = vmatpush.bf16.msra.mxu0 %v6790
          %7099 = vmatmul.bf16.gmra.mxu0 %v6196
          %v7100 = vpop.f32.mrf.mxu0
          %v7101 = vadd.f32 %v7088, %v7100
          %v7102 = vpop.f32.mrf.mxu0
          %7103 = vdwg.mxu0
          %7104 = vmatpush.bf16.msra.mxu0 %v6805
          %7105 = vmatpush.bf16.msra.mxu0 %v6804
          %7106 = vmatpush.bf16.msra.mxu0 %v6803
          %7107 = vmatpush.bf16.msra.mxu0 %v6802
          %7108 = vmatpush.bf16.msra.mxu0 %v6801
          %7109 = vmatpush.bf16.msra.mxu0 %v6800
          %7110 = vmatpush.bf16.msra.mxu0 %v6799
          %7111 = vmatpush.bf16.msra.mxu0 %v6798
          %7112 = vmatmul.bf16.gmra.mxu0 %v6197
          %v7113 = vpop.f32.mrf.mxu0
          %v7114 = vadd.f32 %v7101, %v7113
          %v7115 = vpop.f32.mrf.mxu0
          %7116 = vdwg.mxu0
          %7117 = vmatpush.bf16.msra.mxu0 %v6813
          %7118 = vmatpush.bf16.msra.mxu0 %v6812
          %7119 = vmatpush.bf16.msra.mxu0 %v6811
          %7120 = vmatpush.bf16.msra.mxu0 %v6810
          %7121 = vmatpush.bf16.msra.mxu0 %v6809
          %7122 = vmatpush.bf16.msra.mxu0 %v6808
          %7123 = vmatpush.bf16.msra.mxu0 %v6807
          %7124 = vmatpush.bf16.msra.mxu0 %v6806
          %7125 = vmatmul.bf16.gmra.mxu0 %v6198
          %v7126 = vpop.f32.mrf.mxu0
          %v7127 = vadd.f32 %v7114, %v7126
          %v7128 = vpop.f32.mrf.mxu0
          %7129 = vdwg.mxu0
          %7130 = vmatpush.bf16.msra.mxu0 %v6821
          %7131 = vmatpush.bf16.msra.mxu0 %v6820
          %7132 = vmatpush.bf16.msra.mxu0 %v6819
          %7133 = vmatpush.bf16.msra.mxu0 %v6818
          %7134 = vmatpush.bf16.msra.mxu0 %v6817
          %7135 = vmatpush.bf16.msra.mxu0 %v6816
          %7136 = vmatpush.bf16.msra.mxu0 %v6815
          %7137 = vmatpush.bf16.msra.mxu0 %v6814
          %7138 = vmatmul.bf16.gmra.mxu0 %v6199
          %v7139 = vpop.f32.mrf.mxu0
          %v7140 = vadd.f32 %v7127, %v7139
          %v7141 = vpop.f32.mrf.mxu0
          %7142 = vdwg.mxu0
          %7143 = vmatpush.bf16.msra.mxu0 %v6829
          %7144 = vmatpush.bf16.msra.mxu0 %v6828
          %7145 = vmatpush.bf16.msra.mxu0 %v6827
          %7146 = vmatpush.bf16.msra.mxu0 %v6826
          %7147 = vmatpush.bf16.msra.mxu0 %v6825
          %7148 = vmatpush.bf16.msra.mxu0 %v6824
          %7149 = vmatpush.bf16.msra.mxu0 %v6823
          %7150 = vmatpush.bf16.msra.mxu0 %v6822
          %7151 = vmatmul.bf16.gmra.mxu0 %v6200
          %v7152 = vpop.f32.mrf.mxu0
          %v7153 = vadd.f32 %v7140, %v7152
          %v7154 = vpop.f32.mrf.mxu0
          %7155 = vdwg.mxu0
          %7156 = vmatpush.bf16.msra.mxu0 %v6837
          %7157 = vmatpush.bf16.msra.mxu0 %v6836
          %7158 = vmatpush.bf16.msra.mxu0 %v6835
          %7159 = vmatpush.bf16.msra.mxu0 %v6834
          %7160 = vmatpush.bf16.msra.mxu0 %v6833
          %7161 = vmatpush.bf16.msra.mxu0 %v6832
          %7162 = vmatpush.bf16.msra.mxu0 %v6831
          %7163 = vmatpush.bf16.msra.mxu0 %v6830
          %7164 = vmatmul.bf16.gmra.mxu0 %v6201
          %v7165 = vpop.f32.mrf.mxu0
          %v7166 = vadd.f32 %v7153, %v7165
          %v7167 = vpop.f32.mrf.mxu0
          %7168 = vdwg.mxu0
          %7169 = vmatpush.bf16.msra.mxu0 %v6845
          %7170 = vmatpush.bf16.msra.mxu0 %v6844
          %7171 = vmatpush.bf16.msra.mxu0 %v6843
          %7172 = vmatpush.bf16.msra.mxu0 %v6842
          %7173 = vmatpush.bf16.msra.mxu0 %v6841
          %7174 = vmatpush.bf16.msra.mxu0 %v6840
          %7175 = vmatpush.bf16.msra.mxu0 %v6839
          %7176 = vmatpush.bf16.msra.mxu0 %v6838
          %7177 = vmatmul.bf16.gmra.mxu0 %v6202
          %v7178 = vpop.f32.mrf.mxu0
          %v7179 = vadd.f32 %v7166, %v7178
          %v7180 = vpop.f32.mrf.mxu0
          %7181 = vdwg.mxu0
          %v7182 = vmax.f32 %v7179, 0.0
          %v7183 = vlaneseq
          %v7184 = vshrl.u32 %v7183, 7
          %vm7185 = vcmp.lt.s32.totalorder %v7184, 2
          %v7186 = vsel %vm7185, 1, 0
          %v7187 = vcvt.s32.f32 %v7186
          %v7188 = vmul.f32 %v7182, %v7187
          %v7189 = vrot.slane %v7188, 4
          %v7190 = vadd.f32 %v7188, %v7189
          %v7191 = vrot.slane %v7190, 2
          %v7192 = vadd.f32 %v7190, %v7191
          %v7193 = vrot.slane %v7192, 1
          %v7194 = vadd.f32 %v7192, %v7193
          %v7195 = vmul.f32 %v7194, 0.5
          %v7196 = vsub.f32 %v7182, %v7195
          %v7197 = vmul.f32 %v7196, %v7196
          %v7198 = vmul.f32 %v7197, %v7187
          %v7199 = vrot.slane %v7198, 4
          %v7200 = vadd.f32 %v7198, %v7199
          %v7201 = vrot.slane %v7200, 2
          %v7202 = vadd.f32 %v7200, %v7201
          %v7203 = vrot.slane %v7202, 1
          %v7204 = vadd.f32 %v7202, %v7203
          %v7205 = vmul.f32 %v7204, 0.5
          %v7206 = vadd.f32 %v7205, 1e-05
          %v7207 = vrsqrt.pop %v7206
          %v7208 = vmul.f32 %v7207, %v7206
          %v7209 = vmul.f32 %v7208, %v7207
          %v7210 = vmul.f32 0.5, %v7209
          %v7211 = vsub.f32 1.5, %v7210
          %v7212 = vmul.f32 %v7207, %v7211
          %vm7213 = vweird.f32 %v7206
          %vm7214 = vweird.f32 %v7207
          %vm7215 = vmor %vm7213, %vm7214
          %v7216 = vsel %vm7215, %v7207, %v7212
          %v7217 = vmul.f32 %v7196, %v7216
          %v7219 = vperm.slane %v6168, 0
          %v7221 = vmul.f32 %v7217, %v7219
          %v7223 = vperm.slane %v6169, 0
          %v7225 = vadd.f32 %v7221, %v7223
          %v7227 = vperm.slane %v6186, 0
          %7229 = vmatpush.msra.mxu0 %v6185
          %7230 = vmatpush.msra.mxu0 %v6184
          %7231 = vmatpush.msra.mxu0 %v6183
          %7232 = vmatpush.msra.mxu0 %v6182
          %7233 = vmatpush.msra.mxu0 %v6181
          %7234 = vmatpush.msra.mxu0 %v6180
          %7235 = vmatpush.msra.mxu0 %v6179
          %7236 = vmatpush.msra.mxu0 %v6178
          %7237 = vmatpush.msra.mxu0 %v6177
          %7238 = vmatpush.msra.mxu0 %v6176
          %7239 = vmatpush.msra.mxu0 %v6175
          %7240 = vmatpush.msra.mxu0 %v6174
          %7241 = vmatpush.msra.mxu0 %v6173
          %7242 = vmatpush.msra.mxu0 %v6172
          %7243 = vmatpush.msra.mxu0 %v6171
          %7244 = vmatpush.msra.mxu0 %v6170
          %7245 = vmatmul.f32.gmra.mxu0 %v7225
          %v7246 = vpop.f32.mrf.mxu0
          %v7247 = vadd.f32 %v7227, %v7246
          %7248 = vdwg.mxu0
          %v7249 = vmul.f32 %v7247, %v7247
          %7250 = vadd.xlane.f32.xlu0 %v7249
          %v7251 = vpop.xlane.xlu0 %7250
          %v7252 = vadd.f32 %v7251, 1e-12
          %v7253 = vrsqrt.pop %v7252
          %v7254 = vmul.f32 %v7253, %v7252
          %v7255 = vmul.f32 %v7254, %v7253
          %v7256 = vmul.f32 0.5, %v7255
          %v7257 = vsub.f32 1.5, %v7256
          %v7258 = vmul.f32 %v7253, %v7257
          %vm7259 = vweird.f32 %v7252
          %vm7260 = vweird.f32 %v7253
          %vm7261 = vmor %vm7259, %vm7260
          %v7262 = vsel %vm7261, %v7253, %v7258
          %v7263 = vmul.f32 %v7247, %v7262
          %7264 = vst [vmem:[%s10] sm:$0xff] %v7263
        $region100: #{image_text_matching_forward.2} parent=59 // pred_fallthru
          _
        // Predicated region
        $region101: #{image_text_matching_forward.2} parent=59 // pred_check
          %p7265 = pneg %p254
        $region102: #{image_text_matching_forward.2} parent=59 // pred_check_branch
          %7267 = sbr.rel (%p7265) target = $region104
        $region103: #{image_text_matching_forward.2} parent=59 // pred_region
          _
        $region104: #{image_text_matching_forward.2} parent=59 // pred_fallthru
          _
        // Predicated region
        $region105: #{image_text_matching_forward.2} parent=59 // pred_check
          %p7268 = pneg %p254
        $region106: #{image_text_matching_forward.2} parent=59 // pred_check_branch
          %7270 = sbr.rel (%p7268) target = $region108
        $region107: #{image_text_matching_forward.2} parent=59 // pred_region
          _
        $region108: #{image_text_matching_forward.2} parent=59 // pred_fallthru
          _
      $region60: #{image_text_matching_forward.2} parent=5 // pred_fallthru
        _
      %p7271 = scmp.le.s32.totalorder 2, %s21
      // Predicated region
      $region109: #{image_text_matching_forward.2} parent=5 // pred_check
        %p7272 = pneg %p7271
      $region110: #{image_text_matching_forward.2} parent=5 // pred_check_branch
        %7274 = sbr.rel (%p7272) target = $region112
      $region111: #{image_text_matching_forward.2} parent=5 // pred_region
        %s7275 = ssub.s32 %s21, 2
      $region112: #{image_text_matching_forward.2} parent=5 // pred_fallthru
        _
    $region6: #{image_text_matching_forward.2} parent=1 // loop_footer
      %s25 = sadd.s32 1, %s21
    $region7: #{image_text_matching_forward.2} parent=1 // loop_footer_branch
      %20 = sbr.rel target = $region3
    $region8: #{image_text_matching_forward.2} parent=1 // loop_exit
      _
    %7276 = vsyncpa [#allocation4], 1
    %s7277 = scalar_lea.sflag [#allocation4], 1
    %7278 = vsyncpa %s7277, 1
    %7279 = vsyncpa [#allocation6], 1
    %7280 = vsyncpa [#allocation9], 1
    %7281 = vsyncpa [#allocation12], 1
    %7282 = vsyncpa [#allocation15], 1

</llo_original>
